<compile_context>
chip_gen: v5e
topology: v5e:2x2
jax: 0.10.0
libtpu: 0.0.40
codegen_flags: <defaults>
</compile_context>

<pallas_src>
import functools

import jax
import jax.numpy as jnp
from jax.experimental import pallas as pl
from jax.experimental.pallas import tpu as pltpu

_EPS = 1e-5


# ----------------------------------------------------------------------------
# Pallas kernels
# ----------------------------------------------------------------------------
def _matmul_affine_kernel(a_ref, w_ref, ss_ref, *rest, relu):
    """o = maybe_relu((a @ w) * scale + shift [+ zero-extended shortcut]).

    a_ref : (tm, K) bf16        w_ref : (K, N) bf16 (grid-invariant)
    ss_ref: (2, N) f32 packed [scale; shift]
    rest  : [sc_ref (tm, sc_c) bf16,]  o_ref (tm, N)
    Residual is added in f32 *before* the single bf16 cast.
    """
    o_ref = rest[-1]
    acc = jnp.dot(a_ref[...], w_ref[...], preferred_element_type=jnp.float32)
    y = acc * ss_ref[0:1, :] + ss_ref[1:2, :]
    if len(rest) == 2:                                   # fused residual add
        sc = rest[0][...].astype(jnp.float32)
        pad_c = y.shape[-1] - sc.shape[-1]
        if pad_c:
            sc = jnp.concatenate(
                [sc, jnp.zeros((sc.shape[0], pad_c), jnp.float32)], axis=-1)
        y = y + sc
    if relu:
        y = jnp.maximum(y, 0.0)
    o_ref[...] = y.astype(o_ref.dtype)


def _conv3x3_kernel(x_ref, w_ref, ss_ref, o_ref, *, stride, Ho, Wo, Cin, relu):
    """Direct 3x3 conv for one batch element: im2col in VMEM -> ONE MXU dot.

    stride 1: x_ref (1, H+2, W+2, Cin)
    stride 2: x_ref (1, H+2, (W+2)//2, 2*Cin)   (column pairs pre-folded into lanes
              by a free HBM reshape, so the phase split below uses no strided loads)
    w_ref : (9*Cin, Cout) bf16   -- grouped weights expanded block-diagonally
    ss_ref: (2, Cout) f32        -- fused post-BN (+bias) scale / shift
    o_ref : (1, Ho, Wo, Cout)    -- written directly in NHWC
    """
    taps = []
    if stride == 1:
        for i in range(3):
            for j in range(3):
                taps.append(x_ref[0, i:i + Ho, j:j + Wo, :])
    else:
        # (H+2, Wo+1, 2*Cin) -> (Ho+1, 2, Wo+1, 2*Cin): split of a leading dim only.
        xr = x_ref[0].reshape(Ho + 1, 2, Wo + 1, 2 * Cin)
        for i in range(3):
            for j in range(3):
                r_ph, r_off = i % 2, i // 2
                c_ph, c_off = j % 2, j // 2
                rows = xr[r_off:r_off + Ho, r_ph]              # (Ho, Wo+1, 2*Cin)
                taps.append(rows[:, c_off:c_off + Wo,
                                 c_ph * Cin:(c_ph + 1) * Cin])  # (Ho, Wo, Cin)
    # im2col-in-VMEM: one (Ho*Wo, 9*Cin) operand -> a single K=9*Cin MXU dot.
    a = jnp.concatenate(taps, axis=-1).reshape(Ho * Wo, 9 * Cin)
    acc = jnp.dot(a, w_ref[...], preferred_element_type=jnp.float32)
    y = acc * ss_ref[0:1, :] + ss_ref[1:2, :]
    if relu:
        y = jnp.maximum(y, 0.0)
    o_ref[0] = y.reshape(Ho, Wo, -1).astype(o_ref.dtype)


def _head_kernel(x_ref, ss_ref, w_ref, b_ref, o_ref):
    """Fused bn_final + ReLU + global-avg-pool + fc.  x_ref: (N, H*W, C)."""
    y = jnp.maximum(
        x_ref[...].astype(jnp.float32) * ss_ref[0:1, :] + ss_ref[1:2, :], 0.0)
    pooled = jnp.mean(y, axis=1)                                   # (N, C) f32
    o_ref[...] = jnp.dot(pooled.astype(jnp.bfloat16), w_ref[...],
                         preferred_element_type=jnp.float32) + b_ref[...]


# ----------------------------------------------------------------------------
# Wrappers
# ----------------------------------------------------------------------------
def _bn_affine(bn):
    s = bn["gamma"] / jnp.sqrt(bn["var"] + _EPS)
    t = bn["beta"] - bn["mean"] * s
    return s, t


def _multi_tc_chip():
    """True for chips with >1 TensorCore per device (v4/v5p megacore, v7x)."""
    try:
        kind = jax.devices()[0].device_kind.lower()
    except Exception:
        return False
    if "lite" in kind or "v5e" in kind or "v6e" in kind:
        return False
    return any(t in kind for t in ("v4", "v5p", "v7", "tpu7"))


def _pick_tile_m(M):
    """Largest 128-multiple tile dividing M.

    v5e/v6e (single TC): biggest tile wins (fewer ~0.35us grid steps, ~85% of HBM
    roofline at >=512).  Multi-TC chips: prefer the largest tile that still gives
    >=2 grid steps so both cores get work.  Returns None if M has no 128-multiple
    divisor; the caller pads M (no silent single-giant-step fallback anymore).
    """
    divs = [t for t in (1024, 512, 384, 256, 128) if M % t == 0]
    if not divs:
        return None
    if _multi_tc_chip():
        for t in divs:
            if M // t >= 2:
                return t
    return divs[0]


def matmul_affine(a, wmat, scale, shift, relu, shortcut=None,
                  out_dtype=jnp.bfloat16):
    """out = maybe_relu((a @ wmat) * scale + shift [+ shortcut]) as one tiled kernel."""
    M0, K = a.shape
    Nc = wmat.shape[1]
    tm = _pick_tile_m(M0)
    if tm is None:
        Mp = -(-M0 // 128) * 128
        a = jnp.pad(a, ((0, Mp - M0), (0, 0)))
        if shortcut is not None:
            shortcut = jnp.pad(shortcut, ((0, Mp - M0), (0, 0)))
        tm = _pick_tile_m(Mp)
    M = a.shape[0]

    ss = jnp.stack([scale, shift]).astype(jnp.float32)               # (2, Nc)
    in_specs = [
        pl.BlockSpec((tm, K), lambda i: (i, 0)),
        pl.BlockSpec((K, Nc), lambda i: (0, 0)),
        pl.BlockSpec((2, Nc), lambda i: (0, 0)),
    ]
    args = [a.astype(jnp.bfloat16), wmat.astype(jnp.bfloat16), ss]
    sc_bytes = 0
    if shortcut is not None:
        sc_c = shortcut.shape[1]
        in_specs.append(pl.BlockSpec((tm, sc_c), lambda i: (i, 0)))
        args.append(shortcut.astype(jnp.bfloat16))
        sc_bytes = M * sc_c * 2
    cost = pl.CostEstimate(
        flops=2 * M * Nc * K, transcendentals=0,
        bytes_accessed=M * K * 2 + K * Nc * 2 + 2 * Nc * 4 + sc_bytes + M * Nc * 2)
    out = pl.pallas_call(
        functools.partial(_matmul_affine_kernel, relu=relu),
        out_shape=jax.ShapeDtypeStruct((M, Nc), out_dtype),
        grid=(M // tm,),
        in_specs=in_specs,
        out_specs=pl.BlockSpec((tm, Nc), lambda i: (i, 0)),
        compiler_params=pltpu.CompilerParams(dimension_semantics=("parallel",)),
        cost_estimate=cost,
    )(*args)
    return out[:M0] if M != M0 else out


def conv1x1_fused(x, w, b, post_bn, relu, pre_bn=None, shortcut=None):
    """1x1 conv(+bias); optional preceding BN folded into weights; post-BN/ReLU and
    (optionally) the block's residual add fused into the matmul epilogue."""
    N, H, W, Cin = x.shape
    Cout = w.shape[0]
    wmat = w.reshape(Cout, Cin).T.astype(jnp.float32)                # (Cin, Cout)
    bias = b.astype(jnp.float32)
    if pre_bn is not None:                           # BN (no ReLU) before the conv
        s_in, t_in = _bn_affine(pre_bn)
        bias = bias + t_in @ wmat
        wmat = wmat * s_in[:, None]
    s_p, t_p = _bn_affine(post_bn)
    eff_scale = s_p
    eff_shift = s_p * bias + t_p
    sc = None
    if shortcut is not None:
        sc = shortcut.reshape(N * H * W, shortcut.shape[-1])
    out = matmul_affine(x.reshape(N * H * W, Cin), wmat, eff_scale, eff_shift,
                        relu, shortcut=sc)
    return out.reshape(N, H, W, Cout)


def _expand_grouped_weight(w, groups):
    """(Cout, Cin//G, 3, 3) grouped conv weight -> block-diagonal dense
    (9*Cin, Cout) matmul weight; K order = (ki*3+kj)*Cin + c (matches tap concat)."""
    Cout, Cg, kh, kw = w.shape
    G = groups
    Cin = Cg * G
    if G == 1:
        wd = w
    else:
        Co = Cout // G
        wg = w.reshape(G, Co, Cg, kh, kw)
        wd = jnp.zeros((G, Co, G, Cg, kh, kw), w.dtype)
        gi = jnp.arange(G)
        wd = wd.at[gi, :, gi].set(wg)
        wd = wd.reshape(Cout, Cin, kh, kw)
    return wd.transpose(2, 3, 1, 0).reshape(kh * kw * Cin, Cout)


def conv3x3_fused(x, w, b, post_bn, relu, stride=1, groups=1):
    """3x3 conv (padding=1, optional groups / stride 2) with fused post-BN/ReLU.

    One pallas grid step per image: im2col built in VMEM and contracted in a
    single MXU dot (K = 9*Cin).  Grouped convs use a block-diagonal dense weight
    (conv_groups is small, the net is memory-bound), which removes every HBM
    group-transpose / phase-stack relayout and lets the output be written
    directly in NHWC (no post-kernel transpose)."""
    N, H, W, Cin = x.shape
    Cout = w.shape[0]
    Ho = (H + 2 - 3) // stride + 1
    Wo = (W + 2 - 3) // stride + 1
    if b is None:
        b = jnp.zeros((Cout,), jnp.float32)
    s_p, t_p = _bn_affine(post_bn)
    ss = jnp.stack([s_p, s_p * b.astype(jnp.float32) + t_p]).astype(jnp.float32)
    wmat = _expand_grouped_weight(w.astype(jnp.float32), groups).astype(jnp.bfloat16)

    xp = jnp.pad(x.astype(jnp.bfloat16), ((0, 0), (1, 1), (1, 1), (0, 0)))
    if stride == 1:
        xin = xp                                            # (N, H+2, W+2, Cin)
    else:
        assert H % 2 == 0 and W % 2 == 0, "stride-2 path expects even spatial dims"
        # Fold column pairs into lanes: FREE row-major reshape in HBM; the in-kernel
        # stride-2 phase split then needs no strided loads and no HBM gather.
        xin = xp.reshape(N, H + 2, (W + 2) // 2, 2 * Cin)
    blk_in = (1,) + xin.shape[1:]

    cost = pl.CostEstimate(
        flops=2 * N * Ho * Wo * 9 * Cin * Cout, transcendentals=0,
        bytes_accessed=(xin.size * 2 + wmat.size * 2 + ss.size * 4
                        + N * Ho * Wo * Cout * 2))
    # TODO(synk): for large batch/spatial sizes add an output-row grid axis (with a
    # +2-row halo) and set vmem_limit_bytes for v7x's 64 MiB VMEM; at these shapes
    # each block is far below the 32 MiB scoped default on every generation.
    out = pl.pallas_call(
        functools.partial(_conv3x3_kernel, stride=stride, Ho=Ho, Wo=Wo,
                          Cin=Cin, relu=relu),
        out_shape=jax.ShapeDtypeStruct((N, Ho, Wo, Cout), jnp.bfloat16),
        grid=(N,),
        in_specs=[
            pl.BlockSpec(blk_in, lambda n: (n, 0, 0, 0)),
            pl.BlockSpec(wmat.shape, lambda n: (0, 0)),
            pl.BlockSpec((2, Cout), lambda n: (0, 0)),
        ],
        out_specs=pl.BlockSpec((1, Ho, Wo, Cout), lambda n: (n, 0, 0, 0)),
        compiler_params=pltpu.CompilerParams(dimension_semantics=("parallel",)),
        cost_estimate=cost,
    )(xin, wmat, ss)
    return out


def head_fused(x, bn, fc_w, fc_b):
    """bn_final + ReLU + AdaptiveAvgPool2d(1) + Linear in a single Pallas kernel."""
    N, H, W, C = x.shape
    ncls = fc_w.shape[1]
    s, t = _bn_affine(bn)
    ss = jnp.stack([s, t]).astype(jnp.float32)
    return pl.pallas_call(
        _head_kernel,
        out_shape=jax.ShapeDtypeStruct((N, ncls), jnp.float32),
    )(x.reshape(N, H * W, C), ss, fc_w.astype(jnp.bfloat16),
      fc_b.reshape(1, ncls).astype(jnp.float32))


def avgpool2x2_ceil(x):
    # nn.AvgPool2d((2,2), stride=(2,2), ceil_mode=True); spatial dims are even here
    # so ceil_mode is a no-op.  Mean in f32, tiny tensor, stays JAX glue.
    N, H, W, C = x.shape
    return (x.astype(jnp.float32).reshape(N, H // 2, 2, W // 2, 2, C)
            .mean(axis=(2, 4)).astype(x.dtype))


def bottleneck_block(x, bp, conv_groups):
    # bottle_in: its BN (no ReLU) folds into the 1x1 weights; epilogue fuses the
    # *cell's* BN + ReLU.
    y = conv1x1_fused(x, bp["bottle_in"]["w"], bp["bottle_in"]["b"],
                      post_bn=bp["cell"]["bn"], relu=True,
                      pre_bn=bp["bottle_in"]["bn"])
    # TODO(synk): `Slot` is a searchable ModNAS placeholder with no bound op here;
    # instantiated as the default grouped 3x3 GroupConv (BN + ReLU + conv).
    # cell 3x3: epilogue fuses bottle_out's BN + ReLU.
    y = conv3x3_fused(y, bp["cell"]["w"], bp["cell"]["b"],
                      post_bn=bp["bottle_out"]["bn"], relu=True,
                      stride=bp["stride"], groups=conv_groups)
    # bottle_out 1x1: epilogue fuses the block's final BN (no ReLU) and the f32
    # residual add (shortcut zero-extended over the leading channels in-kernel).
    shortcut = avgpool2x2_ceil(x) if bp["downsample"] else x
    y = conv1x1_fused(y, bp["bottle_out"]["w"], bp["bottle_out"]["b"],
                      post_bn=bp["bn"], relu=False, shortcut=shortcut)
    return y


def pyramidnet_forward(params, x_nchw):
    x = jnp.transpose(x_nchw.astype(jnp.float32), (0, 2, 3, 1)).astype(jnp.bfloat16)
    # conv1 (bias=False) with bn1 fused into its epilogue.
    x = conv3x3_fused(x, params["conv1_w"], None, post_bn=params["bn1"], relu=False,
                      stride=1, groups=1)
    for bp in params["blocks"]:
        x = bottleneck_block(x, bp, params["conv_groups"])
    return head_fused(x, params["bn_final"], params["fc_w"], params["fc_b"])


# ----------------------------------------------------------------------------
# Deterministic parameter construction (shapes follow PyramidNet.__init__)
# ----------------------------------------------------------------------------
class KeyGen:
    def __init__(self, key):
        self.key = key

    def __call__(self):
        self.key, k = jax.random.split(self.key)
        return k


def _init_conv_w(kg, cout, cin_g, kh, kw):
    return 0.1 * jax.random.normal(kg(), (cout, cin_g, kh, kw), dtype=jnp.float32)


def _init_bias(kg, c):
    return 0.1 * jax.random.normal(kg(), (c,), dtype=jnp.float32)


def _init_bn(kg, c):
    return {
        "gamma": 1.0 + 0.1 * jax.random.normal(kg(), (c,), dtype=jnp.float32),
        "beta": 0.1 * jax.random.normal(kg(), (c,), dtype=jnp.float32),
        "mean": 0.1 * jax.random.normal(kg(), (c,), dtype=jnp.float32),
        "var": 1.0 + 0.1 * jnp.abs(jax.random.normal(kg(), (c,), dtype=jnp.float32)),
    }


def build_pyramidnet_params(kg, chn_in=3, chn=16, n_classes=10, n_groups=2,
                            n_blocks=1, conv_groups=2, bottleneck_ratio=4, alpha=8.0):
    addrate = alpha / (n_groups * n_blocks * 1.0)
    chn_cur = float(chn)
    params = {
        "conv1_w": _init_conv_w(kg, chn, chn_in, 3, 3),  # bias=False
        "bn1": _init_bn(kg, chn),
        "blocks": [],
    }
    cur_in = chn
    for gi in range(n_groups):
        stride = 1 if gi == 0 else 2
        for bi in range(n_blocks):
            b_stride = stride if bi == 0 else 1
            chn_prev = int(round(cur_in))
            chn_next = int(round(chn_cur + addrate))
            chn_next -= chn_next % conv_groups
            bp = {
                "bottle_in": {"bn": _init_bn(kg, chn_prev),
                              "w": _init_conv_w(kg, chn_next, chn_prev, 1, 1),
                              "b": _init_bias(kg, chn_next)},
                "cell": {"bn": _init_bn(kg, chn_next),
                         "w": _init_conv_w(kg, chn_next, chn_next // conv_groups, 3, 3),
                         "b": _init_bias(kg, chn_next)},
                "bottle_out": {"bn": _init_bn(kg, chn_next),
                               "w": _init_conv_w(kg, chn_next * bottleneck_ratio,
                                                 chn_next, 1, 1),
                               "b": _init_bias(kg, chn_next * bottleneck_ratio)},
                "bn": _init_bn(kg, chn_next * bottleneck_ratio),
                "downsample": (stride != 1) and (bi == 0),
                "stride": b_stride,
            }
            params["blocks"].append(bp)
            chn_cur += addrate
            cur_in = chn_next * bottleneck_ratio
    chn_fin = int(chn_cur) * bottleneck_ratio
    params["bn_final"] = _init_bn(kg, chn_fin)
    params["fc_w"] = 0.1 * jax.random.normal(kg(), (chn_fin, n_classes), dtype=jnp.float32)
    params["fc_b"] = _init_bias(kg, n_classes)
    params["conv_groups"] = conv_groups
    return params


# ----------------------------------------------------------------------------
# Main
# ----------------------------------------------------------------------------
if __name__ == "__main__":
    key = jax.random.PRNGKey(0)
    kx, kp = jax.random.split(key)
    # Small config: chn_in=3, chn=16, n_classes=10, groups=2, blocks=1,
    # conv_groups=2, bottleneck_ratio=4, alpha=8
    x = jax.random.normal(kx, (2, 3, 16, 16), dtype=jnp.float32)
    params = build_pyramidnet_params(KeyGen(kp), chn_in=3, chn=16, n_classes=10,
                                     n_groups=2, n_blocks=1, conv_groups=2,
                                     bottleneck_ratio=4, alpha=8.0)
    fwd = jax.jit(lambda inp: pyramidnet_forward(params, inp))
    out = jax.block_until_ready(fwd(x))
    assert out.shape == (2, 10), out.shape
    assert bool(jnp.all(jnp.isfinite(out)))
    print("KERNEL_OK")
</pallas_src>

<mosaic_0001>
module attributes {stable_mosaic.version = 11 : i64} {
  func.func @_conv3x3_kernel(%arg0: i32, %arg1: memref<1x18x18x3xbf16, #tpu.memory_space<vmem>>, %arg2: memref<27x16xbf16, #tpu.memory_space<vmem>>, %arg3: memref<2x16xf32, #tpu.memory_space<vmem>>, %arg4: memref<1x16x16x16xbf16, #tpu.memory_space<vmem>>) attributes {dimension_semantics = [#tpu.dimension_semantics<parallel>], iteration_bounds = array<i64: 2>, scalar_prefetch = 0 : i64, scratch_operands = 0 : i64, tpu.core_type = #tpu.core_type<tc>, window_params = [{transform_indices = @transform_0, window_bounds = array<i64: 1, 18, 18, 3>}, {pipeline_mode = #tpu.pipeline_mode<synchronous>, transform_indices = @transform_1, window_bounds = array<i64: 27, 16>}, {pipeline_mode = #tpu.pipeline_mode<synchronous>, transform_indices = @transform_2, window_bounds = array<i64: 2, 16>}, {transform_indices = @transform_3, window_bounds = array<i64: 1, 16, 16, 16>}]} {
    %c0 = arith.constant 0 : index
    %c0_0 = arith.constant 0 : index
    %c0_1 = arith.constant 0 : index
    %c0_2 = arith.constant 0 : index
    %0 = vector.load %arg1[%c0, %c0_0, %c0_1, %c0_2] : memref<1x18x18x3xbf16, #tpu.memory_space<vmem>>, vector<1x16x16x3xbf16>
    %1 = vector.shape_cast %0 : vector<1x16x16x3xbf16> to vector<16x16x3xbf16>
    %c0_3 = arith.constant 0 : index
    %c0_4 = arith.constant 0 : index
    %c1 = arith.constant 1 : index
    %c0_5 = arith.constant 0 : index
    %2 = vector.load %arg1[%c0_3, %c0_4, %c1, %c0_5] : memref<1x18x18x3xbf16, #tpu.memory_space<vmem>>, vector<1x16x16x3xbf16>
    %3 = vector.shape_cast %2 : vector<1x16x16x3xbf16> to vector<16x16x3xbf16>
    %c0_6 = arith.constant 0 : index
    %c0_7 = arith.constant 0 : index
    %c2 = arith.constant 2 : index
    %c0_8 = arith.constant 0 : index
    %4 = vector.load %arg1[%c0_6, %c0_7, %c2, %c0_8] : memref<1x18x18x3xbf16, #tpu.memory_space<vmem>>, vector<1x16x16x3xbf16>
    %5 = vector.shape_cast %4 : vector<1x16x16x3xbf16> to vector<16x16x3xbf16>
    %c0_9 = arith.constant 0 : index
    %c1_10 = arith.constant 1 : index
    %c0_11 = arith.constant 0 : index
    %c0_12 = arith.constant 0 : index
    %6 = vector.load %arg1[%c0_9, %c1_10, %c0_11, %c0_12] : memref<1x18x18x3xbf16, #tpu.memory_space<vmem>>, vector<1x16x16x3xbf16>
    %7 = vector.shape_cast %6 : vector<1x16x16x3xbf16> to vector<16x16x3xbf16>
    %c0_13 = arith.constant 0 : index
    %c1_14 = arith.constant 1 : index
    %c1_15 = arith.constant 1 : index
    %c0_16 = arith.constant 0 : index
    %8 = vector.load %arg1[%c0_13, %c1_14, %c1_15, %c0_16] : memref<1x18x18x3xbf16, #tpu.memory_space<vmem>>, vector<1x16x16x3xbf16>
    %9 = vector.shape_cast %8 : vector<1x16x16x3xbf16> to vector<16x16x3xbf16>
    %c0_17 = arith.constant 0 : index
    %c1_18 = arith.constant 1 : index
    %c2_19 = arith.constant 2 : index
    %c0_20 = arith.constant 0 : index
    %10 = vector.load %arg1[%c0_17, %c1_18, %c2_19, %c0_20] : memref<1x18x18x3xbf16, #tpu.memory_space<vmem>>, vector<1x16x16x3xbf16>
    %11 = vector.shape_cast %10 : vector<1x16x16x3xbf16> to vector<16x16x3xbf16>
    %c0_21 = arith.constant 0 : index
    %c2_22 = arith.constant 2 : index
    %c0_23 = arith.constant 0 : index
    %c0_24 = arith.constant 0 : index
    %12 = vector.load %arg1[%c0_21, %c2_22, %c0_23, %c0_24] : memref<1x18x18x3xbf16, #tpu.memory_space<vmem>>, vector<1x16x16x3xbf16>
    %13 = vector.shape_cast %12 : vector<1x16x16x3xbf16> to vector<16x16x3xbf16>
    %c0_25 = arith.constant 0 : index
    %c2_26 = arith.constant 2 : index
    %c1_27 = arith.constant 1 : index
    %c0_28 = arith.constant 0 : index
    %14 = vector.load %arg1[%c0_25, %c2_26, %c1_27, %c0_28] : memref<1x18x18x3xbf16, #tpu.memory_space<vmem>>, vector<1x16x16x3xbf16>
    %15 = vector.shape_cast %14 : vector<1x16x16x3xbf16> to vector<16x16x3xbf16>
    %c0_29 = arith.constant 0 : index
    %c2_30 = arith.constant 2 : index
    %c2_31 = arith.constant 2 : index
    %c0_32 = arith.constant 0 : index
    %16 = vector.load %arg1[%c0_29, %c2_30, %c2_31, %c0_32] : memref<1x18x18x3xbf16, #tpu.memory_space<vmem>>, vector<1x16x16x3xbf16>
    %17 = vector.shape_cast %16 : vector<1x16x16x3xbf16> to vector<16x16x3xbf16>
    %18 = tpu.concatenate %1, %3, %5, %7, %9, %11, %13, %15, %17 in 2 : vector<16x16x3xbf16>, vector<16x16x3xbf16>, vector<16x16x3xbf16>, vector<16x16x3xbf16>, vector<16x16x3xbf16>, vector<16x16x3xbf16>, vector<16x16x3xbf16>, vector<16x16x3xbf16>, vector<16x16x3xbf16> -> vector<16x16x27xbf16>
    %19 = vector.shape_cast %18 : vector<16x16x27xbf16> to vector<256x27xbf16>
    %c0_33 = arith.constant 0 : index
    %c0_34 = arith.constant 0 : index
    %20 = vector.load %arg2[%c0_33, %c0_34] : memref<27x16xbf16, #tpu.memory_space<vmem>>, vector<27x16xbf16>
    %cst = arith.constant dense<0.000000e+00> : vector<256x16xf32>
    %21 = tpu.matmul %19, %20, %cst {dimension_numbers = #tpu.dot_dimension_numbers<[1], [0], [0], [1], [0, 0, 1, 1], [], []>} : vector<256x27xbf16>, vector<27x16xbf16>, vector<256x16xf32> -> vector<256x16xf32>
    %c0_35 = arith.constant 0 : index
    %c0_36 = arith.constant 0 : index
    %22 = vector.load %arg3[%c0_35, %c0_36] : memref<2x16xf32, #tpu.memory_space<vmem>>, vector<1x16xf32>
    %23 = vector.broadcast %22 : vector<1x16xf32> to vector<256x16xf32>
    %24 = arith.mulf %21, %23 : vector<256x16xf32>
    %c1_37 = arith.constant 1 : index
    %c0_38 = arith.constant 0 : index
    %25 = vector.load %arg3[%c1_37, %c0_38] : memref<2x16xf32, #tpu.memory_space<vmem>>, vector<1x16xf32>
    %26 = vector.broadcast %25 : vector<1x16xf32> to vector<256x16xf32>
    %27 = arith.addf %24, %26 : vector<256x16xf32>
    %28 = vector.shape_cast %27 : vector<256x16xf32> to vector<16x16x16xf32>
    %29 = arith.truncf %28 : vector<16x16x16xf32> to vector<16x16x16xbf16>
    %c0_39 = arith.constant 0 : index
    %c0_40 = arith.constant 0 : index
    %c0_41 = arith.constant 0 : index
    %c0_42 = arith.constant 0 : index
    %30 = vector.load %arg4[%c0_39, %c0_40, %c0_41, %c0_42] : memref<1x16x16x16xbf16, #tpu.memory_space<vmem>>, vector<1x16x16x16xbf16>
    %31 = vector.shape_cast %30 : vector<1x16x16x16xbf16> to vector<16x16x16xbf16>
    %32 = vector.shape_cast %29 : vector<16x16x16xbf16> to vector<1x16x16x16xbf16>
    tpu.vector_store %arg4[%c0_39, %c0_40, %c0_41, %c0_42], %32 {strides = array<i32>} : memref<1x16x16x16xbf16, #tpu.memory_space<vmem>>, vector<1x16x16x16xbf16>,
    return
  }
  func.func @transform_0(%arg0: i32) -> (i32, i32, i32, i32) {
    %c0_i32 = arith.constant 0 : i32
    %c0_i32_0 = arith.constant 0 : i32
    %c0_i32_1 = arith.constant 0 : i32
    %c0_i32_2 = arith.constant 0 : i32
    return %arg0, %c0_i32, %c0_i32_0, %c0_i32_1 : i32, i32, i32, i32
  }
  func.func @transform_1(%arg0: i32) -> (i32, i32) {
    %c0_i32 = arith.constant 0 : i32
    %c0_i32_0 = arith.constant 0 : i32
    %c0_i32_1 = arith.constant 0 : i32
    return %c0_i32, %c0_i32_0 : i32, i32
  }
  func.func @transform_2(%arg0: i32) -> (i32, i32) {
    %c0_i32 = arith.constant 0 : i32
    %c0_i32_0 = arith.constant 0 : i32
    %c0_i32_1 = arith.constant 0 : i32
    return %c0_i32, %c0_i32_0 : i32, i32
  }
  func.func @transform_3(%arg0: i32) -> (i32, i32, i32, i32) {
    %c0_i32 = arith.constant 0 : i32
    %c0_i32_0 = arith.constant 0 : i32
    %c0_i32_1 = arith.constant 0 : i32
    %c0_i32_2 = arith.constant 0 : i32
    return %arg0, %c0_i32, %c0_i32_0, %c0_i32_1 : i32, i32, i32, i32
  }
}

module attributes {stable_mosaic.version = 11 : i64} {
  func.func @_matmul_affine_kernel(%arg0: i32, %arg1: memref<512x16xbf16, #tpu.memory_space<vmem>>, %arg2: memref<16x20xbf16, #tpu.memory_space<vmem>>, %arg3: memref<2x20xf32, #tpu.memory_space<vmem>>, %arg4: memref<512x20xbf16, #tpu.memory_space<vmem>>) attributes {dimension_semantics = [#tpu.dimension_semantics<parallel>], iteration_bounds = array<i64: 1>, scalar_prefetch = 0 : i64, scratch_operands = 0 : i64, tpu.core_type = #tpu.core_type<tc>, window_params = [{transform_indices = @transform_0, window_bounds = array<i64: 512, 16>}, {pipeline_mode = #tpu.pipeline_mode<synchronous>, transform_indices = @transform_1, window_bounds = array<i64: 16, 20>}, {pipeline_mode = #tpu.pipeline_mode<synchronous>, transform_indices = @transform_2, window_bounds = array<i64: 2, 20>}, {transform_indices = @transform_3, window_bounds = array<i64: 512, 20>}]} {
    %c0 = arith.constant 0 : index
    %c0_0 = arith.constant 0 : index
    %0 = vector.load %arg1[%c0, %c0_0] : memref<512x16xbf16, #tpu.memory_space<vmem>>, vector<512x16xbf16>
    %c0_1 = arith.constant 0 : index
    %c0_2 = arith.constant 0 : index
    %1 = vector.load %arg2[%c0_1, %c0_2] : memref<16x20xbf16, #tpu.memory_space<vmem>>, vector<16x20xbf16>
    %cst = arith.constant dense<0.000000e+00> : vector<512x20xf32>
    %2 = tpu.matmul %0, %1, %cst {dimension_numbers = #tpu.dot_dimension_numbers<[1], [0], [0], [1], [0, 0, 1, 1], [], []>} : vector<512x16xbf16>, vector<16x20xbf16>, vector<512x20xf32> -> vector<512x20xf32>
    %c0_3 = arith.constant 0 : index
    %c0_4 = arith.constant 0 : index
    %3 = vector.load %arg3[%c0_3, %c0_4] : memref<2x20xf32, #tpu.memory_space<vmem>>, vector<1x20xf32>
    %4 = vector.broadcast %3 : vector<1x20xf32> to vector<512x20xf32>
    %5 = arith.mulf %2, %4 : vector<512x20xf32>
    %c1 = arith.constant 1 : index
    %c0_5 = arith.constant 0 : index
    %6 = vector.load %arg3[%c1, %c0_5] : memref<2x20xf32, #tpu.memory_space<vmem>>, vector<1x20xf32>
    %7 = vector.broadcast %6 : vector<1x20xf32> to vector<512x20xf32>
    %8 = arith.addf %5, %7 : vector<512x20xf32>
    %cst_6 = arith.constant 0.000000e+00 : f32
    %9 = vector.broadcast %cst_6 : f32 to vector<512x20xf32>
    %10 = arith.maximumf %8, %9 : vector<512x20xf32>
    %11 = arith.truncf %10 : vector<512x20xf32> to vector<512x20xbf16>
    %c0_7 = arith.constant 0 : index
    %c0_8 = arith.constant 0 : index
    %12 = vector.load %arg4[%c0_7, %c0_8] : memref<512x20xbf16, #tpu.memory_space<vmem>>, vector<512x20xbf16>
    tpu.vector_store %arg4[%c0_7, %c0_8], %11 {strides = array<i32>} : memref<512x20xbf16, #tpu.memory_space<vmem>>, vector<512x20xbf16>,
    return
  }
  func.func @transform_0(%arg0: i32) -> (i32, i32) {
    %c0_i32 = arith.constant 0 : i32
    %c0_i32_0 = arith.constant 0 : i32
    return %arg0, %c0_i32 : i32, i32
  }
  func.func @transform_1(%arg0: i32) -> (i32, i32) {
    %c0_i32 = arith.constant 0 : i32
    %c0_i32_0 = arith.constant 0 : i32
    %c0_i32_1 = arith.constant 0 : i32
    return %c0_i32, %c0_i32_0 : i32, i32
  }
  func.func @transform_2(%arg0: i32) -> (i32, i32) {
    %c0_i32 = arith.constant 0 : i32
    %c0_i32_0 = arith.constant 0 : i32
    %c0_i32_1 = arith.constant 0 : i32
    return %c0_i32, %c0_i32_0 : i32, i32
  }
  func.func @transform_3(%arg0: i32) -> (i32, i32) {
    %c0_i32 = arith.constant 0 : i32
    %c0_i32_0 = arith.constant 0 : i32
    return %arg0, %c0_i32 : i32, i32
  }
}

module attributes {stable_mosaic.version = 11 : i64} {
  func.func @_matmul_affine_kernel(%arg0: i32, %arg1: memref<512x20xbf16, #tpu.memory_space<vmem>>, %arg2: memref<20x80xbf16, #tpu.memory_space<vmem>>, %arg3: memref<2x80xf32, #tpu.memory_space<vmem>>, %arg4: memref<512x16xbf16, #tpu.memory_space<vmem>>, %arg5: memref<512x80xbf16, #tpu.memory_space<vmem>>) attributes {dimension_semantics = [#tpu.dimension_semantics<parallel>], iteration_bounds = array<i64: 1>, scalar_prefetch = 0 : i64, scratch_operands = 0 : i64, tpu.core_type = #tpu.core_type<tc>, window_params = [{transform_indices = @transform_0, window_bounds = array<i64: 512, 20>}, {pipeline_mode = #tpu.pipeline_mode<synchronous>, transform_indices = @transform_1, window_bounds = array<i64: 20, 80>}, {pipeline_mode = #tpu.pipeline_mode<synchronous>, transform_indices = @transform_2, window_bounds = array<i64: 2, 80>}, {transform_indices = @transform_3, window_bounds = array<i64: 512, 16>}, {transform_indices = @transform_4, window_bounds = array<i64: 512, 80>}]} {
    %c0 = arith.constant 0 : index
    %c0_0 = arith.constant 0 : index
    %0 = vector.load %arg1[%c0, %c0_0] : memref<512x20xbf16, #tpu.memory_space<vmem>>, vector<512x20xbf16>
    %c0_1 = arith.constant 0 : index
    %c0_2 = arith.constant 0 : index
    %1 = vector.load %arg2[%c0_1, %c0_2] : memref<20x80xbf16, #tpu.memory_space<vmem>>, vector<20x80xbf16>
    %cst = arith.constant dense<0.000000e+00> : vector<512x80xf32>
    %2 = tpu.matmul %0, %1, %cst {dimension_numbers = #tpu.dot_dimension_numbers<[1], [0], [0], [1], [0, 0, 1, 1], [], []>} : vector<512x20xbf16>, vector<20x80xbf16>, vector<512x80xf32> -> vector<512x80xf32>
    %c0_3 = arith.constant 0 : index
    %c0_4 = arith.constant 0 : index
    %3 = vector.load %arg3[%c0_3, %c0_4] : memref<2x80xf32, #tpu.memory_space<vmem>>, vector<1x80xf32>
    %4 = vector.broadcast %3 : vector<1x80xf32> to vector<512x80xf32>
    %5 = arith.mulf %2, %4 : vector<512x80xf32>
    %c1 = arith.constant 1 : index
    %c0_5 = arith.constant 0 : index
    %6 = vector.load %arg3[%c1, %c0_5] : memref<2x80xf32, #tpu.memory_space<vmem>>, vector<1x80xf32>
    %7 = vector.broadcast %6 : vector<1x80xf32> to vector<512x80xf32>
    %8 = arith.addf %5, %7 : vector<512x80xf32>
    %c0_6 = arith.constant 0 : index
    %c0_7 = arith.constant 0 : index
    %9 = vector.load %arg4[%c0_6, %c0_7] : memref<512x16xbf16, #tpu.memory_space<vmem>>, vector<512x16xbf16>
    %10 = arith.extf %9 : vector<512x16xbf16> to vector<512x16xf32>
    %cst_8 = arith.constant 0.000000e+00 : f32
    %11 = vector.broadcast %cst_8 : f32 to vector<512x64xf32>
    %12 = tpu.concatenate %10, %11 in 1 : vector<512x16xf32>, vector<512x64xf32> -> vector<512x80xf32>
    %13 = arith.addf %8, %12 : vector<512x80xf32>
    %14 = arith.truncf %13 : vector<512x80xf32> to vector<512x80xbf16>
    %c0_9 = arith.constant 0 : index
    %c0_10 = arith.constant 0 : index
    %15 = vector.load %arg5[%c0_9, %c0_10] : memref<512x80xbf16, #tpu.memory_space<vmem>>, vector<512x80xbf16>
    tpu.vector_store %arg5[%c0_9, %c0_10], %14 {strides = array<i32>} : memref<512x80xbf16, #tpu.memory_space<vmem>>, vector<512x80xbf16>,
    return
  }
  func.func @transform_0(%arg0: i32) -> (i32, i32) {
    %c0_i32 = arith.constant 0 : i32
    %c0_i32_0 = arith.constant 0 : i32
    return %arg0, %c0_i32 : i32, i32
  }
  func.func @transform_1(%arg0: i32) -> (i32, i32) {
    %c0_i32 = arith.constant 0 : i32
    %c0_i32_0 = arith.constant 0 : i32
    %c0_i32_1 = arith.constant 0 : i32
    return %c0_i32, %c0_i32_0 : i32, i32
  }
  func.func @transform_2(%arg0: i32) -> (i32, i32) {
    %c0_i32 = arith.constant 0 : i32
    %c0_i32_0 = arith.constant 0 : i32
    %c0_i32_1 = arith.constant 0 : i32
    return %c0_i32, %c0_i32_0 : i32, i32
  }
  func.func @transform_3(%arg0: i32) -> (i32, i32) {
    %c0_i32 = arith.constant 0 : i32
    %c0_i32_0 = arith.constant 0 : i32
    return %arg0, %c0_i32 : i32, i32
  }
  func.func @transform_4(%arg0: i32) -> (i32, i32) {
    %c0_i32 = arith.constant 0 : i32
    %c0_i32_0 = arith.constant 0 : i32
    return %arg0, %c0_i32 : i32, i32
  }
}

module attributes {stable_mosaic.version = 11 : i64} {
  func.func @_conv3x3_kernel(%arg0: i32, %arg1: memref<1x18x18x20xbf16, #tpu.memory_space<vmem>>, %arg2: memref<180x20xbf16, #tpu.memory_space<vmem>>, %arg3: memref<2x20xf32, #tpu.memory_space<vmem>>, %arg4: memref<1x16x16x20xbf16, #tpu.memory_space<vmem>>) attributes {dimension_semantics = [#tpu.dimension_semantics<parallel>], iteration_bounds = array<i64: 2>, scalar_prefetch = 0 : i64, scratch_operands = 0 : i64, tpu.core_type = #tpu.core_type<tc>, window_params = [{transform_indices = @transform_0, window_bounds = array<i64: 1, 18, 18, 20>}, {pipeline_mode = #tpu.pipeline_mode<synchronous>, transform_indices = @transform_1, window_bounds = array<i64: 180, 20>}, {pipeline_mode = #tpu.pipeline_mode<synchronous>, transform_indices = @transform_2, window_bounds = array<i64: 2, 20>}, {transform_indices = @transform_3, window_bounds = array<i64: 1, 16, 16, 20>}]} {
    %c0 = arith.constant 0 : index
    %c0_0 = arith.constant 0 : index
    %c0_1 = arith.constant 0 : index
    %c0_2 = arith.constant 0 : index
    %0 = vector.load %arg1[%c0, %c0_0, %c0_1, %c0_2] : memref<1x18x18x20xbf16, #tpu.memory_space<vmem>>, vector<1x16x16x20xbf16>
    %1 = vector.shape_cast %0 : vector<1x16x16x20xbf16> to vector<16x16x20xbf16>
    %c0_3 = arith.constant 0 : index
    %c0_4 = arith.constant 0 : index
    %c1 = arith.constant 1 : index
    %c0_5 = arith.constant 0 : index
    %2 = vector.load %arg1[%c0_3, %c0_4, %c1, %c0_5] : memref<1x18x18x20xbf16, #tpu.memory_space<vmem>>, vector<1x16x16x20xbf16>
    %3 = vector.shape_cast %2 : vector<1x16x16x20xbf16> to vector<16x16x20xbf16>
    %c0_6 = arith.constant 0 : index
    %c0_7 = arith.constant 0 : index
    %c2 = arith.constant 2 : index
    %c0_8 = arith.constant 0 : index
    %4 = vector.load %arg1[%c0_6, %c0_7, %c2, %c0_8] : memref<1x18x18x20xbf16, #tpu.memory_space<vmem>>, vector<1x16x16x20xbf16>
    %5 = vector.shape_cast %4 : vector<1x16x16x20xbf16> to vector<16x16x20xbf16>
    %c0_9 = arith.constant 0 : index
    %c1_10 = arith.constant 1 : index
    %c0_11 = arith.constant 0 : index
    %c0_12 = arith.constant 0 : index
    %6 = vector.load %arg1[%c0_9, %c1_10, %c0_11, %c0_12] : memref<1x18x18x20xbf16, #tpu.memory_space<vmem>>, vector<1x16x16x20xbf16>
    %7 = vector.shape_cast %6 : vector<1x16x16x20xbf16> to vector<16x16x20xbf16>
    %c0_13 = arith.constant 0 : index
    %c1_14 = arith.constant 1 : index
    %c1_15 = arith.constant 1 : index
    %c0_16 = arith.constant 0 : index
    %8 = vector.load %arg1[%c0_13, %c1_14, %c1_15, %c0_16] : memref<1x18x18x20xbf16, #tpu.memory_space<vmem>>, vector<1x16x16x20xbf16>
    %9 = vector.shape_cast %8 : vector<1x16x16x20xbf16> to vector<16x16x20xbf16>
    %c0_17 = arith.constant 0 : index
    %c1_18 = arith.constant 1 : index
    %c2_19 = arith.constant 2 : index
    %c0_20 = arith.constant 0 : index
    %10 = vector.load %arg1[%c0_17, %c1_18, %c2_19, %c0_20] : memref<1x18x18x20xbf16, #tpu.memory_space<vmem>>, vector<1x16x16x20xbf16>
    %11 = vector.shape_cast %10 : vector<1x16x16x20xbf16> to vector<16x16x20xbf16>
    %c0_21 = arith.constant 0 : index
    %c2_22 = arith.constant 2 : index
    %c0_23 = arith.constant 0 : index
    %c0_24 = arith.constant 0 : index
    %12 = vector.load %arg1[%c0_21, %c2_22, %c0_23, %c0_24] : memref<1x18x18x20xbf16, #tpu.memory_space<vmem>>, vector<1x16x16x20xbf16>
    %13 = vector.shape_cast %12 : vector<1x16x16x20xbf16> to vector<16x16x20xbf16>
    %c0_25 = arith.constant 0 : index
    %c2_26 = arith.constant 2 : index
    %c1_27 = arith.constant 1 : index
    %c0_28 = arith.constant 0 : index
    %14 = vector.load %arg1[%c0_25, %c2_26, %c1_27, %c0_28] : memref<1x18x18x20xbf16, #tpu.memory_space<vmem>>, vector<1x16x16x20xbf16>
    %15 = vector.shape_cast %14 : vector<1x16x16x20xbf16> to vector<16x16x20xbf16>
    %c0_29 = arith.constant 0 : index
    %c2_30 = arith.constant 2 : index
    %c2_31 = arith.constant 2 : index
    %c0_32 = arith.constant 0 : index
    %16 = vector.load %arg1[%c0_29, %c2_30, %c2_31, %c0_32] : memref<1x18x18x20xbf16, #tpu.memory_space<vmem>>, vector<1x16x16x20xbf16>
    %17 = vector.shape_cast %16 : vector<1x16x16x20xbf16> to vector<16x16x20xbf16>
    %18 = tpu.concatenate %1, %3, %5, %7, %9, %11, %13, %15, %17 in 2 : vector<16x16x20xbf16>, vector<16x16x20xbf16>, vector<16x16x20xbf16>, vector<16x16x20xbf16>, vector<16x16x20xbf16>, vector<16x16x20xbf16>, vector<16x16x20xbf16>, vector<16x16x20xbf16>, vector<16x16x20xbf16> -> vector<16x16x180xbf16>
    %19 = vector.shape_cast %18 : vector<16x16x180xbf16> to vector<256x180xbf16>
    %c0_33 = arith.constant 0 : index
    %c0_34 = arith.constant 0 : index
    %20 = vector.load %arg2[%c0_33, %c0_34] : memref<180x20xbf16, #tpu.memory_space<vmem>>, vector<180x20xbf16>
    %cst = arith.constant dense<0.000000e+00> : vector<256x20xf32>
    %21 = tpu.matmul %19, %20, %cst {dimension_numbers = #tpu.dot_dimension_numbers<[1], [0], [0], [1], [0, 0, 1, 1], [], []>} : vector<256x180xbf16>, vector<180x20xbf16>, vector<256x20xf32> -> vector<256x20xf32>
    %c0_35 = arith.constant 0 : index
    %c0_36 = arith.constant 0 : index
    %22 = vector.load %arg3[%c0_35, %c0_36] : memref<2x20xf32, #tpu.memory_space<vmem>>, vector<1x20xf32>
    %23 = vector.broadcast %22 : vector<1x20xf32> to vector<256x20xf32>
    %24 = arith.mulf %21, %23 : vector<256x20xf32>
    %c1_37 = arith.constant 1 : index
    %c0_38 = arith.constant 0 : index
    %25 = vector.load %arg3[%c1_37, %c0_38] : memref<2x20xf32, #tpu.memory_space<vmem>>, vector<1x20xf32>
    %26 = vector.broadcast %25 : vector<1x20xf32> to vector<256x20xf32>
    %27 = arith.addf %24, %26 : vector<256x20xf32>
    %cst_39 = arith.constant 0.000000e+00 : f32
    %28 = vector.broadcast %cst_39 : f32 to vector<256x20xf32>
    %29 = arith.maximumf %27, %28 : vector<256x20xf32>
    %30 = vector.shape_cast %29 : vector<256x20xf32> to vector<16x16x20xf32>
    %31 = arith.truncf %30 : vector<16x16x20xf32> to vector<16x16x20xbf16>
    %c0_40 = arith.constant 0 : index
    %c0_41 = arith.constant 0 : index
    %c0_42 = arith.constant 0 : index
    %c0_43 = arith.constant 0 : index
    %32 = vector.load %arg4[%c0_40, %c0_41, %c0_42, %c0_43] : memref<1x16x16x20xbf16, #tpu.memory_space<vmem>>, vector<1x16x16x20xbf16>
    %33 = vector.shape_cast %32 : vector<1x16x16x20xbf16> to vector<16x16x20xbf16>
    %34 = vector.shape_cast %31 : vector<16x16x20xbf16> to vector<1x16x16x20xbf16>
    tpu.vector_store %arg4[%c0_40, %c0_41, %c0_42, %c0_43], %34 {strides = array<i32>} : memref<1x16x16x20xbf16, #tpu.memory_space<vmem>>, vector<1x16x16x20xbf16>,
    return
  }
  func.func @transform_0(%arg0: i32) -> (i32, i32, i32, i32) {
    %c0_i32 = arith.constant 0 : i32
    %c0_i32_0 = arith.constant 0 : i32
    %c0_i32_1 = arith.constant 0 : i32
    %c0_i32_2 = arith.constant 0 : i32
    return %arg0, %c0_i32, %c0_i32_0, %c0_i32_1 : i32, i32, i32, i32
  }
  func.func @transform_1(%arg0: i32) -> (i32, i32) {
    %c0_i32 = arith.constant 0 : i32
    %c0_i32_0 = arith.constant 0 : i32
    %c0_i32_1 = arith.constant 0 : i32
    return %c0_i32, %c0_i32_0 : i32, i32
  }
  func.func @transform_2(%arg0: i32) -> (i32, i32) {
    %c0_i32 = arith.constant 0 : i32
    %c0_i32_0 = arith.constant 0 : i32
    %c0_i32_1 = arith.constant 0 : i32
    return %c0_i32, %c0_i32_0 : i32, i32
  }
  func.func @transform_3(%arg0: i32) -> (i32, i32, i32, i32) {
    %c0_i32 = arith.constant 0 : i32
    %c0_i32_0 = arith.constant 0 : i32
    %c0_i32_1 = arith.constant 0 : i32
    %c0_i32_2 = arith.constant 0 : i32
    return %arg0, %c0_i32, %c0_i32_0, %c0_i32_1 : i32, i32, i32, i32
  }
}

module attributes {stable_mosaic.version = 11 : i64} {
  func.func @_matmul_affine_kernel(%arg0: i32, %arg1: memref<512x80xbf16, #tpu.memory_space<vmem>>, %arg2: memref<80x24xbf16, #tpu.memory_space<vmem>>, %arg3: memref<2x24xf32, #tpu.memory_space<vmem>>, %arg4: memref<512x24xbf16, #tpu.memory_space<vmem>>) attributes {dimension_semantics = [#tpu.dimension_semantics<parallel>], iteration_bounds = array<i64: 1>, scalar_prefetch = 0 : i64, scratch_operands = 0 : i64, tpu.core_type = #tpu.core_type<tc>, window_params = [{transform_indices = @transform_0, window_bounds = array<i64: 512, 80>}, {pipeline_mode = #tpu.pipeline_mode<synchronous>, transform_indices = @transform_1, window_bounds = array<i64: 80, 24>}, {pipeline_mode = #tpu.pipeline_mode<synchronous>, transform_indices = @transform_2, window_bounds = array<i64: 2, 24>}, {transform_indices = @transform_3, window_bounds = array<i64: 512, 24>}]} {
    %c0 = arith.constant 0 : index
    %c0_0 = arith.constant 0 : index
    %0 = vector.load %arg1[%c0, %c0_0] : memref<512x80xbf16, #tpu.memory_space<vmem>>, vector<512x80xbf16>
    %c0_1 = arith.constant 0 : index
    %c0_2 = arith.constant 0 : index
    %1 = vector.load %arg2[%c0_1, %c0_2] : memref<80x24xbf16, #tpu.memory_space<vmem>>, vector<80x24xbf16>
    %cst = arith.constant dense<0.000000e+00> : vector<512x24xf32>
    %2 = tpu.matmul %0, %1, %cst {dimension_numbers = #tpu.dot_dimension_numbers<[1], [0], [0], [1], [0, 0, 1, 1], [], []>} : vector<512x80xbf16>, vector<80x24xbf16>, vector<512x24xf32> -> vector<512x24xf32>
    %c0_3 = arith.constant 0 : index
    %c0_4 = arith.constant 0 : index
    %3 = vector.load %arg3[%c0_3, %c0_4] : memref<2x24xf32, #tpu.memory_space<vmem>>, vector<1x24xf32>
    %4 = vector.broadcast %3 : vector<1x24xf32> to vector<512x24xf32>
    %5 = arith.mulf %2, %4 : vector<512x24xf32>
    %c1 = arith.constant 1 : index
    %c0_5 = arith.constant 0 : index
    %6 = vector.load %arg3[%c1, %c0_5] : memref<2x24xf32, #tpu.memory_space<vmem>>, vector<1x24xf32>
    %7 = vector.broadcast %6 : vector<1x24xf32> to vector<512x24xf32>
    %8 = arith.addf %5, %7 : vector<512x24xf32>
    %cst_6 = arith.constant 0.000000e+00 : f32
    %9 = vector.broadcast %cst_6 : f32 to vector<512x24xf32>
    %10 = arith.maximumf %8, %9 : vector<512x24xf32>
    %11 = arith.truncf %10 : vector<512x24xf32> to vector<512x24xbf16>
    %c0_7 = arith.constant 0 : index
    %c0_8 = arith.constant 0 : index
    %12 = vector.load %arg4[%c0_7, %c0_8] : memref<512x24xbf16, #tpu.memory_space<vmem>>, vector<512x24xbf16>
    tpu.vector_store %arg4[%c0_7, %c0_8], %11 {strides = array<i32>} : memref<512x24xbf16, #tpu.memory_space<vmem>>, vector<512x24xbf16>,
    return
  }
  func.func @transform_0(%arg0: i32) -> (i32, i32) {
    %c0_i32 = arith.constant 0 : i32
    %c0_i32_0 = arith.constant 0 : i32
    return %arg0, %c0_i32 : i32, i32
  }
  func.func @transform_1(%arg0: i32) -> (i32, i32) {
    %c0_i32 = arith.constant 0 : i32
    %c0_i32_0 = arith.constant 0 : i32
    %c0_i32_1 = arith.constant 0 : i32
    return %c0_i32, %c0_i32_0 : i32, i32
  }
  func.func @transform_2(%arg0: i32) -> (i32, i32) {
    %c0_i32 = arith.constant 0 : i32
    %c0_i32_0 = arith.constant 0 : i32
    %c0_i32_1 = arith.constant 0 : i32
    return %c0_i32, %c0_i32_0 : i32, i32
  }
  func.func @transform_3(%arg0: i32) -> (i32, i32) {
    %c0_i32 = arith.constant 0 : i32
    %c0_i32_0 = arith.constant 0 : i32
    return %arg0, %c0_i32 : i32, i32
  }
}

module attributes {stable_mosaic.version = 11 : i64} {
  func.func @_conv3x3_kernel(%arg0: i32, %arg1: memref<1x18x9x48xbf16, #tpu.memory_space<vmem>>, %arg2: memref<216x24xbf16, #tpu.memory_space<vmem>>, %arg3: memref<2x24xf32, #tpu.memory_space<vmem>>, %arg4: memref<1x8x8x24xbf16, #tpu.memory_space<vmem>>) attributes {dimension_semantics = [#tpu.dimension_semantics<parallel>], iteration_bounds = array<i64: 2>, scalar_prefetch = 0 : i64, scratch_operands = 0 : i64, tpu.core_type = #tpu.core_type<tc>, window_params = [{transform_indices = @transform_0, window_bounds = array<i64: 1, 18, 9, 48>}, {pipeline_mode = #tpu.pipeline_mode<synchronous>, transform_indices = @transform_1, window_bounds = array<i64: 216, 24>}, {pipeline_mode = #tpu.pipeline_mode<synchronous>, transform_indices = @transform_2, window_bounds = array<i64: 2, 24>}, {transform_indices = @transform_3, window_bounds = array<i64: 1, 8, 8, 24>}]} {
    %c0 = arith.constant 0 : index
    %c0_0 = arith.constant 0 : index
    %c0_1 = arith.constant 0 : index
    %c0_2 = arith.constant 0 : index
    %0 = vector.load %arg1[%c0, %c0_0, %c0_1, %c0_2] : memref<1x18x9x48xbf16, #tpu.memory_space<vmem>>, vector<1x18x9x48xbf16>
    %1 = vector.shape_cast %0 : vector<1x18x9x48xbf16> to vector<18x9x48xbf16>
    %2 = vector.shape_cast %1 : vector<18x9x48xbf16> to vector<9x2x9x48xbf16>
    %3 = vector.extract_strided_slice %2 {offsets = [0, 0, 0, 0], sizes = [8, 1, 9, 48], strides = [1, 1, 1, 1]} : vector<9x2x9x48xbf16> to vector<8x1x9x48xbf16>
    %4 = vector.shape_cast %3 : vector<8x1x9x48xbf16> to vector<8x9x48xbf16>
    %5 = vector.extract_strided_slice %4 {offsets = [0, 0, 0], sizes = [8, 8, 24], strides = [1, 1, 1]} : vector<8x9x48xbf16> to vector<8x8x24xbf16>
    %6 = vector.extract_strided_slice %2 {offsets = [0, 0, 0, 0], sizes = [8, 1, 9, 48], strides = [1, 1, 1, 1]} : vector<9x2x9x48xbf16> to vector<8x1x9x48xbf16>
    %7 = vector.shape_cast %6 : vector<8x1x9x48xbf16> to vector<8x9x48xbf16>
    %8 = vector.extract_strided_slice %7 {offsets = [0, 0, 24], sizes = [8, 8, 24], strides = [1, 1, 1]} : vector<8x9x48xbf16> to vector<8x8x24xbf16>
    %9 = vector.extract_strided_slice %2 {offsets = [0, 0, 0, 0], sizes = [8, 1, 9, 48], strides = [1, 1, 1, 1]} : vector<9x2x9x48xbf16> to vector<8x1x9x48xbf16>
    %10 = vector.shape_cast %9 : vector<8x1x9x48xbf16> to vector<8x9x48xbf16>
    %11 = vector.extract_strided_slice %10 {offsets = [0, 1, 0], sizes = [8, 8, 24], strides = [1, 1, 1]} : vector<8x9x48xbf16> to vector<8x8x24xbf16>
    %12 = vector.extract_strided_slice %2 {offsets = [0, 1, 0, 0], sizes = [8, 1, 9, 48], strides = [1, 1, 1, 1]} : vector<9x2x9x48xbf16> to vector<8x1x9x48xbf16>
    %13 = vector.shape_cast %12 : vector<8x1x9x48xbf16> to vector<8x9x48xbf16>
    %14 = vector.extract_strided_slice %13 {offsets = [0, 0, 0], sizes = [8, 8, 24], strides = [1, 1, 1]} : vector<8x9x48xbf16> to vector<8x8x24xbf16>
    %15 = vector.extract_strided_slice %2 {offsets = [0, 1, 0, 0], sizes = [8, 1, 9, 48], strides = [1, 1, 1, 1]} : vector<9x2x9x48xbf16> to vector<8x1x9x48xbf16>
    %16 = vector.shape_cast %15 : vector<8x1x9x48xbf16> to vector<8x9x48xbf16>
    %17 = vector.extract_strided_slice %16 {offsets = [0, 0, 24], sizes = [8, 8, 24], strides = [1, 1, 1]} : vector<8x9x48xbf16> to vector<8x8x24xbf16>
    %18 = vector.extract_strided_slice %2 {offsets = [0, 1, 0, 0], sizes = [8, 1, 9, 48], strides = [1, 1, 1, 1]} : vector<9x2x9x48xbf16> to vector<8x1x9x48xbf16>
    %19 = vector.shape_cast %18 : vector<8x1x9x48xbf16> to vector<8x9x48xbf16>
    %20 = vector.extract_strided_slice %19 {offsets = [0, 1, 0], sizes = [8, 8, 24], strides = [1, 1, 1]} : vector<8x9x48xbf16> to vector<8x8x24xbf16>
    %21 = vector.extract_strided_slice %2 {offsets = [1, 0, 0, 0], sizes = [8, 1, 9, 48], strides = [1, 1, 1, 1]} : vector<9x2x9x48xbf16> to vector<8x1x9x48xbf16>
    %22 = vector.shape_cast %21 : vector<8x1x9x48xbf16> to vector<8x9x48xbf16>
    %23 = vector.extract_strided_slice %22 {offsets = [0, 0, 0], sizes = [8, 8, 24], strides = [1, 1, 1]} : vector<8x9x48xbf16> to vector<8x8x24xbf16>
    %24 = vector.extract_strided_slice %2 {offsets = [1, 0, 0, 0], sizes = [8, 1, 9, 48], strides = [1, 1, 1, 1]} : vector<9x2x9x48xbf16> to vector<8x1x9x48xbf16>
    %25 = vector.shape_cast %24 : vector<8x1x9x48xbf16> to vector<8x9x48xbf16>
    %26 = vector.extract_strided_slice %25 {offsets = [0, 0, 24], sizes = [8, 8, 24], strides = [1, 1, 1]} : vector<8x9x48xbf16> to vector<8x8x24xbf16>
    %27 = vector.extract_strided_slice %2 {offsets = [1, 0, 0, 0], sizes = [8, 1, 9, 48], strides = [1, 1, 1, 1]} : vector<9x2x9x48xbf16> to vector<8x1x9x48xbf16>
    %28 = vector.shape_cast %27 : vector<8x1x9x48xbf16> to vector<8x9x48xbf16>
    %29 = vector.extract_strided_slice %28 {offsets = [0, 1, 0], sizes = [8, 8, 24], strides = [1, 1, 1]} : vector<8x9x48xbf16> to vector<8x8x24xbf16>
    %30 = tpu.concatenate %5, %8, %11, %14, %17, %20, %23, %26, %29 in 2 : vector<8x8x24xbf16>, vector<8x8x24xbf16>, vector<8x8x24xbf16>, vector<8x8x24xbf16>, vector<8x8x24xbf16>, vector<8x8x24xbf16>, vector<8x8x24xbf16>, vector<8x8x24xbf16>, vector<8x8x24xbf16> -> vector<8x8x216xbf16>
    %31 = vector.shape_cast %30 : vector<8x8x216xbf16> to vector<64x216xbf16>
    %c0_3 = arith.constant 0 : index
    %c0_4 = arith.constant 0 : index
    %32 = vector.load %arg2[%c0_3, %c0_4] : memref<216x24xbf16, #tpu.memory_space<vmem>>, vector<216x24xbf16>
    %cst = arith.constant dense<0.000000e+00> : vector<64x24xf32>
    %33 = tpu.matmul %31, %32, %cst {dimension_numbers = #tpu.dot_dimension_numbers<[1], [0], [0], [1], [0, 0, 1, 1], [], []>} : vector<64x216xbf16>, vector<216x24xbf16>, vector<64x24xf32> -> vector<64x24xf32>
    %c0_5 = arith.constant 0 : index
    %c0_6 = arith.constant 0 : index
    %34 = vector.load %arg3[%c0_5, %c0_6] : memref<2x24xf32, #tpu.memory_space<vmem>>, vector<1x24xf32>
    %35 = vector.broadcast %34 : vector<1x24xf32> to vector<64x24xf32>
    %36 = arith.mulf %33, %35 : vector<64x24xf32>
    %c1 = arith.constant 1 : index
    %c0_7 = arith.constant 0 : index
    %37 = vector.load %arg3[%c1, %c0_7] : memref<2x24xf32, #tpu.memory_space<vmem>>, vector<1x24xf32>
    %38 = vector.broadcast %37 : vector<1x24xf32> to vector<64x24xf32>
    %39 = arith.addf %36, %38 : vector<64x24xf32>
    %cst_8 = arith.constant 0.000000e+00 : f32
    %40 = vector.broadcast %cst_8 : f32 to vector<64x24xf32>
    %41 = arith.maximumf %39, %40 : vector<64x24xf32>
    %42 = vector.shape_cast %41 : vector<64x24xf32> to vector<8x8x24xf32>
    %43 = arith.truncf %42 : vector<8x8x24xf32> to vector<8x8x24xbf16>
    %c0_9 = arith.constant 0 : index
    %c0_10 = arith.constant 0 : index
    %c0_11 = arith.constant 0 : index
    %c0_12 = arith.constant 0 : index
    %44 = vector.load %arg4[%c0_9, %c0_10, %c0_11, %c0_12] : memref<1x8x8x24xbf16, #tpu.memory_space<vmem>>, vector<1x8x8x24xbf16>
    %45 = vector.shape_cast %44 : vector<1x8x8x24xbf16> to vector<8x8x24xbf16>
    %46 = vector.shape_cast %43 : vector<8x8x24xbf16> to vector<1x8x8x24xbf16>
    tpu.vector_store %arg4[%c0_9, %c0_10, %c0_11, %c0_12], %46 {strides = array<i32>} : memref<1x8x8x24xbf16, #tpu.memory_space<vmem>>, vector<1x8x8x24xbf16>,
    return
  }
  func.func @transform_0(%arg0: i32) -> (i32, i32, i32, i32) {
    %c0_i32 = arith.constant 0 : i32
    %c0_i32_0 = arith.constant 0 : i32
    %c0_i32_1 = arith.constant 0 : i32
    %c0_i32_2 = arith.constant 0 : i32
    return %arg0, %c0_i32, %c0_i32_0, %c0_i32_1 : i32, i32, i32, i32
  }
  func.func @transform_1(%arg0: i32) -> (i32, i32) {
    %c0_i32 = arith.constant 0 : i32
    %c0_i32_0 = arith.constant 0 : i32
    %c0_i32_1 = arith.constant 0 : i32
    return %c0_i32, %c0_i32_0 : i32, i32
  }
  func.func @transform_2(%arg0: i32) -> (i32, i32) {
    %c0_i32 = arith.constant 0 : i32
    %c0_i32_0 = arith.constant 0 : i32
    %c0_i32_1 = arith.constant 0 : i32
    return %c0_i32, %c0_i32_0 : i32, i32
  }
  func.func @transform_3(%arg0: i32) -> (i32, i32, i32, i32) {
    %c0_i32 = arith.constant 0 : i32
    %c0_i32_0 = arith.constant 0 : i32
    %c0_i32_1 = arith.constant 0 : i32
    %c0_i32_2 = arith.constant 0 : i32
    return %arg0, %c0_i32, %c0_i32_0, %c0_i32_1 : i32, i32, i32, i32
  }
}

module attributes {stable_mosaic.version = 11 : i64} {
  func.func @_matmul_affine_kernel(%arg0: i32, %arg1: memref<128x24xbf16, #tpu.memory_space<vmem>>, %arg2: memref<24x96xbf16, #tpu.memory_space<vmem>>, %arg3: memref<2x96xf32, #tpu.memory_space<vmem>>, %arg4: memref<128x80xbf16, #tpu.memory_space<vmem>>, %arg5: memref<128x96xbf16, #tpu.memory_space<vmem>>) attributes {dimension_semantics = [#tpu.dimension_semantics<parallel>], iteration_bounds = array<i64: 1>, scalar_prefetch = 0 : i64, scratch_operands = 0 : i64, tpu.core_type = #tpu.core_type<tc>, window_params = [{transform_indices = @transform_0, window_bounds = array<i64: 128, 24>}, {pipeline_mode = #tpu.pipeline_mode<synchronous>, transform_indices = @transform_1, window_bounds = array<i64: 24, 96>}, {pipeline_mode = #tpu.pipeline_mode<synchronous>, transform_indices = @transform_2, window_bounds = array<i64: 2, 96>}, {transform_indices = @transform_3, window_bounds = array<i64: 128, 80>}, {transform_indices = @transform_4, window_bounds = array<i64: 128, 96>}]} {
    %c0 = arith.constant 0 : index
    %c0_0 = arith.constant 0 : index
    %0 = vector.load %arg1[%c0, %c0_0] : memref<128x24xbf16, #tpu.memory_space<vmem>>, vector<128x24xbf16>
    %c0_1 = arith.constant 0 : index
    %c0_2 = arith.constant 0 : index
    %1 = vector.load %arg2[%c0_1, %c0_2] : memref<24x96xbf16, #tpu.memory_space<vmem>>, vector<24x96xbf16>
    %cst = arith.constant dense<0.000000e+00> : vector<128x96xf32>
    %2 = tpu.matmul %0, %1, %cst {dimension_numbers = #tpu.dot_dimension_numbers<[1], [0], [0], [1], [0, 0, 1, 1], [], []>} : vector<128x24xbf16>, vector<24x96xbf16>, vector<128x96xf32> -> vector<128x96xf32>
    %c0_3 = arith.constant 0 : index
    %c0_4 = arith.constant 0 : index
    %3 = vector.load %arg3[%c0_3, %c0_4] : memref<2x96xf32, #tpu.memory_space<vmem>>, vector<1x96xf32>
    %4 = vector.broadcast %3 : vector<1x96xf32> to vector<128x96xf32>
    %5 = arith.mulf %2, %4 : vector<128x96xf32>
    %c1 = arith.constant 1 : index
    %c0_5 = arith.constant 0 : index
    %6 = vector.load %arg3[%c1, %c0_5] : memref<2x96xf32, #tpu.memory_space<vmem>>, vector<1x96xf32>
    %7 = vector.broadcast %6 : vector<1x96xf32> to vector<128x96xf32>
    %8 = arith.addf %5, %7 : vector<128x96xf32>
    %c0_6 = arith.constant 0 : index
    %c0_7 = arith.constant 0 : index
    %9 = vector.load %arg4[%c0_6, %c0_7] : memref<128x80xbf16, #tpu.memory_space<vmem>>, vector<128x80xbf16>
    %10 = arith.extf %9 : vector<128x80xbf16> to vector<128x80xf32>
    %cst_8 = arith.constant 0.000000e+00 : f32
    %11 = vector.broadcast %cst_8 : f32 to vector<128x16xf32>
    %12 = tpu.concatenate %10, %11 in 1 : vector<128x80xf32>, vector<128x16xf32> -> vector<128x96xf32>
    %13 = arith.addf %8, %12 : vector<128x96xf32>
    %14 = arith.truncf %13 : vector<128x96xf32> to vector<128x96xbf16>
    %c0_9 = arith.constant 0 : index
    %c0_10 = arith.constant 0 : index
    %15 = vector.load %arg5[%c0_9, %c0_10] : memref<128x96xbf16, #tpu.memory_space<vmem>>, vector<128x96xbf16>
    tpu.vector_store %arg5[%c0_9, %c0_10], %14 {strides = array<i32>} : memref<128x96xbf16, #tpu.memory_space<vmem>>, vector<128x96xbf16>,
    return
  }
  func.func @transform_0(%arg0: i32) -> (i32, i32) {
    %c0_i32 = arith.constant 0 : i32
    %c0_i32_0 = arith.constant 0 : i32
    return %arg0, %c0_i32 : i32, i32
  }
  func.func @transform_1(%arg0: i32) -> (i32, i32) {
    %c0_i32 = arith.constant 0 : i32
    %c0_i32_0 = arith.constant 0 : i32
    %c0_i32_1 = arith.constant 0 : i32
    return %c0_i32, %c0_i32_0 : i32, i32
  }
  func.func @transform_2(%arg0: i32) -> (i32, i32) {
    %c0_i32 = arith.constant 0 : i32
    %c0_i32_0 = arith.constant 0 : i32
    %c0_i32_1 = arith.constant 0 : i32
    return %c0_i32, %c0_i32_0 : i32, i32
  }
  func.func @transform_3(%arg0: i32) -> (i32, i32) {
    %c0_i32 = arith.constant 0 : i32
    %c0_i32_0 = arith.constant 0 : i32
    return %arg0, %c0_i32 : i32, i32
  }
  func.func @transform_4(%arg0: i32) -> (i32, i32) {
    %c0_i32 = arith.constant 0 : i32
    %c0_i32_0 = arith.constant 0 : i32
    return %arg0, %c0_i32 : i32, i32
  }
}

module attributes {stable_mosaic.version = 11 : i64} {
  func.func @_head_kernel(%arg0: memref<2x64x96xbf16, #tpu.memory_space<vmem>>, %arg1: memref<2x96xf32, #tpu.memory_space<vmem>>, %arg2: memref<96x10xbf16, #tpu.memory_space<vmem>>, %arg3: memref<1x10xf32, #tpu.memory_space<vmem>>, %arg4: memref<2x10xf32, #tpu.memory_space<vmem>>) attributes {dimension_semantics = [], scalar_prefetch = 0 : i64, scratch_operands = 0 : i64, tpu.core_type = #tpu.core_type<tc>} {
    %c0 = arith.constant 0 : index
    %c0_0 = arith.constant 0 : index
    %c0_1 = arith.constant 0 : index
    %0 = vector.load %arg0[%c0, %c0_0, %c0_1] : memref<2x64x96xbf16, #tpu.memory_space<vmem>>, vector<2x64x96xbf16>
    %1 = arith.extf %0 : vector<2x64x96xbf16> to vector<2x64x96xf32>
    %c0_2 = arith.constant 0 : index
    %c0_3 = arith.constant 0 : index
    %2 = vector.load %arg1[%c0_2, %c0_3] : memref<2x96xf32, #tpu.memory_space<vmem>>, vector<1x96xf32>
    %3 = vector.shape_cast %2 : vector<1x96xf32> to vector<1x1x96xf32>
    %4 = vector.broadcast %3 : vector<1x1x96xf32> to vector<2x64x96xf32>
    %5 = arith.mulf %1, %4 : vector<2x64x96xf32>
    %c1 = arith.constant 1 : index
    %c0_4 = arith.constant 0 : index
    %6 = vector.load %arg1[%c1, %c0_4] : memref<2x96xf32, #tpu.memory_space<vmem>>, vector<1x96xf32>
    %7 = vector.shape_cast %6 : vector<1x96xf32> to vector<1x1x96xf32>
    %8 = vector.broadcast %7 : vector<1x1x96xf32> to vector<2x64x96xf32>
    %9 = arith.addf %5, %8 : vector<2x64x96xf32>
    %cst = arith.constant 0.000000e+00 : f32
    %10 = vector.broadcast %cst : f32 to vector<2x64x96xf32>
    %11 = arith.maximumf %9, %10 : vector<2x64x96xf32>
    %cst_5 = arith.constant dense<0.000000e+00> : vector<2x96xf32>
    %12 = vector.multi_reduction <add>, %11, %cst_5 [1] : vector<2x64x96xf32> to vector<2x96xf32>
    %cst_6 = arith.constant 6.400000e+01 : f32
    %13 = vector.broadcast %cst_6 : f32 to vector<2x96xf32>
    %14 = arith.divf %12, %13 : vector<2x96xf32>
    %15 = arith.truncf %14 : vector<2x96xf32> to vector<2x96xbf16>
    %c0_7 = arith.constant 0 : index
    %c0_8 = arith.constant 0 : index
    %16 = vector.load %arg2[%c0_7, %c0_8] : memref<96x10xbf16, #tpu.memory_space<vmem>>, vector<96x10xbf16>
    %cst_9 = arith.constant dense<0.000000e+00> : vector<2x10xf32>
    %17 = tpu.matmul %15, %16, %cst_9 {dimension_numbers = #tpu.dot_dimension_numbers<[1], [0], [0], [1], [0, 0, 1, 1], [], []>} : vector<2x96xbf16>, vector<96x10xbf16>, vector<2x10xf32> -> vector<2x10xf32>
    %c0_10 = arith.constant 0 : index
    %c0_11 = arith.constant 0 : index
    %18 = vector.load %arg3[%c0_10, %c0_11] : memref<1x10xf32, #tpu.memory_space<vmem>>, vector<1x10xf32>
    %19 = vector.broadcast %18 : vector<1x10xf32> to vector<2x10xf32>
    %20 = arith.addf %17, %19 : vector<2x10xf32>
    %c0_12 = arith.constant 0 : index
    %c0_13 = arith.constant 0 : index
    %21 = vector.load %arg4[%c0_12, %c0_13] : memref<2x10xf32, #tpu.memory_space<vmem>>, vector<2x10xf32>
    tpu.vector_store %arg4[%c0_12, %c0_13], %20 {strides = array<i32>} : memref<2x10xf32, #tpu.memory_space<vmem>>, vector<2x10xf32>,
    return
  }
}

</mosaic_0001>

<llo_original>
// kernel: _lambda_.9
$region0: #{_lambda_.9}
  #allocation0 [shape = 'u32[]', space=smem, size = 0x4, offset = 0x4, fixed_abs, tag = 'smem constant byte address 0x4 - core index']
  #allocation1 [shape = 'u32[72,128]{1,0:T(1,128)}', space=vmem, size = 0x9000, scoped, tag = 'internal scratch']
  %s0 = inlined_call_operand.vmem [shape: bf16[512,16], index: 0, kind: input, shape index: {}]
  %s1 = inlined_call_operand.vmem [shape: bf16[16,20], index: 1, kind: input, shape index: {}]
  %s2 = inlined_call_operand.vmem [shape: f32[2,20], index: 2, kind: input, shape index: {}]
  %s3 = inlined_call_operand.vmem [shape: bf16[512,20], index: 3, kind: output, shape index: {}]
  %s4 = sld [smem:[#allocation0]]
  $region22: #{_lambda_.9} parent=0
    _
  %s6 = ssub.s32 1, %s4
  %s7 = scalar_select 0, %s6, %s4
  // Predicated region
  $region2: #{_lambda_.9} parent=0 // pred_check
    _
  $region3: #{_lambda_.9} parent=0 // pred_check_branch
    %9 = sbr.rel (0) target = $region5
  $region4: #{_lambda_.9} parent=0 // pred_region
    _
  $region5: #{_lambda_.9} parent=0 // pred_fallthru
    _
  // Predicated region
  $region6: #{_lambda_.9} parent=0 // pred_check
    _
  $region7: #{_lambda_.9} parent=0 // pred_check_branch
    %11 = sbr.rel (0) target = $region9
  $region8: #{_lambda_.9} parent=0 // pred_region
    _
  $region9: #{_lambda_.9} parent=0 // pred_fallthru
    _
  // Predicated region
  $region10: #{_lambda_.9} parent=0 // pred_check
    _
  $region11: #{_lambda_.9} parent=0 // pred_check_branch
    %13 = sbr.rel (0) target = $region13
  $region12: #{_lambda_.9} parent=0 // pred_region
    _
  $region13: #{_lambda_.9} parent=0 // pred_fallthru
    _
  %v15 = vld [vmem:[%s0] sm:$0xf]
  %v16 = vld [vmem:[%s0 + $0x4] sm:$0xf]
  %v17 = vld [vmem:[%s0 + $0x8] sm:$0xf]
  %v18 = vld [vmem:[%s0 + $0xc] sm:$0xf]
  %v19 = vld [vmem:[%s0 + $0x10] sm:$0xf]
  %v20 = vld [vmem:[%s0 + $0x14] sm:$0xf]
  %v21 = vld [vmem:[%s0 + $0x18] sm:$0xf]
  %v22 = vld [vmem:[%s0 + $0x1c] sm:$0xf]
  %v23 = vld [vmem:[%s0 + $0x20] sm:$0xf]
  %v24 = vld [vmem:[%s0 + $0x24] sm:$0xf]
  %v25 = vld [vmem:[%s0 + $0x28] sm:$0xf]
  %v26 = vld [vmem:[%s0 + $0x2c] sm:$0xf]
  %v27 = vld [vmem:[%s0 + $0x30] sm:$0xf]
  %v28 = vld [vmem:[%s0 + $0x34] sm:$0xf]
  %v29 = vld [vmem:[%s0 + $0x38] sm:$0xf]
  %v30 = vld [vmem:[%s0 + $0x3c] sm:$0xf]
  %v31 = vld [vmem:[%s0 + $0x40] sm:$0xf]
  %v32 = vld [vmem:[%s0 + $0x44] sm:$0xf]
  %v33 = vld [vmem:[%s0 + $0x48] sm:$0xf]
  %v34 = vld [vmem:[%s0 + $0x4c] sm:$0xf]
  %v35 = vld [vmem:[%s0 + $0x50] sm:$0xf]
  %v36 = vld [vmem:[%s0 + $0x54] sm:$0xf]
  %v37 = vld [vmem:[%s0 + $0x58] sm:$0xf]
  %v38 = vld [vmem:[%s0 + $0x5c] sm:$0xf]
  %v39 = vld [vmem:[%s0 + $0x60] sm:$0xf]
  %v40 = vld [vmem:[%s0 + $0x64] sm:$0xf]
  %v41 = vld [vmem:[%s0 + $0x68] sm:$0xf]
  %v42 = vld [vmem:[%s0 + $0x6c] sm:$0xf]
  %v43 = vld [vmem:[%s0 + $0x70] sm:$0xf]
  %v44 = vld [vmem:[%s0 + $0x74] sm:$0xf]
  %v45 = vld [vmem:[%s0 + $0x78] sm:$0xf]
  %v46 = vld [vmem:[%s0 + $0x7c] sm:$0xf]
  %v47 = vld [vmem:[%s0 + $0x80] sm:$0xf]
  %v48 = vld [vmem:[%s0 + $0x84] sm:$0xf]
  %v49 = vld [vmem:[%s0 + $0x88] sm:$0xf]
  %v50 = vld [vmem:[%s0 + $0x8c] sm:$0xf]
  %v51 = vld [vmem:[%s0 + $0x90] sm:$0xf]
  %v52 = vld [vmem:[%s0 + $0x94] sm:$0xf]
  %v53 = vld [vmem:[%s0 + $0x98] sm:$0xf]
  %v54 = vld [vmem:[%s0 + $0x9c] sm:$0xf]
  %v55 = vld [vmem:[%s0 + $0xa0] sm:$0xf]
  %v56 = vld [vmem:[%s0 + $0xa4] sm:$0xf]
  %v57 = vld [vmem:[%s0 + $0xa8] sm:$0xf]
  %v58 = vld [vmem:[%s0 + $0xac] sm:$0xf]
  %v59 = vld [vmem:[%s0 + $0xb0] sm:$0xf]
  %v60 = vld [vmem:[%s0 + $0xb4] sm:$0xf]
  %v61 = vld [vmem:[%s0 + $0xb8] sm:$0xf]
  %v62 = vld [vmem:[%s0 + $0xbc] sm:$0xf]
  %v63 = vld [vmem:[%s0 + $0xc0] sm:$0xf]
  %v64 = vld [vmem:[%s0 + $0xc4] sm:$0xf]
  %v65 = vld [vmem:[%s0 + $0xc8] sm:$0xf]
  %v66 = vld [vmem:[%s0 + $0xcc] sm:$0xf]
  %v67 = vld [vmem:[%s0 + $0xd0] sm:$0xf]
  %v68 = vld [vmem:[%s0 + $0xd4] sm:$0xf]
  %v69 = vld [vmem:[%s0 + $0xd8] sm:$0xf]
  %v70 = vld [vmem:[%s0 + $0xdc] sm:$0xf]
  %v71 = vld [vmem:[%s0 + $0xe0] sm:$0xf]
  %v72 = vld [vmem:[%s0 + $0xe4] sm:$0xf]
  %v73 = vld [vmem:[%s0 + $0xe8] sm:$0xf]
  %v74 = vld [vmem:[%s0 + $0xec] sm:$0xf]
  %v75 = vld [vmem:[%s0 + $0xf0] sm:$0xf]
  %v76 = vld [vmem:[%s0 + $0xf4] sm:$0xf]
  %v77 = vld [vmem:[%s0 + $0xf8] sm:$0xf]
  %v78 = vld [vmem:[%s0 + $0xfc] sm:$0xf]
  %v79 = vld [vmem:[%s1] sm:$0xf]
  %v80 = vld [vmem:[%s1 + $0x4] sm:$0xf]
  %v145 = vunpack.c.l.b16 %v15
  %v146 = vunpack.c.l.b16 %v16
  %v147 = vunpack.c.l.b16 %v17
  %v148 = vunpack.c.l.b16 %v18
  %v149 = vunpack.c.l.b16 %v19
  %v150 = vunpack.c.l.b16 %v20
  %v151 = vunpack.c.l.b16 %v21
  %v152 = vunpack.c.l.b16 %v22
  %v153 = vunpack.c.l.b16 %v23
  %v154 = vunpack.c.l.b16 %v24
  %v155 = vunpack.c.l.b16 %v25
  %v156 = vunpack.c.l.b16 %v26
  %v157 = vunpack.c.l.b16 %v27
  %v158 = vunpack.c.l.b16 %v28
  %v159 = vunpack.c.l.b16 %v29
  %v160 = vunpack.c.l.b16 %v30
  %v161 = vunpack.c.l.b16 %v31
  %v162 = vunpack.c.l.b16 %v32
  %v163 = vunpack.c.l.b16 %v33
  %v164 = vunpack.c.l.b16 %v34
  %v165 = vunpack.c.l.b16 %v35
  %v166 = vunpack.c.l.b16 %v36
  %v167 = vunpack.c.l.b16 %v37
  %v168 = vunpack.c.l.b16 %v38
  %v169 = vunpack.c.l.b16 %v39
  %v170 = vunpack.c.l.b16 %v40
  %v171 = vunpack.c.l.b16 %v41
  %v172 = vunpack.c.l.b16 %v42
  %v173 = vunpack.c.l.b16 %v43
  %v174 = vunpack.c.l.b16 %v44
  %v175 = vunpack.c.l.b16 %v45
  %v176 = vunpack.c.l.b16 %v46
  %v177 = vunpack.c.l.b16 %v47
  %v178 = vunpack.c.l.b16 %v48
  %v179 = vunpack.c.l.b16 %v49
  %v180 = vunpack.c.l.b16 %v50
  %v181 = vunpack.c.l.b16 %v51
  %v182 = vunpack.c.l.b16 %v52
  %v183 = vunpack.c.l.b16 %v53
  %v184 = vunpack.c.l.b16 %v54
  %v185 = vunpack.c.l.b16 %v55
  %v186 = vunpack.c.l.b16 %v56
  %v187 = vunpack.c.l.b16 %v57
  %v188 = vunpack.c.l.b16 %v58
  %v189 = vunpack.c.l.b16 %v59
  %v190 = vunpack.c.l.b16 %v60
  %v191 = vunpack.c.l.b16 %v61
  %v192 = vunpack.c.l.b16 %v62
  %v193 = vunpack.c.l.b16 %v63
  %v194 = vunpack.c.l.b16 %v64
  %v195 = vunpack.c.l.b16 %v65
  %v196 = vunpack.c.l.b16 %v66
  %v197 = vunpack.c.l.b16 %v67
  %v198 = vunpack.c.l.b16 %v68
  %v199 = vunpack.c.l.b16 %v69
  %v200 = vunpack.c.l.b16 %v70
  %v201 = vunpack.c.l.b16 %v71
  %v202 = vunpack.c.l.b16 %v72
  %v203 = vunpack.c.l.b16 %v73
  %v204 = vunpack.c.l.b16 %v74
  %v205 = vunpack.c.l.b16 %v75
  %v206 = vunpack.c.l.b16 %v76
  %v207 = vunpack.c.l.b16 %v77
  %v208 = vunpack.c.l.b16 %v78
  %v209 = vpack.c.b16 %v146, %v145
  %v210 = vpack.c.b16 %v148, %v147
  %v211 = vpack.c.b16 %v150, %v149
  %v212 = vpack.c.b16 %v152, %v151
  %v213 = vpack.c.b16 %v154, %v153
  %v214 = vpack.c.b16 %v156, %v155
  %v215 = vpack.c.b16 %v158, %v157
  %v216 = vpack.c.b16 %v160, %v159
  %v217 = vpack.c.b16 %v162, %v161
  %v218 = vpack.c.b16 %v164, %v163
  %v219 = vpack.c.b16 %v166, %v165
  %v220 = vpack.c.b16 %v168, %v167
  %v221 = vpack.c.b16 %v170, %v169
  %v222 = vpack.c.b16 %v172, %v171
  %v223 = vpack.c.b16 %v174, %v173
  %v224 = vpack.c.b16 %v176, %v175
  %v225 = vpack.c.b16 %v178, %v177
  %v226 = vpack.c.b16 %v180, %v179
  %v227 = vpack.c.b16 %v182, %v181
  %v228 = vpack.c.b16 %v184, %v183
  %v229 = vpack.c.b16 %v186, %v185
  %v230 = vpack.c.b16 %v188, %v187
  %v231 = vpack.c.b16 %v190, %v189
  %v232 = vpack.c.b16 %v192, %v191
  %v233 = vpack.c.b16 %v194, %v193
  %v234 = vpack.c.b16 %v196, %v195
  %v235 = vpack.c.b16 %v198, %v197
  %v236 = vpack.c.b16 %v200, %v199
  %v237 = vpack.c.b16 %v202, %v201
  %v238 = vpack.c.b16 %v204, %v203
  %v239 = vpack.c.b16 %v206, %v205
  %v240 = vpack.c.b16 %v208, %v207
  %v243 = vunpack.c.l.b16 %v79
  %v244 = vunpack.c.l.b16 %v80
  %v245 = vpack.c.b16 %v244, %v243
  %vm247 = vcmask 130048
  %v249 = vsel %vm247, %v209, 0
  %v252 = vsel %vm247, %v210, 0
  %v255 = vsel %vm247, %v211, 0
  %v258 = vsel %vm247, %v212, 0
  %v261 = vsel %vm247, %v213, 0
  %v264 = vsel %vm247, %v214, 0
  %v267 = vsel %vm247, %v215, 0
  %v270 = vsel %vm247, %v216, 0
  %v273 = vsel %vm247, %v217, 0
  %v276 = vsel %vm247, %v218, 0
  %v279 = vsel %vm247, %v219, 0
  %v282 = vsel %vm247, %v220, 0
  %v285 = vsel %vm247, %v221, 0
  %v288 = vsel %vm247, %v222, 0
  %v291 = vsel %vm247, %v223, 0
  %v294 = vsel %vm247, %v224, 0
  %v297 = vsel %vm247, %v225, 0
  %v300 = vsel %vm247, %v226, 0
  %v303 = vsel %vm247, %v227, 0
  %v306 = vsel %vm247, %v228, 0
  %v309 = vsel %vm247, %v229, 0
  %v312 = vsel %vm247, %v230, 0
  %v315 = vsel %vm247, %v231, 0
  %v318 = vsel %vm247, %v232, 0
  %v321 = vsel %vm247, %v233, 0
  %v324 = vsel %vm247, %v234, 0
  %v327 = vsel %vm247, %v235, 0
  %v330 = vsel %vm247, %v236, 0
  %v333 = vsel %vm247, %v237, 0
  %v336 = vsel %vm247, %v238, 0
  %v339 = vsel %vm247, %v239, 0
  %v342 = vsel %vm247, %v240, 0
  %344 = vmatpush.bf16.msra.mxu0 0
  %345 = vmatpush.bf16.msra.mxu0 0
  %346 = vmatpush.bf16.msra.mxu0 0
  %347 = vmatpush.bf16.msra.mxu0 0
  %348 = vmatpush.bf16.msra.mxu0 0
  %349 = vmatpush.bf16.msra.mxu0 0
  %350 = vmatpush.bf16.msra.mxu0 0
  %351 = vmatpush.bf16.msra.mxu0 %v245
  %352 = vmatmul.bf16.gmra.mxu0 %v249
  %v353 = vpop.f32.mrf.mxu0
  %v354 = vadd.f32 0.0, %v353
  %v355 = vpop.f32.mrf.mxu0
  %v356 = vadd.f32 0.0, %v355
  %357 = vmatmul.bf16.gmra.mxu0 %v252
  %v358 = vpop.f32.mrf.mxu0
  %v359 = vadd.f32 0.0, %v358
  %v360 = vpop.f32.mrf.mxu0
  %v361 = vadd.f32 0.0, %v360
  %362 = vmatmul.bf16.gmra.mxu0 %v255
  %v363 = vpop.f32.mrf.mxu0
  %v364 = vadd.f32 0.0, %v363
  %v365 = vpop.f32.mrf.mxu0
  %v366 = vadd.f32 0.0, %v365
  %367 = vmatmul.bf16.gmra.mxu0 %v258
  %v368 = vpop.f32.mrf.mxu0
  %v369 = vadd.f32 0.0, %v368
  %v370 = vpop.f32.mrf.mxu0
  %v371 = vadd.f32 0.0, %v370
  %372 = vmatmul.bf16.gmra.mxu0 %v261
  %v373 = vpop.f32.mrf.mxu0
  %v374 = vadd.f32 0.0, %v373
  %v375 = vpop.f32.mrf.mxu0
  %v376 = vadd.f32 0.0, %v375
  %377 = vmatmul.bf16.gmra.mxu0 %v264
  %v378 = vpop.f32.mrf.mxu0
  %v379 = vadd.f32 0.0, %v378
  %v380 = vpop.f32.mrf.mxu0
  %v381 = vadd.f32 0.0, %v380
  %382 = vmatmul.bf16.gmra.mxu0 %v267
  %v383 = vpop.f32.mrf.mxu0
  %v384 = vadd.f32 0.0, %v383
  %v385 = vpop.f32.mrf.mxu0
  %v386 = vadd.f32 0.0, %v385
  %387 = vmatmul.bf16.gmra.mxu0 %v270
  %v388 = vpop.f32.mrf.mxu0
  %v389 = vadd.f32 0.0, %v388
  %v390 = vpop.f32.mrf.mxu0
  %v391 = vadd.f32 0.0, %v390
  %392 = vmatmul.bf16.gmra.mxu0 %v273
  %v393 = vpop.f32.mrf.mxu0
  %v394 = vadd.f32 0.0, %v393
  %v395 = vpop.f32.mrf.mxu0
  %v396 = vadd.f32 0.0, %v395
  %397 = vmatmul.bf16.gmra.mxu0 %v276
  %v398 = vpop.f32.mrf.mxu0
  %v399 = vadd.f32 0.0, %v398
  %v400 = vpop.f32.mrf.mxu0
  %v401 = vadd.f32 0.0, %v400
  %402 = vmatmul.bf16.gmra.mxu0 %v279
  %v403 = vpop.f32.mrf.mxu0
  %v404 = vadd.f32 0.0, %v403
  %v405 = vpop.f32.mrf.mxu0
  %v406 = vadd.f32 0.0, %v405
  %407 = vmatmul.bf16.gmra.mxu0 %v282
  %v408 = vpop.f32.mrf.mxu0
  %v409 = vadd.f32 0.0, %v408
  %v410 = vpop.f32.mrf.mxu0
  %v411 = vadd.f32 0.0, %v410
  %412 = vmatmul.bf16.gmra.mxu0 %v285
  %v413 = vpop.f32.mrf.mxu0
  %v414 = vadd.f32 0.0, %v413
  %v415 = vpop.f32.mrf.mxu0
  %v416 = vadd.f32 0.0, %v415
  %417 = vmatmul.bf16.gmra.mxu0 %v288
  %v418 = vpop.f32.mrf.mxu0
  %v419 = vadd.f32 0.0, %v418
  %v420 = vpop.f32.mrf.mxu0
  %v421 = vadd.f32 0.0, %v420
  %422 = vmatmul.bf16.gmra.mxu0 %v291
  %v423 = vpop.f32.mrf.mxu0
  %v424 = vadd.f32 0.0, %v423
  %v425 = vpop.f32.mrf.mxu0
  %v426 = vadd.f32 0.0, %v425
  %427 = vmatmul.bf16.gmra.mxu0 %v294
  %v428 = vpop.f32.mrf.mxu0
  %v429 = vadd.f32 0.0, %v428
  %v430 = vpop.f32.mrf.mxu0
  %v431 = vadd.f32 0.0, %v430
  %432 = vmatmul.bf16.gmra.mxu0 %v297
  %v433 = vpop.f32.mrf.mxu0
  %v434 = vadd.f32 0.0, %v433
  %v435 = vpop.f32.mrf.mxu0
  %v436 = vadd.f32 0.0, %v435
  %437 = vmatmul.bf16.gmra.mxu0 %v300
  %v438 = vpop.f32.mrf.mxu0
  %v439 = vadd.f32 0.0, %v438
  %v440 = vpop.f32.mrf.mxu0
  %v441 = vadd.f32 0.0, %v440
  %442 = vmatmul.bf16.gmra.mxu0 %v303
  %v443 = vpop.f32.mrf.mxu0
  %v444 = vadd.f32 0.0, %v443
  %v445 = vpop.f32.mrf.mxu0
  %v446 = vadd.f32 0.0, %v445
  %447 = vmatmul.bf16.gmra.mxu0 %v306
  %v448 = vpop.f32.mrf.mxu0
  %v449 = vadd.f32 0.0, %v448
  %v450 = vpop.f32.mrf.mxu0
  %v451 = vadd.f32 0.0, %v450
  %452 = vmatmul.bf16.gmra.mxu0 %v309
  %v453 = vpop.f32.mrf.mxu0
  %v454 = vadd.f32 0.0, %v453
  %v455 = vpop.f32.mrf.mxu0
  %v456 = vadd.f32 0.0, %v455
  %457 = vmatmul.bf16.gmra.mxu0 %v312
  %v458 = vpop.f32.mrf.mxu0
  %v459 = vadd.f32 0.0, %v458
  %v460 = vpop.f32.mrf.mxu0
  %v461 = vadd.f32 0.0, %v460
  %462 = vmatmul.bf16.gmra.mxu0 %v315
  %v463 = vpop.f32.mrf.mxu0
  %v464 = vadd.f32 0.0, %v463
  %v465 = vpop.f32.mrf.mxu0
  %v466 = vadd.f32 0.0, %v465
  %467 = vmatmul.bf16.gmra.mxu0 %v318
  %v468 = vpop.f32.mrf.mxu0
  %v469 = vadd.f32 0.0, %v468
  %v470 = vpop.f32.mrf.mxu0
  %v471 = vadd.f32 0.0, %v470
  %472 = vmatmul.bf16.gmra.mxu0 %v321
  %v473 = vpop.f32.mrf.mxu0
  %v474 = vadd.f32 0.0, %v473
  %v475 = vpop.f32.mrf.mxu0
  %v476 = vadd.f32 0.0, %v475
  %477 = vmatmul.bf16.gmra.mxu0 %v324
  %v478 = vpop.f32.mrf.mxu0
  %v479 = vadd.f32 0.0, %v478
  %v480 = vpop.f32.mrf.mxu0
  %v481 = vadd.f32 0.0, %v480
  %482 = vmatmul.bf16.gmra.mxu0 %v327
  %v483 = vpop.f32.mrf.mxu0
  %v484 = vadd.f32 0.0, %v483
  %v485 = vpop.f32.mrf.mxu0
  %v486 = vadd.f32 0.0, %v485
  %487 = vmatmul.bf16.gmra.mxu0 %v330
  %v488 = vpop.f32.mrf.mxu0
  %v489 = vadd.f32 0.0, %v488
  %v490 = vpop.f32.mrf.mxu0
  %v491 = vadd.f32 0.0, %v490
  %492 = vmatmul.bf16.gmra.mxu0 %v333
  %v493 = vpop.f32.mrf.mxu0
  %v494 = vadd.f32 0.0, %v493
  %v495 = vpop.f32.mrf.mxu0
  %v496 = vadd.f32 0.0, %v495
  %497 = vmatmul.bf16.gmra.mxu0 %v336
  %v498 = vpop.f32.mrf.mxu0
  %v499 = vadd.f32 0.0, %v498
  %v500 = vpop.f32.mrf.mxu0
  %v501 = vadd.f32 0.0, %v500
  %502 = vmatmul.bf16.gmra.mxu0 %v339
  %v503 = vpop.f32.mrf.mxu0
  %v504 = vadd.f32 0.0, %v503
  %v505 = vpop.f32.mrf.mxu0
  %v506 = vadd.f32 0.0, %v505
  %507 = vmatmul.bf16.gmra.mxu0 %v342
  %v508 = vpop.f32.mrf.mxu0
  %v509 = vadd.f32 0.0, %v508
  %v510 = vpop.f32.mrf.mxu0
  %v511 = vadd.f32 0.0, %v510
  %512 = vdwg.mxu0
  %v513 = vld [vmem:[%s2] sm:$0x1]
  %v514 = vperm.slane %v513, 0
  %v515 = vmul.f32 %v354, %v514
  %v516 = vmul.f32 %v356, %v514
  %v517 = vmul.f32 %v359, %v514
  %v518 = vmul.f32 %v361, %v514
  %v519 = vmul.f32 %v364, %v514
  %v520 = vmul.f32 %v366, %v514
  %v521 = vmul.f32 %v369, %v514
  %v522 = vmul.f32 %v371, %v514
  %v523 = vmul.f32 %v374, %v514
  %v524 = vmul.f32 %v376, %v514
  %v525 = vmul.f32 %v379, %v514
  %v526 = vmul.f32 %v381, %v514
  %v527 = vmul.f32 %v384, %v514
  %v528 = vmul.f32 %v386, %v514
  %v529 = vmul.f32 %v389, %v514
  %v530 = vmul.f32 %v391, %v514
  %v531 = vmul.f32 %v394, %v514
  %v532 = vmul.f32 %v396, %v514
  %v533 = vmul.f32 %v399, %v514
  %v534 = vmul.f32 %v401, %v514
  %v535 = vmul.f32 %v404, %v514
  %v536 = vmul.f32 %v406, %v514
  %v537 = vmul.f32 %v409, %v514
  %v538 = vmul.f32 %v411, %v514
  %v539 = vmul.f32 %v414, %v514
  %v540 = vmul.f32 %v416, %v514
  %v541 = vmul.f32 %v419, %v514
  %v542 = vmul.f32 %v421, %v514
  %v543 = vmul.f32 %v424, %v514
  %v544 = vmul.f32 %v426, %v514
  %v545 = vmul.f32 %v429, %v514
  %v546 = vmul.f32 %v431, %v514
  %v547 = vmul.f32 %v434, %v514
  %v548 = vmul.f32 %v436, %v514
  %v549 = vmul.f32 %v439, %v514
  %v550 = vmul.f32 %v441, %v514
  %v551 = vmul.f32 %v444, %v514
  %v552 = vmul.f32 %v446, %v514
  %v553 = vmul.f32 %v449, %v514
  %v554 = vmul.f32 %v451, %v514
  %v555 = vmul.f32 %v454, %v514
  %v556 = vmul.f32 %v456, %v514
  %v557 = vmul.f32 %v459, %v514
  %v558 = vmul.f32 %v461, %v514
  %v559 = vmul.f32 %v464, %v514
  %v560 = vmul.f32 %v466, %v514
  %v561 = vmul.f32 %v469, %v514
  %v562 = vmul.f32 %v471, %v514
  %v563 = vmul.f32 %v474, %v514
  %v564 = vmul.f32 %v476, %v514
  %v565 = vmul.f32 %v479, %v514
  %v566 = vmul.f32 %v481, %v514
  %v567 = vmul.f32 %v484, %v514
  %v568 = vmul.f32 %v486, %v514
  %v569 = vmul.f32 %v489, %v514
  %v570 = vmul.f32 %v491, %v514
  %v571 = vmul.f32 %v494, %v514
  %v572 = vmul.f32 %v496, %v514
  %v573 = vmul.f32 %v499, %v514
  %v574 = vmul.f32 %v501, %v514
  %v575 = vmul.f32 %v504, %v514
  %v576 = vmul.f32 %v506, %v514
  %v577 = vmul.f32 %v509, %v514
  %v578 = vmul.f32 %v511, %v514
  %v579 = vld [vmem:[%s2 + $0x1] sm:$0x1]
  %v580 = vperm.slane %v579, 0
  %v581 = vadd.f32 %v515, %v580
  %v582 = vadd.f32 %v516, %v580
  %v583 = vadd.f32 %v517, %v580
  %v584 = vadd.f32 %v518, %v580
  %v585 = vadd.f32 %v519, %v580
  %v586 = vadd.f32 %v520, %v580
  %v587 = vadd.f32 %v521, %v580
  %v588 = vadd.f32 %v522, %v580
  %v589 = vadd.f32 %v523, %v580
  %v590 = vadd.f32 %v524, %v580
  %v591 = vadd.f32 %v525, %v580
  %v592 = vadd.f32 %v526, %v580
  %v593 = vadd.f32 %v527, %v580
  %v594 = vadd.f32 %v528, %v580
  %v595 = vadd.f32 %v529, %v580
  %v596 = vadd.f32 %v530, %v580
  %v597 = vadd.f32 %v531, %v580
  %v598 = vadd.f32 %v532, %v580
  %v599 = vadd.f32 %v533, %v580
  %v600 = vadd.f32 %v534, %v580
  %v601 = vadd.f32 %v535, %v580
  %v602 = vadd.f32 %v536, %v580
  %v603 = vadd.f32 %v537, %v580
  %v604 = vadd.f32 %v538, %v580
  %v605 = vadd.f32 %v539, %v580
  %v606 = vadd.f32 %v540, %v580
  %v607 = vadd.f32 %v541, %v580
  %v608 = vadd.f32 %v542, %v580
  %v609 = vadd.f32 %v543, %v580
  %v610 = vadd.f32 %v544, %v580
  %v611 = vadd.f32 %v545, %v580
  %v612 = vadd.f32 %v546, %v580
  %v613 = vadd.f32 %v547, %v580
  %v614 = vadd.f32 %v548, %v580
  %v615 = vadd.f32 %v549, %v580
  %v616 = vadd.f32 %v550, %v580
  %v617 = vadd.f32 %v551, %v580
  %v618 = vadd.f32 %v552, %v580
  %v619 = vadd.f32 %v553, %v580
  %v620 = vadd.f32 %v554, %v580
  %v621 = vadd.f32 %v555, %v580
  %v622 = vadd.f32 %v556, %v580
  %v623 = vadd.f32 %v557, %v580
  %v624 = vadd.f32 %v558, %v580
  %v625 = vadd.f32 %v559, %v580
  %v626 = vadd.f32 %v560, %v580
  %v627 = vadd.f32 %v561, %v580
  %v628 = vadd.f32 %v562, %v580
  %v629 = vadd.f32 %v563, %v580
  %v630 = vadd.f32 %v564, %v580
  %v631 = vadd.f32 %v565, %v580
  %v632 = vadd.f32 %v566, %v580
  %v633 = vadd.f32 %v567, %v580
  %v634 = vadd.f32 %v568, %v580
  %v635 = vadd.f32 %v569, %v580
  %v636 = vadd.f32 %v570, %v580
  %v637 = vadd.f32 %v571, %v580
  %v638 = vadd.f32 %v572, %v580
  %v639 = vadd.f32 %v573, %v580
  %v640 = vadd.f32 %v574, %v580
  %v641 = vadd.f32 %v575, %v580
  %v642 = vadd.f32 %v576, %v580
  %v643 = vadd.f32 %v577, %v580
  %v644 = vadd.f32 %v578, %v580
  %v645 = vmax.f32 %v581, 0.0
  %v646 = vmax.f32 %v582, 0.0
  %v647 = vmax.f32 %v583, 0.0
  %v648 = vmax.f32 %v584, 0.0
  %v649 = vmax.f32 %v585, 0.0
  %v650 = vmax.f32 %v586, 0.0
  %v651 = vmax.f32 %v587, 0.0
  %v652 = vmax.f32 %v588, 0.0
  %v653 = vmax.f32 %v589, 0.0
  %v654 = vmax.f32 %v590, 0.0
  %v655 = vmax.f32 %v591, 0.0
  %v656 = vmax.f32 %v592, 0.0
  %v657 = vmax.f32 %v593, 0.0
  %v658 = vmax.f32 %v594, 0.0
  %v659 = vmax.f32 %v595, 0.0
  %v660 = vmax.f32 %v596, 0.0
  %v661 = vmax.f32 %v597, 0.0
  %v662 = vmax.f32 %v598, 0.0
  %v663 = vmax.f32 %v599, 0.0
  %v664 = vmax.f32 %v600, 0.0
  %v665 = vmax.f32 %v601, 0.0
  %v666 = vmax.f32 %v602, 0.0
  %v667 = vmax.f32 %v603, 0.0
  %v668 = vmax.f32 %v604, 0.0
  %v669 = vmax.f32 %v605, 0.0
  %v670 = vmax.f32 %v606, 0.0
  %v671 = vmax.f32 %v607, 0.0
  %v672 = vmax.f32 %v608, 0.0
  %v673 = vmax.f32 %v609, 0.0
  %v674 = vmax.f32 %v610, 0.0
  %v675 = vmax.f32 %v611, 0.0
  %v676 = vmax.f32 %v612, 0.0
  %v677 = vmax.f32 %v613, 0.0
  %v678 = vmax.f32 %v614, 0.0
  %v679 = vmax.f32 %v615, 0.0
  %v680 = vmax.f32 %v616, 0.0
  %v681 = vmax.f32 %v617, 0.0
  %v682 = vmax.f32 %v618, 0.0
  %v683 = vmax.f32 %v619, 0.0
  %v684 = vmax.f32 %v620, 0.0
  %v685 = vmax.f32 %v621, 0.0
  %v686 = vmax.f32 %v622, 0.0
  %v687 = vmax.f32 %v623, 0.0
  %v688 = vmax.f32 %v624, 0.0
  %v689 = vmax.f32 %v625, 0.0
  %v690 = vmax.f32 %v626, 0.0
  %v691 = vmax.f32 %v627, 0.0
  %v692 = vmax.f32 %v628, 0.0
  %v693 = vmax.f32 %v629, 0.0
  %v694 = vmax.f32 %v630, 0.0
  %v695 = vmax.f32 %v631, 0.0
  %v696 = vmax.f32 %v632, 0.0
  %v697 = vmax.f32 %v633, 0.0
  %v698 = vmax.f32 %v634, 0.0
  %v699 = vmax.f32 %v635, 0.0
  %v700 = vmax.f32 %v636, 0.0
  %v701 = vmax.f32 %v637, 0.0
  %v702 = vmax.f32 %v638, 0.0
  %v703 = vmax.f32 %v639, 0.0
  %v704 = vmax.f32 %v640, 0.0
  %v705 = vmax.f32 %v641, 0.0
  %v706 = vmax.f32 %v642, 0.0
  %v707 = vmax.f32 %v643, 0.0
  %v708 = vmax.f32 %v644, 0.0
  %v709 = vpack.c.bf16 %v645, %v645
  %v710 = vpack.c.bf16 %v646, %v646
  %v711 = vpack.c.bf16 %v647, %v647
  %v712 = vpack.c.bf16 %v648, %v648
  %v713 = vpack.c.bf16 %v649, %v649
  %v714 = vpack.c.bf16 %v650, %v650
  %v715 = vpack.c.bf16 %v651, %v651
  %v716 = vpack.c.bf16 %v652, %v652
  %v717 = vpack.c.bf16 %v653, %v653
  %v718 = vpack.c.bf16 %v654, %v654
  %v719 = vpack.c.bf16 %v655, %v655
  %v720 = vpack.c.bf16 %v656, %v656
  %v721 = vpack.c.bf16 %v657, %v657
  %v722 = vpack.c.bf16 %v658, %v658
  %v723 = vpack.c.bf16 %v659, %v659
  %v724 = vpack.c.bf16 %v660, %v660
  %v725 = vpack.c.bf16 %v661, %v661
  %v726 = vpack.c.bf16 %v662, %v662
  %v727 = vpack.c.bf16 %v663, %v663
  %v728 = vpack.c.bf16 %v664, %v664
  %v729 = vpack.c.bf16 %v665, %v665
  %v730 = vpack.c.bf16 %v666, %v666
  %v731 = vpack.c.bf16 %v667, %v667
  %v732 = vpack.c.bf16 %v668, %v668
  %v733 = vpack.c.bf16 %v669, %v669
  %v734 = vpack.c.bf16 %v670, %v670
  %v735 = vpack.c.bf16 %v671, %v671
  %v736 = vpack.c.bf16 %v672, %v672
  %v737 = vpack.c.bf16 %v673, %v673
  %v738 = vpack.c.bf16 %v674, %v674
  %v739 = vpack.c.bf16 %v675, %v675
  %v740 = vpack.c.bf16 %v676, %v676
  %v741 = vpack.c.bf16 %v677, %v677
  %v742 = vpack.c.bf16 %v678, %v678
  %v743 = vpack.c.bf16 %v679, %v679
  %v744 = vpack.c.bf16 %v680, %v680
  %v745 = vpack.c.bf16 %v681, %v681
  %v746 = vpack.c.bf16 %v682, %v682
  %v747 = vpack.c.bf16 %v683, %v683
  %v748 = vpack.c.bf16 %v684, %v684
  %v749 = vpack.c.bf16 %v685, %v685
  %v750 = vpack.c.bf16 %v686, %v686
  %v751 = vpack.c.bf16 %v687, %v687
  %v752 = vpack.c.bf16 %v688, %v688
  %v753 = vpack.c.bf16 %v689, %v689
  %v754 = vpack.c.bf16 %v690, %v690
  %v755 = vpack.c.bf16 %v691, %v691
  %v756 = vpack.c.bf16 %v692, %v692
  %v757 = vpack.c.bf16 %v693, %v693
  %v758 = vpack.c.bf16 %v694, %v694
  %v759 = vpack.c.bf16 %v695, %v695
  %v760 = vpack.c.bf16 %v696, %v696
  %v761 = vpack.c.bf16 %v697, %v697
  %v762 = vpack.c.bf16 %v698, %v698
  %v763 = vpack.c.bf16 %v699, %v699
  %v764 = vpack.c.bf16 %v700, %v700
  %v765 = vpack.c.bf16 %v701, %v701
  %v766 = vpack.c.bf16 %v702, %v702
  %v767 = vpack.c.bf16 %v703, %v703
  %v768 = vpack.c.bf16 %v704, %v704
  %v769 = vpack.c.bf16 %v705, %v705
  %v770 = vpack.c.bf16 %v706, %v706
  %v771 = vpack.c.bf16 %v707, %v707
  %v772 = vpack.c.bf16 %v708, %v708
  %vm773 = vcmask 158720
  %774 = vst.msk [vmem:[%s3] sm:$0xf] %vm773, %v709
  %775 = vst.msk [vmem:[%s3 + $0x4] sm:$0xf] %vm773, %v710
  %776 = vst.msk [vmem:[%s3 + $0x8] sm:$0xf] %vm773, %v711
  %777 = vst.msk [vmem:[%s3 + $0xc] sm:$0xf] %vm773, %v712
  %778 = vst.msk [vmem:[%s3 + $0x10] sm:$0xf] %vm773, %v713
  %779 = vst.msk [vmem:[%s3 + $0x14] sm:$0xf] %vm773, %v714
  %780 = vst.msk [vmem:[%s3 + $0x18] sm:$0xf] %vm773, %v715
  %781 = vst.msk [vmem:[%s3 + $0x1c] sm:$0xf] %vm773, %v716
  %782 = vst.msk [vmem:[%s3 + $0x20] sm:$0xf] %vm773, %v717
  %783 = vst.msk [vmem:[%s3 + $0x24] sm:$0xf] %vm773, %v718
  %784 = vst.msk [vmem:[%s3 + $0x28] sm:$0xf] %vm773, %v719
  %785 = vst.msk [vmem:[%s3 + $0x2c] sm:$0xf] %vm773, %v720
  %786 = vst.msk [vmem:[%s3 + $0x30] sm:$0xf] %vm773, %v721
  %787 = vst.msk [vmem:[%s3 + $0x34] sm:$0xf] %vm773, %v722
  %788 = vst.msk [vmem:[%s3 + $0x38] sm:$0xf] %vm773, %v723
  %789 = vst.msk [vmem:[%s3 + $0x3c] sm:$0xf] %vm773, %v724
  %790 = vst.msk [vmem:[%s3 + $0x40] sm:$0xf] %vm773, %v725
  %791 = vst.msk [vmem:[%s3 + $0x44] sm:$0xf] %vm773, %v726
  %792 = vst.msk [vmem:[%s3 + $0x48] sm:$0xf] %vm773, %v727
  %793 = vst.msk [vmem:[%s3 + $0x4c] sm:$0xf] %vm773, %v728
  %794 = vst.msk [vmem:[%s3 + $0x50] sm:$0xf] %vm773, %v729
  %795 = vst.msk [vmem:[%s3 + $0x54] sm:$0xf] %vm773, %v730
  %796 = vst.msk [vmem:[%s3 + $0x58] sm:$0xf] %vm773, %v731
  %797 = vst.msk [vmem:[%s3 + $0x5c] sm:$0xf] %vm773, %v732
  %798 = vst.msk [vmem:[%s3 + $0x60] sm:$0xf] %vm773, %v733
  %799 = vst.msk [vmem:[%s3 + $0x64] sm:$0xf] %vm773, %v734
  %800 = vst.msk [vmem:[%s3 + $0x68] sm:$0xf] %vm773, %v735
  %801 = vst.msk [vmem:[%s3 + $0x6c] sm:$0xf] %vm773, %v736
  %802 = vst.msk [vmem:[%s3 + $0x70] sm:$0xf] %vm773, %v737
  %803 = vst.msk [vmem:[%s3 + $0x74] sm:$0xf] %vm773, %v738
  %804 = vst.msk [vmem:[%s3 + $0x78] sm:$0xf] %vm773, %v739
  %805 = vst.msk [vmem:[%s3 + $0x7c] sm:$0xf] %vm773, %v740
  %806 = vst.msk [vmem:[%s3 + $0x80] sm:$0xf] %vm773, %v741
  %807 = vst.msk [vmem:[%s3 + $0x84] sm:$0xf] %vm773, %v742
  %808 = vst.msk [vmem:[%s3 + $0x88] sm:$0xf] %vm773, %v743
  %809 = vst.msk [vmem:[%s3 + $0x8c] sm:$0xf] %vm773, %v744
  %810 = vst.msk [vmem:[%s3 + $0x90] sm:$0xf] %vm773, %v745
  %811 = vst.msk [vmem:[%s3 + $0x94] sm:$0xf] %vm773, %v746
  %812 = vst.msk [vmem:[%s3 + $0x98] sm:$0xf] %vm773, %v747
  %813 = vst.msk [vmem:[%s3 + $0x9c] sm:$0xf] %vm773, %v748
  %814 = vst.msk [vmem:[%s3 + $0xa0] sm:$0xf] %vm773, %v749
  %815 = vst.msk [vmem:[%s3 + $0xa4] sm:$0xf] %vm773, %v750
  %816 = vst.msk [vmem:[%s3 + $0xa8] sm:$0xf] %vm773, %v751
  %817 = vst.msk [vmem:[%s3 + $0xac] sm:$0xf] %vm773, %v752
  %818 = vst.msk [vmem:[%s3 + $0xb0] sm:$0xf] %vm773, %v753
  %819 = vst.msk [vmem:[%s3 + $0xb4] sm:$0xf] %vm773, %v754
  %820 = vst.msk [vmem:[%s3 + $0xb8] sm:$0xf] %vm773, %v755
  %821 = vst.msk [vmem:[%s3 + $0xbc] sm:$0xf] %vm773, %v756
  %822 = vst.msk [vmem:[%s3 + $0xc0] sm:$0xf] %vm773, %v757
  %823 = vst.msk [vmem:[%s3 + $0xc4] sm:$0xf] %vm773, %v758
  %824 = vst.msk [vmem:[%s3 + $0xc8] sm:$0xf] %vm773, %v759
  %825 = vst.msk [vmem:[%s3 + $0xcc] sm:$0xf] %vm773, %v760
  %826 = vst.msk [vmem:[%s3 + $0xd0] sm:$0xf] %vm773, %v761
  %827 = vst.msk [vmem:[%s3 + $0xd4] sm:$0xf] %vm773, %v762
  %828 = vst.msk [vmem:[%s3 + $0xd8] sm:$0xf] %vm773, %v763
  %829 = vst.msk [vmem:[%s3 + $0xdc] sm:$0xf] %vm773, %v764
  %830 = vst.msk [vmem:[%s3 + $0xe0] sm:$0xf] %vm773, %v765
  %831 = vst.msk [vmem:[%s3 + $0xe4] sm:$0xf] %vm773, %v766
  %832 = vst.msk [vmem:[%s3 + $0xe8] sm:$0xf] %vm773, %v767
  %833 = vst.msk [vmem:[%s3 + $0xec] sm:$0xf] %vm773, %v768
  %834 = vst.msk [vmem:[%s3 + $0xf0] sm:$0xf] %vm773, %v769
  %835 = vst.msk [vmem:[%s3 + $0xf4] sm:$0xf] %vm773, %v770
  %836 = vst.msk [vmem:[%s3 + $0xf8] sm:$0xf] %vm773, %v771
  %837 = vst.msk [vmem:[%s3 + $0xfc] sm:$0xf] %vm773, %v772
  // Predicated region
  $region14: #{_lambda_.9} parent=0 // pred_check
    _
  $region15: #{_lambda_.9} parent=0 // pred_check_branch
    %839 = sbr.rel (0) target = $region17
  $region16: #{_lambda_.9} parent=0 // pred_region
    _
  $region17: #{_lambda_.9} parent=0 // pred_fallthru
    _
  // Predicated region
  $region18: #{_lambda_.9} parent=0 // pred_check
    _
  $region19: #{_lambda_.9} parent=0 // pred_check_branch
    %841 = sbr.rel (0) target = $region21
  $region20: #{_lambda_.9} parent=0 // pred_region
    _
  $region21: #{_lambda_.9} parent=0 // pred_fallthru
    _

// kernel: _lambda_.8
$region0: #{_lambda_.8}
  #allocation0 [shape = 'u32[]', space=smem, size = 0x4, offset = 0x4, fixed_abs, tag = 'smem constant byte address 0x4 - core index']
  #allocation1 [shape = 'u32[72,128]{1,0:T(1,128)}', space=vmem, size = 0x9000, scoped, tag = 'internal scratch']
  %s0 = inlined_call_operand.vmem [shape: bf16[2,18,18,3], index: 0, kind: input, shape index: {}]
  %s1 = inlined_call_operand.vmem [shape: bf16[27,16], index: 1, kind: input, shape index: {}]
  %s2 = inlined_call_operand.vmem [shape: f32[2,16], index: 2, kind: input, shape index: {}]
  %s3 = inlined_call_operand.vmem [shape: bf16[2,16,16,16], index: 3, kind: output, shape index: {}]
  %s4 = sld [smem:[#allocation0]]
  $region45: #{_lambda_.8} parent=0
    _
  %s6 = ssub.s32 1, %s4
  %s7 = scalar_select 0, %s6, %s4
  loop: start=0, step=1, limit=4
  $region2: #{_lambda_.8} parent=0 // loop_pre_header
    _
  $region3: #{_lambda_.8} parent=0 // loop_header
    %s9 = sphi 0, %s13
    %p10 = scmp.ge.s32.totalorder %s9, 4
    %s19 = sphi 0, %s21
    %s22 = sphi 0, %s19
    %s23 = sphi 0, %s22
    %s39 = sphi 0, %s23
    %s43 = sphi 0, %s43
    %s45 = sphi 0, %s43
    %s46 = sphi 0, %s45
    %s60 = sphi 0, %s46
    %s64 = sphi 0, %s64
    %s66 = sphi 0, %s64
    %s67 = sphi 0, %s66
    %s81 = sphi 0, %s67
    %s87 = sphi 0, %s89
    %s90 = sphi 0, %s87
    %s91 = sphi 0, %s90
    %s107 = sphi 0, %s91
  $region4: #{_lambda_.8} parent=0 // loop_header_branch
    %12 = sbr.rel (%p10) target = $region8
  $region5: #{_lambda_.8} parent=0 // loop_body
    %s14 = ssub.s32 %s9, 1
    %s15 = ssub.s32 %s9, 2
    %s16 = sadd.s32 %s9, 1
    %s17 = ssub.s32 %s9, %s16
    %p18 = scmp.eq.s32.totalorder %s17, 0
    %s20 = sadd.s32 %s19, 1
    %s21 = scalar_select %p18, %s19, %s20
    %p24 = pneg %p18
    %p25 = scmp.eq.s32.totalorder %s9, 1
    %p26 = por %p24, %p25
    %p27 = scmp.ne.s32.totalorder %s19, %s22
    %p28 = scmp.eq.s32.totalorder %s9, 0
    %p29 = por %p27, %p28
    %p30 = scmp.ne.s32.totalorder %s19, %s22
    %p31 = scmp.eq.s32.totalorder %s14, 1
    %p32 = por %p30, %p31
    %p33 = scmp.ne.s32.totalorder %s22, %s23
    %p34 = scmp.eq.s32.totalorder %s14, 0
    %p35 = por %p33, %p34
    %p36 = scmp.ne.s32.totalorder %s22, %s23
    %p37 = scmp.eq.s32.totalorder %s15, 1
    %p38 = por %p36, %p37
    %p40 = scmp.ne.s32.totalorder %s23, %s39
    %p41 = scmp.eq.s32.totalorder %s15, 0
    %p42 = por %p40, %p41
    %s44 = sadd.s32 %s43, 1
    %p47 = scmp.eq.s32.totalorder %s9, 1
    %p48 = scmp.ne.s32.totalorder %s43, %s45
    %p49 = scmp.eq.s32.totalorder %s9, 0
    %p50 = por %p48, %p49
    %p51 = scmp.ne.s32.totalorder %s43, %s45
    %p52 = scmp.eq.s32.totalorder %s14, 1
    %p53 = por %p51, %p52
    %p54 = scmp.ne.s32.totalorder %s45, %s46
    %p55 = scmp.eq.s32.totalorder %s14, 0
    %p56 = por %p54, %p55
    %p57 = scmp.ne.s32.totalorder %s45, %s46
    %p58 = scmp.eq.s32.totalorder %s15, 1
    %p59 = por %p57, %p58
    %p61 = scmp.ne.s32.totalorder %s46, %s60
    %p62 = scmp.eq.s32.totalorder %s15, 0
    %p63 = por %p61, %p62
    %s65 = sadd.s32 %s64, 1
    %p68 = scmp.eq.s32.totalorder %s9, 1
    %p69 = scmp.ne.s32.totalorder %s64, %s66
    %p70 = scmp.eq.s32.totalorder %s9, 0
    %p71 = por %p69, %p70
    %p72 = scmp.ne.s32.totalorder %s64, %s66
    %p73 = scmp.eq.s32.totalorder %s14, 1
    %p74 = por %p72, %p73
    %p75 = scmp.ne.s32.totalorder %s66, %s67
    %p76 = scmp.eq.s32.totalorder %s14, 0
    %p77 = por %p75, %p76
    %p78 = scmp.ne.s32.totalorder %s66, %s67
    %p79 = scmp.eq.s32.totalorder %s15, 1
    %p80 = por %p78, %p79
    %p82 = scmp.ne.s32.totalorder %s67, %s81
    %p83 = scmp.eq.s32.totalorder %s15, 0
    %p84 = por %p82, %p83
    %s85 = ssub.s32 %s9, %s16
    %p86 = scmp.eq.s32.totalorder %s85, 0
    %s88 = sadd.s32 %s87, 1
    %s89 = scalar_select %p86, %s87, %s88
    %p92 = pneg %p86
    %p93 = scmp.eq.s32.totalorder %s9, 1
    %p94 = por %p92, %p93
    %p95 = scmp.ne.s32.totalorder %s87, %s90
    %p96 = scmp.eq.s32.totalorder %s9, 0
    %p97 = por %p95, %p96
    %p98 = scmp.ne.s32.totalorder %s87, %s90
    %p99 = scmp.eq.s32.totalorder %s14, 1
    %p100 = por %p98, %p99
    %p101 = scmp.ne.s32.totalorder %s90, %s91
    %p102 = scmp.eq.s32.totalorder %s14, 0
    %p103 = por %p101, %p102
    %p104 = scmp.ne.s32.totalorder %s90, %s91
    %p105 = scmp.eq.s32.totalorder %s15, 1
    %p106 = por %p104, %p105
    %p108 = scmp.ne.s32.totalorder %s91, %s107
    %p109 = scmp.eq.s32.totalorder %s15, 0
    %p110 = por %p108, %p109
    %p111 = scmp.le.s32.totalorder 1, %s9
    %p112 = scmp.lt.s32.totalorder %s9, 3
    %p113 = pnand %p111, %p112
    %p114 = pneg %p113
    // Predicated region
    $region9: #{_lambda_.8} parent=5 // pred_check
      _
    $region10: #{_lambda_.8} parent=5 // pred_check_branch
      %116 = sbr.rel (%p113) target = $region12
    $region11: #{_lambda_.8} parent=5 // pred_region
      %s117 = ssub.s32 %s9, 1
      // Predicated region
      $region13: #{_lambda_.8} parent=11 // pred_check
        %p118 = pneg %p56
      $region14: #{_lambda_.8} parent=11 // pred_check_branch
        %120 = sbr.rel (%p118) target = $region16
      $region15: #{_lambda_.8} parent=11 // pred_region
        _
      $region16: #{_lambda_.8} parent=11 // pred_fallthru
        _
      // Predicated region
      $region17: #{_lambda_.8} parent=11 // pred_check
        %p121 = pneg %p77
      $region18: #{_lambda_.8} parent=11 // pred_check_branch
        %123 = sbr.rel (%p121) target = $region20
      $region19: #{_lambda_.8} parent=11 // pred_region
        _
      $region20: #{_lambda_.8} parent=11 // pred_fallthru
        _
    $region12: #{_lambda_.8} parent=5 // pred_fallthru
      _
    %p124 = scmp.lt.s32.totalorder %s9, 2
    // Predicated region
    $region21: #{_lambda_.8} parent=5 // pred_check
      %p125 = pneg %p124
    $region22: #{_lambda_.8} parent=5 // pred_check_branch
      %127 = sbr.rel (%p125) target = $region24
    $region23: #{_lambda_.8} parent=5 // pred_region
      // Predicated region
      $region25: #{_lambda_.8} parent=23 // pred_check
        %p128 = pneg %p29
      $region26: #{_lambda_.8} parent=23 // pred_check_branch
        %130 = sbr.rel (%p128) target = $region28
      $region27: #{_lambda_.8} parent=23 // pred_region
        %p131 = scmp.lt.s32.totalorder %s9, 1
        %s132 = scalar_select %p131, %s9, 1
        %s133 = smul.addr %s132, 54
        %s134 = smul.addr %s133, 4
        %s135 = scalar_lea.vmem %s0, %s134
      $region28: #{_lambda_.8} parent=23 // pred_fallthru
        _
    $region24: #{_lambda_.8} parent=5 // pred_fallthru
      _
    %p136 = scmp.le.s32.totalorder 1, %s9
    %p137 = scmp.lt.s32.totalorder %s9, 3
    %p138 = pnand %p136, %p137
    %p139 = pneg %p138
    // Predicated region
    $region29: #{_lambda_.8} parent=5 // pred_check
      _
    $region30: #{_lambda_.8} parent=5 // pred_check_branch
      %141 = sbr.rel (%p138) target = $region32
    $region31: #{_lambda_.8} parent=5 // pred_region
      %s142 = ssub.s32 %s9, 1
      %p143 = scmp.lt.s32.totalorder %s14, 1
      %s144 = scalar_select %p143, %s14, 1
      %s145 = smul.addr %s144, 54
      %s146 = smul.addr %s145, 4
      %s147 = scalar_lea.vmem %s0, %s146
      %p148 = pneg %p35
      %p149 = pneg %p32
      %p150 = pneg %p56
      %p151 = pneg %p53
      %p152 = pneg %p77
      %p153 = pneg %p74
      %p154 = pneg %p103
      %p155 = pneg %p100
      %p156 = scmp.lt.s32.totalorder %s14, 1
      %s157 = scalar_select %p156, %s14, 1
      %s158 = smul.addr %s157, 32
      %s159 = smul.addr %s158, 4
      %s160 = scalar_lea.vmem %s3, %s159
      %p161 = scmp.lt.s32.totalorder %s14, 1
      %s162 = scalar_select %p161, %s14, 1
      %s163 = smul.addr %s162, 54
      %s164 = smul.addr %s163, 4
      %s165 = scalar_lea.vmem %s0, %s164
      %p166 = scmp.lt.s32.totalorder %s14, 1
      %s167 = scalar_select %p166, %s14, 1
      %s168 = smul.addr %s167, 32
      %s169 = smul.addr %s168, 4
      %s170 = scalar_lea.vmem %s3, %s169
      %v172 = vld [vmem:[%s165] sm:$0xf]
      %v173 = vld [vmem:[%s165 + $0x4] sm:$0xf]
      %v174 = vld [vmem:[%s165 + $0xc] sm:$0xf]
      %v175 = vld [vmem:[%s165 + $0x10] sm:$0xf]
      %v176 = vld [vmem:[%s165 + $0x18] sm:$0xf]
      %v177 = vld [vmem:[%s165 + $0x1c] sm:$0xf]
      %v178 = vld [vmem:[%s165 + $0x24] sm:$0xf]
      %v179 = vld [vmem:[%s165 + $0x28] sm:$0xf]
      %v180 = vld [vmem:[%s165 + $0x30] sm:$0xf]
      %v181 = vld [vmem:[%s165 + $0x34] sm:$0xf]
      %v182 = vld [vmem:[%s165 + $0x3c] sm:$0xf]
      %v183 = vld [vmem:[%s165 + $0x40] sm:$0xf]
      %v184 = vld [vmem:[%s165 + $0x48] sm:$0xf]
      %v185 = vld [vmem:[%s165 + $0x4c] sm:$0xf]
      %v186 = vld [vmem:[%s165 + $0x54] sm:$0xf]
      %v187 = vld [vmem:[%s165 + $0x58] sm:$0xf]
      %v188 = vld [vmem:[%s165 + $0x60] sm:$0xf]
      %v189 = vld [vmem:[%s165 + $0x64] sm:$0xf]
      %v190 = vld [vmem:[%s165 + $0x6c] sm:$0xf]
      %v191 = vld [vmem:[%s165 + $0x70] sm:$0xf]
      %v192 = vld [vmem:[%s165 + $0x78] sm:$0xf]
      %v193 = vld [vmem:[%s165 + $0x7c] sm:$0xf]
      %v194 = vld [vmem:[%s165 + $0x84] sm:$0xf]
      %v195 = vld [vmem:[%s165 + $0x88] sm:$0xf]
      %v196 = vld [vmem:[%s165 + $0x90] sm:$0xf]
      %v197 = vld [vmem:[%s165 + $0x94] sm:$0xf]
      %v198 = vld [vmem:[%s165 + $0x9c] sm:$0xf]
      %v199 = vld [vmem:[%s165 + $0xa0] sm:$0xf]
      %v200 = vld [vmem:[%s165 + $0xa8] sm:$0xf]
      %v201 = vld [vmem:[%s165 + $0xac] sm:$0xf]
      %v202 = vld [vmem:[%s165 + $0xb4] sm:$0xf]
      %v203 = vld [vmem:[%s165 + $0xb8] sm:$0xf]
      %v204 = vld [vmem:[%s165 + $0x8] sm:$0x1]
      %v205 = vld [vmem:[%s165 + $0x14] sm:$0x1]
      %v206 = vld [vmem:[%s165 + $0x20] sm:$0x1]
      %v207 = vld [vmem:[%s165 + $0x2c] sm:$0x1]
      %v208 = vld [vmem:[%s165 + $0x38] sm:$0x1]
      %v209 = vld [vmem:[%s165 + $0x44] sm:$0x1]
      %v210 = vld [vmem:[%s165 + $0x50] sm:$0x1]
      %v211 = vld [vmem:[%s165 + $0x5c] sm:$0x1]
      %v212 = vld [vmem:[%s165 + $0x68] sm:$0x1]
      %v213 = vld [vmem:[%s165 + $0x74] sm:$0x1]
      %v214 = vld [vmem:[%s165 + $0x80] sm:$0x1]
      %v215 = vld [vmem:[%s165 + $0x8c] sm:$0x1]
      %v216 = vld [vmem:[%s165 + $0x98] sm:$0x1]
      %v217 = vld [vmem:[%s165 + $0xa4] sm:$0x1]
      %v218 = vld [vmem:[%s165 + $0xb0] sm:$0x1]
      %v219 = vld [vmem:[%s165 + $0xbc] sm:$0x1]
      %v220 = vld [vmem:[%s165] sm:$0xe]
      %v221 = vld [vmem:[%s165 + $0xc] sm:$0xe]
      %v222 = vld [vmem:[%s165 + $0x18] sm:$0xe]
      %v223 = vld [vmem:[%s165 + $0x24] sm:$0xe]
      %v224 = vld [vmem:[%s165 + $0x30] sm:$0xe]
      %v225 = vld [vmem:[%s165 + $0x3c] sm:$0xe]
      %v226 = vld [vmem:[%s165 + $0x48] sm:$0xe]
      %v227 = vld [vmem:[%s165 + $0x54] sm:$0xe]
      %v228 = vld [vmem:[%s165 + $0x60] sm:$0xe]
      %v229 = vld [vmem:[%s165 + $0x6c] sm:$0xe]
      %v230 = vld [vmem:[%s165 + $0x78] sm:$0xe]
      %v231 = vld [vmem:[%s165 + $0x84] sm:$0xe]
      %v232 = vld [vmem:[%s165 + $0x90] sm:$0xe]
      %v233 = vld [vmem:[%s165 + $0x9c] sm:$0xe]
      %v234 = vld [vmem:[%s165 + $0xa8] sm:$0xe]
      %v235 = vld [vmem:[%s165 + $0xb4] sm:$0xe]
      %s236 = scalar_lea.vmem %s165, 12
      %v237 = vld [vmem:[%s236] sm:$0xf]
      %v238 = vld [vmem:[%s236 + $0x4] sm:$0xf]
      %v239 = vld [vmem:[%s236 + $0xc] sm:$0xf]
      %v240 = vld [vmem:[%s236 + $0x10] sm:$0xf]
      %v241 = vld [vmem:[%s236 + $0x18] sm:$0xf]
      %v242 = vld [vmem:[%s236 + $0x1c] sm:$0xf]
      %v243 = vld [vmem:[%s236 + $0x24] sm:$0xf]
      %v244 = vld [vmem:[%s236 + $0x28] sm:$0xf]
      %v245 = vld [vmem:[%s236 + $0x30] sm:$0xf]
      %v246 = vld [vmem:[%s236 + $0x34] sm:$0xf]
      %v247 = vld [vmem:[%s236 + $0x3c] sm:$0xf]
      %v248 = vld [vmem:[%s236 + $0x40] sm:$0xf]
      %v249 = vld [vmem:[%s236 + $0x48] sm:$0xf]
      %v250 = vld [vmem:[%s236 + $0x4c] sm:$0xf]
      %v251 = vld [vmem:[%s236 + $0x54] sm:$0xf]
      %v252 = vld [vmem:[%s236 + $0x58] sm:$0xf]
      %v253 = vld [vmem:[%s236 + $0x60] sm:$0xf]
      %v254 = vld [vmem:[%s236 + $0x64] sm:$0xf]
      %v255 = vld [vmem:[%s236 + $0x6c] sm:$0xf]
      %v256 = vld [vmem:[%s236 + $0x70] sm:$0xf]
      %v257 = vld [vmem:[%s236 + $0x78] sm:$0xf]
      %v258 = vld [vmem:[%s236 + $0x7c] sm:$0xf]
      %v259 = vld [vmem:[%s236 + $0x84] sm:$0xf]
      %v260 = vld [vmem:[%s236 + $0x88] sm:$0xf]
      %v261 = vld [vmem:[%s236 + $0x90] sm:$0xf]
      %v262 = vld [vmem:[%s236 + $0x94] sm:$0xf]
      %v263 = vld [vmem:[%s236 + $0x9c] sm:$0xf]
      %v264 = vld [vmem:[%s236 + $0xa0] sm:$0xf]
      %v265 = vld [vmem:[%s236 + $0xa8] sm:$0xf]
      %v266 = vld [vmem:[%s236 + $0xac] sm:$0xf]
      %v267 = vld [vmem:[%s236 + $0xb4] sm:$0xf]
      %v268 = vld [vmem:[%s236 + $0xb8] sm:$0xf]
      %v269 = vld [vmem:[%s236 + $0x8] sm:$0x1]
      %v270 = vld [vmem:[%s236 + $0x14] sm:$0x1]
      %v271 = vld [vmem:[%s236 + $0x20] sm:$0x1]
      %v272 = vld [vmem:[%s236 + $0x2c] sm:$0x1]
      %v273 = vld [vmem:[%s236 + $0x38] sm:$0x1]
      %v274 = vld [vmem:[%s236 + $0x44] sm:$0x1]
      %v275 = vld [vmem:[%s236 + $0x50] sm:$0x1]
      %v276 = vld [vmem:[%s236 + $0x5c] sm:$0x1]
      %v277 = vld [vmem:[%s236 + $0x68] sm:$0x1]
      %v278 = vld [vmem:[%s236 + $0x74] sm:$0x1]
      %v279 = vld [vmem:[%s236 + $0x80] sm:$0x1]
      %v280 = vld [vmem:[%s236 + $0x8c] sm:$0x1]
      %v281 = vld [vmem:[%s236 + $0x98] sm:$0x1]
      %v282 = vld [vmem:[%s236 + $0xa4] sm:$0x1]
      %v283 = vld [vmem:[%s236 + $0xb0] sm:$0x1]
      %v284 = vld [vmem:[%s236 + $0xbc] sm:$0x1]
      %v285 = vld [vmem:[%s236] sm:$0xe]
      %v286 = vld [vmem:[%s236 + $0xc] sm:$0xe]
      %v287 = vld [vmem:[%s236 + $0x18] sm:$0xe]
      %v288 = vld [vmem:[%s236 + $0x24] sm:$0xe]
      %v289 = vld [vmem:[%s236 + $0x30] sm:$0xe]
      %v290 = vld [vmem:[%s236 + $0x3c] sm:$0xe]
      %v291 = vld [vmem:[%s236 + $0x48] sm:$0xe]
      %v292 = vld [vmem:[%s236 + $0x54] sm:$0xe]
      %v293 = vld [vmem:[%s236 + $0x60] sm:$0xe]
      %v294 = vld [vmem:[%s236 + $0x6c] sm:$0xe]
      %v295 = vld [vmem:[%s236 + $0x78] sm:$0xe]
      %v296 = vld [vmem:[%s236 + $0x84] sm:$0xe]
      %v297 = vld [vmem:[%s236 + $0x90] sm:$0xe]
      %v298 = vld [vmem:[%s236 + $0x9c] sm:$0xe]
      %v299 = vld [vmem:[%s236 + $0xa8] sm:$0xe]
      %v300 = vld [vmem:[%s236 + $0xb4] sm:$0xe]
      %s301 = scalar_lea.vmem %s165, 24
      %v302 = vld [vmem:[%s301] sm:$0xf]
      %v303 = vld [vmem:[%s301 + $0x4] sm:$0xf]
      %v304 = vld [vmem:[%s301 + $0xc] sm:$0xf]
      %v305 = vld [vmem:[%s301 + $0x10] sm:$0xf]
      %v306 = vld [vmem:[%s301 + $0x18] sm:$0xf]
      %v307 = vld [vmem:[%s301 + $0x1c] sm:$0xf]
      %v308 = vld [vmem:[%s301 + $0x24] sm:$0xf]
      %v309 = vld [vmem:[%s301 + $0x28] sm:$0xf]
      %v310 = vld [vmem:[%s301 + $0x30] sm:$0xf]
      %v311 = vld [vmem:[%s301 + $0x34] sm:$0xf]
      %v312 = vld [vmem:[%s301 + $0x3c] sm:$0xf]
      %v313 = vld [vmem:[%s301 + $0x40] sm:$0xf]
      %v314 = vld [vmem:[%s301 + $0x48] sm:$0xf]
      %v315 = vld [vmem:[%s301 + $0x4c] sm:$0xf]
      %v316 = vld [vmem:[%s301 + $0x54] sm:$0xf]
      %v317 = vld [vmem:[%s301 + $0x58] sm:$0xf]
      %v318 = vld [vmem:[%s301 + $0x60] sm:$0xf]
      %v319 = vld [vmem:[%s301 + $0x64] sm:$0xf]
      %v320 = vld [vmem:[%s301 + $0x6c] sm:$0xf]
      %v321 = vld [vmem:[%s301 + $0x70] sm:$0xf]
      %v322 = vld [vmem:[%s301 + $0x78] sm:$0xf]
      %v323 = vld [vmem:[%s301 + $0x7c] sm:$0xf]
      %v324 = vld [vmem:[%s301 + $0x84] sm:$0xf]
      %v325 = vld [vmem:[%s301 + $0x88] sm:$0xf]
      %v326 = vld [vmem:[%s301 + $0x90] sm:$0xf]
      %v327 = vld [vmem:[%s301 + $0x94] sm:$0xf]
      %v328 = vld [vmem:[%s301 + $0x9c] sm:$0xf]
      %v329 = vld [vmem:[%s301 + $0xa0] sm:$0xf]
      %v330 = vld [vmem:[%s301 + $0xa8] sm:$0xf]
      %v331 = vld [vmem:[%s301 + $0xac] sm:$0xf]
      %v332 = vld [vmem:[%s301 + $0xb4] sm:$0xf]
      %v333 = vld [vmem:[%s301 + $0xb8] sm:$0xf]
      %v334 = vld [vmem:[%s301 + $0x8] sm:$0x1]
      %v335 = vld [vmem:[%s301 + $0x14] sm:$0x1]
      %v336 = vld [vmem:[%s301 + $0x20] sm:$0x1]
      %v337 = vld [vmem:[%s301 + $0x2c] sm:$0x1]
      %v338 = vld [vmem:[%s301 + $0x38] sm:$0x1]
      %v339 = vld [vmem:[%s301 + $0x44] sm:$0x1]
      %v340 = vld [vmem:[%s301 + $0x50] sm:$0x1]
      %v341 = vld [vmem:[%s301 + $0x5c] sm:$0x1]
      %v342 = vld [vmem:[%s301 + $0x68] sm:$0x1]
      %v343 = vld [vmem:[%s301 + $0x74] sm:$0x1]
      %v344 = vld [vmem:[%s301 + $0x80] sm:$0x1]
      %v345 = vld [vmem:[%s301 + $0x8c] sm:$0x1]
      %v346 = vld [vmem:[%s301 + $0x98] sm:$0x1]
      %v347 = vld [vmem:[%s301 + $0xa4] sm:$0x1]
      %v348 = vld [vmem:[%s301 + $0xb0] sm:$0x1]
      %v349 = vld [vmem:[%s301 + $0xbc] sm:$0x1]
      %v350 = vld [vmem:[%s301] sm:$0xe]
      %v351 = vld [vmem:[%s301 + $0xc] sm:$0xe]
      %v352 = vld [vmem:[%s301 + $0x18] sm:$0xe]
      %v353 = vld [vmem:[%s301 + $0x24] sm:$0xe]
      %v354 = vld [vmem:[%s301 + $0x30] sm:$0xe]
      %v355 = vld [vmem:[%s301 + $0x3c] sm:$0xe]
      %v356 = vld [vmem:[%s301 + $0x48] sm:$0xe]
      %v357 = vld [vmem:[%s301 + $0x54] sm:$0xe]
      %v358 = vld [vmem:[%s301 + $0x60] sm:$0xe]
      %v359 = vld [vmem:[%s301 + $0x6c] sm:$0xe]
      %v360 = vld [vmem:[%s301 + $0x78] sm:$0xe]
      %v361 = vld [vmem:[%s301 + $0x84] sm:$0xe]
      %v362 = vld [vmem:[%s301 + $0x90] sm:$0xe]
      %v363 = vld [vmem:[%s301 + $0x9c] sm:$0xe]
      %v364 = vld [vmem:[%s301 + $0xa8] sm:$0xe]
      %v365 = vld [vmem:[%s301 + $0xb4] sm:$0xe]
      %v398 = vunpack.c.l.b16 %v172
      %v399 = vunpack.c.l.b16 %v173
      %v400 = vunpack.c.l.b16 %v174
      %v401 = vunpack.c.l.b16 %v175
      %v402 = vunpack.c.l.b16 %v176
      %v403 = vunpack.c.l.b16 %v177
      %v404 = vunpack.c.l.b16 %v178
      %v405 = vunpack.c.l.b16 %v179
      %v406 = vunpack.c.l.b16 %v180
      %v407 = vunpack.c.l.b16 %v181
      %v408 = vunpack.c.l.b16 %v182
      %v409 = vunpack.c.l.b16 %v183
      %v410 = vunpack.c.l.b16 %v184
      %v411 = vunpack.c.l.b16 %v185
      %v412 = vunpack.c.l.b16 %v186
      %v413 = vunpack.c.l.b16 %v187
      %v414 = vunpack.c.l.b16 %v188
      %v415 = vunpack.c.l.b16 %v189
      %v416 = vunpack.c.l.b16 %v190
      %v417 = vunpack.c.l.b16 %v191
      %v418 = vunpack.c.l.b16 %v192
      %v419 = vunpack.c.l.b16 %v193
      %v420 = vunpack.c.l.b16 %v194
      %v421 = vunpack.c.l.b16 %v195
      %v422 = vunpack.c.l.b16 %v196
      %v423 = vunpack.c.l.b16 %v197
      %v424 = vunpack.c.l.b16 %v198
      %v425 = vunpack.c.l.b16 %v199
      %v426 = vunpack.c.l.b16 %v200
      %v427 = vunpack.c.l.b16 %v201
      %v428 = vunpack.c.l.b16 %v202
      %v429 = vunpack.c.l.b16 %v203
      %v430 = vpack.c.b16 %v399, %v398
      %v431 = vpack.c.b16 %v401, %v400
      %v432 = vpack.c.b16 %v403, %v402
      %v433 = vpack.c.b16 %v405, %v404
      %v434 = vpack.c.b16 %v407, %v406
      %v435 = vpack.c.b16 %v409, %v408
      %v436 = vpack.c.b16 %v411, %v410
      %v437 = vpack.c.b16 %v413, %v412
      %v438 = vpack.c.b16 %v415, %v414
      %v439 = vpack.c.b16 %v417, %v416
      %v440 = vpack.c.b16 %v419, %v418
      %v441 = vpack.c.b16 %v421, %v420
      %v442 = vpack.c.b16 %v423, %v422
      %v443 = vpack.c.b16 %v425, %v424
      %v444 = vpack.c.b16 %v427, %v426
      %v445 = vpack.c.b16 %v429, %v428
      %v462 = vunpack.c.l.b16 %v204
      %v463 = vunpack.c.l.b16 %v205
      %v464 = vunpack.c.l.b16 %v206
      %v465 = vunpack.c.l.b16 %v207
      %v466 = vunpack.c.l.b16 %v208
      %v467 = vunpack.c.l.b16 %v209
      %v468 = vunpack.c.l.b16 %v210
      %v469 = vunpack.c.l.b16 %v211
      %v470 = vunpack.c.l.b16 %v212
      %v471 = vunpack.c.l.b16 %v213
      %v472 = vunpack.c.l.b16 %v214
      %v473 = vunpack.c.l.b16 %v215
      %v474 = vunpack.c.l.b16 %v216
      %v475 = vunpack.c.l.b16 %v217
      %v476 = vunpack.c.l.b16 %v218
      %v477 = vunpack.c.l.b16 %v219
      %v478 = vpack.c.b16 %v462, %v462
      %v479 = vpack.c.b16 %v463, %v463
      %v480 = vpack.c.b16 %v464, %v464
      %v481 = vpack.c.b16 %v465, %v465
      %v482 = vpack.c.b16 %v466, %v466
      %v483 = vpack.c.b16 %v467, %v467
      %v484 = vpack.c.b16 %v468, %v468
      %v485 = vpack.c.b16 %v469, %v469
      %v486 = vpack.c.b16 %v470, %v470
      %v487 = vpack.c.b16 %v471, %v471
      %v488 = vpack.c.b16 %v472, %v472
      %v489 = vpack.c.b16 %v473, %v473
      %v490 = vpack.c.b16 %v474, %v474
      %v491 = vpack.c.b16 %v475, %v475
      %v492 = vpack.c.b16 %v476, %v476
      %v493 = vpack.c.b16 %v477, %v477
      %vm494 = vsmask.f32 7424
      %v496 = vshrl.u32 %v430, 16
      %v498 = vshll.u32 %v430, 16
      %v500 = vrot.slane %v498, 1
      %v501 = vor.u32 %v496, %v500
      %v503 = vshll.u32 %v478, 16
      %v505 = vrot.slane %v503, 1
      %v506 = vsel %vm494, %v501, %v505
      %v508 = vshrl.u32 %v431, 16
      %v510 = vshll.u32 %v431, 16
      %v512 = vrot.slane %v510, 1
      %v513 = vor.u32 %v508, %v512
      %v515 = vshll.u32 %v479, 16
      %v517 = vrot.slane %v515, 1
      %v518 = vsel %vm494, %v513, %v517
      %v520 = vshrl.u32 %v432, 16
      %v522 = vshll.u32 %v432, 16
      %v524 = vrot.slane %v522, 1
      %v525 = vor.u32 %v520, %v524
      %v527 = vshll.u32 %v480, 16
      %v529 = vrot.slane %v527, 1
      %v530 = vsel %vm494, %v525, %v529
      %v532 = vshrl.u32 %v433, 16
      %v534 = vshll.u32 %v433, 16
      %v536 = vrot.slane %v534, 1
      %v537 = vor.u32 %v532, %v536
      %v539 = vshll.u32 %v481, 16
      %v541 = vrot.slane %v539, 1
      %v542 = vsel %vm494, %v537, %v541
      %v544 = vshrl.u32 %v434, 16
      %v546 = vshll.u32 %v434, 16
      %v548 = vrot.slane %v546, 1
      %v549 = vor.u32 %v544, %v548
      %v551 = vshll.u32 %v482, 16
      %v553 = vrot.slane %v551, 1
      %v554 = vsel %vm494, %v549, %v553
      %v556 = vshrl.u32 %v435, 16
      %v558 = vshll.u32 %v435, 16
      %v560 = vrot.slane %v558, 1
      %v561 = vor.u32 %v556, %v560
      %v563 = vshll.u32 %v483, 16
      %v565 = vrot.slane %v563, 1
      %v566 = vsel %vm494, %v561, %v565
      %v568 = vshrl.u32 %v436, 16
      %v570 = vshll.u32 %v436, 16
      %v572 = vrot.slane %v570, 1
      %v573 = vor.u32 %v568, %v572
      %v575 = vshll.u32 %v484, 16
      %v577 = vrot.slane %v575, 1
      %v578 = vsel %vm494, %v573, %v577
      %v580 = vshrl.u32 %v437, 16
      %v582 = vshll.u32 %v437, 16
      %v584 = vrot.slane %v582, 1
      %v585 = vor.u32 %v580, %v584
      %v587 = vshll.u32 %v485, 16
      %v589 = vrot.slane %v587, 1
      %v590 = vsel %vm494, %v585, %v589
      %v592 = vshrl.u32 %v438, 16
      %v594 = vshll.u32 %v438, 16
      %v596 = vrot.slane %v594, 1
      %v597 = vor.u32 %v592, %v596
      %v599 = vshll.u32 %v486, 16
      %v601 = vrot.slane %v599, 1
      %v602 = vsel %vm494, %v597, %v601
      %v604 = vshrl.u32 %v439, 16
      %v606 = vshll.u32 %v439, 16
      %v608 = vrot.slane %v606, 1
      %v609 = vor.u32 %v604, %v608
      %v611 = vshll.u32 %v487, 16
      %v613 = vrot.slane %v611, 1
      %v614 = vsel %vm494, %v609, %v613
      %v616 = vshrl.u32 %v440, 16
      %v618 = vshll.u32 %v440, 16
      %v620 = vrot.slane %v618, 1
      %v621 = vor.u32 %v616, %v620
      %v623 = vshll.u32 %v488, 16
      %v625 = vrot.slane %v623, 1
      %v626 = vsel %vm494, %v621, %v625
      %v628 = vshrl.u32 %v441, 16
      %v630 = vshll.u32 %v441, 16
      %v632 = vrot.slane %v630, 1
      %v633 = vor.u32 %v628, %v632
      %v635 = vshll.u32 %v489, 16
      %v637 = vrot.slane %v635, 1
      %v638 = vsel %vm494, %v633, %v637
      %v640 = vshrl.u32 %v442, 16
      %v642 = vshll.u32 %v442, 16
      %v644 = vrot.slane %v642, 1
      %v645 = vor.u32 %v640, %v644
      %v647 = vshll.u32 %v490, 16
      %v649 = vrot.slane %v647, 1
      %v650 = vsel %vm494, %v645, %v649
      %v652 = vshrl.u32 %v443, 16
      %v654 = vshll.u32 %v443, 16
      %v656 = vrot.slane %v654, 1
      %v657 = vor.u32 %v652, %v656
      %v659 = vshll.u32 %v491, 16
      %v661 = vrot.slane %v659, 1
      %v662 = vsel %vm494, %v657, %v661
      %v664 = vshrl.u32 %v444, 16
      %v666 = vshll.u32 %v444, 16
      %v668 = vrot.slane %v666, 1
      %v669 = vor.u32 %v664, %v668
      %v671 = vshll.u32 %v492, 16
      %v673 = vrot.slane %v671, 1
      %v674 = vsel %vm494, %v669, %v673
      %v676 = vshrl.u32 %v445, 16
      %v678 = vshll.u32 %v445, 16
      %v680 = vrot.slane %v678, 1
      %v681 = vor.u32 %v676, %v680
      %v683 = vshll.u32 %v493, 16
      %v685 = vrot.slane %v683, 1
      %v686 = vsel %vm494, %v681, %v685
      %687 = vrot.lane.b32.xlu0 %v506, 3
      %v688 = vpop.permute.xlu0 %687
      %689 = vrot.lane.b32.xlu0 %v518, 3
      %v690 = vpop.permute.xlu0 %689
      %691 = vrot.lane.b32.xlu0 %v530, 3
      %v692 = vpop.permute.xlu0 %691
      %693 = vrot.lane.b32.xlu0 %v542, 3
      %v694 = vpop.permute.xlu0 %693
      %695 = vrot.lane.b32.xlu0 %v554, 3
      %v696 = vpop.permute.xlu0 %695
      %697 = vrot.lane.b32.xlu0 %v566, 3
      %v698 = vpop.permute.xlu0 %697
      %699 = vrot.lane.b32.xlu0 %v578, 3
      %v700 = vpop.permute.xlu0 %699
      %701 = vrot.lane.b32.xlu0 %v590, 3
      %v702 = vpop.permute.xlu0 %701
      %703 = vrot.lane.b32.xlu0 %v602, 3
      %v704 = vpop.permute.xlu0 %703
      %705 = vrot.lane.b32.xlu0 %v614, 3
      %v706 = vpop.permute.xlu0 %705
      %707 = vrot.lane.b32.xlu0 %v626, 3
      %v708 = vpop.permute.xlu0 %707
      %709 = vrot.lane.b32.xlu0 %v638, 3
      %v710 = vpop.permute.xlu0 %709
      %711 = vrot.lane.b32.xlu0 %v650, 3
      %v712 = vpop.permute.xlu0 %711
      %713 = vrot.lane.b32.xlu0 %v662, 3
      %v714 = vpop.permute.xlu0 %713
      %715 = vrot.lane.b32.xlu0 %v674, 3
      %v716 = vpop.permute.xlu0 %715
      %717 = vrot.lane.b32.xlu0 %v686, 3
      %v718 = vpop.permute.xlu0 %717
      %v735 = vunpack.c.l.b16 %v220
      %v736 = vunpack.c.l.b16 %v221
      %v737 = vunpack.c.l.b16 %v222
      %v738 = vunpack.c.l.b16 %v223
      %v739 = vunpack.c.l.b16 %v224
      %v740 = vunpack.c.l.b16 %v225
      %v741 = vunpack.c.l.b16 %v226
      %v742 = vunpack.c.l.b16 %v227
      %v743 = vunpack.c.l.b16 %v228
      %v744 = vunpack.c.l.b16 %v229
      %v745 = vunpack.c.l.b16 %v230
      %v746 = vunpack.c.l.b16 %v231
      %v747 = vunpack.c.l.b16 %v232
      %v748 = vunpack.c.l.b16 %v233
      %v749 = vunpack.c.l.b16 %v234
      %v750 = vunpack.c.l.b16 %v235
      %v751 = vpack.c.b16 %v399, %v735
      %v752 = vpack.c.b16 %v401, %v736
      %v753 = vpack.c.b16 %v403, %v737
      %v754 = vpack.c.b16 %v405, %v738
      %v755 = vpack.c.b16 %v407, %v739
      %v756 = vpack.c.b16 %v409, %v740
      %v757 = vpack.c.b16 %v411, %v741
      %v758 = vpack.c.b16 %v413, %v742
      %v759 = vpack.c.b16 %v415, %v743
      %v760 = vpack.c.b16 %v417, %v744
      %v761 = vpack.c.b16 %v419, %v745
      %v762 = vpack.c.b16 %v421, %v746
      %v763 = vpack.c.b16 %v423, %v747
      %v764 = vpack.c.b16 %v425, %v748
      %v765 = vpack.c.b16 %v427, %v749
      %v766 = vpack.c.b16 %v429, %v750
      %vm767 = vcmask 1046528
      %v768 = vrot.slane %v751, 1
      %v769 = vrot.slane %v478, 1
      %v770 = vsel %vm767, %v768, %v769
      %v771 = vrot.slane %v752, 1
      %v772 = vrot.slane %v479, 1
      %v773 = vsel %vm767, %v771, %v772
      %v774 = vrot.slane %v753, 1
      %v775 = vrot.slane %v480, 1
      %v776 = vsel %vm767, %v774, %v775
      %v777 = vrot.slane %v754, 1
      %v778 = vrot.slane %v481, 1
      %v779 = vsel %vm767, %v777, %v778
      %v780 = vrot.slane %v755, 1
      %v781 = vrot.slane %v482, 1
      %v782 = vsel %vm767, %v780, %v781
      %v783 = vrot.slane %v756, 1
      %v784 = vrot.slane %v483, 1
      %v785 = vsel %vm767, %v783, %v784
      %v786 = vrot.slane %v757, 1
      %v787 = vrot.slane %v484, 1
      %v788 = vsel %vm767, %v786, %v787
      %v789 = vrot.slane %v758, 1
      %v790 = vrot.slane %v485, 1
      %v791 = vsel %vm767, %v789, %v790
      %v792 = vrot.slane %v759, 1
      %v793 = vrot.slane %v486, 1
      %v794 = vsel %vm767, %v792, %v793
      %v795 = vrot.slane %v760, 1
      %v796 = vrot.slane %v487, 1
      %v797 = vsel %vm767, %v795, %v796
      %v798 = vrot.slane %v761, 1
      %v799 = vrot.slane %v488, 1
      %v800 = vsel %vm767, %v798, %v799
      %v801 = vrot.slane %v762, 1
      %v802 = vrot.slane %v489, 1
      %v803 = vsel %vm767, %v801, %v802
      %v804 = vrot.slane %v763, 1
      %v805 = vrot.slane %v490, 1
      %v806 = vsel %vm767, %v804, %v805
      %v807 = vrot.slane %v764, 1
      %v808 = vrot.slane %v491, 1
      %v809 = vsel %vm767, %v807, %v808
      %v810 = vrot.slane %v765, 1
      %v811 = vrot.slane %v492, 1
      %v812 = vsel %vm767, %v810, %v811
      %v813 = vrot.slane %v766, 1
      %v814 = vrot.slane %v493, 1
      %v815 = vsel %vm767, %v813, %v814
      %816 = vrot.lane.b32.xlu0 %v770, 6
      %v817 = vpop.permute.xlu0 %816
      %818 = vrot.lane.b32.xlu0 %v773, 6
      %v819 = vpop.permute.xlu0 %818
      %820 = vrot.lane.b32.xlu0 %v776, 6
      %v821 = vpop.permute.xlu0 %820
      %822 = vrot.lane.b32.xlu0 %v779, 6
      %v823 = vpop.permute.xlu0 %822
      %824 = vrot.lane.b32.xlu0 %v782, 6
      %v825 = vpop.permute.xlu0 %824
      %826 = vrot.lane.b32.xlu0 %v785, 6
      %v827 = vpop.permute.xlu0 %826
      %828 = vrot.lane.b32.xlu0 %v788, 6
      %v829 = vpop.permute.xlu0 %828
      %830 = vrot.lane.b32.xlu0 %v791, 6
      %v831 = vpop.permute.xlu0 %830
      %832 = vrot.lane.b32.xlu0 %v794, 6
      %v833 = vpop.permute.xlu0 %832
      %834 = vrot.lane.b32.xlu0 %v797, 6
      %v835 = vpop.permute.xlu0 %834
      %836 = vrot.lane.b32.xlu0 %v800, 6
      %v837 = vpop.permute.xlu0 %836
      %838 = vrot.lane.b32.xlu0 %v803, 6
      %v839 = vpop.permute.xlu0 %838
      %840 = vrot.lane.b32.xlu0 %v806, 6
      %v841 = vpop.permute.xlu0 %840
      %842 = vrot.lane.b32.xlu0 %v809, 6
      %v843 = vpop.permute.xlu0 %842
      %844 = vrot.lane.b32.xlu0 %v812, 6
      %v845 = vpop.permute.xlu0 %844
      %846 = vrot.lane.b32.xlu0 %v815, 6
      %v847 = vpop.permute.xlu0 %846
      %v880 = vunpack.c.l.b16 %v237
      %v881 = vunpack.c.l.b16 %v238
      %v882 = vunpack.c.l.b16 %v239
      %v883 = vunpack.c.l.b16 %v240
      %v884 = vunpack.c.l.b16 %v241
      %v885 = vunpack.c.l.b16 %v242
      %v886 = vunpack.c.l.b16 %v243
      %v887 = vunpack.c.l.b16 %v244
      %v888 = vunpack.c.l.b16 %v245
      %v889 = vunpack.c.l.b16 %v246
      %v890 = vunpack.c.l.b16 %v247
      %v891 = vunpack.c.l.b16 %v248
      %v892 = vunpack.c.l.b16 %v249
      %v893 = vunpack.c.l.b16 %v250
      %v894 = vunpack.c.l.b16 %v251
      %v895 = vunpack.c.l.b16 %v252
      %v896 = vunpack.c.l.b16 %v253
      %v897 = vunpack.c.l.b16 %v254
      %v898 = vunpack.c.l.b16 %v255
      %v899 = vunpack.c.l.b16 %v256
      %v900 = vunpack.c.l.b16 %v257
      %v901 = vunpack.c.l.b16 %v258
      %v902 = vunpack.c.l.b16 %v259
      %v903 = vunpack.c.l.b16 %v260
      %v904 = vunpack.c.l.b16 %v261
      %v905 = vunpack.c.l.b16 %v262
      %v906 = vunpack.c.l.b16 %v263
      %v907 = vunpack.c.l.b16 %v264
      %v908 = vunpack.c.l.b16 %v265
      %v909 = vunpack.c.l.b16 %v266
      %v910 = vunpack.c.l.b16 %v267
      %v911 = vunpack.c.l.b16 %v268
      %v912 = vpack.c.b16 %v881, %v880
      %v913 = vpack.c.b16 %v883, %v882
      %v914 = vpack.c.b16 %v885, %v884
      %v915 = vpack.c.b16 %v887, %v886
      %v916 = vpack.c.b16 %v889, %v888
      %v917 = vpack.c.b16 %v891, %v890
      %v918 = vpack.c.b16 %v893, %v892
      %v919 = vpack.c.b16 %v895, %v894
      %v920 = vpack.c.b16 %v897, %v896
      %v921 = vpack.c.b16 %v899, %v898
      %v922 = vpack.c.b16 %v901, %v900
      %v923 = vpack.c.b16 %v903, %v902
      %v924 = vpack.c.b16 %v905, %v904
      %v925 = vpack.c.b16 %v907, %v906
      %v926 = vpack.c.b16 %v909, %v908
      %v927 = vpack.c.b16 %v911, %v910
      %928 = vrot.lane.b32.xlu0 %v912, 9
      %v929 = vpop.permute.xlu0 %928
      %930 = vrot.lane.b32.xlu0 %v913, 9
      %v931 = vpop.permute.xlu0 %930
      %932 = vrot.lane.b32.xlu0 %v914, 9
      %v933 = vpop.permute.xlu0 %932
      %934 = vrot.lane.b32.xlu0 %v915, 9
      %v935 = vpop.permute.xlu0 %934
      %936 = vrot.lane.b32.xlu0 %v916, 9
      %v937 = vpop.permute.xlu0 %936
      %938 = vrot.lane.b32.xlu0 %v917, 9
      %v939 = vpop.permute.xlu0 %938
      %940 = vrot.lane.b32.xlu0 %v918, 9
      %v941 = vpop.permute.xlu0 %940
      %942 = vrot.lane.b32.xlu0 %v919, 9
      %v943 = vpop.permute.xlu0 %942
      %944 = vrot.lane.b32.xlu0 %v920, 9
      %v945 = vpop.permute.xlu0 %944
      %946 = vrot.lane.b32.xlu0 %v921, 9
      %v947 = vpop.permute.xlu0 %946
      %948 = vrot.lane.b32.xlu0 %v922, 9
      %v949 = vpop.permute.xlu0 %948
      %950 = vrot.lane.b32.xlu0 %v923, 9
      %v951 = vpop.permute.xlu0 %950
      %952 = vrot.lane.b32.xlu0 %v924, 9
      %v953 = vpop.permute.xlu0 %952
      %954 = vrot.lane.b32.xlu0 %v925, 9
      %v955 = vpop.permute.xlu0 %954
      %956 = vrot.lane.b32.xlu0 %v926, 9
      %v957 = vpop.permute.xlu0 %956
      %958 = vrot.lane.b32.xlu0 %v927, 9
      %v959 = vpop.permute.xlu0 %958
      %v976 = vunpack.c.l.b16 %v269
      %v977 = vunpack.c.l.b16 %v270
      %v978 = vunpack.c.l.b16 %v271
      %v979 = vunpack.c.l.b16 %v272
      %v980 = vunpack.c.l.b16 %v273
      %v981 = vunpack.c.l.b16 %v274
      %v982 = vunpack.c.l.b16 %v275
      %v983 = vunpack.c.l.b16 %v276
      %v984 = vunpack.c.l.b16 %v277
      %v985 = vunpack.c.l.b16 %v278
      %v986 = vunpack.c.l.b16 %v279
      %v987 = vunpack.c.l.b16 %v280
      %v988 = vunpack.c.l.b16 %v281
      %v989 = vunpack.c.l.b16 %v282
      %v990 = vunpack.c.l.b16 %v283
      %v991 = vunpack.c.l.b16 %v284
      %v992 = vpack.c.b16 %v976, %v976
      %v993 = vpack.c.b16 %v977, %v977
      %v994 = vpack.c.b16 %v978, %v978
      %v995 = vpack.c.b16 %v979, %v979
      %v996 = vpack.c.b16 %v980, %v980
      %v997 = vpack.c.b16 %v981, %v981
      %v998 = vpack.c.b16 %v982, %v982
      %v999 = vpack.c.b16 %v983, %v983
      %v1000 = vpack.c.b16 %v984, %v984
      %v1001 = vpack.c.b16 %v985, %v985
      %v1002 = vpack.c.b16 %v986, %v986
      %v1003 = vpack.c.b16 %v987, %v987
      %v1004 = vpack.c.b16 %v988, %v988
      %v1005 = vpack.c.b16 %v989, %v989
      %v1006 = vpack.c.b16 %v990, %v990
      %v1007 = vpack.c.b16 %v991, %v991
      %v1009 = vshrl.u32 %v912, 16
      %v1011 = vshll.u32 %v912, 16
      %v1013 = vrot.slane %v1011, 1
      %v1014 = vor.u32 %v1009, %v1013
      %v1016 = vshll.u32 %v992, 16
      %v1018 = vrot.slane %v1016, 1
      %v1019 = vsel %vm494, %v1014, %v1018
      %v1021 = vshrl.u32 %v913, 16
      %v1023 = vshll.u32 %v913, 16
      %v1025 = vrot.slane %v1023, 1
      %v1026 = vor.u32 %v1021, %v1025
      %v1028 = vshll.u32 %v993, 16
      %v1030 = vrot.slane %v1028, 1
      %v1031 = vsel %vm494, %v1026, %v1030
      %v1033 = vshrl.u32 %v914, 16
      %v1035 = vshll.u32 %v914, 16
      %v1037 = vrot.slane %v1035, 1
      %v1038 = vor.u32 %v1033, %v1037
      %v1040 = vshll.u32 %v994, 16
      %v1042 = vrot.slane %v1040, 1
      %v1043 = vsel %vm494, %v1038, %v1042
      %v1045 = vshrl.u32 %v915, 16
      %v1047 = vshll.u32 %v915, 16
      %v1049 = vrot.slane %v1047, 1
      %v1050 = vor.u32 %v1045, %v1049
      %v1052 = vshll.u32 %v995, 16
      %v1054 = vrot.slane %v1052, 1
      %v1055 = vsel %vm494, %v1050, %v1054
      %v1057 = vshrl.u32 %v916, 16
      %v1059 = vshll.u32 %v916, 16
      %v1061 = vrot.slane %v1059, 1
      %v1062 = vor.u32 %v1057, %v1061
      %v1064 = vshll.u32 %v996, 16
      %v1066 = vrot.slane %v1064, 1
      %v1067 = vsel %vm494, %v1062, %v1066
      %v1069 = vshrl.u32 %v917, 16
      %v1071 = vshll.u32 %v917, 16
      %v1073 = vrot.slane %v1071, 1
      %v1074 = vor.u32 %v1069, %v1073
      %v1076 = vshll.u32 %v997, 16
      %v1078 = vrot.slane %v1076, 1
      %v1079 = vsel %vm494, %v1074, %v1078
      %v1081 = vshrl.u32 %v918, 16
      %v1083 = vshll.u32 %v918, 16
      %v1085 = vrot.slane %v1083, 1
      %v1086 = vor.u32 %v1081, %v1085
      %v1088 = vshll.u32 %v998, 16
      %v1090 = vrot.slane %v1088, 1
      %v1091 = vsel %vm494, %v1086, %v1090
      %v1093 = vshrl.u32 %v919, 16
      %v1095 = vshll.u32 %v919, 16
      %v1097 = vrot.slane %v1095, 1
      %v1098 = vor.u32 %v1093, %v1097
      %v1100 = vshll.u32 %v999, 16
      %v1102 = vrot.slane %v1100, 1
      %v1103 = vsel %vm494, %v1098, %v1102
      %v1105 = vshrl.u32 %v920, 16
      %v1107 = vshll.u32 %v920, 16
      %v1109 = vrot.slane %v1107, 1
      %v1110 = vor.u32 %v1105, %v1109
      %v1112 = vshll.u32 %v1000, 16
      %v1114 = vrot.slane %v1112, 1
      %v1115 = vsel %vm494, %v1110, %v1114
      %v1117 = vshrl.u32 %v921, 16
      %v1119 = vshll.u32 %v921, 16
      %v1121 = vrot.slane %v1119, 1
      %v1122 = vor.u32 %v1117, %v1121
      %v1124 = vshll.u32 %v1001, 16
      %v1126 = vrot.slane %v1124, 1
      %v1127 = vsel %vm494, %v1122, %v1126
      %v1129 = vshrl.u32 %v922, 16
      %v1131 = vshll.u32 %v922, 16
      %v1133 = vrot.slane %v1131, 1
      %v1134 = vor.u32 %v1129, %v1133
      %v1136 = vshll.u32 %v1002, 16
      %v1138 = vrot.slane %v1136, 1
      %v1139 = vsel %vm494, %v1134, %v1138
      %v1141 = vshrl.u32 %v923, 16
      %v1143 = vshll.u32 %v923, 16
      %v1145 = vrot.slane %v1143, 1
      %v1146 = vor.u32 %v1141, %v1145
      %v1148 = vshll.u32 %v1003, 16
      %v1150 = vrot.slane %v1148, 1
      %v1151 = vsel %vm494, %v1146, %v1150
      %v1153 = vshrl.u32 %v924, 16
      %v1155 = vshll.u32 %v924, 16
      %v1157 = vrot.slane %v1155, 1
      %v1158 = vor.u32 %v1153, %v1157
      %v1160 = vshll.u32 %v1004, 16
      %v1162 = vrot.slane %v1160, 1
      %v1163 = vsel %vm494, %v1158, %v1162
      %v1165 = vshrl.u32 %v925, 16
      %v1167 = vshll.u32 %v925, 16
      %v1169 = vrot.slane %v1167, 1
      %v1170 = vor.u32 %v1165, %v1169
      %v1172 = vshll.u32 %v1005, 16
      %v1174 = vrot.slane %v1172, 1
      %v1175 = vsel %vm494, %v1170, %v1174
      %v1177 = vshrl.u32 %v926, 16
      %v1179 = vshll.u32 %v926, 16
      %v1181 = vrot.slane %v1179, 1
      %v1182 = vor.u32 %v1177, %v1181
      %v1184 = vshll.u32 %v1006, 16
      %v1186 = vrot.slane %v1184, 1
      %v1187 = vsel %vm494, %v1182, %v1186
      %v1189 = vshrl.u32 %v927, 16
      %v1191 = vshll.u32 %v927, 16
      %v1193 = vrot.slane %v1191, 1
      %v1194 = vor.u32 %v1189, %v1193
      %v1196 = vshll.u32 %v1007, 16
      %v1198 = vrot.slane %v1196, 1
      %v1199 = vsel %vm494, %v1194, %v1198
      %1200 = vrot.lane.b32.xlu0 %v1019, 12
      %v1201 = vpop.permute.xlu0 %1200
      %1202 = vrot.lane.b32.xlu0 %v1031, 12
      %v1203 = vpop.permute.xlu0 %1202
      %1204 = vrot.lane.b32.xlu0 %v1043, 12
      %v1205 = vpop.permute.xlu0 %1204
      %1206 = vrot.lane.b32.xlu0 %v1055, 12
      %v1207 = vpop.permute.xlu0 %1206
      %1208 = vrot.lane.b32.xlu0 %v1067, 12
      %v1209 = vpop.permute.xlu0 %1208
      %1210 = vrot.lane.b32.xlu0 %v1079, 12
      %v1211 = vpop.permute.xlu0 %1210
      %1212 = vrot.lane.b32.xlu0 %v1091, 12
      %v1213 = vpop.permute.xlu0 %1212
      %1214 = vrot.lane.b32.xlu0 %v1103, 12
      %v1215 = vpop.permute.xlu0 %1214
      %1216 = vrot.lane.b32.xlu0 %v1115, 12
      %v1217 = vpop.permute.xlu0 %1216
      %1218 = vrot.lane.b32.xlu0 %v1127, 12
      %v1219 = vpop.permute.xlu0 %1218
      %1220 = vrot.lane.b32.xlu0 %v1139, 12
      %v1221 = vpop.permute.xlu0 %1220
      %1222 = vrot.lane.b32.xlu0 %v1151, 12
      %v1223 = vpop.permute.xlu0 %1222
      %1224 = vrot.lane.b32.xlu0 %v1163, 12
      %v1225 = vpop.permute.xlu0 %1224
      %1226 = vrot.lane.b32.xlu0 %v1175, 12
      %v1227 = vpop.permute.xlu0 %1226
      %1228 = vrot.lane.b32.xlu0 %v1187, 12
      %v1229 = vpop.permute.xlu0 %1228
      %1230 = vrot.lane.b32.xlu0 %v1199, 12
      %v1231 = vpop.permute.xlu0 %1230
      %v1248 = vunpack.c.l.b16 %v285
      %v1249 = vunpack.c.l.b16 %v286
      %v1250 = vunpack.c.l.b16 %v287
      %v1251 = vunpack.c.l.b16 %v288
      %v1252 = vunpack.c.l.b16 %v289
      %v1253 = vunpack.c.l.b16 %v290
      %v1254 = vunpack.c.l.b16 %v291
      %v1255 = vunpack.c.l.b16 %v292
      %v1256 = vunpack.c.l.b16 %v293
      %v1257 = vunpack.c.l.b16 %v294
      %v1258 = vunpack.c.l.b16 %v295
      %v1259 = vunpack.c.l.b16 %v296
      %v1260 = vunpack.c.l.b16 %v297
      %v1261 = vunpack.c.l.b16 %v298
      %v1262 = vunpack.c.l.b16 %v299
      %v1263 = vunpack.c.l.b16 %v300
      %v1264 = vpack.c.b16 %v881, %v1248
      %v1265 = vpack.c.b16 %v883, %v1249
      %v1266 = vpack.c.b16 %v885, %v1250
      %v1267 = vpack.c.b16 %v887, %v1251
      %v1268 = vpack.c.b16 %v889, %v1252
      %v1269 = vpack.c.b16 %v891, %v1253
      %v1270 = vpack.c.b16 %v893, %v1254
      %v1271 = vpack.c.b16 %v895, %v1255
      %v1272 = vpack.c.b16 %v897, %v1256
      %v1273 = vpack.c.b16 %v899, %v1257
      %v1274 = vpack.c.b16 %v901, %v1258
      %v1275 = vpack.c.b16 %v903, %v1259
      %v1276 = vpack.c.b16 %v905, %v1260
      %v1277 = vpack.c.b16 %v907, %v1261
      %v1278 = vpack.c.b16 %v909, %v1262
      %v1279 = vpack.c.b16 %v911, %v1263
      %v1280 = vrot.slane %v1264, 1
      %v1281 = vrot.slane %v992, 1
      %v1282 = vsel %vm767, %v1280, %v1281
      %v1283 = vrot.slane %v1265, 1
      %v1284 = vrot.slane %v993, 1
      %v1285 = vsel %vm767, %v1283, %v1284
      %v1286 = vrot.slane %v1266, 1
      %v1287 = vrot.slane %v994, 1
      %v1288 = vsel %vm767, %v1286, %v1287
      %v1289 = vrot.slane %v1267, 1
      %v1290 = vrot.slane %v995, 1
      %v1291 = vsel %vm767, %v1289, %v1290
      %v1292 = vrot.slane %v1268, 1
      %v1293 = vrot.slane %v996, 1
      %v1294 = vsel %vm767, %v1292, %v1293
      %v1295 = vrot.slane %v1269, 1
      %v1296 = vrot.slane %v997, 1
      %v1297 = vsel %vm767, %v1295, %v1296
      %v1298 = vrot.slane %v1270, 1
      %v1299 = vrot.slane %v998, 1
      %v1300 = vsel %vm767, %v1298, %v1299
      %v1301 = vrot.slane %v1271, 1
      %v1302 = vrot.slane %v999, 1
      %v1303 = vsel %vm767, %v1301, %v1302
      %v1304 = vrot.slane %v1272, 1
      %v1305 = vrot.slane %v1000, 1
      %v1306 = vsel %vm767, %v1304, %v1305
      %v1307 = vrot.slane %v1273, 1
      %v1308 = vrot.slane %v1001, 1
      %v1309 = vsel %vm767, %v1307, %v1308
      %v1310 = vrot.slane %v1274, 1
      %v1311 = vrot.slane %v1002, 1
      %v1312 = vsel %vm767, %v1310, %v1311
      %v1313 = vrot.slane %v1275, 1
      %v1314 = vrot.slane %v1003, 1
      %v1315 = vsel %vm767, %v1313, %v1314
      %v1316 = vrot.slane %v1276, 1
      %v1317 = vrot.slane %v1004, 1
      %v1318 = vsel %vm767, %v1316, %v1317
      %v1319 = vrot.slane %v1277, 1
      %v1320 = vrot.slane %v1005, 1
      %v1321 = vsel %vm767, %v1319, %v1320
      %v1322 = vrot.slane %v1278, 1
      %v1323 = vrot.slane %v1006, 1
      %v1324 = vsel %vm767, %v1322, %v1323
      %v1325 = vrot.slane %v1279, 1
      %v1326 = vrot.slane %v1007, 1
      %v1327 = vsel %vm767, %v1325, %v1326
      %1328 = vrot.lane.b32.xlu0 %v1282, 15
      %v1329 = vpop.permute.xlu0 %1328
      %1330 = vrot.lane.b32.xlu0 %v1285, 15
      %v1331 = vpop.permute.xlu0 %1330
      %1332 = vrot.lane.b32.xlu0 %v1288, 15
      %v1333 = vpop.permute.xlu0 %1332
      %1334 = vrot.lane.b32.xlu0 %v1291, 15
      %v1335 = vpop.permute.xlu0 %1334
      %1336 = vrot.lane.b32.xlu0 %v1294, 15
      %v1337 = vpop.permute.xlu0 %1336
      %1338 = vrot.lane.b32.xlu0 %v1297, 15
      %v1339 = vpop.permute.xlu0 %1338
      %1340 = vrot.lane.b32.xlu0 %v1300, 15
      %v1341 = vpop.permute.xlu0 %1340
      %1342 = vrot.lane.b32.xlu0 %v1303, 15
      %v1343 = vpop.permute.xlu0 %1342
      %1344 = vrot.lane.b32.xlu0 %v1306, 15
      %v1345 = vpop.permute.xlu0 %1344
      %1346 = vrot.lane.b32.xlu0 %v1309, 15
      %v1347 = vpop.permute.xlu0 %1346
      %1348 = vrot.lane.b32.xlu0 %v1312, 15
      %v1349 = vpop.permute.xlu0 %1348
      %1350 = vrot.lane.b32.xlu0 %v1315, 15
      %v1351 = vpop.permute.xlu0 %1350
      %1352 = vrot.lane.b32.xlu0 %v1318, 15
      %v1353 = vpop.permute.xlu0 %1352
      %1354 = vrot.lane.b32.xlu0 %v1321, 15
      %v1355 = vpop.permute.xlu0 %1354
      %1356 = vrot.lane.b32.xlu0 %v1324, 15
      %v1357 = vpop.permute.xlu0 %1356
      %1358 = vrot.lane.b32.xlu0 %v1327, 15
      %v1359 = vpop.permute.xlu0 %1358
      %v1392 = vunpack.c.l.b16 %v302
      %v1393 = vunpack.c.l.b16 %v303
      %v1394 = vunpack.c.l.b16 %v304
      %v1395 = vunpack.c.l.b16 %v305
      %v1396 = vunpack.c.l.b16 %v306
      %v1397 = vunpack.c.l.b16 %v307
      %v1398 = vunpack.c.l.b16 %v308
      %v1399 = vunpack.c.l.b16 %v309
      %v1400 = vunpack.c.l.b16 %v310
      %v1401 = vunpack.c.l.b16 %v311
      %v1402 = vunpack.c.l.b16 %v312
      %v1403 = vunpack.c.l.b16 %v313
      %v1404 = vunpack.c.l.b16 %v314
      %v1405 = vunpack.c.l.b16 %v315
      %v1406 = vunpack.c.l.b16 %v316
      %v1407 = vunpack.c.l.b16 %v317
      %v1408 = vunpack.c.l.b16 %v318
      %v1409 = vunpack.c.l.b16 %v319
      %v1410 = vunpack.c.l.b16 %v320
      %v1411 = vunpack.c.l.b16 %v321
      %v1412 = vunpack.c.l.b16 %v322
      %v1413 = vunpack.c.l.b16 %v323
      %v1414 = vunpack.c.l.b16 %v324
      %v1415 = vunpack.c.l.b16 %v325
      %v1416 = vunpack.c.l.b16 %v326
      %v1417 = vunpack.c.l.b16 %v327
      %v1418 = vunpack.c.l.b16 %v328
      %v1419 = vunpack.c.l.b16 %v329
      %v1420 = vunpack.c.l.b16 %v330
      %v1421 = vunpack.c.l.b16 %v331
      %v1422 = vunpack.c.l.b16 %v332
      %v1423 = vunpack.c.l.b16 %v333
      %v1424 = vpack.c.b16 %v1393, %v1392
      %v1425 = vpack.c.b16 %v1395, %v1394
      %v1426 = vpack.c.b16 %v1397, %v1396
      %v1427 = vpack.c.b16 %v1399, %v1398
      %v1428 = vpack.c.b16 %v1401, %v1400
      %v1429 = vpack.c.b16 %v1403, %v1402
      %v1430 = vpack.c.b16 %v1405, %v1404
      %v1431 = vpack.c.b16 %v1407, %v1406
      %v1432 = vpack.c.b16 %v1409, %v1408
      %v1433 = vpack.c.b16 %v1411, %v1410
      %v1434 = vpack.c.b16 %v1413, %v1412
      %v1435 = vpack.c.b16 %v1415, %v1414
      %v1436 = vpack.c.b16 %v1417, %v1416
      %v1437 = vpack.c.b16 %v1419, %v1418
      %v1438 = vpack.c.b16 %v1421, %v1420
      %v1439 = vpack.c.b16 %v1423, %v1422
      %1440 = vrot.lane.b32.xlu0 %v1424, 18
      %v1441 = vpop.permute.xlu0 %1440
      %1442 = vrot.lane.b32.xlu0 %v1425, 18
      %v1443 = vpop.permute.xlu0 %1442
      %1444 = vrot.lane.b32.xlu0 %v1426, 18
      %v1445 = vpop.permute.xlu0 %1444
      %1446 = vrot.lane.b32.xlu0 %v1427, 18
      %v1447 = vpop.permute.xlu0 %1446
      %1448 = vrot.lane.b32.xlu0 %v1428, 18
      %v1449 = vpop.permute.xlu0 %1448
      %1450 = vrot.lane.b32.xlu0 %v1429, 18
      %v1451 = vpop.permute.xlu0 %1450
      %1452 = vrot.lane.b32.xlu0 %v1430, 18
      %v1453 = vpop.permute.xlu0 %1452
      %1454 = vrot.lane.b32.xlu0 %v1431, 18
      %v1455 = vpop.permute.xlu0 %1454
      %1456 = vrot.lane.b32.xlu0 %v1432, 18
      %v1457 = vpop.permute.xlu0 %1456
      %1458 = vrot.lane.b32.xlu0 %v1433, 18
      %v1459 = vpop.permute.xlu0 %1458
      %1460 = vrot.lane.b32.xlu0 %v1434, 18
      %v1461 = vpop.permute.xlu0 %1460
      %1462 = vrot.lane.b32.xlu0 %v1435, 18
      %v1463 = vpop.permute.xlu0 %1462
      %1464 = vrot.lane.b32.xlu0 %v1436, 18
      %v1465 = vpop.permute.xlu0 %1464
      %1466 = vrot.lane.b32.xlu0 %v1437, 18
      %v1467 = vpop.permute.xlu0 %1466
      %1468 = vrot.lane.b32.xlu0 %v1438, 18
      %v1469 = vpop.permute.xlu0 %1468
      %1470 = vrot.lane.b32.xlu0 %v1439, 18
      %v1471 = vpop.permute.xlu0 %1470
      %v1488 = vunpack.c.l.b16 %v334
      %v1489 = vunpack.c.l.b16 %v335
      %v1490 = vunpack.c.l.b16 %v336
      %v1491 = vunpack.c.l.b16 %v337
      %v1492 = vunpack.c.l.b16 %v338
      %v1493 = vunpack.c.l.b16 %v339
      %v1494 = vunpack.c.l.b16 %v340
      %v1495 = vunpack.c.l.b16 %v341
      %v1496 = vunpack.c.l.b16 %v342
      %v1497 = vunpack.c.l.b16 %v343
      %v1498 = vunpack.c.l.b16 %v344
      %v1499 = vunpack.c.l.b16 %v345
      %v1500 = vunpack.c.l.b16 %v346
      %v1501 = vunpack.c.l.b16 %v347
      %v1502 = vunpack.c.l.b16 %v348
      %v1503 = vunpack.c.l.b16 %v349
      %v1504 = vpack.c.b16 %v1488, %v1488
      %v1505 = vpack.c.b16 %v1489, %v1489
      %v1506 = vpack.c.b16 %v1490, %v1490
      %v1507 = vpack.c.b16 %v1491, %v1491
      %v1508 = vpack.c.b16 %v1492, %v1492
      %v1509 = vpack.c.b16 %v1493, %v1493
      %v1510 = vpack.c.b16 %v1494, %v1494
      %v1511 = vpack.c.b16 %v1495, %v1495
      %v1512 = vpack.c.b16 %v1496, %v1496
      %v1513 = vpack.c.b16 %v1497, %v1497
      %v1514 = vpack.c.b16 %v1498, %v1498
      %v1515 = vpack.c.b16 %v1499, %v1499
      %v1516 = vpack.c.b16 %v1500, %v1500
      %v1517 = vpack.c.b16 %v1501, %v1501
      %v1518 = vpack.c.b16 %v1502, %v1502
      %v1519 = vpack.c.b16 %v1503, %v1503
      %v1521 = vshrl.u32 %v1424, 16
      %v1523 = vshll.u32 %v1424, 16
      %v1525 = vrot.slane %v1523, 1
      %v1526 = vor.u32 %v1521, %v1525
      %v1528 = vshll.u32 %v1504, 16
      %v1530 = vrot.slane %v1528, 1
      %v1531 = vsel %vm494, %v1526, %v1530
      %v1533 = vshrl.u32 %v1425, 16
      %v1535 = vshll.u32 %v1425, 16
      %v1537 = vrot.slane %v1535, 1
      %v1538 = vor.u32 %v1533, %v1537
      %v1540 = vshll.u32 %v1505, 16
      %v1542 = vrot.slane %v1540, 1
      %v1543 = vsel %vm494, %v1538, %v1542
      %v1545 = vshrl.u32 %v1426, 16
      %v1547 = vshll.u32 %v1426, 16
      %v1549 = vrot.slane %v1547, 1
      %v1550 = vor.u32 %v1545, %v1549
      %v1552 = vshll.u32 %v1506, 16
      %v1554 = vrot.slane %v1552, 1
      %v1555 = vsel %vm494, %v1550, %v1554
      %v1557 = vshrl.u32 %v1427, 16
      %v1559 = vshll.u32 %v1427, 16
      %v1561 = vrot.slane %v1559, 1
      %v1562 = vor.u32 %v1557, %v1561
      %v1564 = vshll.u32 %v1507, 16
      %v1566 = vrot.slane %v1564, 1
      %v1567 = vsel %vm494, %v1562, %v1566
      %v1569 = vshrl.u32 %v1428, 16
      %v1571 = vshll.u32 %v1428, 16
      %v1573 = vrot.slane %v1571, 1
      %v1574 = vor.u32 %v1569, %v1573
      %v1576 = vshll.u32 %v1508, 16
      %v1578 = vrot.slane %v1576, 1
      %v1579 = vsel %vm494, %v1574, %v1578
      %v1581 = vshrl.u32 %v1429, 16
      %v1583 = vshll.u32 %v1429, 16
      %v1585 = vrot.slane %v1583, 1
      %v1586 = vor.u32 %v1581, %v1585
      %v1588 = vshll.u32 %v1509, 16
      %v1590 = vrot.slane %v1588, 1
      %v1591 = vsel %vm494, %v1586, %v1590
      %v1593 = vshrl.u32 %v1430, 16
      %v1595 = vshll.u32 %v1430, 16
      %v1597 = vrot.slane %v1595, 1
      %v1598 = vor.u32 %v1593, %v1597
      %v1600 = vshll.u32 %v1510, 16
      %v1602 = vrot.slane %v1600, 1
      %v1603 = vsel %vm494, %v1598, %v1602
      %v1605 = vshrl.u32 %v1431, 16
      %v1607 = vshll.u32 %v1431, 16
      %v1609 = vrot.slane %v1607, 1
      %v1610 = vor.u32 %v1605, %v1609
      %v1612 = vshll.u32 %v1511, 16
      %v1614 = vrot.slane %v1612, 1
      %v1615 = vsel %vm494, %v1610, %v1614
      %v1617 = vshrl.u32 %v1432, 16
      %v1619 = vshll.u32 %v1432, 16
      %v1621 = vrot.slane %v1619, 1
      %v1622 = vor.u32 %v1617, %v1621
      %v1624 = vshll.u32 %v1512, 16
      %v1626 = vrot.slane %v1624, 1
      %v1627 = vsel %vm494, %v1622, %v1626
      %v1629 = vshrl.u32 %v1433, 16
      %v1631 = vshll.u32 %v1433, 16
      %v1633 = vrot.slane %v1631, 1
      %v1634 = vor.u32 %v1629, %v1633
      %v1636 = vshll.u32 %v1513, 16
      %v1638 = vrot.slane %v1636, 1
      %v1639 = vsel %vm494, %v1634, %v1638
      %v1641 = vshrl.u32 %v1434, 16
      %v1643 = vshll.u32 %v1434, 16
      %v1645 = vrot.slane %v1643, 1
      %v1646 = vor.u32 %v1641, %v1645
      %v1648 = vshll.u32 %v1514, 16
      %v1650 = vrot.slane %v1648, 1
      %v1651 = vsel %vm494, %v1646, %v1650
      %v1653 = vshrl.u32 %v1435, 16
      %v1655 = vshll.u32 %v1435, 16
      %v1657 = vrot.slane %v1655, 1
      %v1658 = vor.u32 %v1653, %v1657
      %v1660 = vshll.u32 %v1515, 16
      %v1662 = vrot.slane %v1660, 1
      %v1663 = vsel %vm494, %v1658, %v1662
      %v1665 = vshrl.u32 %v1436, 16
      %v1667 = vshll.u32 %v1436, 16
      %v1669 = vrot.slane %v1667, 1
      %v1670 = vor.u32 %v1665, %v1669
      %v1672 = vshll.u32 %v1516, 16
      %v1674 = vrot.slane %v1672, 1
      %v1675 = vsel %vm494, %v1670, %v1674
      %v1677 = vshrl.u32 %v1437, 16
      %v1679 = vshll.u32 %v1437, 16
      %v1681 = vrot.slane %v1679, 1
      %v1682 = vor.u32 %v1677, %v1681
      %v1684 = vshll.u32 %v1517, 16
      %v1686 = vrot.slane %v1684, 1
      %v1687 = vsel %vm494, %v1682, %v1686
      %v1689 = vshrl.u32 %v1438, 16
      %v1691 = vshll.u32 %v1438, 16
      %v1693 = vrot.slane %v1691, 1
      %v1694 = vor.u32 %v1689, %v1693
      %v1696 = vshll.u32 %v1518, 16
      %v1698 = vrot.slane %v1696, 1
      %v1699 = vsel %vm494, %v1694, %v1698
      %v1701 = vshrl.u32 %v1439, 16
      %v1703 = vshll.u32 %v1439, 16
      %v1705 = vrot.slane %v1703, 1
      %v1706 = vor.u32 %v1701, %v1705
      %v1708 = vshll.u32 %v1519, 16
      %v1710 = vrot.slane %v1708, 1
      %v1711 = vsel %vm494, %v1706, %v1710
      %1712 = vrot.lane.b32.xlu0 %v1531, 21
      %v1713 = vpop.permute.xlu0 %1712
      %1714 = vrot.lane.b32.xlu0 %v1543, 21
      %v1715 = vpop.permute.xlu0 %1714
      %1716 = vrot.lane.b32.xlu0 %v1555, 21
      %v1717 = vpop.permute.xlu0 %1716
      %1718 = vrot.lane.b32.xlu0 %v1567, 21
      %v1719 = vpop.permute.xlu0 %1718
      %1720 = vrot.lane.b32.xlu0 %v1579, 21
      %v1721 = vpop.permute.xlu0 %1720
      %1722 = vrot.lane.b32.xlu0 %v1591, 21
      %v1723 = vpop.permute.xlu0 %1722
      %1724 = vrot.lane.b32.xlu0 %v1603, 21
      %v1725 = vpop.permute.xlu0 %1724
      %1726 = vrot.lane.b32.xlu0 %v1615, 21
      %v1727 = vpop.permute.xlu0 %1726
      %1728 = vrot.lane.b32.xlu0 %v1627, 21
      %v1729 = vpop.permute.xlu0 %1728
      %1730 = vrot.lane.b32.xlu0 %v1639, 21
      %v1731 = vpop.permute.xlu0 %1730
      %1732 = vrot.lane.b32.xlu0 %v1651, 21
      %v1733 = vpop.permute.xlu0 %1732
      %1734 = vrot.lane.b32.xlu0 %v1663, 21
      %v1735 = vpop.permute.xlu0 %1734
      %1736 = vrot.lane.b32.xlu0 %v1675, 21
      %v1737 = vpop.permute.xlu0 %1736
      %1738 = vrot.lane.b32.xlu0 %v1687, 21
      %v1739 = vpop.permute.xlu0 %1738
      %1740 = vrot.lane.b32.xlu0 %v1699, 21
      %v1741 = vpop.permute.xlu0 %1740
      %1742 = vrot.lane.b32.xlu0 %v1711, 21
      %v1743 = vpop.permute.xlu0 %1742
      %v1760 = vunpack.c.l.b16 %v350
      %v1761 = vunpack.c.l.b16 %v351
      %v1762 = vunpack.c.l.b16 %v352
      %v1763 = vunpack.c.l.b16 %v353
      %v1764 = vunpack.c.l.b16 %v354
      %v1765 = vunpack.c.l.b16 %v355
      %v1766 = vunpack.c.l.b16 %v356
      %v1767 = vunpack.c.l.b16 %v357
      %v1768 = vunpack.c.l.b16 %v358
      %v1769 = vunpack.c.l.b16 %v359
      %v1770 = vunpack.c.l.b16 %v360
      %v1771 = vunpack.c.l.b16 %v361
      %v1772 = vunpack.c.l.b16 %v362
      %v1773 = vunpack.c.l.b16 %v363
      %v1774 = vunpack.c.l.b16 %v364
      %v1775 = vunpack.c.l.b16 %v365
      %v1776 = vpack.c.b16 %v1393, %v1760
      %v1777 = vpack.c.b16 %v1395, %v1761
      %v1778 = vpack.c.b16 %v1397, %v1762
      %v1779 = vpack.c.b16 %v1399, %v1763
      %v1780 = vpack.c.b16 %v1401, %v1764
      %v1781 = vpack.c.b16 %v1403, %v1765
      %v1782 = vpack.c.b16 %v1405, %v1766
      %v1783 = vpack.c.b16 %v1407, %v1767
      %v1784 = vpack.c.b16 %v1409, %v1768
      %v1785 = vpack.c.b16 %v1411, %v1769
      %v1786 = vpack.c.b16 %v1413, %v1770
      %v1787 = vpack.c.b16 %v1415, %v1771
      %v1788 = vpack.c.b16 %v1417, %v1772
      %v1789 = vpack.c.b16 %v1419, %v1773
      %v1790 = vpack.c.b16 %v1421, %v1774
      %v1791 = vpack.c.b16 %v1423, %v1775
      %v1792 = vrot.slane %v1776, 1
      %v1793 = vrot.slane %v1504, 1
      %v1794 = vsel %vm767, %v1792, %v1793
      %v1795 = vrot.slane %v1777, 1
      %v1796 = vrot.slane %v1505, 1
      %v1797 = vsel %vm767, %v1795, %v1796
      %v1798 = vrot.slane %v1778, 1
      %v1799 = vrot.slane %v1506, 1
      %v1800 = vsel %vm767, %v1798, %v1799
      %v1801 = vrot.slane %v1779, 1
      %v1802 = vrot.slane %v1507, 1
      %v1803 = vsel %vm767, %v1801, %v1802
      %v1804 = vrot.slane %v1780, 1
      %v1805 = vrot.slane %v1508, 1
      %v1806 = vsel %vm767, %v1804, %v1805
      %v1807 = vrot.slane %v1781, 1
      %v1808 = vrot.slane %v1509, 1
      %v1809 = vsel %vm767, %v1807, %v1808
      %v1810 = vrot.slane %v1782, 1
      %v1811 = vrot.slane %v1510, 1
      %v1812 = vsel %vm767, %v1810, %v1811
      %v1813 = vrot.slane %v1783, 1
      %v1814 = vrot.slane %v1511, 1
      %v1815 = vsel %vm767, %v1813, %v1814
      %v1816 = vrot.slane %v1784, 1
      %v1817 = vrot.slane %v1512, 1
      %v1818 = vsel %vm767, %v1816, %v1817
      %v1819 = vrot.slane %v1785, 1
      %v1820 = vrot.slane %v1513, 1
      %v1821 = vsel %vm767, %v1819, %v1820
      %v1822 = vrot.slane %v1786, 1
      %v1823 = vrot.slane %v1514, 1
      %v1824 = vsel %vm767, %v1822, %v1823
      %v1825 = vrot.slane %v1787, 1
      %v1826 = vrot.slane %v1515, 1
      %v1827 = vsel %vm767, %v1825, %v1826
      %v1828 = vrot.slane %v1788, 1
      %v1829 = vrot.slane %v1516, 1
      %v1830 = vsel %vm767, %v1828, %v1829
      %v1831 = vrot.slane %v1789, 1
      %v1832 = vrot.slane %v1517, 1
      %v1833 = vsel %vm767, %v1831, %v1832
      %v1834 = vrot.slane %v1790, 1
      %v1835 = vrot.slane %v1518, 1
      %v1836 = vsel %vm767, %v1834, %v1835
      %v1837 = vrot.slane %v1791, 1
      %v1838 = vrot.slane %v1519, 1
      %v1839 = vsel %vm767, %v1837, %v1838
      %1840 = vrot.lane.b32.xlu0 %v1794, 24
      %v1841 = vpop.permute.xlu0 %1840
      %1842 = vrot.lane.b32.xlu0 %v1797, 24
      %v1843 = vpop.permute.xlu0 %1842
      %1844 = vrot.lane.b32.xlu0 %v1800, 24
      %v1845 = vpop.permute.xlu0 %1844
      %1846 = vrot.lane.b32.xlu0 %v1803, 24
      %v1847 = vpop.permute.xlu0 %1846
      %1848 = vrot.lane.b32.xlu0 %v1806, 24
      %v1849 = vpop.permute.xlu0 %1848
      %1850 = vrot.lane.b32.xlu0 %v1809, 24
      %v1851 = vpop.permute.xlu0 %1850
      %1852 = vrot.lane.b32.xlu0 %v1812, 24
      %v1853 = vpop.permute.xlu0 %1852
      %1854 = vrot.lane.b32.xlu0 %v1815, 24
      %v1855 = vpop.permute.xlu0 %1854
      %1856 = vrot.lane.b32.xlu0 %v1818, 24
      %v1857 = vpop.permute.xlu0 %1856
      %1858 = vrot.lane.b32.xlu0 %v1821, 24
      %v1859 = vpop.permute.xlu0 %1858
      %1860 = vrot.lane.b32.xlu0 %v1824, 24
      %v1861 = vpop.permute.xlu0 %1860
      %1862 = vrot.lane.b32.xlu0 %v1827, 24
      %v1863 = vpop.permute.xlu0 %1862
      %1864 = vrot.lane.b32.xlu0 %v1830, 24
      %v1865 = vpop.permute.xlu0 %1864
      %1866 = vrot.lane.b32.xlu0 %v1833, 24
      %v1867 = vpop.permute.xlu0 %1866
      %1868 = vrot.lane.b32.xlu0 %v1836, 24
      %v1869 = vpop.permute.xlu0 %1868
      %1870 = vrot.lane.b32.xlu0 %v1839, 24
      %v1871 = vpop.permute.xlu0 %1870
      %vm1872 = vcmask 23552
      %v1874 = vsel %vm1872, %v430, %v688
      %v1876 = vsel %vm1872, %v431, %v690
      %v1878 = vsel %vm1872, %v432, %v692
      %v1880 = vsel %vm1872, %v433, %v694
      %v1882 = vsel %vm1872, %v434, %v696
      %v1884 = vsel %vm1872, %v435, %v698
      %v1886 = vsel %vm1872, %v436, %v700
      %v1888 = vsel %vm1872, %v437, %v702
      %v1890 = vsel %vm1872, %v438, %v704
      %v1892 = vsel %vm1872, %v439, %v706
      %v1894 = vsel %vm1872, %v440, %v708
      %v1896 = vsel %vm1872, %v441, %v710
      %v1898 = vsel %vm1872, %v442, %v712
      %v1900 = vsel %vm1872, %v443, %v714
      %v1902 = vsel %vm1872, %v444, %v716
      %v1904 = vsel %vm1872, %v445, %v718
      %vm1905 = vcmask 48128
      %v1907 = vsel %vm1905, %v1874, %v817
      %v1909 = vsel %vm1905, %v1876, %v819
      %v1911 = vsel %vm1905, %v1878, %v821
      %v1913 = vsel %vm1905, %v1880, %v823
      %v1915 = vsel %vm1905, %v1882, %v825
      %v1917 = vsel %vm1905, %v1884, %v827
      %v1919 = vsel %vm1905, %v1886, %v829
      %v1921 = vsel %vm1905, %v1888, %v831
      %v1923 = vsel %vm1905, %v1890, %v833
      %v1925 = vsel %vm1905, %v1892, %v835
      %v1927 = vsel %vm1905, %v1894, %v837
      %v1929 = vsel %vm1905, %v1896, %v839
      %v1931 = vsel %vm1905, %v1898, %v841
      %v1933 = vsel %vm1905, %v1900, %v843
      %v1935 = vsel %vm1905, %v1902, %v845
      %v1937 = vsel %vm1905, %v1904, %v847
      %vm1938 = vcmask 72704
      %v1940 = vsel %vm1938, %v1907, %v929
      %v1942 = vsel %vm1938, %v1909, %v931
      %v1944 = vsel %vm1938, %v1911, %v933
      %v1946 = vsel %vm1938, %v1913, %v935
      %v1948 = vsel %vm1938, %v1915, %v937
      %v1950 = vsel %vm1938, %v1917, %v939
      %v1952 = vsel %vm1938, %v1919, %v941
      %v1954 = vsel %vm1938, %v1921, %v943
      %v1956 = vsel %vm1938, %v1923, %v945
      %v1958 = vsel %vm1938, %v1925, %v947
      %v1960 = vsel %vm1938, %v1927, %v949
      %v1962 = vsel %vm1938, %v1929, %v951
      %v1964 = vsel %vm1938, %v1931, %v953
      %v1966 = vsel %vm1938, %v1933, %v955
      %v1968 = vsel %vm1938, %v1935, %v957
      %v1970 = vsel %vm1938, %v1937, %v959
      %vm1971 = vcmask 97280
      %v1973 = vsel %vm1971, %v1940, %v1201
      %v1975 = vsel %vm1971, %v1942, %v1203
      %v1977 = vsel %vm1971, %v1944, %v1205
      %v1979 = vsel %vm1971, %v1946, %v1207
      %v1981 = vsel %vm1971, %v1948, %v1209
      %v1983 = vsel %vm1971, %v1950, %v1211
      %v1985 = vsel %vm1971, %v1952, %v1213
      %v1987 = vsel %vm1971, %v1954, %v1215
      %v1989 = vsel %vm1971, %v1956, %v1217
      %v1991 = vsel %vm1971, %v1958, %v1219
      %v1993 = vsel %vm1971, %v1960, %v1221
      %v1995 = vsel %vm1971, %v1962, %v1223
      %v1997 = vsel %vm1971, %v1964, %v1225
      %v1999 = vsel %vm1971, %v1966, %v1227
      %v2001 = vsel %vm1971, %v1968, %v1229
      %v2003 = vsel %vm1971, %v1970, %v1231
      %vm2004 = vcmask 121856
      %v2006 = vsel %vm2004, %v1973, %v1329
      %v2008 = vsel %vm2004, %v1975, %v1331
      %v2010 = vsel %vm2004, %v1977, %v1333
      %v2012 = vsel %vm2004, %v1979, %v1335
      %v2014 = vsel %vm2004, %v1981, %v1337
      %v2016 = vsel %vm2004, %v1983, %v1339
      %v2018 = vsel %vm2004, %v1985, %v1341
      %v2020 = vsel %vm2004, %v1987, %v1343
      %v2022 = vsel %vm2004, %v1989, %v1345
      %v2024 = vsel %vm2004, %v1991, %v1347
      %v2026 = vsel %vm2004, %v1993, %v1349
      %v2028 = vsel %vm2004, %v1995, %v1351
      %v2030 = vsel %vm2004, %v1997, %v1353
      %v2032 = vsel %vm2004, %v1999, %v1355
      %v2034 = vsel %vm2004, %v2001, %v1357
      %v2036 = vsel %vm2004, %v2003, %v1359
      %vm2037 = vcmask 146432
      %v2039 = vsel %vm2037, %v2006, %v1441
      %v2041 = vsel %vm2037, %v2008, %v1443
      %v2043 = vsel %vm2037, %v2010, %v1445
      %v2045 = vsel %vm2037, %v2012, %v1447
      %v2047 = vsel %vm2037, %v2014, %v1449
      %v2049 = vsel %vm2037, %v2016, %v1451
      %v2051 = vsel %vm2037, %v2018, %v1453
      %v2053 = vsel %vm2037, %v2020, %v1455
      %v2055 = vsel %vm2037, %v2022, %v1457
      %v2057 = vsel %vm2037, %v2024, %v1459
      %v2059 = vsel %vm2037, %v2026, %v1461
      %v2061 = vsel %vm2037, %v2028, %v1463
      %v2063 = vsel %vm2037, %v2030, %v1465
      %v2065 = vsel %vm2037, %v2032, %v1467
      %v2067 = vsel %vm2037, %v2034, %v1469
      %v2069 = vsel %vm2037, %v2036, %v1471
      %vm2070 = vcmask 171008
      %v2072 = vsel %vm2070, %v2039, %v1713
      %v2074 = vsel %vm2070, %v2041, %v1715
      %v2076 = vsel %vm2070, %v2043, %v1717
      %v2078 = vsel %vm2070, %v2045, %v1719
      %v2080 = vsel %vm2070, %v2047, %v1721
      %v2082 = vsel %vm2070, %v2049, %v1723
      %v2084 = vsel %vm2070, %v2051, %v1725
      %v2086 = vsel %vm2070, %v2053, %v1727
      %v2088 = vsel %vm2070, %v2055, %v1729
      %v2090 = vsel %vm2070, %v2057, %v1731
      %v2092 = vsel %vm2070, %v2059, %v1733
      %v2094 = vsel %vm2070, %v2061, %v1735
      %v2096 = vsel %vm2070, %v2063, %v1737
      %v2098 = vsel %vm2070, %v2065, %v1739
      %v2100 = vsel %vm2070, %v2067, %v1741
      %v2102 = vsel %vm2070, %v2069, %v1743
      %vm2103 = vcmask 195584
      %v2105 = vsel %vm2103, %v2072, %v1841
      %v2107 = vsel %vm2103, %v2074, %v1843
      %v2109 = vsel %vm2103, %v2076, %v1845
      %v2111 = vsel %vm2103, %v2078, %v1847
      %v2113 = vsel %vm2103, %v2080, %v1849
      %v2115 = vsel %vm2103, %v2082, %v1851
      %v2117 = vsel %vm2103, %v2084, %v1853
      %v2119 = vsel %vm2103, %v2086, %v1855
      %v2121 = vsel %vm2103, %v2088, %v1857
      %v2123 = vsel %vm2103, %v2090, %v1859
      %v2125 = vsel %vm2103, %v2092, %v1861
      %v2127 = vsel %vm2103, %v2094, %v1863
      %v2129 = vsel %vm2103, %v2096, %v1865
      %v2131 = vsel %vm2103, %v2098, %v1867
      %v2133 = vsel %vm2103, %v2100, %v1869
      %v2135 = vsel %vm2103, %v2102, %v1871
      %v2136 = vld [vmem:[%s1] sm:$0xf]
      %v2137 = vld [vmem:[%s1 + $0x4] sm:$0xf]
      %v2138 = vld [vmem:[%s1 + $0x8] sm:$0xf]
      %v2139 = vld [vmem:[%s1 + $0xc] sm:$0x3]
      %v2144 = vunpack.c.l.b16 %v2136
      %v2145 = vunpack.c.l.b16 %v2137
      %v2146 = vunpack.c.l.b16 %v2138
      %v2147 = vunpack.c.l.b16 %v2139
      %v2148 = vpack.c.b16 %v2145, %v2144
      %v2149 = vpack.c.b16 %v2147, %v2146
      %vm2151 = vcmask 220160
      %v2152 = vsel %vm2151, %v2105, 0
      %v2154 = vsel %vm2151, %v2107, 0
      %v2156 = vsel %vm2151, %v2109, 0
      %v2158 = vsel %vm2151, %v2111, 0
      %v2160 = vsel %vm2151, %v2113, 0
      %v2162 = vsel %vm2151, %v2115, 0
      %v2164 = vsel %vm2151, %v2117, 0
      %v2166 = vsel %vm2151, %v2119, 0
      %v2168 = vsel %vm2151, %v2121, 0
      %v2170 = vsel %vm2151, %v2123, 0
      %v2172 = vsel %vm2151, %v2125, 0
      %v2174 = vsel %vm2151, %v2127, 0
      %v2176 = vsel %vm2151, %v2129, 0
      %v2178 = vsel %vm2151, %v2131, 0
      %v2180 = vsel %vm2151, %v2133, 0
      %v2182 = vsel %vm2151, %v2135, 0
      %vm2184 = vcmask 1044480
      %vm2185 = vcmask 1045504
      %v2186 = vsel %vm2184, 4294967295, 65535
      %v2187 = vsel %vm2185, %v2186, 0
      %v2189 = vand.u32 %v2149, %v2187
      %2191 = vmatpush.bf16.msra.mxu0 0
      %2192 = vmatpush.bf16.msra.mxu0 0
      %2193 = vmatpush.bf16.msra.mxu0 0
      %2194 = vmatpush.bf16.msra.mxu0 0
      %2195 = vmatpush.bf16.msra.mxu0 0
      %2196 = vmatpush.bf16.msra.mxu0 0
      %2197 = vmatpush.bf16.msra.mxu0 %v2189
      %2198 = vmatpush.bf16.msra.mxu0 %v2148
      %2199 = vmatmul.bf16.gmra.mxu0 %v2152
      %v2200 = vpop.f32.mrf.mxu0
      %v2201 = vadd.f32 0.0, %v2200
      %v2202 = vpop.f32.mrf.mxu0
      %v2203 = vadd.f32 0.0, %v2202
      %2204 = vmatmul.bf16.gmra.mxu0 %v2154
      %v2205 = vpop.f32.mrf.mxu0
      %v2206 = vadd.f32 0.0, %v2205
      %v2207 = vpop.f32.mrf.mxu0
      %v2208 = vadd.f32 0.0, %v2207
      %2209 = vmatmul.bf16.gmra.mxu0 %v2156
      %v2210 = vpop.f32.mrf.mxu0
      %v2211 = vadd.f32 0.0, %v2210
      %v2212 = vpop.f32.mrf.mxu0
      %v2213 = vadd.f32 0.0, %v2212
      %2214 = vmatmul.bf16.gmra.mxu0 %v2158
      %v2215 = vpop.f32.mrf.mxu0
      %v2216 = vadd.f32 0.0, %v2215
      %v2217 = vpop.f32.mrf.mxu0
      %v2218 = vadd.f32 0.0, %v2217
      %2219 = vmatmul.bf16.gmra.mxu0 %v2160
      %v2220 = vpop.f32.mrf.mxu0
      %v2221 = vadd.f32 0.0, %v2220
      %v2222 = vpop.f32.mrf.mxu0
      %v2223 = vadd.f32 0.0, %v2222
      %2224 = vmatmul.bf16.gmra.mxu0 %v2162
      %v2225 = vpop.f32.mrf.mxu0
      %v2226 = vadd.f32 0.0, %v2225
      %v2227 = vpop.f32.mrf.mxu0
      %v2228 = vadd.f32 0.0, %v2227
      %2229 = vmatmul.bf16.gmra.mxu0 %v2164
      %v2230 = vpop.f32.mrf.mxu0
      %v2231 = vadd.f32 0.0, %v2230
      %v2232 = vpop.f32.mrf.mxu0
      %v2233 = vadd.f32 0.0, %v2232
      %2234 = vmatmul.bf16.gmra.mxu0 %v2166
      %v2235 = vpop.f32.mrf.mxu0
      %v2236 = vadd.f32 0.0, %v2235
      %v2237 = vpop.f32.mrf.mxu0
      %v2238 = vadd.f32 0.0, %v2237
      %2239 = vmatmul.bf16.gmra.mxu0 %v2168
      %v2240 = vpop.f32.mrf.mxu0
      %v2241 = vadd.f32 0.0, %v2240
      %v2242 = vpop.f32.mrf.mxu0
      %v2243 = vadd.f32 0.0, %v2242
      %2244 = vmatmul.bf16.gmra.mxu0 %v2170
      %v2245 = vpop.f32.mrf.mxu0
      %v2246 = vadd.f32 0.0, %v2245
      %v2247 = vpop.f32.mrf.mxu0
      %v2248 = vadd.f32 0.0, %v2247
      %2249 = vmatmul.bf16.gmra.mxu0 %v2172
      %v2250 = vpop.f32.mrf.mxu0
      %v2251 = vadd.f32 0.0, %v2250
      %v2252 = vpop.f32.mrf.mxu0
      %v2253 = vadd.f32 0.0, %v2252
      %2254 = vmatmul.bf16.gmra.mxu0 %v2174
      %v2255 = vpop.f32.mrf.mxu0
      %v2256 = vadd.f32 0.0, %v2255
      %v2257 = vpop.f32.mrf.mxu0
      %v2258 = vadd.f32 0.0, %v2257
      %2259 = vmatmul.bf16.gmra.mxu0 %v2176
      %v2260 = vpop.f32.mrf.mxu0
      %v2261 = vadd.f32 0.0, %v2260
      %v2262 = vpop.f32.mrf.mxu0
      %v2263 = vadd.f32 0.0, %v2262
      %2264 = vmatmul.bf16.gmra.mxu0 %v2178
      %v2265 = vpop.f32.mrf.mxu0
      %v2266 = vadd.f32 0.0, %v2265
      %v2267 = vpop.f32.mrf.mxu0
      %v2268 = vadd.f32 0.0, %v2267
      %2269 = vmatmul.bf16.gmra.mxu0 %v2180
      %v2270 = vpop.f32.mrf.mxu0
      %v2271 = vadd.f32 0.0, %v2270
      %v2272 = vpop.f32.mrf.mxu0
      %v2273 = vadd.f32 0.0, %v2272
      %2274 = vmatmul.bf16.gmra.mxu0 %v2182
      %v2275 = vpop.f32.mrf.mxu0
      %v2276 = vadd.f32 0.0, %v2275
      %v2277 = vpop.f32.mrf.mxu0
      %v2278 = vadd.f32 0.0, %v2277
      %2279 = vdwg.mxu0
      %v2280 = vld [vmem:[%s2] sm:$0x1]
      %v2281 = vperm.slane %v2280, 0
      %v2282 = vmul.f32 %v2201, %v2281
      %v2283 = vmul.f32 %v2203, %v2281
      %v2284 = vmul.f32 %v2206, %v2281
      %v2285 = vmul.f32 %v2208, %v2281
      %v2286 = vmul.f32 %v2211, %v2281
      %v2287 = vmul.f32 %v2213, %v2281
      %v2288 = vmul.f32 %v2216, %v2281
      %v2289 = vmul.f32 %v2218, %v2281
      %v2290 = vmul.f32 %v2221, %v2281
      %v2291 = vmul.f32 %v2223, %v2281
      %v2292 = vmul.f32 %v2226, %v2281
      %v2293 = vmul.f32 %v2228, %v2281
      %v2294 = vmul.f32 %v2231, %v2281
      %v2295 = vmul.f32 %v2233, %v2281
      %v2296 = vmul.f32 %v2236, %v2281
      %v2297 = vmul.f32 %v2238, %v2281
      %v2298 = vmul.f32 %v2241, %v2281
      %v2299 = vmul.f32 %v2243, %v2281
      %v2300 = vmul.f32 %v2246, %v2281
      %v2301 = vmul.f32 %v2248, %v2281
      %v2302 = vmul.f32 %v2251, %v2281
      %v2303 = vmul.f32 %v2253, %v2281
      %v2304 = vmul.f32 %v2256, %v2281
      %v2305 = vmul.f32 %v2258, %v2281
      %v2306 = vmul.f32 %v2261, %v2281
      %v2307 = vmul.f32 %v2263, %v2281
      %v2308 = vmul.f32 %v2266, %v2281
      %v2309 = vmul.f32 %v2268, %v2281
      %v2310 = vmul.f32 %v2271, %v2281
      %v2311 = vmul.f32 %v2273, %v2281
      %v2312 = vmul.f32 %v2276, %v2281
      %v2313 = vmul.f32 %v2278, %v2281
      %v2314 = vld [vmem:[%s2 + $0x1] sm:$0x1]
      %v2315 = vperm.slane %v2314, 0
      %v2316 = vadd.f32 %v2282, %v2315
      %v2317 = vadd.f32 %v2283, %v2315
      %v2318 = vadd.f32 %v2284, %v2315
      %v2319 = vadd.f32 %v2285, %v2315
      %v2320 = vadd.f32 %v2286, %v2315
      %v2321 = vadd.f32 %v2287, %v2315
      %v2322 = vadd.f32 %v2288, %v2315
      %v2323 = vadd.f32 %v2289, %v2315
      %v2324 = vadd.f32 %v2290, %v2315
      %v2325 = vadd.f32 %v2291, %v2315
      %v2326 = vadd.f32 %v2292, %v2315
      %v2327 = vadd.f32 %v2293, %v2315
      %v2328 = vadd.f32 %v2294, %v2315
      %v2329 = vadd.f32 %v2295, %v2315
      %v2330 = vadd.f32 %v2296, %v2315
      %v2331 = vadd.f32 %v2297, %v2315
      %v2332 = vadd.f32 %v2298, %v2315
      %v2333 = vadd.f32 %v2299, %v2315
      %v2334 = vadd.f32 %v2300, %v2315
      %v2335 = vadd.f32 %v2301, %v2315
      %v2336 = vadd.f32 %v2302, %v2315
      %v2337 = vadd.f32 %v2303, %v2315
      %v2338 = vadd.f32 %v2304, %v2315
      %v2339 = vadd.f32 %v2305, %v2315
      %v2340 = vadd.f32 %v2306, %v2315
      %v2341 = vadd.f32 %v2307, %v2315
      %v2342 = vadd.f32 %v2308, %v2315
      %v2343 = vadd.f32 %v2309, %v2315
      %v2344 = vadd.f32 %v2310, %v2315
      %v2345 = vadd.f32 %v2311, %v2315
      %v2346 = vadd.f32 %v2312, %v2315
      %v2347 = vadd.f32 %v2313, %v2315
      %v2348 = vpack.c.bf16 %v2316, %v2316
      %v2349 = vpack.c.bf16 %v2317, %v2317
      %v2350 = vpack.c.bf16 %v2318, %v2318
      %v2351 = vpack.c.bf16 %v2319, %v2319
      %v2352 = vpack.c.bf16 %v2320, %v2320
      %v2353 = vpack.c.bf16 %v2321, %v2321
      %v2354 = vpack.c.bf16 %v2322, %v2322
      %v2355 = vpack.c.bf16 %v2323, %v2323
      %v2356 = vpack.c.bf16 %v2324, %v2324
      %v2357 = vpack.c.bf16 %v2325, %v2325
      %v2358 = vpack.c.bf16 %v2326, %v2326
      %v2359 = vpack.c.bf16 %v2327, %v2327
      %v2360 = vpack.c.bf16 %v2328, %v2328
      %v2361 = vpack.c.bf16 %v2329, %v2329
      %v2362 = vpack.c.bf16 %v2330, %v2330
      %v2363 = vpack.c.bf16 %v2331, %v2331
      %v2364 = vpack.c.bf16 %v2332, %v2332
      %v2365 = vpack.c.bf16 %v2333, %v2333
      %v2366 = vpack.c.bf16 %v2334, %v2334
      %v2367 = vpack.c.bf16 %v2335, %v2335
      %v2368 = vpack.c.bf16 %v2336, %v2336
      %v2369 = vpack.c.bf16 %v2337, %v2337
      %v2370 = vpack.c.bf16 %v2338, %v2338
      %v2371 = vpack.c.bf16 %v2339, %v2339
      %v2372 = vpack.c.bf16 %v2340, %v2340
      %v2373 = vpack.c.bf16 %v2341, %v2341
      %v2374 = vpack.c.bf16 %v2342, %v2342
      %v2375 = vpack.c.bf16 %v2343, %v2343
      %v2376 = vpack.c.bf16 %v2344, %v2344
      %v2377 = vpack.c.bf16 %v2345, %v2345
      %v2378 = vpack.c.bf16 %v2346, %v2346
      %v2379 = vpack.c.bf16 %v2347, %v2347
      %vm2380 = vcmask 125952
      %2381 = vst.msk [vmem:[%s170] sm:$0xf] %vm2380, %v2348
      %2382 = vst.msk [vmem:[%s170 + $0x4] sm:$0xf] %vm2380, %v2349
      %2383 = vst.msk [vmem:[%s170 + $0x8] sm:$0xf] %vm2380, %v2350
      %2384 = vst.msk [vmem:[%s170 + $0xc] sm:$0xf] %vm2380, %v2351
      %2385 = vst.msk [vmem:[%s170 + $0x10] sm:$0xf] %vm2380, %v2352
      %2386 = vst.msk [vmem:[%s170 + $0x14] sm:$0xf] %vm2380, %v2353
      %2387 = vst.msk [vmem:[%s170 + $0x18] sm:$0xf] %vm2380, %v2354
      %2388 = vst.msk [vmem:[%s170 + $0x1c] sm:$0xf] %vm2380, %v2355
      %2389 = vst.msk [vmem:[%s170 + $0x20] sm:$0xf] %vm2380, %v2356
      %2390 = vst.msk [vmem:[%s170 + $0x24] sm:$0xf] %vm2380, %v2357
      %2391 = vst.msk [vmem:[%s170 + $0x28] sm:$0xf] %vm2380, %v2358
      %2392 = vst.msk [vmem:[%s170 + $0x2c] sm:$0xf] %vm2380, %v2359
      %2393 = vst.msk [vmem:[%s170 + $0x30] sm:$0xf] %vm2380, %v2360
      %2394 = vst.msk [vmem:[%s170 + $0x34] sm:$0xf] %vm2380, %v2361
      %2395 = vst.msk [vmem:[%s170 + $0x38] sm:$0xf] %vm2380, %v2362
      %2396 = vst.msk [vmem:[%s170 + $0x3c] sm:$0xf] %vm2380, %v2363
      %2397 = vst.msk [vmem:[%s170 + $0x40] sm:$0xf] %vm2380, %v2364
      %2398 = vst.msk [vmem:[%s170 + $0x44] sm:$0xf] %vm2380, %v2365
      %2399 = vst.msk [vmem:[%s170 + $0x48] sm:$0xf] %vm2380, %v2366
      %2400 = vst.msk [vmem:[%s170 + $0x4c] sm:$0xf] %vm2380, %v2367
      %2401 = vst.msk [vmem:[%s170 + $0x50] sm:$0xf] %vm2380, %v2368
      %2402 = vst.msk [vmem:[%s170 + $0x54] sm:$0xf] %vm2380, %v2369
      %2403 = vst.msk [vmem:[%s170 + $0x58] sm:$0xf] %vm2380, %v2370
      %2404 = vst.msk [vmem:[%s170 + $0x5c] sm:$0xf] %vm2380, %v2371
      %2405 = vst.msk [vmem:[%s170 + $0x60] sm:$0xf] %vm2380, %v2372
      %2406 = vst.msk [vmem:[%s170 + $0x64] sm:$0xf] %vm2380, %v2373
      %2407 = vst.msk [vmem:[%s170 + $0x68] sm:$0xf] %vm2380, %v2374
      %2408 = vst.msk [vmem:[%s170 + $0x6c] sm:$0xf] %vm2380, %v2375
      %2409 = vst.msk [vmem:[%s170 + $0x70] sm:$0xf] %vm2380, %v2376
      %2410 = vst.msk [vmem:[%s170 + $0x74] sm:$0xf] %vm2380, %v2377
      %2411 = vst.msk [vmem:[%s170 + $0x78] sm:$0xf] %vm2380, %v2378
      %2412 = vst.msk [vmem:[%s170 + $0x7c] sm:$0xf] %vm2380, %v2379
      %p2413 = scmp.lt.s32.totalorder %s14, 1
      %s2414 = scalar_select %p2413, %s14, 1
      %s2415 = smul.addr %s2414, 32
      %s2416 = smul.addr %s2415, 4
      %s2417 = scalar_lea.vmem %s3, %s2416
      // Predicated region
      $region33: #{_lambda_.8} parent=31 // pred_check
        %p2418 = pneg %p100
      $region34: #{_lambda_.8} parent=31 // pred_check_branch
        %2420 = sbr.rel (%p2418) target = $region36
      $region35: #{_lambda_.8} parent=31 // pred_region
        _
      $region36: #{_lambda_.8} parent=31 // pred_fallthru
        _
    $region32: #{_lambda_.8} parent=5 // pred_fallthru
      _
    %p2421 = scmp.le.s32.totalorder 2, %s9
    // Predicated region
    $region37: #{_lambda_.8} parent=5 // pred_check
      %p2422 = pneg %p2421
    $region38: #{_lambda_.8} parent=5 // pred_check_branch
      %2424 = sbr.rel (%p2422) target = $region40
    $region39: #{_lambda_.8} parent=5 // pred_region
      %s2425 = ssub.s32 %s9, 2
      // Predicated region
      $region41: #{_lambda_.8} parent=39 // pred_check
        %p2426 = pneg %p106
      $region42: #{_lambda_.8} parent=39 // pred_check_branch
        %2428 = sbr.rel (%p2426) target = $region44
      $region43: #{_lambda_.8} parent=39 // pred_region
        %p2429 = scmp.lt.s32.totalorder %s15, 1
        %s2430 = scalar_select %p2429, %s15, 1
        %s2431 = smul.addr %s2430, 32
        %s2432 = smul.addr %s2431, 4
        %s2433 = scalar_lea.vmem %s3, %s2432
      $region44: #{_lambda_.8} parent=39 // pred_fallthru
        _
    $region40: #{_lambda_.8} parent=5 // pred_fallthru
      _
  $region6: #{_lambda_.8} parent=0 // loop_footer
    %s13 = sadd.s32 1, %s9
  $region7: #{_lambda_.8} parent=0 // loop_footer_branch
    %8 = sbr.rel target = $region3
  $region8: #{_lambda_.8} parent=0 // loop_exit
    _

// kernel: _lambda_.11
$region0: #{_lambda_.11}
  #allocation0 [shape = 'u32[]', space=smem, size = 0x4, offset = 0x4, fixed_abs, tag = 'smem constant byte address 0x4 - core index']
  #allocation1 [shape = 'u32[72,128]{1,0:T(1,128)}', space=vmem, size = 0x9000, scoped, tag = 'internal scratch']
  %s0 = inlined_call_operand.vmem [shape: bf16[512,20], index: 0, kind: input, shape index: {}]
  %s1 = inlined_call_operand.vmem [shape: bf16[20,80], index: 1, kind: input, shape index: {}]
  %s2 = inlined_call_operand.vmem [shape: f32[2,80], index: 2, kind: input, shape index: {}]
  %s3 = inlined_call_operand.vmem [shape: bf16[512,16], index: 3, kind: input, shape index: {}]
  %s4 = inlined_call_operand.vmem [shape: bf16[512,80], index: 4, kind: output, shape index: {}]
  %s5 = sld [smem:[#allocation0]]
  $region26: #{_lambda_.11} parent=0
    _
  %s7 = ssub.s32 1, %s5
  %s8 = scalar_select 0, %s7, %s5
  // Predicated region
  $region2: #{_lambda_.11} parent=0 // pred_check
    _
  $region3: #{_lambda_.11} parent=0 // pred_check_branch
    %10 = sbr.rel (0) target = $region5
  $region4: #{_lambda_.11} parent=0 // pred_region
    _
  $region5: #{_lambda_.11} parent=0 // pred_fallthru
    _
  // Predicated region
  $region6: #{_lambda_.11} parent=0 // pred_check
    _
  $region7: #{_lambda_.11} parent=0 // pred_check_branch
    %12 = sbr.rel (0) target = $region9
  $region8: #{_lambda_.11} parent=0 // pred_region
    _
  $region9: #{_lambda_.11} parent=0 // pred_fallthru
    _
  // Predicated region
  $region10: #{_lambda_.11} parent=0 // pred_check
    _
  $region11: #{_lambda_.11} parent=0 // pred_check_branch
    %14 = sbr.rel (0) target = $region13
  $region12: #{_lambda_.11} parent=0 // pred_region
    _
  $region13: #{_lambda_.11} parent=0 // pred_fallthru
    _
  // Predicated region
  $region14: #{_lambda_.11} parent=0 // pred_check
    _
  $region15: #{_lambda_.11} parent=0 // pred_check_branch
    %16 = sbr.rel (0) target = $region17
  $region16: #{_lambda_.11} parent=0 // pred_region
    _
  $region17: #{_lambda_.11} parent=0 // pred_fallthru
    _
  %v18 = vld [vmem:[%s0] sm:$0xf]
  %v19 = vld [vmem:[%s0 + $0x4] sm:$0xf]
  %v20 = vld [vmem:[%s0 + $0x8] sm:$0xf]
  %v21 = vld [vmem:[%s0 + $0xc] sm:$0xf]
  %v22 = vld [vmem:[%s0 + $0x10] sm:$0xf]
  %v23 = vld [vmem:[%s0 + $0x14] sm:$0xf]
  %v24 = vld [vmem:[%s0 + $0x18] sm:$0xf]
  %v25 = vld [vmem:[%s0 + $0x1c] sm:$0xf]
  %v26 = vld [vmem:[%s0 + $0x20] sm:$0xf]
  %v27 = vld [vmem:[%s0 + $0x24] sm:$0xf]
  %v28 = vld [vmem:[%s0 + $0x28] sm:$0xf]
  %v29 = vld [vmem:[%s0 + $0x2c] sm:$0xf]
  %v30 = vld [vmem:[%s0 + $0x30] sm:$0xf]
  %v31 = vld [vmem:[%s0 + $0x34] sm:$0xf]
  %v32 = vld [vmem:[%s0 + $0x38] sm:$0xf]
  %v33 = vld [vmem:[%s0 + $0x3c] sm:$0xf]
  %v34 = vld [vmem:[%s0 + $0x40] sm:$0xf]
  %v35 = vld [vmem:[%s0 + $0x44] sm:$0xf]
  %v36 = vld [vmem:[%s0 + $0x48] sm:$0xf]
  %v37 = vld [vmem:[%s0 + $0x4c] sm:$0xf]
  %v38 = vld [vmem:[%s0 + $0x50] sm:$0xf]
  %v39 = vld [vmem:[%s0 + $0x54] sm:$0xf]
  %v40 = vld [vmem:[%s0 + $0x58] sm:$0xf]
  %v41 = vld [vmem:[%s0 + $0x5c] sm:$0xf]
  %v42 = vld [vmem:[%s0 + $0x60] sm:$0xf]
  %v43 = vld [vmem:[%s0 + $0x64] sm:$0xf]
  %v44 = vld [vmem:[%s0 + $0x68] sm:$0xf]
  %v45 = vld [vmem:[%s0 + $0x6c] sm:$0xf]
  %v46 = vld [vmem:[%s0 + $0x70] sm:$0xf]
  %v47 = vld [vmem:[%s0 + $0x74] sm:$0xf]
  %v48 = vld [vmem:[%s0 + $0x78] sm:$0xf]
  %v49 = vld [vmem:[%s0 + $0x7c] sm:$0xf]
  %v50 = vld [vmem:[%s0 + $0x80] sm:$0xf]
  %v51 = vld [vmem:[%s0 + $0x84] sm:$0xf]
  %v52 = vld [vmem:[%s0 + $0x88] sm:$0xf]
  %v53 = vld [vmem:[%s0 + $0x8c] sm:$0xf]
  %v54 = vld [vmem:[%s0 + $0x90] sm:$0xf]
  %v55 = vld [vmem:[%s0 + $0x94] sm:$0xf]
  %v56 = vld [vmem:[%s0 + $0x98] sm:$0xf]
  %v57 = vld [vmem:[%s0 + $0x9c] sm:$0xf]
  %v58 = vld [vmem:[%s0 + $0xa0] sm:$0xf]
  %v59 = vld [vmem:[%s0 + $0xa4] sm:$0xf]
  %v60 = vld [vmem:[%s0 + $0xa8] sm:$0xf]
  %v61 = vld [vmem:[%s0 + $0xac] sm:$0xf]
  %v62 = vld [vmem:[%s0 + $0xb0] sm:$0xf]
  %v63 = vld [vmem:[%s0 + $0xb4] sm:$0xf]
  %v64 = vld [vmem:[%s0 + $0xb8] sm:$0xf]
  %v65 = vld [vmem:[%s0 + $0xbc] sm:$0xf]
  %v66 = vld [vmem:[%s0 + $0xc0] sm:$0xf]
  %v67 = vld [vmem:[%s0 + $0xc4] sm:$0xf]
  %v68 = vld [vmem:[%s0 + $0xc8] sm:$0xf]
  %v69 = vld [vmem:[%s0 + $0xcc] sm:$0xf]
  %v70 = vld [vmem:[%s0 + $0xd0] sm:$0xf]
  %v71 = vld [vmem:[%s0 + $0xd4] sm:$0xf]
  %v72 = vld [vmem:[%s0 + $0xd8] sm:$0xf]
  %v73 = vld [vmem:[%s0 + $0xdc] sm:$0xf]
  %v74 = vld [vmem:[%s0 + $0xe0] sm:$0xf]
  %v75 = vld [vmem:[%s0 + $0xe4] sm:$0xf]
  %v76 = vld [vmem:[%s0 + $0xe8] sm:$0xf]
  %v77 = vld [vmem:[%s0 + $0xec] sm:$0xf]
  %v78 = vld [vmem:[%s0 + $0xf0] sm:$0xf]
  %v79 = vld [vmem:[%s0 + $0xf4] sm:$0xf]
  %v80 = vld [vmem:[%s0 + $0xf8] sm:$0xf]
  %v81 = vld [vmem:[%s0 + $0xfc] sm:$0xf]
  %v82 = vld [vmem:[%s1] sm:$0xf]
  %v83 = vld [vmem:[%s1 + $0x4] sm:$0xf]
  %v84 = vld [vmem:[%s1 + $0x8] sm:$0x3]
  %v149 = vunpack.c.l.b16 %v18
  %v150 = vunpack.c.l.b16 %v19
  %v151 = vunpack.c.l.b16 %v20
  %v152 = vunpack.c.l.b16 %v21
  %v153 = vunpack.c.l.b16 %v22
  %v154 = vunpack.c.l.b16 %v23
  %v155 = vunpack.c.l.b16 %v24
  %v156 = vunpack.c.l.b16 %v25
  %v157 = vunpack.c.l.b16 %v26
  %v158 = vunpack.c.l.b16 %v27
  %v159 = vunpack.c.l.b16 %v28
  %v160 = vunpack.c.l.b16 %v29
  %v161 = vunpack.c.l.b16 %v30
  %v162 = vunpack.c.l.b16 %v31
  %v163 = vunpack.c.l.b16 %v32
  %v164 = vunpack.c.l.b16 %v33
  %v165 = vunpack.c.l.b16 %v34
  %v166 = vunpack.c.l.b16 %v35
  %v167 = vunpack.c.l.b16 %v36
  %v168 = vunpack.c.l.b16 %v37
  %v169 = vunpack.c.l.b16 %v38
  %v170 = vunpack.c.l.b16 %v39
  %v171 = vunpack.c.l.b16 %v40
  %v172 = vunpack.c.l.b16 %v41
  %v173 = vunpack.c.l.b16 %v42
  %v174 = vunpack.c.l.b16 %v43
  %v175 = vunpack.c.l.b16 %v44
  %v176 = vunpack.c.l.b16 %v45
  %v177 = vunpack.c.l.b16 %v46
  %v178 = vunpack.c.l.b16 %v47
  %v179 = vunpack.c.l.b16 %v48
  %v180 = vunpack.c.l.b16 %v49
  %v181 = vunpack.c.l.b16 %v50
  %v182 = vunpack.c.l.b16 %v51
  %v183 = vunpack.c.l.b16 %v52
  %v184 = vunpack.c.l.b16 %v53
  %v185 = vunpack.c.l.b16 %v54
  %v186 = vunpack.c.l.b16 %v55
  %v187 = vunpack.c.l.b16 %v56
  %v188 = vunpack.c.l.b16 %v57
  %v189 = vunpack.c.l.b16 %v58
  %v190 = vunpack.c.l.b16 %v59
  %v191 = vunpack.c.l.b16 %v60
  %v192 = vunpack.c.l.b16 %v61
  %v193 = vunpack.c.l.b16 %v62
  %v194 = vunpack.c.l.b16 %v63
  %v195 = vunpack.c.l.b16 %v64
  %v196 = vunpack.c.l.b16 %v65
  %v197 = vunpack.c.l.b16 %v66
  %v198 = vunpack.c.l.b16 %v67
  %v199 = vunpack.c.l.b16 %v68
  %v200 = vunpack.c.l.b16 %v69
  %v201 = vunpack.c.l.b16 %v70
  %v202 = vunpack.c.l.b16 %v71
  %v203 = vunpack.c.l.b16 %v72
  %v204 = vunpack.c.l.b16 %v73
  %v205 = vunpack.c.l.b16 %v74
  %v206 = vunpack.c.l.b16 %v75
  %v207 = vunpack.c.l.b16 %v76
  %v208 = vunpack.c.l.b16 %v77
  %v209 = vunpack.c.l.b16 %v78
  %v210 = vunpack.c.l.b16 %v79
  %v211 = vunpack.c.l.b16 %v80
  %v212 = vunpack.c.l.b16 %v81
  %v213 = vpack.c.b16 %v150, %v149
  %v214 = vpack.c.b16 %v152, %v151
  %v215 = vpack.c.b16 %v154, %v153
  %v216 = vpack.c.b16 %v156, %v155
  %v217 = vpack.c.b16 %v158, %v157
  %v218 = vpack.c.b16 %v160, %v159
  %v219 = vpack.c.b16 %v162, %v161
  %v220 = vpack.c.b16 %v164, %v163
  %v221 = vpack.c.b16 %v166, %v165
  %v222 = vpack.c.b16 %v168, %v167
  %v223 = vpack.c.b16 %v170, %v169
  %v224 = vpack.c.b16 %v172, %v171
  %v225 = vpack.c.b16 %v174, %v173
  %v226 = vpack.c.b16 %v176, %v175
  %v227 = vpack.c.b16 %v178, %v177
  %v228 = vpack.c.b16 %v180, %v179
  %v229 = vpack.c.b16 %v182, %v181
  %v230 = vpack.c.b16 %v184, %v183
  %v231 = vpack.c.b16 %v186, %v185
  %v232 = vpack.c.b16 %v188, %v187
  %v233 = vpack.c.b16 %v190, %v189
  %v234 = vpack.c.b16 %v192, %v191
  %v235 = vpack.c.b16 %v194, %v193
  %v236 = vpack.c.b16 %v196, %v195
  %v237 = vpack.c.b16 %v198, %v197
  %v238 = vpack.c.b16 %v200, %v199
  %v239 = vpack.c.b16 %v202, %v201
  %v240 = vpack.c.b16 %v204, %v203
  %v241 = vpack.c.b16 %v206, %v205
  %v242 = vpack.c.b16 %v208, %v207
  %v243 = vpack.c.b16 %v210, %v209
  %v244 = vpack.c.b16 %v212, %v211
  %v248 = vunpack.c.l.b16 %v82
  %v249 = vunpack.c.l.b16 %v83
  %v250 = vunpack.c.l.b16 %v84
  %v251 = vpack.c.b16 %v249, %v248
  %v252 = vpack.c.b16 %v250, %v250
  %vm254 = vcmask 162816
  %v256 = vsel %vm254, %v213, 0
  %v259 = vsel %vm254, %v214, 0
  %v262 = vsel %vm254, %v215, 0
  %v265 = vsel %vm254, %v216, 0
  %v268 = vsel %vm254, %v217, 0
  %v271 = vsel %vm254, %v218, 0
  %v274 = vsel %vm254, %v219, 0
  %v277 = vsel %vm254, %v220, 0
  %v280 = vsel %vm254, %v221, 0
  %v283 = vsel %vm254, %v222, 0
  %v286 = vsel %vm254, %v223, 0
  %v289 = vsel %vm254, %v224, 0
  %v292 = vsel %vm254, %v225, 0
  %v295 = vsel %vm254, %v226, 0
  %v298 = vsel %vm254, %v227, 0
  %v301 = vsel %vm254, %v228, 0
  %v304 = vsel %vm254, %v229, 0
  %v307 = vsel %vm254, %v230, 0
  %v310 = vsel %vm254, %v231, 0
  %v313 = vsel %vm254, %v232, 0
  %v316 = vsel %vm254, %v233, 0
  %v319 = vsel %vm254, %v234, 0
  %v322 = vsel %vm254, %v235, 0
  %v325 = vsel %vm254, %v236, 0
  %v328 = vsel %vm254, %v237, 0
  %v331 = vsel %vm254, %v238, 0
  %v334 = vsel %vm254, %v239, 0
  %v337 = vsel %vm254, %v240, 0
  %v340 = vsel %vm254, %v241, 0
  %v343 = vsel %vm254, %v242, 0
  %v346 = vsel %vm254, %v243, 0
  %v349 = vsel %vm254, %v244, 0
  %vm351 = vcmask 1041408
  %v353 = vsel %vm351, %v252, 0
  %355 = vmatpush.bf16.msra.mxu0 0
  %356 = vmatpush.bf16.msra.mxu0 0
  %357 = vmatpush.bf16.msra.mxu0 0
  %358 = vmatpush.bf16.msra.mxu0 0
  %359 = vmatpush.bf16.msra.mxu0 0
  %360 = vmatpush.bf16.msra.mxu0 0
  %361 = vmatpush.bf16.msra.mxu0 %v353
  %362 = vmatpush.bf16.msra.mxu0 %v251
  %363 = vmatmul.bf16.gmra.mxu0 %v256
  %v364 = vpop.f32.mrf.mxu0
  %v365 = vadd.f32 0.0, %v364
  %v366 = vpop.f32.mrf.mxu0
  %v367 = vadd.f32 0.0, %v366
  %368 = vmatmul.bf16.gmra.mxu0 %v259
  %v369 = vpop.f32.mrf.mxu0
  %v370 = vadd.f32 0.0, %v369
  %v371 = vpop.f32.mrf.mxu0
  %v372 = vadd.f32 0.0, %v371
  %373 = vmatmul.bf16.gmra.mxu0 %v262
  %v374 = vpop.f32.mrf.mxu0
  %v375 = vadd.f32 0.0, %v374
  %v376 = vpop.f32.mrf.mxu0
  %v377 = vadd.f32 0.0, %v376
  %378 = vmatmul.bf16.gmra.mxu0 %v265
  %v379 = vpop.f32.mrf.mxu0
  %v380 = vadd.f32 0.0, %v379
  %v381 = vpop.f32.mrf.mxu0
  %v382 = vadd.f32 0.0, %v381
  %383 = vmatmul.bf16.gmra.mxu0 %v268
  %v384 = vpop.f32.mrf.mxu0
  %v385 = vadd.f32 0.0, %v384
  %v386 = vpop.f32.mrf.mxu0
  %v387 = vadd.f32 0.0, %v386
  %388 = vmatmul.bf16.gmra.mxu0 %v271
  %v389 = vpop.f32.mrf.mxu0
  %v390 = vadd.f32 0.0, %v389
  %v391 = vpop.f32.mrf.mxu0
  %v392 = vadd.f32 0.0, %v391
  %393 = vmatmul.bf16.gmra.mxu0 %v274
  %v394 = vpop.f32.mrf.mxu0
  %v395 = vadd.f32 0.0, %v394
  %v396 = vpop.f32.mrf.mxu0
  %v397 = vadd.f32 0.0, %v396
  %398 = vmatmul.bf16.gmra.mxu0 %v277
  %v399 = vpop.f32.mrf.mxu0
  %v400 = vadd.f32 0.0, %v399
  %v401 = vpop.f32.mrf.mxu0
  %v402 = vadd.f32 0.0, %v401
  %403 = vmatmul.bf16.gmra.mxu0 %v280
  %v404 = vpop.f32.mrf.mxu0
  %v405 = vadd.f32 0.0, %v404
  %v406 = vpop.f32.mrf.mxu0
  %v407 = vadd.f32 0.0, %v406
  %408 = vmatmul.bf16.gmra.mxu0 %v283
  %v409 = vpop.f32.mrf.mxu0
  %v410 = vadd.f32 0.0, %v409
  %v411 = vpop.f32.mrf.mxu0
  %v412 = vadd.f32 0.0, %v411
  %413 = vmatmul.bf16.gmra.mxu0 %v286
  %v414 = vpop.f32.mrf.mxu0
  %v415 = vadd.f32 0.0, %v414
  %v416 = vpop.f32.mrf.mxu0
  %v417 = vadd.f32 0.0, %v416
  %418 = vmatmul.bf16.gmra.mxu0 %v289
  %v419 = vpop.f32.mrf.mxu0
  %v420 = vadd.f32 0.0, %v419
  %v421 = vpop.f32.mrf.mxu0
  %v422 = vadd.f32 0.0, %v421
  %423 = vmatmul.bf16.gmra.mxu0 %v292
  %v424 = vpop.f32.mrf.mxu0
  %v425 = vadd.f32 0.0, %v424
  %v426 = vpop.f32.mrf.mxu0
  %v427 = vadd.f32 0.0, %v426
  %428 = vmatmul.bf16.gmra.mxu0 %v295
  %v429 = vpop.f32.mrf.mxu0
  %v430 = vadd.f32 0.0, %v429
  %v431 = vpop.f32.mrf.mxu0
  %v432 = vadd.f32 0.0, %v431
  %433 = vmatmul.bf16.gmra.mxu0 %v298
  %v434 = vpop.f32.mrf.mxu0
  %v435 = vadd.f32 0.0, %v434
  %v436 = vpop.f32.mrf.mxu0
  %v437 = vadd.f32 0.0, %v436
  %438 = vmatmul.bf16.gmra.mxu0 %v301
  %v439 = vpop.f32.mrf.mxu0
  %v440 = vadd.f32 0.0, %v439
  %v441 = vpop.f32.mrf.mxu0
  %v442 = vadd.f32 0.0, %v441
  %443 = vmatmul.bf16.gmra.mxu0 %v304
  %v444 = vpop.f32.mrf.mxu0
  %v445 = vadd.f32 0.0, %v444
  %v446 = vpop.f32.mrf.mxu0
  %v447 = vadd.f32 0.0, %v446
  %448 = vmatmul.bf16.gmra.mxu0 %v307
  %v449 = vpop.f32.mrf.mxu0
  %v450 = vadd.f32 0.0, %v449
  %v451 = vpop.f32.mrf.mxu0
  %v452 = vadd.f32 0.0, %v451
  %453 = vmatmul.bf16.gmra.mxu0 %v310
  %v454 = vpop.f32.mrf.mxu0
  %v455 = vadd.f32 0.0, %v454
  %v456 = vpop.f32.mrf.mxu0
  %v457 = vadd.f32 0.0, %v456
  %458 = vmatmul.bf16.gmra.mxu0 %v313
  %v459 = vpop.f32.mrf.mxu0
  %v460 = vadd.f32 0.0, %v459
  %v461 = vpop.f32.mrf.mxu0
  %v462 = vadd.f32 0.0, %v461
  %463 = vmatmul.bf16.gmra.mxu0 %v316
  %v464 = vpop.f32.mrf.mxu0
  %v465 = vadd.f32 0.0, %v464
  %v466 = vpop.f32.mrf.mxu0
  %v467 = vadd.f32 0.0, %v466
  %468 = vmatmul.bf16.gmra.mxu0 %v319
  %v469 = vpop.f32.mrf.mxu0
  %v470 = vadd.f32 0.0, %v469
  %v471 = vpop.f32.mrf.mxu0
  %v472 = vadd.f32 0.0, %v471
  %473 = vmatmul.bf16.gmra.mxu0 %v322
  %v474 = vpop.f32.mrf.mxu0
  %v475 = vadd.f32 0.0, %v474
  %v476 = vpop.f32.mrf.mxu0
  %v477 = vadd.f32 0.0, %v476
  %478 = vmatmul.bf16.gmra.mxu0 %v325
  %v479 = vpop.f32.mrf.mxu0
  %v480 = vadd.f32 0.0, %v479
  %v481 = vpop.f32.mrf.mxu0
  %v482 = vadd.f32 0.0, %v481
  %483 = vmatmul.bf16.gmra.mxu0 %v328
  %v484 = vpop.f32.mrf.mxu0
  %v485 = vadd.f32 0.0, %v484
  %v486 = vpop.f32.mrf.mxu0
  %v487 = vadd.f32 0.0, %v486
  %488 = vmatmul.bf16.gmra.mxu0 %v331
  %v489 = vpop.f32.mrf.mxu0
  %v490 = vadd.f32 0.0, %v489
  %v491 = vpop.f32.mrf.mxu0
  %v492 = vadd.f32 0.0, %v491
  %493 = vmatmul.bf16.gmra.mxu0 %v334
  %v494 = vpop.f32.mrf.mxu0
  %v495 = vadd.f32 0.0, %v494
  %v496 = vpop.f32.mrf.mxu0
  %v497 = vadd.f32 0.0, %v496
  %498 = vmatmul.bf16.gmra.mxu0 %v337
  %v499 = vpop.f32.mrf.mxu0
  %v500 = vadd.f32 0.0, %v499
  %v501 = vpop.f32.mrf.mxu0
  %v502 = vadd.f32 0.0, %v501
  %503 = vmatmul.bf16.gmra.mxu0 %v340
  %v504 = vpop.f32.mrf.mxu0
  %v505 = vadd.f32 0.0, %v504
  %v506 = vpop.f32.mrf.mxu0
  %v507 = vadd.f32 0.0, %v506
  %508 = vmatmul.bf16.gmra.mxu0 %v343
  %v509 = vpop.f32.mrf.mxu0
  %v510 = vadd.f32 0.0, %v509
  %v511 = vpop.f32.mrf.mxu0
  %v512 = vadd.f32 0.0, %v511
  %513 = vmatmul.bf16.gmra.mxu0 %v346
  %v514 = vpop.f32.mrf.mxu0
  %v515 = vadd.f32 0.0, %v514
  %v516 = vpop.f32.mrf.mxu0
  %v517 = vadd.f32 0.0, %v516
  %518 = vmatmul.bf16.gmra.mxu0 %v349
  %v519 = vpop.f32.mrf.mxu0
  %v520 = vadd.f32 0.0, %v519
  %v521 = vpop.f32.mrf.mxu0
  %v522 = vadd.f32 0.0, %v521
  %523 = vdwg.mxu0
  %v524 = vld [vmem:[%s2] sm:$0x1]
  %v525 = vperm.slane %v524, 0
  %v526 = vmul.f32 %v365, %v525
  %v527 = vmul.f32 %v367, %v525
  %v528 = vmul.f32 %v370, %v525
  %v529 = vmul.f32 %v372, %v525
  %v530 = vmul.f32 %v375, %v525
  %v531 = vmul.f32 %v377, %v525
  %v532 = vmul.f32 %v380, %v525
  %v533 = vmul.f32 %v382, %v525
  %v534 = vmul.f32 %v385, %v525
  %v535 = vmul.f32 %v387, %v525
  %v536 = vmul.f32 %v390, %v525
  %v537 = vmul.f32 %v392, %v525
  %v538 = vmul.f32 %v395, %v525
  %v539 = vmul.f32 %v397, %v525
  %v540 = vmul.f32 %v400, %v525
  %v541 = vmul.f32 %v402, %v525
  %v542 = vmul.f32 %v405, %v525
  %v543 = vmul.f32 %v407, %v525
  %v544 = vmul.f32 %v410, %v525
  %v545 = vmul.f32 %v412, %v525
  %v546 = vmul.f32 %v415, %v525
  %v547 = vmul.f32 %v417, %v525
  %v548 = vmul.f32 %v420, %v525
  %v549 = vmul.f32 %v422, %v525
  %v550 = vmul.f32 %v425, %v525
  %v551 = vmul.f32 %v427, %v525
  %v552 = vmul.f32 %v430, %v525
  %v553 = vmul.f32 %v432, %v525
  %v554 = vmul.f32 %v435, %v525
  %v555 = vmul.f32 %v437, %v525
  %v556 = vmul.f32 %v440, %v525
  %v557 = vmul.f32 %v442, %v525
  %v558 = vmul.f32 %v445, %v525
  %v559 = vmul.f32 %v447, %v525
  %v560 = vmul.f32 %v450, %v525
  %v561 = vmul.f32 %v452, %v525
  %v562 = vmul.f32 %v455, %v525
  %v563 = vmul.f32 %v457, %v525
  %v564 = vmul.f32 %v460, %v525
  %v565 = vmul.f32 %v462, %v525
  %v566 = vmul.f32 %v465, %v525
  %v567 = vmul.f32 %v467, %v525
  %v568 = vmul.f32 %v470, %v525
  %v569 = vmul.f32 %v472, %v525
  %v570 = vmul.f32 %v475, %v525
  %v571 = vmul.f32 %v477, %v525
  %v572 = vmul.f32 %v480, %v525
  %v573 = vmul.f32 %v482, %v525
  %v574 = vmul.f32 %v485, %v525
  %v575 = vmul.f32 %v487, %v525
  %v576 = vmul.f32 %v490, %v525
  %v577 = vmul.f32 %v492, %v525
  %v578 = vmul.f32 %v495, %v525
  %v579 = vmul.f32 %v497, %v525
  %v580 = vmul.f32 %v500, %v525
  %v581 = vmul.f32 %v502, %v525
  %v582 = vmul.f32 %v505, %v525
  %v583 = vmul.f32 %v507, %v525
  %v584 = vmul.f32 %v510, %v525
  %v585 = vmul.f32 %v512, %v525
  %v586 = vmul.f32 %v515, %v525
  %v587 = vmul.f32 %v517, %v525
  %v588 = vmul.f32 %v520, %v525
  %v589 = vmul.f32 %v522, %v525
  %v590 = vld [vmem:[%s2 + $0x1] sm:$0x1]
  %v591 = vperm.slane %v590, 0
  %v592 = vadd.f32 %v526, %v591
  %v593 = vadd.f32 %v527, %v591
  %v594 = vadd.f32 %v528, %v591
  %v595 = vadd.f32 %v529, %v591
  %v596 = vadd.f32 %v530, %v591
  %v597 = vadd.f32 %v531, %v591
  %v598 = vadd.f32 %v532, %v591
  %v599 = vadd.f32 %v533, %v591
  %v600 = vadd.f32 %v534, %v591
  %v601 = vadd.f32 %v535, %v591
  %v602 = vadd.f32 %v536, %v591
  %v603 = vadd.f32 %v537, %v591
  %v604 = vadd.f32 %v538, %v591
  %v605 = vadd.f32 %v539, %v591
  %v606 = vadd.f32 %v540, %v591
  %v607 = vadd.f32 %v541, %v591
  %v608 = vadd.f32 %v542, %v591
  %v609 = vadd.f32 %v543, %v591
  %v610 = vadd.f32 %v544, %v591
  %v611 = vadd.f32 %v545, %v591
  %v612 = vadd.f32 %v546, %v591
  %v613 = vadd.f32 %v547, %v591
  %v614 = vadd.f32 %v548, %v591
  %v615 = vadd.f32 %v549, %v591
  %v616 = vadd.f32 %v550, %v591
  %v617 = vadd.f32 %v551, %v591
  %v618 = vadd.f32 %v552, %v591
  %v619 = vadd.f32 %v553, %v591
  %v620 = vadd.f32 %v554, %v591
  %v621 = vadd.f32 %v555, %v591
  %v622 = vadd.f32 %v556, %v591
  %v623 = vadd.f32 %v557, %v591
  %v624 = vadd.f32 %v558, %v591
  %v625 = vadd.f32 %v559, %v591
  %v626 = vadd.f32 %v560, %v591
  %v627 = vadd.f32 %v561, %v591
  %v628 = vadd.f32 %v562, %v591
  %v629 = vadd.f32 %v563, %v591
  %v630 = vadd.f32 %v564, %v591
  %v631 = vadd.f32 %v565, %v591
  %v632 = vadd.f32 %v566, %v591
  %v633 = vadd.f32 %v567, %v591
  %v634 = vadd.f32 %v568, %v591
  %v635 = vadd.f32 %v569, %v591
  %v636 = vadd.f32 %v570, %v591
  %v637 = vadd.f32 %v571, %v591
  %v638 = vadd.f32 %v572, %v591
  %v639 = vadd.f32 %v573, %v591
  %v640 = vadd.f32 %v574, %v591
  %v641 = vadd.f32 %v575, %v591
  %v642 = vadd.f32 %v576, %v591
  %v643 = vadd.f32 %v577, %v591
  %v644 = vadd.f32 %v578, %v591
  %v645 = vadd.f32 %v579, %v591
  %v646 = vadd.f32 %v580, %v591
  %v647 = vadd.f32 %v581, %v591
  %v648 = vadd.f32 %v582, %v591
  %v649 = vadd.f32 %v583, %v591
  %v650 = vadd.f32 %v584, %v591
  %v651 = vadd.f32 %v585, %v591
  %v652 = vadd.f32 %v586, %v591
  %v653 = vadd.f32 %v587, %v591
  %v654 = vadd.f32 %v588, %v591
  %v655 = vadd.f32 %v589, %v591
  %v656 = vld [vmem:[%s3] sm:$0xf]
  %v657 = vld [vmem:[%s3 + $0x4] sm:$0xf]
  %v658 = vld [vmem:[%s3 + $0x8] sm:$0xf]
  %v659 = vld [vmem:[%s3 + $0xc] sm:$0xf]
  %v660 = vld [vmem:[%s3 + $0x10] sm:$0xf]
  %v661 = vld [vmem:[%s3 + $0x14] sm:$0xf]
  %v662 = vld [vmem:[%s3 + $0x18] sm:$0xf]
  %v663 = vld [vmem:[%s3 + $0x1c] sm:$0xf]
  %v664 = vld [vmem:[%s3 + $0x20] sm:$0xf]
  %v665 = vld [vmem:[%s3 + $0x24] sm:$0xf]
  %v666 = vld [vmem:[%s3 + $0x28] sm:$0xf]
  %v667 = vld [vmem:[%s3 + $0x2c] sm:$0xf]
  %v668 = vld [vmem:[%s3 + $0x30] sm:$0xf]
  %v669 = vld [vmem:[%s3 + $0x34] sm:$0xf]
  %v670 = vld [vmem:[%s3 + $0x38] sm:$0xf]
  %v671 = vld [vmem:[%s3 + $0x3c] sm:$0xf]
  %v672 = vld [vmem:[%s3 + $0x40] sm:$0xf]
  %v673 = vld [vmem:[%s3 + $0x44] sm:$0xf]
  %v674 = vld [vmem:[%s3 + $0x48] sm:$0xf]
  %v675 = vld [vmem:[%s3 + $0x4c] sm:$0xf]
  %v676 = vld [vmem:[%s3 + $0x50] sm:$0xf]
  %v677 = vld [vmem:[%s3 + $0x54] sm:$0xf]
  %v678 = vld [vmem:[%s3 + $0x58] sm:$0xf]
  %v679 = vld [vmem:[%s3 + $0x5c] sm:$0xf]
  %v680 = vld [vmem:[%s3 + $0x60] sm:$0xf]
  %v681 = vld [vmem:[%s3 + $0x64] sm:$0xf]
  %v682 = vld [vmem:[%s3 + $0x68] sm:$0xf]
  %v683 = vld [vmem:[%s3 + $0x6c] sm:$0xf]
  %v684 = vld [vmem:[%s3 + $0x70] sm:$0xf]
  %v685 = vld [vmem:[%s3 + $0x74] sm:$0xf]
  %v686 = vld [vmem:[%s3 + $0x78] sm:$0xf]
  %v687 = vld [vmem:[%s3 + $0x7c] sm:$0xf]
  %v688 = vld [vmem:[%s3 + $0x80] sm:$0xf]
  %v689 = vld [vmem:[%s3 + $0x84] sm:$0xf]
  %v690 = vld [vmem:[%s3 + $0x88] sm:$0xf]
  %v691 = vld [vmem:[%s3 + $0x8c] sm:$0xf]
  %v692 = vld [vmem:[%s3 + $0x90] sm:$0xf]
  %v693 = vld [vmem:[%s3 + $0x94] sm:$0xf]
  %v694 = vld [vmem:[%s3 + $0x98] sm:$0xf]
  %v695 = vld [vmem:[%s3 + $0x9c] sm:$0xf]
  %v696 = vld [vmem:[%s3 + $0xa0] sm:$0xf]
  %v697 = vld [vmem:[%s3 + $0xa4] sm:$0xf]
  %v698 = vld [vmem:[%s3 + $0xa8] sm:$0xf]
  %v699 = vld [vmem:[%s3 + $0xac] sm:$0xf]
  %v700 = vld [vmem:[%s3 + $0xb0] sm:$0xf]
  %v701 = vld [vmem:[%s3 + $0xb4] sm:$0xf]
  %v702 = vld [vmem:[%s3 + $0xb8] sm:$0xf]
  %v703 = vld [vmem:[%s3 + $0xbc] sm:$0xf]
  %v704 = vld [vmem:[%s3 + $0xc0] sm:$0xf]
  %v705 = vld [vmem:[%s3 + $0xc4] sm:$0xf]
  %v706 = vld [vmem:[%s3 + $0xc8] sm:$0xf]
  %v707 = vld [vmem:[%s3 + $0xcc] sm:$0xf]
  %v708 = vld [vmem:[%s3 + $0xd0] sm:$0xf]
  %v709 = vld [vmem:[%s3 + $0xd4] sm:$0xf]
  %v710 = vld [vmem:[%s3 + $0xd8] sm:$0xf]
  %v711 = vld [vmem:[%s3 + $0xdc] sm:$0xf]
  %v712 = vld [vmem:[%s3 + $0xe0] sm:$0xf]
  %v713 = vld [vmem:[%s3 + $0xe4] sm:$0xf]
  %v714 = vld [vmem:[%s3 + $0xe8] sm:$0xf]
  %v715 = vld [vmem:[%s3 + $0xec] sm:$0xf]
  %v716 = vld [vmem:[%s3 + $0xf0] sm:$0xf]
  %v717 = vld [vmem:[%s3 + $0xf4] sm:$0xf]
  %v718 = vld [vmem:[%s3 + $0xf8] sm:$0xf]
  %v719 = vld [vmem:[%s3 + $0xfc] sm:$0xf]
  %v720 = vunpack.c.l.bf16 %v656
  %v721 = vunpack.c.l.bf16 %v657
  %v722 = vunpack.c.l.bf16 %v658
  %v723 = vunpack.c.l.bf16 %v659
  %v724 = vunpack.c.l.bf16 %v660
  %v725 = vunpack.c.l.bf16 %v661
  %v726 = vunpack.c.l.bf16 %v662
  %v727 = vunpack.c.l.bf16 %v663
  %v728 = vunpack.c.l.bf16 %v664
  %v729 = vunpack.c.l.bf16 %v665
  %v730 = vunpack.c.l.bf16 %v666
  %v731 = vunpack.c.l.bf16 %v667
  %v732 = vunpack.c.l.bf16 %v668
  %v733 = vunpack.c.l.bf16 %v669
  %v734 = vunpack.c.l.bf16 %v670
  %v735 = vunpack.c.l.bf16 %v671
  %v736 = vunpack.c.l.bf16 %v672
  %v737 = vunpack.c.l.bf16 %v673
  %v738 = vunpack.c.l.bf16 %v674
  %v739 = vunpack.c.l.bf16 %v675
  %v740 = vunpack.c.l.bf16 %v676
  %v741 = vunpack.c.l.bf16 %v677
  %v742 = vunpack.c.l.bf16 %v678
  %v743 = vunpack.c.l.bf16 %v679
  %v744 = vunpack.c.l.bf16 %v680
  %v745 = vunpack.c.l.bf16 %v681
  %v746 = vunpack.c.l.bf16 %v682
  %v747 = vunpack.c.l.bf16 %v683
  %v748 = vunpack.c.l.bf16 %v684
  %v749 = vunpack.c.l.bf16 %v685
  %v750 = vunpack.c.l.bf16 %v686
  %v751 = vunpack.c.l.bf16 %v687
  %v752 = vunpack.c.l.bf16 %v688
  %v753 = vunpack.c.l.bf16 %v689
  %v754 = vunpack.c.l.bf16 %v690
  %v755 = vunpack.c.l.bf16 %v691
  %v756 = vunpack.c.l.bf16 %v692
  %v757 = vunpack.c.l.bf16 %v693
  %v758 = vunpack.c.l.bf16 %v694
  %v759 = vunpack.c.l.bf16 %v695
  %v760 = vunpack.c.l.bf16 %v696
  %v761 = vunpack.c.l.bf16 %v697
  %v762 = vunpack.c.l.bf16 %v698
  %v763 = vunpack.c.l.bf16 %v699
  %v764 = vunpack.c.l.bf16 %v700
  %v765 = vunpack.c.l.bf16 %v701
  %v766 = vunpack.c.l.bf16 %v702
  %v767 = vunpack.c.l.bf16 %v703
  %v768 = vunpack.c.l.bf16 %v704
  %v769 = vunpack.c.l.bf16 %v705
  %v770 = vunpack.c.l.bf16 %v706
  %v771 = vunpack.c.l.bf16 %v707
  %v772 = vunpack.c.l.bf16 %v708
  %v773 = vunpack.c.l.bf16 %v709
  %v774 = vunpack.c.l.bf16 %v710
  %v775 = vunpack.c.l.bf16 %v711
  %v776 = vunpack.c.l.bf16 %v712
  %v777 = vunpack.c.l.bf16 %v713
  %v778 = vunpack.c.l.bf16 %v714
  %v779 = vunpack.c.l.bf16 %v715
  %v780 = vunpack.c.l.bf16 %v716
  %v781 = vunpack.c.l.bf16 %v717
  %v782 = vunpack.c.l.bf16 %v718
  %v783 = vunpack.c.l.bf16 %v719
  %vm784 = vcmask 130048
  %v785 = vsel %vm784, %v720, 0.0
  %v786 = vsel %vm784, %v721, 0.0
  %v787 = vsel %vm784, %v722, 0.0
  %v788 = vsel %vm784, %v723, 0.0
  %v789 = vsel %vm784, %v724, 0.0
  %v790 = vsel %vm784, %v725, 0.0
  %v791 = vsel %vm784, %v726, 0.0
  %v792 = vsel %vm784, %v727, 0.0
  %v793 = vsel %vm784, %v728, 0.0
  %v794 = vsel %vm784, %v729, 0.0
  %v795 = vsel %vm784, %v730, 0.0
  %v796 = vsel %vm784, %v731, 0.0
  %v797 = vsel %vm784, %v732, 0.0
  %v798 = vsel %vm784, %v733, 0.0
  %v799 = vsel %vm784, %v734, 0.0
  %v800 = vsel %vm784, %v735, 0.0
  %v801 = vsel %vm784, %v736, 0.0
  %v802 = vsel %vm784, %v737, 0.0
  %v803 = vsel %vm784, %v738, 0.0
  %v804 = vsel %vm784, %v739, 0.0
  %v805 = vsel %vm784, %v740, 0.0
  %v806 = vsel %vm784, %v741, 0.0
  %v807 = vsel %vm784, %v742, 0.0
  %v808 = vsel %vm784, %v743, 0.0
  %v809 = vsel %vm784, %v744, 0.0
  %v810 = vsel %vm784, %v745, 0.0
  %v811 = vsel %vm784, %v746, 0.0
  %v812 = vsel %vm784, %v747, 0.0
  %v813 = vsel %vm784, %v748, 0.0
  %v814 = vsel %vm784, %v749, 0.0
  %v815 = vsel %vm784, %v750, 0.0
  %v816 = vsel %vm784, %v751, 0.0
  %v817 = vsel %vm784, %v752, 0.0
  %v818 = vsel %vm784, %v753, 0.0
  %v819 = vsel %vm784, %v754, 0.0
  %v820 = vsel %vm784, %v755, 0.0
  %v821 = vsel %vm784, %v756, 0.0
  %v822 = vsel %vm784, %v757, 0.0
  %v823 = vsel %vm784, %v758, 0.0
  %v824 = vsel %vm784, %v759, 0.0
  %v825 = vsel %vm784, %v760, 0.0
  %v826 = vsel %vm784, %v761, 0.0
  %v827 = vsel %vm784, %v762, 0.0
  %v828 = vsel %vm784, %v763, 0.0
  %v829 = vsel %vm784, %v764, 0.0
  %v830 = vsel %vm784, %v765, 0.0
  %v831 = vsel %vm784, %v766, 0.0
  %v832 = vsel %vm784, %v767, 0.0
  %v833 = vsel %vm784, %v768, 0.0
  %v834 = vsel %vm784, %v769, 0.0
  %v835 = vsel %vm784, %v770, 0.0
  %v836 = vsel %vm784, %v771, 0.0
  %v837 = vsel %vm784, %v772, 0.0
  %v838 = vsel %vm784, %v773, 0.0
  %v839 = vsel %vm784, %v774, 0.0
  %v840 = vsel %vm784, %v775, 0.0
  %v841 = vsel %vm784, %v776, 0.0
  %v842 = vsel %vm784, %v777, 0.0
  %v843 = vsel %vm784, %v778, 0.0
  %v844 = vsel %vm784, %v779, 0.0
  %v845 = vsel %vm784, %v780, 0.0
  %v846 = vsel %vm784, %v781, 0.0
  %v847 = vsel %vm784, %v782, 0.0
  %v848 = vsel %vm784, %v783, 0.0
  %v849 = vadd.f32 %v592, %v785
  %v850 = vadd.f32 %v593, %v786
  %v851 = vadd.f32 %v594, %v787
  %v852 = vadd.f32 %v595, %v788
  %v853 = vadd.f32 %v596, %v789
  %v854 = vadd.f32 %v597, %v790
  %v855 = vadd.f32 %v598, %v791
  %v856 = vadd.f32 %v599, %v792
  %v857 = vadd.f32 %v600, %v793
  %v858 = vadd.f32 %v601, %v794
  %v859 = vadd.f32 %v602, %v795
  %v860 = vadd.f32 %v603, %v796
  %v861 = vadd.f32 %v604, %v797
  %v862 = vadd.f32 %v605, %v798
  %v863 = vadd.f32 %v606, %v799
  %v864 = vadd.f32 %v607, %v800
  %v865 = vadd.f32 %v608, %v801
  %v866 = vadd.f32 %v609, %v802
  %v867 = vadd.f32 %v610, %v803
  %v868 = vadd.f32 %v611, %v804
  %v869 = vadd.f32 %v612, %v805
  %v870 = vadd.f32 %v613, %v806
  %v871 = vadd.f32 %v614, %v807
  %v872 = vadd.f32 %v615, %v808
  %v873 = vadd.f32 %v616, %v809
  %v874 = vadd.f32 %v617, %v810
  %v875 = vadd.f32 %v618, %v811
  %v876 = vadd.f32 %v619, %v812
  %v877 = vadd.f32 %v620, %v813
  %v878 = vadd.f32 %v621, %v814
  %v879 = vadd.f32 %v622, %v815
  %v880 = vadd.f32 %v623, %v816
  %v881 = vadd.f32 %v624, %v817
  %v882 = vadd.f32 %v625, %v818
  %v883 = vadd.f32 %v626, %v819
  %v884 = vadd.f32 %v627, %v820
  %v885 = vadd.f32 %v628, %v821
  %v886 = vadd.f32 %v629, %v822
  %v887 = vadd.f32 %v630, %v823
  %v888 = vadd.f32 %v631, %v824
  %v889 = vadd.f32 %v632, %v825
  %v890 = vadd.f32 %v633, %v826
  %v891 = vadd.f32 %v634, %v827
  %v892 = vadd.f32 %v635, %v828
  %v893 = vadd.f32 %v636, %v829
  %v894 = vadd.f32 %v637, %v830
  %v895 = vadd.f32 %v638, %v831
  %v896 = vadd.f32 %v639, %v832
  %v897 = vadd.f32 %v640, %v833
  %v898 = vadd.f32 %v641, %v834
  %v899 = vadd.f32 %v642, %v835
  %v900 = vadd.f32 %v643, %v836
  %v901 = vadd.f32 %v644, %v837
  %v902 = vadd.f32 %v645, %v838
  %v903 = vadd.f32 %v646, %v839
  %v904 = vadd.f32 %v647, %v840
  %v905 = vadd.f32 %v648, %v841
  %v906 = vadd.f32 %v649, %v842
  %v907 = vadd.f32 %v650, %v843
  %v908 = vadd.f32 %v651, %v844
  %v909 = vadd.f32 %v652, %v845
  %v910 = vadd.f32 %v653, %v846
  %v911 = vadd.f32 %v654, %v847
  %v912 = vadd.f32 %v655, %v848
  %v913 = vpack.c.bf16 %v849, %v849
  %v914 = vpack.c.bf16 %v850, %v850
  %v915 = vpack.c.bf16 %v851, %v851
  %v916 = vpack.c.bf16 %v852, %v852
  %v917 = vpack.c.bf16 %v853, %v853
  %v918 = vpack.c.bf16 %v854, %v854
  %v919 = vpack.c.bf16 %v855, %v855
  %v920 = vpack.c.bf16 %v856, %v856
  %v921 = vpack.c.bf16 %v857, %v857
  %v922 = vpack.c.bf16 %v858, %v858
  %v923 = vpack.c.bf16 %v859, %v859
  %v924 = vpack.c.bf16 %v860, %v860
  %v925 = vpack.c.bf16 %v861, %v861
  %v926 = vpack.c.bf16 %v862, %v862
  %v927 = vpack.c.bf16 %v863, %v863
  %v928 = vpack.c.bf16 %v864, %v864
  %v929 = vpack.c.bf16 %v865, %v865
  %v930 = vpack.c.bf16 %v866, %v866
  %v931 = vpack.c.bf16 %v867, %v867
  %v932 = vpack.c.bf16 %v868, %v868
  %v933 = vpack.c.bf16 %v869, %v869
  %v934 = vpack.c.bf16 %v870, %v870
  %v935 = vpack.c.bf16 %v871, %v871
  %v936 = vpack.c.bf16 %v872, %v872
  %v937 = vpack.c.bf16 %v873, %v873
  %v938 = vpack.c.bf16 %v874, %v874
  %v939 = vpack.c.bf16 %v875, %v875
  %v940 = vpack.c.bf16 %v876, %v876
  %v941 = vpack.c.bf16 %v877, %v877
  %v942 = vpack.c.bf16 %v878, %v878
  %v943 = vpack.c.bf16 %v879, %v879
  %v944 = vpack.c.bf16 %v880, %v880
  %v945 = vpack.c.bf16 %v881, %v881
  %v946 = vpack.c.bf16 %v882, %v882
  %v947 = vpack.c.bf16 %v883, %v883
  %v948 = vpack.c.bf16 %v884, %v884
  %v949 = vpack.c.bf16 %v885, %v885
  %v950 = vpack.c.bf16 %v886, %v886
  %v951 = vpack.c.bf16 %v887, %v887
  %v952 = vpack.c.bf16 %v888, %v888
  %v953 = vpack.c.bf16 %v889, %v889
  %v954 = vpack.c.bf16 %v890, %v890
  %v955 = vpack.c.bf16 %v891, %v891
  %v956 = vpack.c.bf16 %v892, %v892
  %v957 = vpack.c.bf16 %v893, %v893
  %v958 = vpack.c.bf16 %v894, %v894
  %v959 = vpack.c.bf16 %v895, %v895
  %v960 = vpack.c.bf16 %v896, %v896
  %v961 = vpack.c.bf16 %v897, %v897
  %v962 = vpack.c.bf16 %v898, %v898
  %v963 = vpack.c.bf16 %v899, %v899
  %v964 = vpack.c.bf16 %v900, %v900
  %v965 = vpack.c.bf16 %v901, %v901
  %v966 = vpack.c.bf16 %v902, %v902
  %v967 = vpack.c.bf16 %v903, %v903
  %v968 = vpack.c.bf16 %v904, %v904
  %v969 = vpack.c.bf16 %v905, %v905
  %v970 = vpack.c.bf16 %v906, %v906
  %v971 = vpack.c.bf16 %v907, %v907
  %v972 = vpack.c.bf16 %v908, %v908
  %v973 = vpack.c.bf16 %v909, %v909
  %v974 = vpack.c.bf16 %v910, %v910
  %v975 = vpack.c.bf16 %v911, %v911
  %v976 = vpack.c.bf16 %v912, %v912
  %vm977 = vcmask 650240
  %978 = vst.msk [vmem:[%s4] sm:$0xf] %vm977, %v913
  %979 = vst.msk [vmem:[%s4 + $0x4] sm:$0xf] %vm977, %v914
  %980 = vst.msk [vmem:[%s4 + $0x8] sm:$0xf] %vm977, %v915
  %981 = vst.msk [vmem:[%s4 + $0xc] sm:$0xf] %vm977, %v916
  %982 = vst.msk [vmem:[%s4 + $0x10] sm:$0xf] %vm977, %v917
  %983 = vst.msk [vmem:[%s4 + $0x14] sm:$0xf] %vm977, %v918
  %984 = vst.msk [vmem:[%s4 + $0x18] sm:$0xf] %vm977, %v919
  %985 = vst.msk [vmem:[%s4 + $0x1c] sm:$0xf] %vm977, %v920
  %986 = vst.msk [vmem:[%s4 + $0x20] sm:$0xf] %vm977, %v921
  %987 = vst.msk [vmem:[%s4 + $0x24] sm:$0xf] %vm977, %v922
  %988 = vst.msk [vmem:[%s4 + $0x28] sm:$0xf] %vm977, %v923
  %989 = vst.msk [vmem:[%s4 + $0x2c] sm:$0xf] %vm977, %v924
  %990 = vst.msk [vmem:[%s4 + $0x30] sm:$0xf] %vm977, %v925
  %991 = vst.msk [vmem:[%s4 + $0x34] sm:$0xf] %vm977, %v926
  %992 = vst.msk [vmem:[%s4 + $0x38] sm:$0xf] %vm977, %v927
  %993 = vst.msk [vmem:[%s4 + $0x3c] sm:$0xf] %vm977, %v928
  %994 = vst.msk [vmem:[%s4 + $0x40] sm:$0xf] %vm977, %v929
  %995 = vst.msk [vmem:[%s4 + $0x44] sm:$0xf] %vm977, %v930
  %996 = vst.msk [vmem:[%s4 + $0x48] sm:$0xf] %vm977, %v931
  %997 = vst.msk [vmem:[%s4 + $0x4c] sm:$0xf] %vm977, %v932
  %998 = vst.msk [vmem:[%s4 + $0x50] sm:$0xf] %vm977, %v933
  %999 = vst.msk [vmem:[%s4 + $0x54] sm:$0xf] %vm977, %v934
  %1000 = vst.msk [vmem:[%s4 + $0x58] sm:$0xf] %vm977, %v935
  %1001 = vst.msk [vmem:[%s4 + $0x5c] sm:$0xf] %vm977, %v936
  %1002 = vst.msk [vmem:[%s4 + $0x60] sm:$0xf] %vm977, %v937
  %1003 = vst.msk [vmem:[%s4 + $0x64] sm:$0xf] %vm977, %v938
  %1004 = vst.msk [vmem:[%s4 + $0x68] sm:$0xf] %vm977, %v939
  %1005 = vst.msk [vmem:[%s4 + $0x6c] sm:$0xf] %vm977, %v940
  %1006 = vst.msk [vmem:[%s4 + $0x70] sm:$0xf] %vm977, %v941
  %1007 = vst.msk [vmem:[%s4 + $0x74] sm:$0xf] %vm977, %v942
  %1008 = vst.msk [vmem:[%s4 + $0x78] sm:$0xf] %vm977, %v943
  %1009 = vst.msk [vmem:[%s4 + $0x7c] sm:$0xf] %vm977, %v944
  %1010 = vst.msk [vmem:[%s4 + $0x80] sm:$0xf] %vm977, %v945
  %1011 = vst.msk [vmem:[%s4 + $0x84] sm:$0xf] %vm977, %v946
  %1012 = vst.msk [vmem:[%s4 + $0x88] sm:$0xf] %vm977, %v947
  %1013 = vst.msk [vmem:[%s4 + $0x8c] sm:$0xf] %vm977, %v948
  %1014 = vst.msk [vmem:[%s4 + $0x90] sm:$0xf] %vm977, %v949
  %1015 = vst.msk [vmem:[%s4 + $0x94] sm:$0xf] %vm977, %v950
  %1016 = vst.msk [vmem:[%s4 + $0x98] sm:$0xf] %vm977, %v951
  %1017 = vst.msk [vmem:[%s4 + $0x9c] sm:$0xf] %vm977, %v952
  %1018 = vst.msk [vmem:[%s4 + $0xa0] sm:$0xf] %vm977, %v953
  %1019 = vst.msk [vmem:[%s4 + $0xa4] sm:$0xf] %vm977, %v954
  %1020 = vst.msk [vmem:[%s4 + $0xa8] sm:$0xf] %vm977, %v955
  %1021 = vst.msk [vmem:[%s4 + $0xac] sm:$0xf] %vm977, %v956
  %1022 = vst.msk [vmem:[%s4 + $0xb0] sm:$0xf] %vm977, %v957
  %1023 = vst.msk [vmem:[%s4 + $0xb4] sm:$0xf] %vm977, %v958
  %1024 = vst.msk [vmem:[%s4 + $0xb8] sm:$0xf] %vm977, %v959
  %1025 = vst.msk [vmem:[%s4 + $0xbc] sm:$0xf] %vm977, %v960
  %1026 = vst.msk [vmem:[%s4 + $0xc0] sm:$0xf] %vm977, %v961
  %1027 = vst.msk [vmem:[%s4 + $0xc4] sm:$0xf] %vm977, %v962
  %1028 = vst.msk [vmem:[%s4 + $0xc8] sm:$0xf] %vm977, %v963
  %1029 = vst.msk [vmem:[%s4 + $0xcc] sm:$0xf] %vm977, %v964
  %1030 = vst.msk [vmem:[%s4 + $0xd0] sm:$0xf] %vm977, %v965
  %1031 = vst.msk [vmem:[%s4 + $0xd4] sm:$0xf] %vm977, %v966
  %1032 = vst.msk [vmem:[%s4 + $0xd8] sm:$0xf] %vm977, %v967
  %1033 = vst.msk [vmem:[%s4 + $0xdc] sm:$0xf] %vm977, %v968
  %1034 = vst.msk [vmem:[%s4 + $0xe0] sm:$0xf] %vm977, %v969
  %1035 = vst.msk [vmem:[%s4 + $0xe4] sm:$0xf] %vm977, %v970
  %1036 = vst.msk [vmem:[%s4 + $0xe8] sm:$0xf] %vm977, %v971
  %1037 = vst.msk [vmem:[%s4 + $0xec] sm:$0xf] %vm977, %v972
  %1038 = vst.msk [vmem:[%s4 + $0xf0] sm:$0xf] %vm977, %v973
  %1039 = vst.msk [vmem:[%s4 + $0xf4] sm:$0xf] %vm977, %v974
  %1040 = vst.msk [vmem:[%s4 + $0xf8] sm:$0xf] %vm977, %v975
  %1041 = vst.msk [vmem:[%s4 + $0xfc] sm:$0xf] %vm977, %v976
  // Predicated region
  $region18: #{_lambda_.11} parent=0 // pred_check
    _
  $region19: #{_lambda_.11} parent=0 // pred_check_branch
    %1043 = sbr.rel (0) target = $region21
  $region20: #{_lambda_.11} parent=0 // pred_region
    _
  $region21: #{_lambda_.11} parent=0 // pred_fallthru
    _
  // Predicated region
  $region22: #{_lambda_.11} parent=0 // pred_check
    _
  $region23: #{_lambda_.11} parent=0 // pred_check_branch
    %1045 = sbr.rel (0) target = $region25
  $region24: #{_lambda_.11} parent=0 // pred_region
    _
  $region25: #{_lambda_.11} parent=0 // pred_fallthru
    _

// kernel: _lambda_.12
$region0: #{_lambda_.12}
  #allocation0 [shape = 'u32[]', space=smem, size = 0x4, offset = 0x4, fixed_abs, tag = 'smem constant byte address 0x4 - core index']
  #allocation1 [shape = 'u32[72,128]{1,0:T(1,128)}', space=vmem, size = 0x9000, scoped, tag = 'internal scratch']
  %s0 = inlined_call_operand.vmem [shape: bf16[512,80], index: 0, kind: input, shape index: {}]
  %s1 = inlined_call_operand.vmem [shape: bf16[80,24], index: 1, kind: input, shape index: {}]
  %s2 = inlined_call_operand.vmem [shape: f32[2,24], index: 2, kind: input, shape index: {}]
  %s3 = inlined_call_operand.vmem [shape: bf16[512,24], index: 3, kind: output, shape index: {}]
  %s4 = sld [smem:[#allocation0]]
  $region22: #{_lambda_.12} parent=0
    _
  %s6 = ssub.s32 1, %s4
  %s7 = scalar_select 0, %s6, %s4
  // Predicated region
  $region2: #{_lambda_.12} parent=0 // pred_check
    _
  $region3: #{_lambda_.12} parent=0 // pred_check_branch
    %9 = sbr.rel (0) target = $region5
  $region4: #{_lambda_.12} parent=0 // pred_region
    _
  $region5: #{_lambda_.12} parent=0 // pred_fallthru
    _
  // Predicated region
  $region6: #{_lambda_.12} parent=0 // pred_check
    _
  $region7: #{_lambda_.12} parent=0 // pred_check_branch
    %11 = sbr.rel (0) target = $region9
  $region8: #{_lambda_.12} parent=0 // pred_region
    _
  $region9: #{_lambda_.12} parent=0 // pred_fallthru
    _
  // Predicated region
  $region10: #{_lambda_.12} parent=0 // pred_check
    _
  $region11: #{_lambda_.12} parent=0 // pred_check_branch
    %13 = sbr.rel (0) target = $region13
  $region12: #{_lambda_.12} parent=0 // pred_region
    _
  $region13: #{_lambda_.12} parent=0 // pred_fallthru
    _
  %v15 = vld [vmem:[%s0] sm:$0xf]
  %v16 = vld [vmem:[%s0 + $0x4] sm:$0xf]
  %v17 = vld [vmem:[%s0 + $0x8] sm:$0xf]
  %v18 = vld [vmem:[%s0 + $0xc] sm:$0xf]
  %v19 = vld [vmem:[%s0 + $0x10] sm:$0xf]
  %v20 = vld [vmem:[%s0 + $0x14] sm:$0xf]
  %v21 = vld [vmem:[%s0 + $0x18] sm:$0xf]
  %v22 = vld [vmem:[%s0 + $0x1c] sm:$0xf]
  %v23 = vld [vmem:[%s0 + $0x20] sm:$0xf]
  %v24 = vld [vmem:[%s0 + $0x24] sm:$0xf]
  %v25 = vld [vmem:[%s0 + $0x28] sm:$0xf]
  %v26 = vld [vmem:[%s0 + $0x2c] sm:$0xf]
  %v27 = vld [vmem:[%s0 + $0x30] sm:$0xf]
  %v28 = vld [vmem:[%s0 + $0x34] sm:$0xf]
  %v29 = vld [vmem:[%s0 + $0x38] sm:$0xf]
  %v30 = vld [vmem:[%s0 + $0x3c] sm:$0xf]
  %v31 = vld [vmem:[%s0 + $0x40] sm:$0xf]
  %v32 = vld [vmem:[%s0 + $0x44] sm:$0xf]
  %v33 = vld [vmem:[%s0 + $0x48] sm:$0xf]
  %v34 = vld [vmem:[%s0 + $0x4c] sm:$0xf]
  %v35 = vld [vmem:[%s0 + $0x50] sm:$0xf]
  %v36 = vld [vmem:[%s0 + $0x54] sm:$0xf]
  %v37 = vld [vmem:[%s0 + $0x58] sm:$0xf]
  %v38 = vld [vmem:[%s0 + $0x5c] sm:$0xf]
  %v39 = vld [vmem:[%s0 + $0x60] sm:$0xf]
  %v40 = vld [vmem:[%s0 + $0x64] sm:$0xf]
  %v41 = vld [vmem:[%s0 + $0x68] sm:$0xf]
  %v42 = vld [vmem:[%s0 + $0x6c] sm:$0xf]
  %v43 = vld [vmem:[%s0 + $0x70] sm:$0xf]
  %v44 = vld [vmem:[%s0 + $0x74] sm:$0xf]
  %v45 = vld [vmem:[%s0 + $0x78] sm:$0xf]
  %v46 = vld [vmem:[%s0 + $0x7c] sm:$0xf]
  %v47 = vld [vmem:[%s0 + $0x80] sm:$0xf]
  %v48 = vld [vmem:[%s0 + $0x84] sm:$0xf]
  %v49 = vld [vmem:[%s0 + $0x88] sm:$0xf]
  %v50 = vld [vmem:[%s0 + $0x8c] sm:$0xf]
  %v51 = vld [vmem:[%s0 + $0x90] sm:$0xf]
  %v52 = vld [vmem:[%s0 + $0x94] sm:$0xf]
  %v53 = vld [vmem:[%s0 + $0x98] sm:$0xf]
  %v54 = vld [vmem:[%s0 + $0x9c] sm:$0xf]
  %v55 = vld [vmem:[%s0 + $0xa0] sm:$0xf]
  %v56 = vld [vmem:[%s0 + $0xa4] sm:$0xf]
  %v57 = vld [vmem:[%s0 + $0xa8] sm:$0xf]
  %v58 = vld [vmem:[%s0 + $0xac] sm:$0xf]
  %v59 = vld [vmem:[%s0 + $0xb0] sm:$0xf]
  %v60 = vld [vmem:[%s0 + $0xb4] sm:$0xf]
  %v61 = vld [vmem:[%s0 + $0xb8] sm:$0xf]
  %v62 = vld [vmem:[%s0 + $0xbc] sm:$0xf]
  %v63 = vld [vmem:[%s0 + $0xc0] sm:$0xf]
  %v64 = vld [vmem:[%s0 + $0xc4] sm:$0xf]
  %v65 = vld [vmem:[%s0 + $0xc8] sm:$0xf]
  %v66 = vld [vmem:[%s0 + $0xcc] sm:$0xf]
  %v67 = vld [vmem:[%s0 + $0xd0] sm:$0xf]
  %v68 = vld [vmem:[%s0 + $0xd4] sm:$0xf]
  %v69 = vld [vmem:[%s0 + $0xd8] sm:$0xf]
  %v70 = vld [vmem:[%s0 + $0xdc] sm:$0xf]
  %v71 = vld [vmem:[%s0 + $0xe0] sm:$0xf]
  %v72 = vld [vmem:[%s0 + $0xe4] sm:$0xf]
  %v73 = vld [vmem:[%s0 + $0xe8] sm:$0xf]
  %v74 = vld [vmem:[%s0 + $0xec] sm:$0xf]
  %v75 = vld [vmem:[%s0 + $0xf0] sm:$0xf]
  %v76 = vld [vmem:[%s0 + $0xf4] sm:$0xf]
  %v77 = vld [vmem:[%s0 + $0xf8] sm:$0xf]
  %v78 = vld [vmem:[%s0 + $0xfc] sm:$0xf]
  %v79 = vld [vmem:[%s1] sm:$0xf]
  %v80 = vld [vmem:[%s1 + $0x4] sm:$0xf]
  %v81 = vld [vmem:[%s1 + $0x8] sm:$0xf]
  %v82 = vld [vmem:[%s1 + $0xc] sm:$0xf]
  %v83 = vld [vmem:[%s1 + $0x10] sm:$0xf]
  %v84 = vld [vmem:[%s1 + $0x14] sm:$0xf]
  %v85 = vld [vmem:[%s1 + $0x18] sm:$0xf]
  %v86 = vld [vmem:[%s1 + $0x1c] sm:$0xf]
  %v87 = vld [vmem:[%s1 + $0x20] sm:$0xf]
  %v88 = vld [vmem:[%s1 + $0x24] sm:$0xf]
  %v153 = vunpack.c.l.b16 %v15
  %v154 = vunpack.c.l.b16 %v16
  %v155 = vunpack.c.l.b16 %v17
  %v156 = vunpack.c.l.b16 %v18
  %v157 = vunpack.c.l.b16 %v19
  %v158 = vunpack.c.l.b16 %v20
  %v159 = vunpack.c.l.b16 %v21
  %v160 = vunpack.c.l.b16 %v22
  %v161 = vunpack.c.l.b16 %v23
  %v162 = vunpack.c.l.b16 %v24
  %v163 = vunpack.c.l.b16 %v25
  %v164 = vunpack.c.l.b16 %v26
  %v165 = vunpack.c.l.b16 %v27
  %v166 = vunpack.c.l.b16 %v28
  %v167 = vunpack.c.l.b16 %v29
  %v168 = vunpack.c.l.b16 %v30
  %v169 = vunpack.c.l.b16 %v31
  %v170 = vunpack.c.l.b16 %v32
  %v171 = vunpack.c.l.b16 %v33
  %v172 = vunpack.c.l.b16 %v34
  %v173 = vunpack.c.l.b16 %v35
  %v174 = vunpack.c.l.b16 %v36
  %v175 = vunpack.c.l.b16 %v37
  %v176 = vunpack.c.l.b16 %v38
  %v177 = vunpack.c.l.b16 %v39
  %v178 = vunpack.c.l.b16 %v40
  %v179 = vunpack.c.l.b16 %v41
  %v180 = vunpack.c.l.b16 %v42
  %v181 = vunpack.c.l.b16 %v43
  %v182 = vunpack.c.l.b16 %v44
  %v183 = vunpack.c.l.b16 %v45
  %v184 = vunpack.c.l.b16 %v46
  %v185 = vunpack.c.l.b16 %v47
  %v186 = vunpack.c.l.b16 %v48
  %v187 = vunpack.c.l.b16 %v49
  %v188 = vunpack.c.l.b16 %v50
  %v189 = vunpack.c.l.b16 %v51
  %v190 = vunpack.c.l.b16 %v52
  %v191 = vunpack.c.l.b16 %v53
  %v192 = vunpack.c.l.b16 %v54
  %v193 = vunpack.c.l.b16 %v55
  %v194 = vunpack.c.l.b16 %v56
  %v195 = vunpack.c.l.b16 %v57
  %v196 = vunpack.c.l.b16 %v58
  %v197 = vunpack.c.l.b16 %v59
  %v198 = vunpack.c.l.b16 %v60
  %v199 = vunpack.c.l.b16 %v61
  %v200 = vunpack.c.l.b16 %v62
  %v201 = vunpack.c.l.b16 %v63
  %v202 = vunpack.c.l.b16 %v64
  %v203 = vunpack.c.l.b16 %v65
  %v204 = vunpack.c.l.b16 %v66
  %v205 = vunpack.c.l.b16 %v67
  %v206 = vunpack.c.l.b16 %v68
  %v207 = vunpack.c.l.b16 %v69
  %v208 = vunpack.c.l.b16 %v70
  %v209 = vunpack.c.l.b16 %v71
  %v210 = vunpack.c.l.b16 %v72
  %v211 = vunpack.c.l.b16 %v73
  %v212 = vunpack.c.l.b16 %v74
  %v213 = vunpack.c.l.b16 %v75
  %v214 = vunpack.c.l.b16 %v76
  %v215 = vunpack.c.l.b16 %v77
  %v216 = vunpack.c.l.b16 %v78
  %v217 = vpack.c.b16 %v154, %v153
  %v218 = vpack.c.b16 %v156, %v155
  %v219 = vpack.c.b16 %v158, %v157
  %v220 = vpack.c.b16 %v160, %v159
  %v221 = vpack.c.b16 %v162, %v161
  %v222 = vpack.c.b16 %v164, %v163
  %v223 = vpack.c.b16 %v166, %v165
  %v224 = vpack.c.b16 %v168, %v167
  %v225 = vpack.c.b16 %v170, %v169
  %v226 = vpack.c.b16 %v172, %v171
  %v227 = vpack.c.b16 %v174, %v173
  %v228 = vpack.c.b16 %v176, %v175
  %v229 = vpack.c.b16 %v178, %v177
  %v230 = vpack.c.b16 %v180, %v179
  %v231 = vpack.c.b16 %v182, %v181
  %v232 = vpack.c.b16 %v184, %v183
  %v233 = vpack.c.b16 %v186, %v185
  %v234 = vpack.c.b16 %v188, %v187
  %v235 = vpack.c.b16 %v190, %v189
  %v236 = vpack.c.b16 %v192, %v191
  %v237 = vpack.c.b16 %v194, %v193
  %v238 = vpack.c.b16 %v196, %v195
  %v239 = vpack.c.b16 %v198, %v197
  %v240 = vpack.c.b16 %v200, %v199
  %v241 = vpack.c.b16 %v202, %v201
  %v242 = vpack.c.b16 %v204, %v203
  %v243 = vpack.c.b16 %v206, %v205
  %v244 = vpack.c.b16 %v208, %v207
  %v245 = vpack.c.b16 %v210, %v209
  %v246 = vpack.c.b16 %v212, %v211
  %v247 = vpack.c.b16 %v214, %v213
  %v248 = vpack.c.b16 %v216, %v215
  %v259 = vunpack.c.l.b16 %v79
  %v260 = vunpack.c.l.b16 %v80
  %v261 = vunpack.c.l.b16 %v81
  %v262 = vunpack.c.l.b16 %v82
  %v263 = vunpack.c.l.b16 %v83
  %v264 = vunpack.c.l.b16 %v84
  %v265 = vunpack.c.l.b16 %v85
  %v266 = vunpack.c.l.b16 %v86
  %v267 = vunpack.c.l.b16 %v87
  %v268 = vunpack.c.l.b16 %v88
  %v269 = vpack.c.b16 %v260, %v259
  %v270 = vpack.c.b16 %v262, %v261
  %v271 = vpack.c.b16 %v264, %v263
  %v272 = vpack.c.b16 %v266, %v265
  %v273 = vpack.c.b16 %v268, %v267
  %vm279 = vcmask 654336
  %v281 = vsel %vm279, %v217, 0
  %v284 = vsel %vm279, %v218, 0
  %v287 = vsel %vm279, %v219, 0
  %v290 = vsel %vm279, %v220, 0
  %v293 = vsel %vm279, %v221, 0
  %v296 = vsel %vm279, %v222, 0
  %v299 = vsel %vm279, %v223, 0
  %v302 = vsel %vm279, %v224, 0
  %v305 = vsel %vm279, %v225, 0
  %v308 = vsel %vm279, %v226, 0
  %v311 = vsel %vm279, %v227, 0
  %v314 = vsel %vm279, %v228, 0
  %v317 = vsel %vm279, %v229, 0
  %v320 = vsel %vm279, %v230, 0
  %v323 = vsel %vm279, %v231, 0
  %v326 = vsel %vm279, %v232, 0
  %v329 = vsel %vm279, %v233, 0
  %v332 = vsel %vm279, %v234, 0
  %v335 = vsel %vm279, %v235, 0
  %v338 = vsel %vm279, %v236, 0
  %v341 = vsel %vm279, %v237, 0
  %v344 = vsel %vm279, %v238, 0
  %v347 = vsel %vm279, %v239, 0
  %v350 = vsel %vm279, %v240, 0
  %v353 = vsel %vm279, %v241, 0
  %v356 = vsel %vm279, %v242, 0
  %v359 = vsel %vm279, %v243, 0
  %v362 = vsel %vm279, %v244, 0
  %v365 = vsel %vm279, %v245, 0
  %v368 = vsel %vm279, %v246, 0
  %v371 = vsel %vm279, %v247, 0
  %v374 = vsel %vm279, %v248, 0
  %376 = vmatpush.bf16.msra.mxu0 0
  %377 = vmatpush.bf16.msra.mxu0 0
  %378 = vmatpush.bf16.msra.mxu0 0
  %379 = vmatpush.bf16.msra.mxu0 %v273
  %380 = vmatpush.bf16.msra.mxu0 %v272
  %381 = vmatpush.bf16.msra.mxu0 %v271
  %382 = vmatpush.bf16.msra.mxu0 %v270
  %383 = vmatpush.bf16.msra.mxu0 %v269
  %384 = vmatmul.bf16.gmra.mxu0 %v281
  %v385 = vpop.f32.mrf.mxu0
  %v386 = vadd.f32 0.0, %v385
  %v387 = vpop.f32.mrf.mxu0
  %v388 = vadd.f32 0.0, %v387
  %389 = vmatmul.bf16.gmra.mxu0 %v284
  %v390 = vpop.f32.mrf.mxu0
  %v391 = vadd.f32 0.0, %v390
  %v392 = vpop.f32.mrf.mxu0
  %v393 = vadd.f32 0.0, %v392
  %394 = vmatmul.bf16.gmra.mxu0 %v287
  %v395 = vpop.f32.mrf.mxu0
  %v396 = vadd.f32 0.0, %v395
  %v397 = vpop.f32.mrf.mxu0
  %v398 = vadd.f32 0.0, %v397
  %399 = vmatmul.bf16.gmra.mxu0 %v290
  %v400 = vpop.f32.mrf.mxu0
  %v401 = vadd.f32 0.0, %v400
  %v402 = vpop.f32.mrf.mxu0
  %v403 = vadd.f32 0.0, %v402
  %404 = vmatmul.bf16.gmra.mxu0 %v293
  %v405 = vpop.f32.mrf.mxu0
  %v406 = vadd.f32 0.0, %v405
  %v407 = vpop.f32.mrf.mxu0
  %v408 = vadd.f32 0.0, %v407
  %409 = vmatmul.bf16.gmra.mxu0 %v296
  %v410 = vpop.f32.mrf.mxu0
  %v411 = vadd.f32 0.0, %v410
  %v412 = vpop.f32.mrf.mxu0
  %v413 = vadd.f32 0.0, %v412
  %414 = vmatmul.bf16.gmra.mxu0 %v299
  %v415 = vpop.f32.mrf.mxu0
  %v416 = vadd.f32 0.0, %v415
  %v417 = vpop.f32.mrf.mxu0
  %v418 = vadd.f32 0.0, %v417
  %419 = vmatmul.bf16.gmra.mxu0 %v302
  %v420 = vpop.f32.mrf.mxu0
  %v421 = vadd.f32 0.0, %v420
  %v422 = vpop.f32.mrf.mxu0
  %v423 = vadd.f32 0.0, %v422
  %424 = vmatmul.bf16.gmra.mxu0 %v305
  %v425 = vpop.f32.mrf.mxu0
  %v426 = vadd.f32 0.0, %v425
  %v427 = vpop.f32.mrf.mxu0
  %v428 = vadd.f32 0.0, %v427
  %429 = vmatmul.bf16.gmra.mxu0 %v308
  %v430 = vpop.f32.mrf.mxu0
  %v431 = vadd.f32 0.0, %v430
  %v432 = vpop.f32.mrf.mxu0
  %v433 = vadd.f32 0.0, %v432
  %434 = vmatmul.bf16.gmra.mxu0 %v311
  %v435 = vpop.f32.mrf.mxu0
  %v436 = vadd.f32 0.0, %v435
  %v437 = vpop.f32.mrf.mxu0
  %v438 = vadd.f32 0.0, %v437
  %439 = vmatmul.bf16.gmra.mxu0 %v314
  %v440 = vpop.f32.mrf.mxu0
  %v441 = vadd.f32 0.0, %v440
  %v442 = vpop.f32.mrf.mxu0
  %v443 = vadd.f32 0.0, %v442
  %444 = vmatmul.bf16.gmra.mxu0 %v317
  %v445 = vpop.f32.mrf.mxu0
  %v446 = vadd.f32 0.0, %v445
  %v447 = vpop.f32.mrf.mxu0
  %v448 = vadd.f32 0.0, %v447
  %449 = vmatmul.bf16.gmra.mxu0 %v320
  %v450 = vpop.f32.mrf.mxu0
  %v451 = vadd.f32 0.0, %v450
  %v452 = vpop.f32.mrf.mxu0
  %v453 = vadd.f32 0.0, %v452
  %454 = vmatmul.bf16.gmra.mxu0 %v323
  %v455 = vpop.f32.mrf.mxu0
  %v456 = vadd.f32 0.0, %v455
  %v457 = vpop.f32.mrf.mxu0
  %v458 = vadd.f32 0.0, %v457
  %459 = vmatmul.bf16.gmra.mxu0 %v326
  %v460 = vpop.f32.mrf.mxu0
  %v461 = vadd.f32 0.0, %v460
  %v462 = vpop.f32.mrf.mxu0
  %v463 = vadd.f32 0.0, %v462
  %464 = vmatmul.bf16.gmra.mxu0 %v329
  %v465 = vpop.f32.mrf.mxu0
  %v466 = vadd.f32 0.0, %v465
  %v467 = vpop.f32.mrf.mxu0
  %v468 = vadd.f32 0.0, %v467
  %469 = vmatmul.bf16.gmra.mxu0 %v332
  %v470 = vpop.f32.mrf.mxu0
  %v471 = vadd.f32 0.0, %v470
  %v472 = vpop.f32.mrf.mxu0
  %v473 = vadd.f32 0.0, %v472
  %474 = vmatmul.bf16.gmra.mxu0 %v335
  %v475 = vpop.f32.mrf.mxu0
  %v476 = vadd.f32 0.0, %v475
  %v477 = vpop.f32.mrf.mxu0
  %v478 = vadd.f32 0.0, %v477
  %479 = vmatmul.bf16.gmra.mxu0 %v338
  %v480 = vpop.f32.mrf.mxu0
  %v481 = vadd.f32 0.0, %v480
  %v482 = vpop.f32.mrf.mxu0
  %v483 = vadd.f32 0.0, %v482
  %484 = vmatmul.bf16.gmra.mxu0 %v341
  %v485 = vpop.f32.mrf.mxu0
  %v486 = vadd.f32 0.0, %v485
  %v487 = vpop.f32.mrf.mxu0
  %v488 = vadd.f32 0.0, %v487
  %489 = vmatmul.bf16.gmra.mxu0 %v344
  %v490 = vpop.f32.mrf.mxu0
  %v491 = vadd.f32 0.0, %v490
  %v492 = vpop.f32.mrf.mxu0
  %v493 = vadd.f32 0.0, %v492
  %494 = vmatmul.bf16.gmra.mxu0 %v347
  %v495 = vpop.f32.mrf.mxu0
  %v496 = vadd.f32 0.0, %v495
  %v497 = vpop.f32.mrf.mxu0
  %v498 = vadd.f32 0.0, %v497
  %499 = vmatmul.bf16.gmra.mxu0 %v350
  %v500 = vpop.f32.mrf.mxu0
  %v501 = vadd.f32 0.0, %v500
  %v502 = vpop.f32.mrf.mxu0
  %v503 = vadd.f32 0.0, %v502
  %504 = vmatmul.bf16.gmra.mxu0 %v353
  %v505 = vpop.f32.mrf.mxu0
  %v506 = vadd.f32 0.0, %v505
  %v507 = vpop.f32.mrf.mxu0
  %v508 = vadd.f32 0.0, %v507
  %509 = vmatmul.bf16.gmra.mxu0 %v356
  %v510 = vpop.f32.mrf.mxu0
  %v511 = vadd.f32 0.0, %v510
  %v512 = vpop.f32.mrf.mxu0
  %v513 = vadd.f32 0.0, %v512
  %514 = vmatmul.bf16.gmra.mxu0 %v359
  %v515 = vpop.f32.mrf.mxu0
  %v516 = vadd.f32 0.0, %v515
  %v517 = vpop.f32.mrf.mxu0
  %v518 = vadd.f32 0.0, %v517
  %519 = vmatmul.bf16.gmra.mxu0 %v362
  %v520 = vpop.f32.mrf.mxu0
  %v521 = vadd.f32 0.0, %v520
  %v522 = vpop.f32.mrf.mxu0
  %v523 = vadd.f32 0.0, %v522
  %524 = vmatmul.bf16.gmra.mxu0 %v365
  %v525 = vpop.f32.mrf.mxu0
  %v526 = vadd.f32 0.0, %v525
  %v527 = vpop.f32.mrf.mxu0
  %v528 = vadd.f32 0.0, %v527
  %529 = vmatmul.bf16.gmra.mxu0 %v368
  %v530 = vpop.f32.mrf.mxu0
  %v531 = vadd.f32 0.0, %v530
  %v532 = vpop.f32.mrf.mxu0
  %v533 = vadd.f32 0.0, %v532
  %534 = vmatmul.bf16.gmra.mxu0 %v371
  %v535 = vpop.f32.mrf.mxu0
  %v536 = vadd.f32 0.0, %v535
  %v537 = vpop.f32.mrf.mxu0
  %v538 = vadd.f32 0.0, %v537
  %539 = vmatmul.bf16.gmra.mxu0 %v374
  %v540 = vpop.f32.mrf.mxu0
  %v541 = vadd.f32 0.0, %v540
  %v542 = vpop.f32.mrf.mxu0
  %v543 = vadd.f32 0.0, %v542
  %544 = vdwg.mxu0
  %v545 = vld [vmem:[%s2] sm:$0x1]
  %v546 = vperm.slane %v545, 0
  %v547 = vmul.f32 %v386, %v546
  %v548 = vmul.f32 %v388, %v546
  %v549 = vmul.f32 %v391, %v546
  %v550 = vmul.f32 %v393, %v546
  %v551 = vmul.f32 %v396, %v546
  %v552 = vmul.f32 %v398, %v546
  %v553 = vmul.f32 %v401, %v546
  %v554 = vmul.f32 %v403, %v546
  %v555 = vmul.f32 %v406, %v546
  %v556 = vmul.f32 %v408, %v546
  %v557 = vmul.f32 %v411, %v546
  %v558 = vmul.f32 %v413, %v546
  %v559 = vmul.f32 %v416, %v546
  %v560 = vmul.f32 %v418, %v546
  %v561 = vmul.f32 %v421, %v546
  %v562 = vmul.f32 %v423, %v546
  %v563 = vmul.f32 %v426, %v546
  %v564 = vmul.f32 %v428, %v546
  %v565 = vmul.f32 %v431, %v546
  %v566 = vmul.f32 %v433, %v546
  %v567 = vmul.f32 %v436, %v546
  %v568 = vmul.f32 %v438, %v546
  %v569 = vmul.f32 %v441, %v546
  %v570 = vmul.f32 %v443, %v546
  %v571 = vmul.f32 %v446, %v546
  %v572 = vmul.f32 %v448, %v546
  %v573 = vmul.f32 %v451, %v546
  %v574 = vmul.f32 %v453, %v546
  %v575 = vmul.f32 %v456, %v546
  %v576 = vmul.f32 %v458, %v546
  %v577 = vmul.f32 %v461, %v546
  %v578 = vmul.f32 %v463, %v546
  %v579 = vmul.f32 %v466, %v546
  %v580 = vmul.f32 %v468, %v546
  %v581 = vmul.f32 %v471, %v546
  %v582 = vmul.f32 %v473, %v546
  %v583 = vmul.f32 %v476, %v546
  %v584 = vmul.f32 %v478, %v546
  %v585 = vmul.f32 %v481, %v546
  %v586 = vmul.f32 %v483, %v546
  %v587 = vmul.f32 %v486, %v546
  %v588 = vmul.f32 %v488, %v546
  %v589 = vmul.f32 %v491, %v546
  %v590 = vmul.f32 %v493, %v546
  %v591 = vmul.f32 %v496, %v546
  %v592 = vmul.f32 %v498, %v546
  %v593 = vmul.f32 %v501, %v546
  %v594 = vmul.f32 %v503, %v546
  %v595 = vmul.f32 %v506, %v546
  %v596 = vmul.f32 %v508, %v546
  %v597 = vmul.f32 %v511, %v546
  %v598 = vmul.f32 %v513, %v546
  %v599 = vmul.f32 %v516, %v546
  %v600 = vmul.f32 %v518, %v546
  %v601 = vmul.f32 %v521, %v546
  %v602 = vmul.f32 %v523, %v546
  %v603 = vmul.f32 %v526, %v546
  %v604 = vmul.f32 %v528, %v546
  %v605 = vmul.f32 %v531, %v546
  %v606 = vmul.f32 %v533, %v546
  %v607 = vmul.f32 %v536, %v546
  %v608 = vmul.f32 %v538, %v546
  %v609 = vmul.f32 %v541, %v546
  %v610 = vmul.f32 %v543, %v546
  %v611 = vld [vmem:[%s2 + $0x1] sm:$0x1]
  %v612 = vperm.slane %v611, 0
  %v613 = vadd.f32 %v547, %v612
  %v614 = vadd.f32 %v548, %v612
  %v615 = vadd.f32 %v549, %v612
  %v616 = vadd.f32 %v550, %v612
  %v617 = vadd.f32 %v551, %v612
  %v618 = vadd.f32 %v552, %v612
  %v619 = vadd.f32 %v553, %v612
  %v620 = vadd.f32 %v554, %v612
  %v621 = vadd.f32 %v555, %v612
  %v622 = vadd.f32 %v556, %v612
  %v623 = vadd.f32 %v557, %v612
  %v624 = vadd.f32 %v558, %v612
  %v625 = vadd.f32 %v559, %v612
  %v626 = vadd.f32 %v560, %v612
  %v627 = vadd.f32 %v561, %v612
  %v628 = vadd.f32 %v562, %v612
  %v629 = vadd.f32 %v563, %v612
  %v630 = vadd.f32 %v564, %v612
  %v631 = vadd.f32 %v565, %v612
  %v632 = vadd.f32 %v566, %v612
  %v633 = vadd.f32 %v567, %v612
  %v634 = vadd.f32 %v568, %v612
  %v635 = vadd.f32 %v569, %v612
  %v636 = vadd.f32 %v570, %v612
  %v637 = vadd.f32 %v571, %v612
  %v638 = vadd.f32 %v572, %v612
  %v639 = vadd.f32 %v573, %v612
  %v640 = vadd.f32 %v574, %v612
  %v641 = vadd.f32 %v575, %v612
  %v642 = vadd.f32 %v576, %v612
  %v643 = vadd.f32 %v577, %v612
  %v644 = vadd.f32 %v578, %v612
  %v645 = vadd.f32 %v579, %v612
  %v646 = vadd.f32 %v580, %v612
  %v647 = vadd.f32 %v581, %v612
  %v648 = vadd.f32 %v582, %v612
  %v649 = vadd.f32 %v583, %v612
  %v650 = vadd.f32 %v584, %v612
  %v651 = vadd.f32 %v585, %v612
  %v652 = vadd.f32 %v586, %v612
  %v653 = vadd.f32 %v587, %v612
  %v654 = vadd.f32 %v588, %v612
  %v655 = vadd.f32 %v589, %v612
  %v656 = vadd.f32 %v590, %v612
  %v657 = vadd.f32 %v591, %v612
  %v658 = vadd.f32 %v592, %v612
  %v659 = vadd.f32 %v593, %v612
  %v660 = vadd.f32 %v594, %v612
  %v661 = vadd.f32 %v595, %v612
  %v662 = vadd.f32 %v596, %v612
  %v663 = vadd.f32 %v597, %v612
  %v664 = vadd.f32 %v598, %v612
  %v665 = vadd.f32 %v599, %v612
  %v666 = vadd.f32 %v600, %v612
  %v667 = vadd.f32 %v601, %v612
  %v668 = vadd.f32 %v602, %v612
  %v669 = vadd.f32 %v603, %v612
  %v670 = vadd.f32 %v604, %v612
  %v671 = vadd.f32 %v605, %v612
  %v672 = vadd.f32 %v606, %v612
  %v673 = vadd.f32 %v607, %v612
  %v674 = vadd.f32 %v608, %v612
  %v675 = vadd.f32 %v609, %v612
  %v676 = vadd.f32 %v610, %v612
  %v677 = vmax.f32 %v613, 0.0
  %v678 = vmax.f32 %v614, 0.0
  %v679 = vmax.f32 %v615, 0.0
  %v680 = vmax.f32 %v616, 0.0
  %v681 = vmax.f32 %v617, 0.0
  %v682 = vmax.f32 %v618, 0.0
  %v683 = vmax.f32 %v619, 0.0
  %v684 = vmax.f32 %v620, 0.0
  %v685 = vmax.f32 %v621, 0.0
  %v686 = vmax.f32 %v622, 0.0
  %v687 = vmax.f32 %v623, 0.0
  %v688 = vmax.f32 %v624, 0.0
  %v689 = vmax.f32 %v625, 0.0
  %v690 = vmax.f32 %v626, 0.0
  %v691 = vmax.f32 %v627, 0.0
  %v692 = vmax.f32 %v628, 0.0
  %v693 = vmax.f32 %v629, 0.0
  %v694 = vmax.f32 %v630, 0.0
  %v695 = vmax.f32 %v631, 0.0
  %v696 = vmax.f32 %v632, 0.0
  %v697 = vmax.f32 %v633, 0.0
  %v698 = vmax.f32 %v634, 0.0
  %v699 = vmax.f32 %v635, 0.0
  %v700 = vmax.f32 %v636, 0.0
  %v701 = vmax.f32 %v637, 0.0
  %v702 = vmax.f32 %v638, 0.0
  %v703 = vmax.f32 %v639, 0.0
  %v704 = vmax.f32 %v640, 0.0
  %v705 = vmax.f32 %v641, 0.0
  %v706 = vmax.f32 %v642, 0.0
  %v707 = vmax.f32 %v643, 0.0
  %v708 = vmax.f32 %v644, 0.0
  %v709 = vmax.f32 %v645, 0.0
  %v710 = vmax.f32 %v646, 0.0
  %v711 = vmax.f32 %v647, 0.0
  %v712 = vmax.f32 %v648, 0.0
  %v713 = vmax.f32 %v649, 0.0
  %v714 = vmax.f32 %v650, 0.0
  %v715 = vmax.f32 %v651, 0.0
  %v716 = vmax.f32 %v652, 0.0
  %v717 = vmax.f32 %v653, 0.0
  %v718 = vmax.f32 %v654, 0.0
  %v719 = vmax.f32 %v655, 0.0
  %v720 = vmax.f32 %v656, 0.0
  %v721 = vmax.f32 %v657, 0.0
  %v722 = vmax.f32 %v658, 0.0
  %v723 = vmax.f32 %v659, 0.0
  %v724 = vmax.f32 %v660, 0.0
  %v725 = vmax.f32 %v661, 0.0
  %v726 = vmax.f32 %v662, 0.0
  %v727 = vmax.f32 %v663, 0.0
  %v728 = vmax.f32 %v664, 0.0
  %v729 = vmax.f32 %v665, 0.0
  %v730 = vmax.f32 %v666, 0.0
  %v731 = vmax.f32 %v667, 0.0
  %v732 = vmax.f32 %v668, 0.0
  %v733 = vmax.f32 %v669, 0.0
  %v734 = vmax.f32 %v670, 0.0
  %v735 = vmax.f32 %v671, 0.0
  %v736 = vmax.f32 %v672, 0.0
  %v737 = vmax.f32 %v673, 0.0
  %v738 = vmax.f32 %v674, 0.0
  %v739 = vmax.f32 %v675, 0.0
  %v740 = vmax.f32 %v676, 0.0
  %v741 = vpack.c.bf16 %v677, %v677
  %v742 = vpack.c.bf16 %v678, %v678
  %v743 = vpack.c.bf16 %v679, %v679
  %v744 = vpack.c.bf16 %v680, %v680
  %v745 = vpack.c.bf16 %v681, %v681
  %v746 = vpack.c.bf16 %v682, %v682
  %v747 = vpack.c.bf16 %v683, %v683
  %v748 = vpack.c.bf16 %v684, %v684
  %v749 = vpack.c.bf16 %v685, %v685
  %v750 = vpack.c.bf16 %v686, %v686
  %v751 = vpack.c.bf16 %v687, %v687
  %v752 = vpack.c.bf16 %v688, %v688
  %v753 = vpack.c.bf16 %v689, %v689
  %v754 = vpack.c.bf16 %v690, %v690
  %v755 = vpack.c.bf16 %v691, %v691
  %v756 = vpack.c.bf16 %v692, %v692
  %v757 = vpack.c.bf16 %v693, %v693
  %v758 = vpack.c.bf16 %v694, %v694
  %v759 = vpack.c.bf16 %v695, %v695
  %v760 = vpack.c.bf16 %v696, %v696
  %v761 = vpack.c.bf16 %v697, %v697
  %v762 = vpack.c.bf16 %v698, %v698
  %v763 = vpack.c.bf16 %v699, %v699
  %v764 = vpack.c.bf16 %v700, %v700
  %v765 = vpack.c.bf16 %v701, %v701
  %v766 = vpack.c.bf16 %v702, %v702
  %v767 = vpack.c.bf16 %v703, %v703
  %v768 = vpack.c.bf16 %v704, %v704
  %v769 = vpack.c.bf16 %v705, %v705
  %v770 = vpack.c.bf16 %v706, %v706
  %v771 = vpack.c.bf16 %v707, %v707
  %v772 = vpack.c.bf16 %v708, %v708
  %v773 = vpack.c.bf16 %v709, %v709
  %v774 = vpack.c.bf16 %v710, %v710
  %v775 = vpack.c.bf16 %v711, %v711
  %v776 = vpack.c.bf16 %v712, %v712
  %v777 = vpack.c.bf16 %v713, %v713
  %v778 = vpack.c.bf16 %v714, %v714
  %v779 = vpack.c.bf16 %v715, %v715
  %v780 = vpack.c.bf16 %v716, %v716
  %v781 = vpack.c.bf16 %v717, %v717
  %v782 = vpack.c.bf16 %v718, %v718
  %v783 = vpack.c.bf16 %v719, %v719
  %v784 = vpack.c.bf16 %v720, %v720
  %v785 = vpack.c.bf16 %v721, %v721
  %v786 = vpack.c.bf16 %v722, %v722
  %v787 = vpack.c.bf16 %v723, %v723
  %v788 = vpack.c.bf16 %v724, %v724
  %v789 = vpack.c.bf16 %v725, %v725
  %v790 = vpack.c.bf16 %v726, %v726
  %v791 = vpack.c.bf16 %v727, %v727
  %v792 = vpack.c.bf16 %v728, %v728
  %v793 = vpack.c.bf16 %v729, %v729
  %v794 = vpack.c.bf16 %v730, %v730
  %v795 = vpack.c.bf16 %v731, %v731
  %v796 = vpack.c.bf16 %v732, %v732
  %v797 = vpack.c.bf16 %v733, %v733
  %v798 = vpack.c.bf16 %v734, %v734
  %v799 = vpack.c.bf16 %v735, %v735
  %v800 = vpack.c.bf16 %v736, %v736
  %v801 = vpack.c.bf16 %v737, %v737
  %v802 = vpack.c.bf16 %v738, %v738
  %v803 = vpack.c.bf16 %v739, %v739
  %v804 = vpack.c.bf16 %v740, %v740
  %vm805 = vcmask 191488
  %806 = vst.msk [vmem:[%s3] sm:$0xf] %vm805, %v741
  %807 = vst.msk [vmem:[%s3 + $0x4] sm:$0xf] %vm805, %v742
  %808 = vst.msk [vmem:[%s3 + $0x8] sm:$0xf] %vm805, %v743
  %809 = vst.msk [vmem:[%s3 + $0xc] sm:$0xf] %vm805, %v744
  %810 = vst.msk [vmem:[%s3 + $0x10] sm:$0xf] %vm805, %v745
  %811 = vst.msk [vmem:[%s3 + $0x14] sm:$0xf] %vm805, %v746
  %812 = vst.msk [vmem:[%s3 + $0x18] sm:$0xf] %vm805, %v747
  %813 = vst.msk [vmem:[%s3 + $0x1c] sm:$0xf] %vm805, %v748
  %814 = vst.msk [vmem:[%s3 + $0x20] sm:$0xf] %vm805, %v749
  %815 = vst.msk [vmem:[%s3 + $0x24] sm:$0xf] %vm805, %v750
  %816 = vst.msk [vmem:[%s3 + $0x28] sm:$0xf] %vm805, %v751
  %817 = vst.msk [vmem:[%s3 + $0x2c] sm:$0xf] %vm805, %v752
  %818 = vst.msk [vmem:[%s3 + $0x30] sm:$0xf] %vm805, %v753
  %819 = vst.msk [vmem:[%s3 + $0x34] sm:$0xf] %vm805, %v754
  %820 = vst.msk [vmem:[%s3 + $0x38] sm:$0xf] %vm805, %v755
  %821 = vst.msk [vmem:[%s3 + $0x3c] sm:$0xf] %vm805, %v756
  %822 = vst.msk [vmem:[%s3 + $0x40] sm:$0xf] %vm805, %v757
  %823 = vst.msk [vmem:[%s3 + $0x44] sm:$0xf] %vm805, %v758
  %824 = vst.msk [vmem:[%s3 + $0x48] sm:$0xf] %vm805, %v759
  %825 = vst.msk [vmem:[%s3 + $0x4c] sm:$0xf] %vm805, %v760
  %826 = vst.msk [vmem:[%s3 + $0x50] sm:$0xf] %vm805, %v761
  %827 = vst.msk [vmem:[%s3 + $0x54] sm:$0xf] %vm805, %v762
  %828 = vst.msk [vmem:[%s3 + $0x58] sm:$0xf] %vm805, %v763
  %829 = vst.msk [vmem:[%s3 + $0x5c] sm:$0xf] %vm805, %v764
  %830 = vst.msk [vmem:[%s3 + $0x60] sm:$0xf] %vm805, %v765
  %831 = vst.msk [vmem:[%s3 + $0x64] sm:$0xf] %vm805, %v766
  %832 = vst.msk [vmem:[%s3 + $0x68] sm:$0xf] %vm805, %v767
  %833 = vst.msk [vmem:[%s3 + $0x6c] sm:$0xf] %vm805, %v768
  %834 = vst.msk [vmem:[%s3 + $0x70] sm:$0xf] %vm805, %v769
  %835 = vst.msk [vmem:[%s3 + $0x74] sm:$0xf] %vm805, %v770
  %836 = vst.msk [vmem:[%s3 + $0x78] sm:$0xf] %vm805, %v771
  %837 = vst.msk [vmem:[%s3 + $0x7c] sm:$0xf] %vm805, %v772
  %838 = vst.msk [vmem:[%s3 + $0x80] sm:$0xf] %vm805, %v773
  %839 = vst.msk [vmem:[%s3 + $0x84] sm:$0xf] %vm805, %v774
  %840 = vst.msk [vmem:[%s3 + $0x88] sm:$0xf] %vm805, %v775
  %841 = vst.msk [vmem:[%s3 + $0x8c] sm:$0xf] %vm805, %v776
  %842 = vst.msk [vmem:[%s3 + $0x90] sm:$0xf] %vm805, %v777
  %843 = vst.msk [vmem:[%s3 + $0x94] sm:$0xf] %vm805, %v778
  %844 = vst.msk [vmem:[%s3 + $0x98] sm:$0xf] %vm805, %v779
  %845 = vst.msk [vmem:[%s3 + $0x9c] sm:$0xf] %vm805, %v780
  %846 = vst.msk [vmem:[%s3 + $0xa0] sm:$0xf] %vm805, %v781
  %847 = vst.msk [vmem:[%s3 + $0xa4] sm:$0xf] %vm805, %v782
  %848 = vst.msk [vmem:[%s3 + $0xa8] sm:$0xf] %vm805, %v783
  %849 = vst.msk [vmem:[%s3 + $0xac] sm:$0xf] %vm805, %v784
  %850 = vst.msk [vmem:[%s3 + $0xb0] sm:$0xf] %vm805, %v785
  %851 = vst.msk [vmem:[%s3 + $0xb4] sm:$0xf] %vm805, %v786
  %852 = vst.msk [vmem:[%s3 + $0xb8] sm:$0xf] %vm805, %v787
  %853 = vst.msk [vmem:[%s3 + $0xbc] sm:$0xf] %vm805, %v788
  %854 = vst.msk [vmem:[%s3 + $0xc0] sm:$0xf] %vm805, %v789
  %855 = vst.msk [vmem:[%s3 + $0xc4] sm:$0xf] %vm805, %v790
  %856 = vst.msk [vmem:[%s3 + $0xc8] sm:$0xf] %vm805, %v791
  %857 = vst.msk [vmem:[%s3 + $0xcc] sm:$0xf] %vm805, %v792
  %858 = vst.msk [vmem:[%s3 + $0xd0] sm:$0xf] %vm805, %v793
  %859 = vst.msk [vmem:[%s3 + $0xd4] sm:$0xf] %vm805, %v794
  %860 = vst.msk [vmem:[%s3 + $0xd8] sm:$0xf] %vm805, %v795
  %861 = vst.msk [vmem:[%s3 + $0xdc] sm:$0xf] %vm805, %v796
  %862 = vst.msk [vmem:[%s3 + $0xe0] sm:$0xf] %vm805, %v797
  %863 = vst.msk [vmem:[%s3 + $0xe4] sm:$0xf] %vm805, %v798
  %864 = vst.msk [vmem:[%s3 + $0xe8] sm:$0xf] %vm805, %v799
  %865 = vst.msk [vmem:[%s3 + $0xec] sm:$0xf] %vm805, %v800
  %866 = vst.msk [vmem:[%s3 + $0xf0] sm:$0xf] %vm805, %v801
  %867 = vst.msk [vmem:[%s3 + $0xf4] sm:$0xf] %vm805, %v802
  %868 = vst.msk [vmem:[%s3 + $0xf8] sm:$0xf] %vm805, %v803
  %869 = vst.msk [vmem:[%s3 + $0xfc] sm:$0xf] %vm805, %v804
  // Predicated region
  $region14: #{_lambda_.12} parent=0 // pred_check
    _
  $region15: #{_lambda_.12} parent=0 // pred_check_branch
    %871 = sbr.rel (0) target = $region17
  $region16: #{_lambda_.12} parent=0 // pred_region
    _
  $region17: #{_lambda_.12} parent=0 // pred_fallthru
    _
  // Predicated region
  $region18: #{_lambda_.12} parent=0 // pred_check
    _
  $region19: #{_lambda_.12} parent=0 // pred_check_branch
    %873 = sbr.rel (0) target = $region21
  $region20: #{_lambda_.12} parent=0 // pred_region
    _
  $region21: #{_lambda_.12} parent=0 // pred_fallthru
    _

// kernel: _lambda_.10
$region0: #{_lambda_.10}
  #allocation0 [shape = 'u32[]', space=smem, size = 0x4, offset = 0x4, fixed_abs, tag = 'smem constant byte address 0x4 - core index']
  #allocation1 [shape = 'u32[72,128]{1,0:T(1,128)}', space=vmem, size = 0x9000, scoped, tag = 'internal scratch']
  %s0 = inlined_call_operand.vmem [shape: bf16[2,18,18,20], index: 0, kind: input, shape index: {}]
  %s1 = inlined_call_operand.vmem [shape: bf16[180,20], index: 1, kind: input, shape index: {}]
  %s2 = inlined_call_operand.vmem [shape: f32[2,20], index: 2, kind: input, shape index: {}]
  %s3 = inlined_call_operand.vmem [shape: bf16[2,16,16,20], index: 3, kind: output, shape index: {}]
  %s4 = sld [smem:[#allocation0]]
  $region45: #{_lambda_.10} parent=0
    _
  %s6 = ssub.s32 1, %s4
  %s7 = scalar_select 0, %s6, %s4
  loop: start=0, step=1, limit=4
  $region2: #{_lambda_.10} parent=0 // loop_pre_header
    _
  $region3: #{_lambda_.10} parent=0 // loop_header
    %s9 = sphi 0, %s13
    %p10 = scmp.ge.s32.totalorder %s9, 4
    %s19 = sphi 0, %s21
    %s22 = sphi 0, %s19
    %s23 = sphi 0, %s22
    %s39 = sphi 0, %s23
    %s43 = sphi 0, %s43
    %s45 = sphi 0, %s43
    %s46 = sphi 0, %s45
    %s60 = sphi 0, %s46
    %s64 = sphi 0, %s64
    %s66 = sphi 0, %s64
    %s67 = sphi 0, %s66
    %s81 = sphi 0, %s67
    %s87 = sphi 0, %s89
    %s90 = sphi 0, %s87
    %s91 = sphi 0, %s90
    %s107 = sphi 0, %s91
  $region4: #{_lambda_.10} parent=0 // loop_header_branch
    %12 = sbr.rel (%p10) target = $region8
  $region5: #{_lambda_.10} parent=0 // loop_body
    %s14 = ssub.s32 %s9, 1
    %s15 = ssub.s32 %s9, 2
    %s16 = sadd.s32 %s9, 1
    %s17 = ssub.s32 %s9, %s16
    %p18 = scmp.eq.s32.totalorder %s17, 0
    %s20 = sadd.s32 %s19, 1
    %s21 = scalar_select %p18, %s19, %s20
    %p24 = pneg %p18
    %p25 = scmp.eq.s32.totalorder %s9, 1
    %p26 = por %p24, %p25
    %p27 = scmp.ne.s32.totalorder %s19, %s22
    %p28 = scmp.eq.s32.totalorder %s9, 0
    %p29 = por %p27, %p28
    %p30 = scmp.ne.s32.totalorder %s19, %s22
    %p31 = scmp.eq.s32.totalorder %s14, 1
    %p32 = por %p30, %p31
    %p33 = scmp.ne.s32.totalorder %s22, %s23
    %p34 = scmp.eq.s32.totalorder %s14, 0
    %p35 = por %p33, %p34
    %p36 = scmp.ne.s32.totalorder %s22, %s23
    %p37 = scmp.eq.s32.totalorder %s15, 1
    %p38 = por %p36, %p37
    %p40 = scmp.ne.s32.totalorder %s23, %s39
    %p41 = scmp.eq.s32.totalorder %s15, 0
    %p42 = por %p40, %p41
    %s44 = sadd.s32 %s43, 1
    %p47 = scmp.eq.s32.totalorder %s9, 1
    %p48 = scmp.ne.s32.totalorder %s43, %s45
    %p49 = scmp.eq.s32.totalorder %s9, 0
    %p50 = por %p48, %p49
    %p51 = scmp.ne.s32.totalorder %s43, %s45
    %p52 = scmp.eq.s32.totalorder %s14, 1
    %p53 = por %p51, %p52
    %p54 = scmp.ne.s32.totalorder %s45, %s46
    %p55 = scmp.eq.s32.totalorder %s14, 0
    %p56 = por %p54, %p55
    %p57 = scmp.ne.s32.totalorder %s45, %s46
    %p58 = scmp.eq.s32.totalorder %s15, 1
    %p59 = por %p57, %p58
    %p61 = scmp.ne.s32.totalorder %s46, %s60
    %p62 = scmp.eq.s32.totalorder %s15, 0
    %p63 = por %p61, %p62
    %s65 = sadd.s32 %s64, 1
    %p68 = scmp.eq.s32.totalorder %s9, 1
    %p69 = scmp.ne.s32.totalorder %s64, %s66
    %p70 = scmp.eq.s32.totalorder %s9, 0
    %p71 = por %p69, %p70
    %p72 = scmp.ne.s32.totalorder %s64, %s66
    %p73 = scmp.eq.s32.totalorder %s14, 1
    %p74 = por %p72, %p73
    %p75 = scmp.ne.s32.totalorder %s66, %s67
    %p76 = scmp.eq.s32.totalorder %s14, 0
    %p77 = por %p75, %p76
    %p78 = scmp.ne.s32.totalorder %s66, %s67
    %p79 = scmp.eq.s32.totalorder %s15, 1
    %p80 = por %p78, %p79
    %p82 = scmp.ne.s32.totalorder %s67, %s81
    %p83 = scmp.eq.s32.totalorder %s15, 0
    %p84 = por %p82, %p83
    %s85 = ssub.s32 %s9, %s16
    %p86 = scmp.eq.s32.totalorder %s85, 0
    %s88 = sadd.s32 %s87, 1
    %s89 = scalar_select %p86, %s87, %s88
    %p92 = pneg %p86
    %p93 = scmp.eq.s32.totalorder %s9, 1
    %p94 = por %p92, %p93
    %p95 = scmp.ne.s32.totalorder %s87, %s90
    %p96 = scmp.eq.s32.totalorder %s9, 0
    %p97 = por %p95, %p96
    %p98 = scmp.ne.s32.totalorder %s87, %s90
    %p99 = scmp.eq.s32.totalorder %s14, 1
    %p100 = por %p98, %p99
    %p101 = scmp.ne.s32.totalorder %s90, %s91
    %p102 = scmp.eq.s32.totalorder %s14, 0
    %p103 = por %p101, %p102
    %p104 = scmp.ne.s32.totalorder %s90, %s91
    %p105 = scmp.eq.s32.totalorder %s15, 1
    %p106 = por %p104, %p105
    %p108 = scmp.ne.s32.totalorder %s91, %s107
    %p109 = scmp.eq.s32.totalorder %s15, 0
    %p110 = por %p108, %p109
    %p111 = scmp.le.s32.totalorder 1, %s9
    %p112 = scmp.lt.s32.totalorder %s9, 3
    %p113 = pnand %p111, %p112
    %p114 = pneg %p113
    // Predicated region
    $region9: #{_lambda_.10} parent=5 // pred_check
      _
    $region10: #{_lambda_.10} parent=5 // pred_check_branch
      %116 = sbr.rel (%p113) target = $region12
    $region11: #{_lambda_.10} parent=5 // pred_region
      %s117 = ssub.s32 %s9, 1
      // Predicated region
      $region13: #{_lambda_.10} parent=11 // pred_check
        %p118 = pneg %p56
      $region14: #{_lambda_.10} parent=11 // pred_check_branch
        %120 = sbr.rel (%p118) target = $region16
      $region15: #{_lambda_.10} parent=11 // pred_region
        _
      $region16: #{_lambda_.10} parent=11 // pred_fallthru
        _
      // Predicated region
      $region17: #{_lambda_.10} parent=11 // pred_check
        %p121 = pneg %p77
      $region18: #{_lambda_.10} parent=11 // pred_check_branch
        %123 = sbr.rel (%p121) target = $region20
      $region19: #{_lambda_.10} parent=11 // pred_region
        _
      $region20: #{_lambda_.10} parent=11 // pred_fallthru
        _
    $region12: #{_lambda_.10} parent=5 // pred_fallthru
      _
    %p124 = scmp.lt.s32.totalorder %s9, 2
    // Predicated region
    $region21: #{_lambda_.10} parent=5 // pred_check
      %p125 = pneg %p124
    $region22: #{_lambda_.10} parent=5 // pred_check_branch
      %127 = sbr.rel (%p125) target = $region24
    $region23: #{_lambda_.10} parent=5 // pred_region
      // Predicated region
      $region25: #{_lambda_.10} parent=23 // pred_check
        %p128 = pneg %p29
      $region26: #{_lambda_.10} parent=23 // pred_check_branch
        %130 = sbr.rel (%p128) target = $region28
      $region27: #{_lambda_.10} parent=23 // pred_region
        %p131 = scmp.lt.s32.totalorder %s9, 1
        %s132 = scalar_select %p131, %s9, 1
        %s133 = smul.addr %s132, 54
        %s134 = smul.addr %s133, 4
        %s135 = scalar_lea.vmem %s0, %s134
      $region28: #{_lambda_.10} parent=23 // pred_fallthru
        _
    $region24: #{_lambda_.10} parent=5 // pred_fallthru
      _
    %p136 = scmp.le.s32.totalorder 1, %s9
    %p137 = scmp.lt.s32.totalorder %s9, 3
    %p138 = pnand %p136, %p137
    %p139 = pneg %p138
    // Predicated region
    $region29: #{_lambda_.10} parent=5 // pred_check
      _
    $region30: #{_lambda_.10} parent=5 // pred_check_branch
      %141 = sbr.rel (%p138) target = $region32
    $region31: #{_lambda_.10} parent=5 // pred_region
      %s142 = ssub.s32 %s9, 1
      %p143 = scmp.lt.s32.totalorder %s14, 1
      %s144 = scalar_select %p143, %s14, 1
      %s145 = smul.addr %s144, 54
      %s146 = smul.addr %s145, 4
      %s147 = scalar_lea.vmem %s0, %s146
      %p148 = pneg %p35
      %p149 = pneg %p32
      %p150 = pneg %p56
      %p151 = pneg %p53
      %p152 = pneg %p77
      %p153 = pneg %p74
      %p154 = pneg %p103
      %p155 = pneg %p100
      %p156 = scmp.lt.s32.totalorder %s14, 1
      %s157 = scalar_select %p156, %s14, 1
      %s158 = smul.addr %s157, 32
      %s159 = smul.addr %s158, 4
      %s160 = scalar_lea.vmem %s3, %s159
      %p161 = scmp.lt.s32.totalorder %s14, 1
      %s162 = scalar_select %p161, %s14, 1
      %s163 = smul.addr %s162, 54
      %s164 = smul.addr %s163, 4
      %s165 = scalar_lea.vmem %s0, %s164
      %p166 = scmp.lt.s32.totalorder %s14, 1
      %s167 = scalar_select %p166, %s14, 1
      %s168 = smul.addr %s167, 32
      %s169 = smul.addr %s168, 4
      %s170 = scalar_lea.vmem %s3, %s169
      %v172 = vld [vmem:[%s165] sm:$0xf]
      %v173 = vld [vmem:[%s165 + $0x4] sm:$0xf]
      %v174 = vld [vmem:[%s165 + $0xc] sm:$0xf]
      %v175 = vld [vmem:[%s165 + $0x10] sm:$0xf]
      %v176 = vld [vmem:[%s165 + $0x18] sm:$0xf]
      %v177 = vld [vmem:[%s165 + $0x1c] sm:$0xf]
      %v178 = vld [vmem:[%s165 + $0x24] sm:$0xf]
      %v179 = vld [vmem:[%s165 + $0x28] sm:$0xf]
      %v180 = vld [vmem:[%s165 + $0x30] sm:$0xf]
      %v181 = vld [vmem:[%s165 + $0x34] sm:$0xf]
      %v182 = vld [vmem:[%s165 + $0x3c] sm:$0xf]
      %v183 = vld [vmem:[%s165 + $0x40] sm:$0xf]
      %v184 = vld [vmem:[%s165 + $0x48] sm:$0xf]
      %v185 = vld [vmem:[%s165 + $0x4c] sm:$0xf]
      %v186 = vld [vmem:[%s165 + $0x54] sm:$0xf]
      %v187 = vld [vmem:[%s165 + $0x58] sm:$0xf]
      %v188 = vld [vmem:[%s165 + $0x60] sm:$0xf]
      %v189 = vld [vmem:[%s165 + $0x64] sm:$0xf]
      %v190 = vld [vmem:[%s165 + $0x6c] sm:$0xf]
      %v191 = vld [vmem:[%s165 + $0x70] sm:$0xf]
      %v192 = vld [vmem:[%s165 + $0x78] sm:$0xf]
      %v193 = vld [vmem:[%s165 + $0x7c] sm:$0xf]
      %v194 = vld [vmem:[%s165 + $0x84] sm:$0xf]
      %v195 = vld [vmem:[%s165 + $0x88] sm:$0xf]
      %v196 = vld [vmem:[%s165 + $0x90] sm:$0xf]
      %v197 = vld [vmem:[%s165 + $0x94] sm:$0xf]
      %v198 = vld [vmem:[%s165 + $0x9c] sm:$0xf]
      %v199 = vld [vmem:[%s165 + $0xa0] sm:$0xf]
      %v200 = vld [vmem:[%s165 + $0xa8] sm:$0xf]
      %v201 = vld [vmem:[%s165 + $0xac] sm:$0xf]
      %v202 = vld [vmem:[%s165 + $0xb4] sm:$0xf]
      %v203 = vld [vmem:[%s165 + $0xb8] sm:$0xf]
      %v204 = vld [vmem:[%s165 + $0x8] sm:$0x1]
      %v205 = vld [vmem:[%s165 + $0x14] sm:$0x1]
      %v206 = vld [vmem:[%s165 + $0x20] sm:$0x1]
      %v207 = vld [vmem:[%s165 + $0x2c] sm:$0x1]
      %v208 = vld [vmem:[%s165 + $0x38] sm:$0x1]
      %v209 = vld [vmem:[%s165 + $0x44] sm:$0x1]
      %v210 = vld [vmem:[%s165 + $0x50] sm:$0x1]
      %v211 = vld [vmem:[%s165 + $0x5c] sm:$0x1]
      %v212 = vld [vmem:[%s165 + $0x68] sm:$0x1]
      %v213 = vld [vmem:[%s165 + $0x74] sm:$0x1]
      %v214 = vld [vmem:[%s165 + $0x80] sm:$0x1]
      %v215 = vld [vmem:[%s165 + $0x8c] sm:$0x1]
      %v216 = vld [vmem:[%s165 + $0x98] sm:$0x1]
      %v217 = vld [vmem:[%s165 + $0xa4] sm:$0x1]
      %v218 = vld [vmem:[%s165 + $0xb0] sm:$0x1]
      %v219 = vld [vmem:[%s165 + $0xbc] sm:$0x1]
      %v220 = vld [vmem:[%s165] sm:$0xe]
      %v221 = vld [vmem:[%s165 + $0xc] sm:$0xe]
      %v222 = vld [vmem:[%s165 + $0x18] sm:$0xe]
      %v223 = vld [vmem:[%s165 + $0x24] sm:$0xe]
      %v224 = vld [vmem:[%s165 + $0x30] sm:$0xe]
      %v225 = vld [vmem:[%s165 + $0x3c] sm:$0xe]
      %v226 = vld [vmem:[%s165 + $0x48] sm:$0xe]
      %v227 = vld [vmem:[%s165 + $0x54] sm:$0xe]
      %v228 = vld [vmem:[%s165 + $0x60] sm:$0xe]
      %v229 = vld [vmem:[%s165 + $0x6c] sm:$0xe]
      %v230 = vld [vmem:[%s165 + $0x78] sm:$0xe]
      %v231 = vld [vmem:[%s165 + $0x84] sm:$0xe]
      %v232 = vld [vmem:[%s165 + $0x90] sm:$0xe]
      %v233 = vld [vmem:[%s165 + $0x9c] sm:$0xe]
      %v234 = vld [vmem:[%s165 + $0xa8] sm:$0xe]
      %v235 = vld [vmem:[%s165 + $0xb4] sm:$0xe]
      %s236 = scalar_lea.vmem %s165, 12
      %v237 = vld [vmem:[%s236] sm:$0xf]
      %v238 = vld [vmem:[%s236 + $0x4] sm:$0xf]
      %v239 = vld [vmem:[%s236 + $0xc] sm:$0xf]
      %v240 = vld [vmem:[%s236 + $0x10] sm:$0xf]
      %v241 = vld [vmem:[%s236 + $0x18] sm:$0xf]
      %v242 = vld [vmem:[%s236 + $0x1c] sm:$0xf]
      %v243 = vld [vmem:[%s236 + $0x24] sm:$0xf]
      %v244 = vld [vmem:[%s236 + $0x28] sm:$0xf]
      %v245 = vld [vmem:[%s236 + $0x30] sm:$0xf]
      %v246 = vld [vmem:[%s236 + $0x34] sm:$0xf]
      %v247 = vld [vmem:[%s236 + $0x3c] sm:$0xf]
      %v248 = vld [vmem:[%s236 + $0x40] sm:$0xf]
      %v249 = vld [vmem:[%s236 + $0x48] sm:$0xf]
      %v250 = vld [vmem:[%s236 + $0x4c] sm:$0xf]
      %v251 = vld [vmem:[%s236 + $0x54] sm:$0xf]
      %v252 = vld [vmem:[%s236 + $0x58] sm:$0xf]
      %v253 = vld [vmem:[%s236 + $0x60] sm:$0xf]
      %v254 = vld [vmem:[%s236 + $0x64] sm:$0xf]
      %v255 = vld [vmem:[%s236 + $0x6c] sm:$0xf]
      %v256 = vld [vmem:[%s236 + $0x70] sm:$0xf]
      %v257 = vld [vmem:[%s236 + $0x78] sm:$0xf]
      %v258 = vld [vmem:[%s236 + $0x7c] sm:$0xf]
      %v259 = vld [vmem:[%s236 + $0x84] sm:$0xf]
      %v260 = vld [vmem:[%s236 + $0x88] sm:$0xf]
      %v261 = vld [vmem:[%s236 + $0x90] sm:$0xf]
      %v262 = vld [vmem:[%s236 + $0x94] sm:$0xf]
      %v263 = vld [vmem:[%s236 + $0x9c] sm:$0xf]
      %v264 = vld [vmem:[%s236 + $0xa0] sm:$0xf]
      %v265 = vld [vmem:[%s236 + $0xa8] sm:$0xf]
      %v266 = vld [vmem:[%s236 + $0xac] sm:$0xf]
      %v267 = vld [vmem:[%s236 + $0xb4] sm:$0xf]
      %v268 = vld [vmem:[%s236 + $0xb8] sm:$0xf]
      %v269 = vld [vmem:[%s236 + $0x8] sm:$0x1]
      %v270 = vld [vmem:[%s236 + $0x14] sm:$0x1]
      %v271 = vld [vmem:[%s236 + $0x20] sm:$0x1]
      %v272 = vld [vmem:[%s236 + $0x2c] sm:$0x1]
      %v273 = vld [vmem:[%s236 + $0x38] sm:$0x1]
      %v274 = vld [vmem:[%s236 + $0x44] sm:$0x1]
      %v275 = vld [vmem:[%s236 + $0x50] sm:$0x1]
      %v276 = vld [vmem:[%s236 + $0x5c] sm:$0x1]
      %v277 = vld [vmem:[%s236 + $0x68] sm:$0x1]
      %v278 = vld [vmem:[%s236 + $0x74] sm:$0x1]
      %v279 = vld [vmem:[%s236 + $0x80] sm:$0x1]
      %v280 = vld [vmem:[%s236 + $0x8c] sm:$0x1]
      %v281 = vld [vmem:[%s236 + $0x98] sm:$0x1]
      %v282 = vld [vmem:[%s236 + $0xa4] sm:$0x1]
      %v283 = vld [vmem:[%s236 + $0xb0] sm:$0x1]
      %v284 = vld [vmem:[%s236 + $0xbc] sm:$0x1]
      %v285 = vld [vmem:[%s236] sm:$0xe]
      %v286 = vld [vmem:[%s236 + $0xc] sm:$0xe]
      %v287 = vld [vmem:[%s236 + $0x18] sm:$0xe]
      %v288 = vld [vmem:[%s236 + $0x24] sm:$0xe]
      %v289 = vld [vmem:[%s236 + $0x30] sm:$0xe]
      %v290 = vld [vmem:[%s236 + $0x3c] sm:$0xe]
      %v291 = vld [vmem:[%s236 + $0x48] sm:$0xe]
      %v292 = vld [vmem:[%s236 + $0x54] sm:$0xe]
      %v293 = vld [vmem:[%s236 + $0x60] sm:$0xe]
      %v294 = vld [vmem:[%s236 + $0x6c] sm:$0xe]
      %v295 = vld [vmem:[%s236 + $0x78] sm:$0xe]
      %v296 = vld [vmem:[%s236 + $0x84] sm:$0xe]
      %v297 = vld [vmem:[%s236 + $0x90] sm:$0xe]
      %v298 = vld [vmem:[%s236 + $0x9c] sm:$0xe]
      %v299 = vld [vmem:[%s236 + $0xa8] sm:$0xe]
      %v300 = vld [vmem:[%s236 + $0xb4] sm:$0xe]
      %s301 = scalar_lea.vmem %s165, 24
      %v302 = vld [vmem:[%s301] sm:$0xf]
      %v303 = vld [vmem:[%s301 + $0x4] sm:$0xf]
      %v304 = vld [vmem:[%s301 + $0xc] sm:$0xf]
      %v305 = vld [vmem:[%s301 + $0x10] sm:$0xf]
      %v306 = vld [vmem:[%s301 + $0x18] sm:$0xf]
      %v307 = vld [vmem:[%s301 + $0x1c] sm:$0xf]
      %v308 = vld [vmem:[%s301 + $0x24] sm:$0xf]
      %v309 = vld [vmem:[%s301 + $0x28] sm:$0xf]
      %v310 = vld [vmem:[%s301 + $0x30] sm:$0xf]
      %v311 = vld [vmem:[%s301 + $0x34] sm:$0xf]
      %v312 = vld [vmem:[%s301 + $0x3c] sm:$0xf]
      %v313 = vld [vmem:[%s301 + $0x40] sm:$0xf]
      %v314 = vld [vmem:[%s301 + $0x48] sm:$0xf]
      %v315 = vld [vmem:[%s301 + $0x4c] sm:$0xf]
      %v316 = vld [vmem:[%s301 + $0x54] sm:$0xf]
      %v317 = vld [vmem:[%s301 + $0x58] sm:$0xf]
      %v318 = vld [vmem:[%s301 + $0x60] sm:$0xf]
      %v319 = vld [vmem:[%s301 + $0x64] sm:$0xf]
      %v320 = vld [vmem:[%s301 + $0x6c] sm:$0xf]
      %v321 = vld [vmem:[%s301 + $0x70] sm:$0xf]
      %v322 = vld [vmem:[%s301 + $0x78] sm:$0xf]
      %v323 = vld [vmem:[%s301 + $0x7c] sm:$0xf]
      %v324 = vld [vmem:[%s301 + $0x84] sm:$0xf]
      %v325 = vld [vmem:[%s301 + $0x88] sm:$0xf]
      %v326 = vld [vmem:[%s301 + $0x90] sm:$0xf]
      %v327 = vld [vmem:[%s301 + $0x94] sm:$0xf]
      %v328 = vld [vmem:[%s301 + $0x9c] sm:$0xf]
      %v329 = vld [vmem:[%s301 + $0xa0] sm:$0xf]
      %v330 = vld [vmem:[%s301 + $0xa8] sm:$0xf]
      %v331 = vld [vmem:[%s301 + $0xac] sm:$0xf]
      %v332 = vld [vmem:[%s301 + $0xb4] sm:$0xf]
      %v333 = vld [vmem:[%s301 + $0xb8] sm:$0xf]
      %v334 = vld [vmem:[%s301 + $0x8] sm:$0x1]
      %v335 = vld [vmem:[%s301 + $0x14] sm:$0x1]
      %v336 = vld [vmem:[%s301 + $0x20] sm:$0x1]
      %v337 = vld [vmem:[%s301 + $0x2c] sm:$0x1]
      %v338 = vld [vmem:[%s301 + $0x38] sm:$0x1]
      %v339 = vld [vmem:[%s301 + $0x44] sm:$0x1]
      %v340 = vld [vmem:[%s301 + $0x50] sm:$0x1]
      %v341 = vld [vmem:[%s301 + $0x5c] sm:$0x1]
      %v342 = vld [vmem:[%s301 + $0x68] sm:$0x1]
      %v343 = vld [vmem:[%s301 + $0x74] sm:$0x1]
      %v344 = vld [vmem:[%s301 + $0x80] sm:$0x1]
      %v345 = vld [vmem:[%s301 + $0x8c] sm:$0x1]
      %v346 = vld [vmem:[%s301 + $0x98] sm:$0x1]
      %v347 = vld [vmem:[%s301 + $0xa4] sm:$0x1]
      %v348 = vld [vmem:[%s301 + $0xb0] sm:$0x1]
      %v349 = vld [vmem:[%s301 + $0xbc] sm:$0x1]
      %v350 = vld [vmem:[%s301] sm:$0xe]
      %v351 = vld [vmem:[%s301 + $0xc] sm:$0xe]
      %v352 = vld [vmem:[%s301 + $0x18] sm:$0xe]
      %v353 = vld [vmem:[%s301 + $0x24] sm:$0xe]
      %v354 = vld [vmem:[%s301 + $0x30] sm:$0xe]
      %v355 = vld [vmem:[%s301 + $0x3c] sm:$0xe]
      %v356 = vld [vmem:[%s301 + $0x48] sm:$0xe]
      %v357 = vld [vmem:[%s301 + $0x54] sm:$0xe]
      %v358 = vld [vmem:[%s301 + $0x60] sm:$0xe]
      %v359 = vld [vmem:[%s301 + $0x6c] sm:$0xe]
      %v360 = vld [vmem:[%s301 + $0x78] sm:$0xe]
      %v361 = vld [vmem:[%s301 + $0x84] sm:$0xe]
      %v362 = vld [vmem:[%s301 + $0x90] sm:$0xe]
      %v363 = vld [vmem:[%s301 + $0x9c] sm:$0xe]
      %v364 = vld [vmem:[%s301 + $0xa8] sm:$0xe]
      %v365 = vld [vmem:[%s301 + $0xb4] sm:$0xe]
      %v398 = vunpack.c.l.b16 %v172
      %v399 = vunpack.c.l.b16 %v173
      %v400 = vunpack.c.l.b16 %v174
      %v401 = vunpack.c.l.b16 %v175
      %v402 = vunpack.c.l.b16 %v176
      %v403 = vunpack.c.l.b16 %v177
      %v404 = vunpack.c.l.b16 %v178
      %v405 = vunpack.c.l.b16 %v179
      %v406 = vunpack.c.l.b16 %v180
      %v407 = vunpack.c.l.b16 %v181
      %v408 = vunpack.c.l.b16 %v182
      %v409 = vunpack.c.l.b16 %v183
      %v410 = vunpack.c.l.b16 %v184
      %v411 = vunpack.c.l.b16 %v185
      %v412 = vunpack.c.l.b16 %v186
      %v413 = vunpack.c.l.b16 %v187
      %v414 = vunpack.c.l.b16 %v188
      %v415 = vunpack.c.l.b16 %v189
      %v416 = vunpack.c.l.b16 %v190
      %v417 = vunpack.c.l.b16 %v191
      %v418 = vunpack.c.l.b16 %v192
      %v419 = vunpack.c.l.b16 %v193
      %v420 = vunpack.c.l.b16 %v194
      %v421 = vunpack.c.l.b16 %v195
      %v422 = vunpack.c.l.b16 %v196
      %v423 = vunpack.c.l.b16 %v197
      %v424 = vunpack.c.l.b16 %v198
      %v425 = vunpack.c.l.b16 %v199
      %v426 = vunpack.c.l.b16 %v200
      %v427 = vunpack.c.l.b16 %v201
      %v428 = vunpack.c.l.b16 %v202
      %v429 = vunpack.c.l.b16 %v203
      %v430 = vpack.c.b16 %v399, %v398
      %v431 = vpack.c.b16 %v401, %v400
      %v432 = vpack.c.b16 %v403, %v402
      %v433 = vpack.c.b16 %v405, %v404
      %v434 = vpack.c.b16 %v407, %v406
      %v435 = vpack.c.b16 %v409, %v408
      %v436 = vpack.c.b16 %v411, %v410
      %v437 = vpack.c.b16 %v413, %v412
      %v438 = vpack.c.b16 %v415, %v414
      %v439 = vpack.c.b16 %v417, %v416
      %v440 = vpack.c.b16 %v419, %v418
      %v441 = vpack.c.b16 %v421, %v420
      %v442 = vpack.c.b16 %v423, %v422
      %v443 = vpack.c.b16 %v425, %v424
      %v444 = vpack.c.b16 %v427, %v426
      %v445 = vpack.c.b16 %v429, %v428
      %v462 = vunpack.c.l.b16 %v204
      %v463 = vunpack.c.l.b16 %v205
      %v464 = vunpack.c.l.b16 %v206
      %v465 = vunpack.c.l.b16 %v207
      %v466 = vunpack.c.l.b16 %v208
      %v467 = vunpack.c.l.b16 %v209
      %v468 = vunpack.c.l.b16 %v210
      %v469 = vunpack.c.l.b16 %v211
      %v470 = vunpack.c.l.b16 %v212
      %v471 = vunpack.c.l.b16 %v213
      %v472 = vunpack.c.l.b16 %v214
      %v473 = vunpack.c.l.b16 %v215
      %v474 = vunpack.c.l.b16 %v216
      %v475 = vunpack.c.l.b16 %v217
      %v476 = vunpack.c.l.b16 %v218
      %v477 = vunpack.c.l.b16 %v219
      %v478 = vpack.c.b16 %v462, %v462
      %v479 = vpack.c.b16 %v463, %v463
      %v480 = vpack.c.b16 %v464, %v464
      %v481 = vpack.c.b16 %v465, %v465
      %v482 = vpack.c.b16 %v466, %v466
      %v483 = vpack.c.b16 %v467, %v467
      %v484 = vpack.c.b16 %v468, %v468
      %v485 = vpack.c.b16 %v469, %v469
      %v486 = vpack.c.b16 %v470, %v470
      %v487 = vpack.c.b16 %v471, %v471
      %v488 = vpack.c.b16 %v472, %v472
      %v489 = vpack.c.b16 %v473, %v473
      %v490 = vpack.c.b16 %v474, %v474
      %v491 = vpack.c.b16 %v475, %v475
      %v492 = vpack.c.b16 %v476, %v476
      %v493 = vpack.c.b16 %v477, %v477
      %vm494 = vsmask.f32 7424
      %v496 = vshrl.u32 %v430, 16
      %v498 = vshll.u32 %v430, 16
      %v500 = vrot.slane %v498, 1
      %v501 = vor.u32 %v496, %v500
      %v503 = vshll.u32 %v478, 16
      %v505 = vrot.slane %v503, 1
      %v506 = vsel %vm494, %v501, %v505
      %v508 = vshrl.u32 %v431, 16
      %v510 = vshll.u32 %v431, 16
      %v512 = vrot.slane %v510, 1
      %v513 = vor.u32 %v508, %v512
      %v515 = vshll.u32 %v479, 16
      %v517 = vrot.slane %v515, 1
      %v518 = vsel %vm494, %v513, %v517
      %v520 = vshrl.u32 %v432, 16
      %v522 = vshll.u32 %v432, 16
      %v524 = vrot.slane %v522, 1
      %v525 = vor.u32 %v520, %v524
      %v527 = vshll.u32 %v480, 16
      %v529 = vrot.slane %v527, 1
      %v530 = vsel %vm494, %v525, %v529
      %v532 = vshrl.u32 %v433, 16
      %v534 = vshll.u32 %v433, 16
      %v536 = vrot.slane %v534, 1
      %v537 = vor.u32 %v532, %v536
      %v539 = vshll.u32 %v481, 16
      %v541 = vrot.slane %v539, 1
      %v542 = vsel %vm494, %v537, %v541
      %v544 = vshrl.u32 %v434, 16
      %v546 = vshll.u32 %v434, 16
      %v548 = vrot.slane %v546, 1
      %v549 = vor.u32 %v544, %v548
      %v551 = vshll.u32 %v482, 16
      %v553 = vrot.slane %v551, 1
      %v554 = vsel %vm494, %v549, %v553
      %v556 = vshrl.u32 %v435, 16
      %v558 = vshll.u32 %v435, 16
      %v560 = vrot.slane %v558, 1
      %v561 = vor.u32 %v556, %v560
      %v563 = vshll.u32 %v483, 16
      %v565 = vrot.slane %v563, 1
      %v566 = vsel %vm494, %v561, %v565
      %v568 = vshrl.u32 %v436, 16
      %v570 = vshll.u32 %v436, 16
      %v572 = vrot.slane %v570, 1
      %v573 = vor.u32 %v568, %v572
      %v575 = vshll.u32 %v484, 16
      %v577 = vrot.slane %v575, 1
      %v578 = vsel %vm494, %v573, %v577
      %v580 = vshrl.u32 %v437, 16
      %v582 = vshll.u32 %v437, 16
      %v584 = vrot.slane %v582, 1
      %v585 = vor.u32 %v580, %v584
      %v587 = vshll.u32 %v485, 16
      %v589 = vrot.slane %v587, 1
      %v590 = vsel %vm494, %v585, %v589
      %v592 = vshrl.u32 %v438, 16
      %v594 = vshll.u32 %v438, 16
      %v596 = vrot.slane %v594, 1
      %v597 = vor.u32 %v592, %v596
      %v599 = vshll.u32 %v486, 16
      %v601 = vrot.slane %v599, 1
      %v602 = vsel %vm494, %v597, %v601
      %v604 = vshrl.u32 %v439, 16
      %v606 = vshll.u32 %v439, 16
      %v608 = vrot.slane %v606, 1
      %v609 = vor.u32 %v604, %v608
      %v611 = vshll.u32 %v487, 16
      %v613 = vrot.slane %v611, 1
      %v614 = vsel %vm494, %v609, %v613
      %v616 = vshrl.u32 %v440, 16
      %v618 = vshll.u32 %v440, 16
      %v620 = vrot.slane %v618, 1
      %v621 = vor.u32 %v616, %v620
      %v623 = vshll.u32 %v488, 16
      %v625 = vrot.slane %v623, 1
      %v626 = vsel %vm494, %v621, %v625
      %v628 = vshrl.u32 %v441, 16
      %v630 = vshll.u32 %v441, 16
      %v632 = vrot.slane %v630, 1
      %v633 = vor.u32 %v628, %v632
      %v635 = vshll.u32 %v489, 16
      %v637 = vrot.slane %v635, 1
      %v638 = vsel %vm494, %v633, %v637
      %v640 = vshrl.u32 %v442, 16
      %v642 = vshll.u32 %v442, 16
      %v644 = vrot.slane %v642, 1
      %v645 = vor.u32 %v640, %v644
      %v647 = vshll.u32 %v490, 16
      %v649 = vrot.slane %v647, 1
      %v650 = vsel %vm494, %v645, %v649
      %v652 = vshrl.u32 %v443, 16
      %v654 = vshll.u32 %v443, 16
      %v656 = vrot.slane %v654, 1
      %v657 = vor.u32 %v652, %v656
      %v659 = vshll.u32 %v491, 16
      %v661 = vrot.slane %v659, 1
      %v662 = vsel %vm494, %v657, %v661
      %v664 = vshrl.u32 %v444, 16
      %v666 = vshll.u32 %v444, 16
      %v668 = vrot.slane %v666, 1
      %v669 = vor.u32 %v664, %v668
      %v671 = vshll.u32 %v492, 16
      %v673 = vrot.slane %v671, 1
      %v674 = vsel %vm494, %v669, %v673
      %v676 = vshrl.u32 %v445, 16
      %v678 = vshll.u32 %v445, 16
      %v680 = vrot.slane %v678, 1
      %v681 = vor.u32 %v676, %v680
      %v683 = vshll.u32 %v493, 16
      %v685 = vrot.slane %v683, 1
      %v686 = vsel %vm494, %v681, %v685
      %687 = vrot.lane.b32.xlu0 %v506, 20
      %v688 = vpop.permute.xlu0 %687
      %689 = vrot.lane.b32.xlu0 %v518, 20
      %v690 = vpop.permute.xlu0 %689
      %691 = vrot.lane.b32.xlu0 %v530, 20
      %v692 = vpop.permute.xlu0 %691
      %693 = vrot.lane.b32.xlu0 %v542, 20
      %v694 = vpop.permute.xlu0 %693
      %695 = vrot.lane.b32.xlu0 %v554, 20
      %v696 = vpop.permute.xlu0 %695
      %697 = vrot.lane.b32.xlu0 %v566, 20
      %v698 = vpop.permute.xlu0 %697
      %699 = vrot.lane.b32.xlu0 %v578, 20
      %v700 = vpop.permute.xlu0 %699
      %701 = vrot.lane.b32.xlu0 %v590, 20
      %v702 = vpop.permute.xlu0 %701
      %703 = vrot.lane.b32.xlu0 %v602, 20
      %v704 = vpop.permute.xlu0 %703
      %705 = vrot.lane.b32.xlu0 %v614, 20
      %v706 = vpop.permute.xlu0 %705
      %707 = vrot.lane.b32.xlu0 %v626, 20
      %v708 = vpop.permute.xlu0 %707
      %709 = vrot.lane.b32.xlu0 %v638, 20
      %v710 = vpop.permute.xlu0 %709
      %711 = vrot.lane.b32.xlu0 %v650, 20
      %v712 = vpop.permute.xlu0 %711
      %713 = vrot.lane.b32.xlu0 %v662, 20
      %v714 = vpop.permute.xlu0 %713
      %715 = vrot.lane.b32.xlu0 %v674, 20
      %v716 = vpop.permute.xlu0 %715
      %717 = vrot.lane.b32.xlu0 %v686, 20
      %v718 = vpop.permute.xlu0 %717
      %v735 = vunpack.c.l.b16 %v220
      %v736 = vunpack.c.l.b16 %v221
      %v737 = vunpack.c.l.b16 %v222
      %v738 = vunpack.c.l.b16 %v223
      %v739 = vunpack.c.l.b16 %v224
      %v740 = vunpack.c.l.b16 %v225
      %v741 = vunpack.c.l.b16 %v226
      %v742 = vunpack.c.l.b16 %v227
      %v743 = vunpack.c.l.b16 %v228
      %v744 = vunpack.c.l.b16 %v229
      %v745 = vunpack.c.l.b16 %v230
      %v746 = vunpack.c.l.b16 %v231
      %v747 = vunpack.c.l.b16 %v232
      %v748 = vunpack.c.l.b16 %v233
      %v749 = vunpack.c.l.b16 %v234
      %v750 = vunpack.c.l.b16 %v235
      %v751 = vpack.c.b16 %v399, %v735
      %v752 = vpack.c.b16 %v401, %v736
      %v753 = vpack.c.b16 %v403, %v737
      %v754 = vpack.c.b16 %v405, %v738
      %v755 = vpack.c.b16 %v407, %v739
      %v756 = vpack.c.b16 %v409, %v740
      %v757 = vpack.c.b16 %v411, %v741
      %v758 = vpack.c.b16 %v413, %v742
      %v759 = vpack.c.b16 %v415, %v743
      %v760 = vpack.c.b16 %v417, %v744
      %v761 = vpack.c.b16 %v419, %v745
      %v762 = vpack.c.b16 %v421, %v746
      %v763 = vpack.c.b16 %v423, %v747
      %v764 = vpack.c.b16 %v425, %v748
      %v765 = vpack.c.b16 %v427, %v749
      %v766 = vpack.c.b16 %v429, %v750
      %vm767 = vcmask 1046528
      %v768 = vrot.slane %v751, 1
      %v769 = vrot.slane %v478, 1
      %v770 = vsel %vm767, %v768, %v769
      %v771 = vrot.slane %v752, 1
      %v772 = vrot.slane %v479, 1
      %v773 = vsel %vm767, %v771, %v772
      %v774 = vrot.slane %v753, 1
      %v775 = vrot.slane %v480, 1
      %v776 = vsel %vm767, %v774, %v775
      %v777 = vrot.slane %v754, 1
      %v778 = vrot.slane %v481, 1
      %v779 = vsel %vm767, %v777, %v778
      %v780 = vrot.slane %v755, 1
      %v781 = vrot.slane %v482, 1
      %v782 = vsel %vm767, %v780, %v781
      %v783 = vrot.slane %v756, 1
      %v784 = vrot.slane %v483, 1
      %v785 = vsel %vm767, %v783, %v784
      %v786 = vrot.slane %v757, 1
      %v787 = vrot.slane %v484, 1
      %v788 = vsel %vm767, %v786, %v787
      %v789 = vrot.slane %v758, 1
      %v790 = vrot.slane %v485, 1
      %v791 = vsel %vm767, %v789, %v790
      %v792 = vrot.slane %v759, 1
      %v793 = vrot.slane %v486, 1
      %v794 = vsel %vm767, %v792, %v793
      %v795 = vrot.slane %v760, 1
      %v796 = vrot.slane %v487, 1
      %v797 = vsel %vm767, %v795, %v796
      %v798 = vrot.slane %v761, 1
      %v799 = vrot.slane %v488, 1
      %v800 = vsel %vm767, %v798, %v799
      %v801 = vrot.slane %v762, 1
      %v802 = vrot.slane %v489, 1
      %v803 = vsel %vm767, %v801, %v802
      %v804 = vrot.slane %v763, 1
      %v805 = vrot.slane %v490, 1
      %v806 = vsel %vm767, %v804, %v805
      %v807 = vrot.slane %v764, 1
      %v808 = vrot.slane %v491, 1
      %v809 = vsel %vm767, %v807, %v808
      %v810 = vrot.slane %v765, 1
      %v811 = vrot.slane %v492, 1
      %v812 = vsel %vm767, %v810, %v811
      %v813 = vrot.slane %v766, 1
      %v814 = vrot.slane %v493, 1
      %v815 = vsel %vm767, %v813, %v814
      %816 = vrot.lane.b32.xlu0 %v770, 40
      %v817 = vpop.permute.xlu0 %816
      %818 = vrot.lane.b32.xlu0 %v773, 40
      %v819 = vpop.permute.xlu0 %818
      %820 = vrot.lane.b32.xlu0 %v776, 40
      %v821 = vpop.permute.xlu0 %820
      %822 = vrot.lane.b32.xlu0 %v779, 40
      %v823 = vpop.permute.xlu0 %822
      %824 = vrot.lane.b32.xlu0 %v782, 40
      %v825 = vpop.permute.xlu0 %824
      %826 = vrot.lane.b32.xlu0 %v785, 40
      %v827 = vpop.permute.xlu0 %826
      %828 = vrot.lane.b32.xlu0 %v788, 40
      %v829 = vpop.permute.xlu0 %828
      %830 = vrot.lane.b32.xlu0 %v791, 40
      %v831 = vpop.permute.xlu0 %830
      %832 = vrot.lane.b32.xlu0 %v794, 40
      %v833 = vpop.permute.xlu0 %832
      %834 = vrot.lane.b32.xlu0 %v797, 40
      %v835 = vpop.permute.xlu0 %834
      %836 = vrot.lane.b32.xlu0 %v800, 40
      %v837 = vpop.permute.xlu0 %836
      %838 = vrot.lane.b32.xlu0 %v803, 40
      %v839 = vpop.permute.xlu0 %838
      %840 = vrot.lane.b32.xlu0 %v806, 40
      %v841 = vpop.permute.xlu0 %840
      %842 = vrot.lane.b32.xlu0 %v809, 40
      %v843 = vpop.permute.xlu0 %842
      %844 = vrot.lane.b32.xlu0 %v812, 40
      %v845 = vpop.permute.xlu0 %844
      %846 = vrot.lane.b32.xlu0 %v815, 40
      %v847 = vpop.permute.xlu0 %846
      %v880 = vunpack.c.l.b16 %v237
      %v881 = vunpack.c.l.b16 %v238
      %v882 = vunpack.c.l.b16 %v239
      %v883 = vunpack.c.l.b16 %v240
      %v884 = vunpack.c.l.b16 %v241
      %v885 = vunpack.c.l.b16 %v242
      %v886 = vunpack.c.l.b16 %v243
      %v887 = vunpack.c.l.b16 %v244
      %v888 = vunpack.c.l.b16 %v245
      %v889 = vunpack.c.l.b16 %v246
      %v890 = vunpack.c.l.b16 %v247
      %v891 = vunpack.c.l.b16 %v248
      %v892 = vunpack.c.l.b16 %v249
      %v893 = vunpack.c.l.b16 %v250
      %v894 = vunpack.c.l.b16 %v251
      %v895 = vunpack.c.l.b16 %v252
      %v896 = vunpack.c.l.b16 %v253
      %v897 = vunpack.c.l.b16 %v254
      %v898 = vunpack.c.l.b16 %v255
      %v899 = vunpack.c.l.b16 %v256
      %v900 = vunpack.c.l.b16 %v257
      %v901 = vunpack.c.l.b16 %v258
      %v902 = vunpack.c.l.b16 %v259
      %v903 = vunpack.c.l.b16 %v260
      %v904 = vunpack.c.l.b16 %v261
      %v905 = vunpack.c.l.b16 %v262
      %v906 = vunpack.c.l.b16 %v263
      %v907 = vunpack.c.l.b16 %v264
      %v908 = vunpack.c.l.b16 %v265
      %v909 = vunpack.c.l.b16 %v266
      %v910 = vunpack.c.l.b16 %v267
      %v911 = vunpack.c.l.b16 %v268
      %v912 = vpack.c.b16 %v881, %v880
      %v913 = vpack.c.b16 %v883, %v882
      %v914 = vpack.c.b16 %v885, %v884
      %v915 = vpack.c.b16 %v887, %v886
      %v916 = vpack.c.b16 %v889, %v888
      %v917 = vpack.c.b16 %v891, %v890
      %v918 = vpack.c.b16 %v893, %v892
      %v919 = vpack.c.b16 %v895, %v894
      %v920 = vpack.c.b16 %v897, %v896
      %v921 = vpack.c.b16 %v899, %v898
      %v922 = vpack.c.b16 %v901, %v900
      %v923 = vpack.c.b16 %v903, %v902
      %v924 = vpack.c.b16 %v905, %v904
      %v925 = vpack.c.b16 %v907, %v906
      %v926 = vpack.c.b16 %v909, %v908
      %v927 = vpack.c.b16 %v911, %v910
      %928 = vrot.lane.b32.xlu0 %v912, 60
      %v929 = vpop.permute.xlu0 %928
      %930 = vrot.lane.b32.xlu0 %v913, 60
      %v931 = vpop.permute.xlu0 %930
      %932 = vrot.lane.b32.xlu0 %v914, 60
      %v933 = vpop.permute.xlu0 %932
      %934 = vrot.lane.b32.xlu0 %v915, 60
      %v935 = vpop.permute.xlu0 %934
      %936 = vrot.lane.b32.xlu0 %v916, 60
      %v937 = vpop.permute.xlu0 %936
      %938 = vrot.lane.b32.xlu0 %v917, 60
      %v939 = vpop.permute.xlu0 %938
      %940 = vrot.lane.b32.xlu0 %v918, 60
      %v941 = vpop.permute.xlu0 %940
      %942 = vrot.lane.b32.xlu0 %v919, 60
      %v943 = vpop.permute.xlu0 %942
      %944 = vrot.lane.b32.xlu0 %v920, 60
      %v945 = vpop.permute.xlu0 %944
      %946 = vrot.lane.b32.xlu0 %v921, 60
      %v947 = vpop.permute.xlu0 %946
      %948 = vrot.lane.b32.xlu0 %v922, 60
      %v949 = vpop.permute.xlu0 %948
      %950 = vrot.lane.b32.xlu0 %v923, 60
      %v951 = vpop.permute.xlu0 %950
      %952 = vrot.lane.b32.xlu0 %v924, 60
      %v953 = vpop.permute.xlu0 %952
      %954 = vrot.lane.b32.xlu0 %v925, 60
      %v955 = vpop.permute.xlu0 %954
      %956 = vrot.lane.b32.xlu0 %v926, 60
      %v957 = vpop.permute.xlu0 %956
      %958 = vrot.lane.b32.xlu0 %v927, 60
      %v959 = vpop.permute.xlu0 %958
      %v976 = vunpack.c.l.b16 %v269
      %v977 = vunpack.c.l.b16 %v270
      %v978 = vunpack.c.l.b16 %v271
      %v979 = vunpack.c.l.b16 %v272
      %v980 = vunpack.c.l.b16 %v273
      %v981 = vunpack.c.l.b16 %v274
      %v982 = vunpack.c.l.b16 %v275
      %v983 = vunpack.c.l.b16 %v276
      %v984 = vunpack.c.l.b16 %v277
      %v985 = vunpack.c.l.b16 %v278
      %v986 = vunpack.c.l.b16 %v279
      %v987 = vunpack.c.l.b16 %v280
      %v988 = vunpack.c.l.b16 %v281
      %v989 = vunpack.c.l.b16 %v282
      %v990 = vunpack.c.l.b16 %v283
      %v991 = vunpack.c.l.b16 %v284
      %v992 = vpack.c.b16 %v976, %v976
      %v993 = vpack.c.b16 %v977, %v977
      %v994 = vpack.c.b16 %v978, %v978
      %v995 = vpack.c.b16 %v979, %v979
      %v996 = vpack.c.b16 %v980, %v980
      %v997 = vpack.c.b16 %v981, %v981
      %v998 = vpack.c.b16 %v982, %v982
      %v999 = vpack.c.b16 %v983, %v983
      %v1000 = vpack.c.b16 %v984, %v984
      %v1001 = vpack.c.b16 %v985, %v985
      %v1002 = vpack.c.b16 %v986, %v986
      %v1003 = vpack.c.b16 %v987, %v987
      %v1004 = vpack.c.b16 %v988, %v988
      %v1005 = vpack.c.b16 %v989, %v989
      %v1006 = vpack.c.b16 %v990, %v990
      %v1007 = vpack.c.b16 %v991, %v991
      %v1009 = vshrl.u32 %v912, 16
      %v1011 = vshll.u32 %v912, 16
      %v1013 = vrot.slane %v1011, 1
      %v1014 = vor.u32 %v1009, %v1013
      %v1016 = vshll.u32 %v992, 16
      %v1018 = vrot.slane %v1016, 1
      %v1019 = vsel %vm494, %v1014, %v1018
      %v1021 = vshrl.u32 %v913, 16
      %v1023 = vshll.u32 %v913, 16
      %v1025 = vrot.slane %v1023, 1
      %v1026 = vor.u32 %v1021, %v1025
      %v1028 = vshll.u32 %v993, 16
      %v1030 = vrot.slane %v1028, 1
      %v1031 = vsel %vm494, %v1026, %v1030
      %v1033 = vshrl.u32 %v914, 16
      %v1035 = vshll.u32 %v914, 16
      %v1037 = vrot.slane %v1035, 1
      %v1038 = vor.u32 %v1033, %v1037
      %v1040 = vshll.u32 %v994, 16
      %v1042 = vrot.slane %v1040, 1
      %v1043 = vsel %vm494, %v1038, %v1042
      %v1045 = vshrl.u32 %v915, 16
      %v1047 = vshll.u32 %v915, 16
      %v1049 = vrot.slane %v1047, 1
      %v1050 = vor.u32 %v1045, %v1049
      %v1052 = vshll.u32 %v995, 16
      %v1054 = vrot.slane %v1052, 1
      %v1055 = vsel %vm494, %v1050, %v1054
      %v1057 = vshrl.u32 %v916, 16
      %v1059 = vshll.u32 %v916, 16
      %v1061 = vrot.slane %v1059, 1
      %v1062 = vor.u32 %v1057, %v1061
      %v1064 = vshll.u32 %v996, 16
      %v1066 = vrot.slane %v1064, 1
      %v1067 = vsel %vm494, %v1062, %v1066
      %v1069 = vshrl.u32 %v917, 16
      %v1071 = vshll.u32 %v917, 16
      %v1073 = vrot.slane %v1071, 1
      %v1074 = vor.u32 %v1069, %v1073
      %v1076 = vshll.u32 %v997, 16
      %v1078 = vrot.slane %v1076, 1
      %v1079 = vsel %vm494, %v1074, %v1078
      %v1081 = vshrl.u32 %v918, 16
      %v1083 = vshll.u32 %v918, 16
      %v1085 = vrot.slane %v1083, 1
      %v1086 = vor.u32 %v1081, %v1085
      %v1088 = vshll.u32 %v998, 16
      %v1090 = vrot.slane %v1088, 1
      %v1091 = vsel %vm494, %v1086, %v1090
      %v1093 = vshrl.u32 %v919, 16
      %v1095 = vshll.u32 %v919, 16
      %v1097 = vrot.slane %v1095, 1
      %v1098 = vor.u32 %v1093, %v1097
      %v1100 = vshll.u32 %v999, 16
      %v1102 = vrot.slane %v1100, 1
      %v1103 = vsel %vm494, %v1098, %v1102
      %v1105 = vshrl.u32 %v920, 16
      %v1107 = vshll.u32 %v920, 16
      %v1109 = vrot.slane %v1107, 1
      %v1110 = vor.u32 %v1105, %v1109
      %v1112 = vshll.u32 %v1000, 16
      %v1114 = vrot.slane %v1112, 1
      %v1115 = vsel %vm494, %v1110, %v1114
      %v1117 = vshrl.u32 %v921, 16
      %v1119 = vshll.u32 %v921, 16
      %v1121 = vrot.slane %v1119, 1
      %v1122 = vor.u32 %v1117, %v1121
      %v1124 = vshll.u32 %v1001, 16
      %v1126 = vrot.slane %v1124, 1
      %v1127 = vsel %vm494, %v1122, %v1126
      %v1129 = vshrl.u32 %v922, 16
      %v1131 = vshll.u32 %v922, 16
      %v1133 = vrot.slane %v1131, 1
      %v1134 = vor.u32 %v1129, %v1133
      %v1136 = vshll.u32 %v1002, 16
      %v1138 = vrot.slane %v1136, 1
      %v1139 = vsel %vm494, %v1134, %v1138
      %v1141 = vshrl.u32 %v923, 16
      %v1143 = vshll.u32 %v923, 16
      %v1145 = vrot.slane %v1143, 1
      %v1146 = vor.u32 %v1141, %v1145
      %v1148 = vshll.u32 %v1003, 16
      %v1150 = vrot.slane %v1148, 1
      %v1151 = vsel %vm494, %v1146, %v1150
      %v1153 = vshrl.u32 %v924, 16
      %v1155 = vshll.u32 %v924, 16
      %v1157 = vrot.slane %v1155, 1
      %v1158 = vor.u32 %v1153, %v1157
      %v1160 = vshll.u32 %v1004, 16
      %v1162 = vrot.slane %v1160, 1
      %v1163 = vsel %vm494, %v1158, %v1162
      %v1165 = vshrl.u32 %v925, 16
      %v1167 = vshll.u32 %v925, 16
      %v1169 = vrot.slane %v1167, 1
      %v1170 = vor.u32 %v1165, %v1169
      %v1172 = vshll.u32 %v1005, 16
      %v1174 = vrot.slane %v1172, 1
      %v1175 = vsel %vm494, %v1170, %v1174
      %v1177 = vshrl.u32 %v926, 16
      %v1179 = vshll.u32 %v926, 16
      %v1181 = vrot.slane %v1179, 1
      %v1182 = vor.u32 %v1177, %v1181
      %v1184 = vshll.u32 %v1006, 16
      %v1186 = vrot.slane %v1184, 1
      %v1187 = vsel %vm494, %v1182, %v1186
      %v1189 = vshrl.u32 %v927, 16
      %v1191 = vshll.u32 %v927, 16
      %v1193 = vrot.slane %v1191, 1
      %v1194 = vor.u32 %v1189, %v1193
      %v1196 = vshll.u32 %v1007, 16
      %v1198 = vrot.slane %v1196, 1
      %v1199 = vsel %vm494, %v1194, %v1198
      %1200 = vrot.lane.b32.xlu0 %v1019, 80
      %v1201 = vpop.permute.xlu0 %1200
      %1202 = vrot.lane.b32.xlu0 %v1031, 80
      %v1203 = vpop.permute.xlu0 %1202
      %1204 = vrot.lane.b32.xlu0 %v1043, 80
      %v1205 = vpop.permute.xlu0 %1204
      %1206 = vrot.lane.b32.xlu0 %v1055, 80
      %v1207 = vpop.permute.xlu0 %1206
      %1208 = vrot.lane.b32.xlu0 %v1067, 80
      %v1209 = vpop.permute.xlu0 %1208
      %1210 = vrot.lane.b32.xlu0 %v1079, 80
      %v1211 = vpop.permute.xlu0 %1210
      %1212 = vrot.lane.b32.xlu0 %v1091, 80
      %v1213 = vpop.permute.xlu0 %1212
      %1214 = vrot.lane.b32.xlu0 %v1103, 80
      %v1215 = vpop.permute.xlu0 %1214
      %1216 = vrot.lane.b32.xlu0 %v1115, 80
      %v1217 = vpop.permute.xlu0 %1216
      %1218 = vrot.lane.b32.xlu0 %v1127, 80
      %v1219 = vpop.permute.xlu0 %1218
      %1220 = vrot.lane.b32.xlu0 %v1139, 80
      %v1221 = vpop.permute.xlu0 %1220
      %1222 = vrot.lane.b32.xlu0 %v1151, 80
      %v1223 = vpop.permute.xlu0 %1222
      %1224 = vrot.lane.b32.xlu0 %v1163, 80
      %v1225 = vpop.permute.xlu0 %1224
      %1226 = vrot.lane.b32.xlu0 %v1175, 80
      %v1227 = vpop.permute.xlu0 %1226
      %1228 = vrot.lane.b32.xlu0 %v1187, 80
      %v1229 = vpop.permute.xlu0 %1228
      %1230 = vrot.lane.b32.xlu0 %v1199, 80
      %v1231 = vpop.permute.xlu0 %1230
      %v1248 = vunpack.c.l.b16 %v285
      %v1249 = vunpack.c.l.b16 %v286
      %v1250 = vunpack.c.l.b16 %v287
      %v1251 = vunpack.c.l.b16 %v288
      %v1252 = vunpack.c.l.b16 %v289
      %v1253 = vunpack.c.l.b16 %v290
      %v1254 = vunpack.c.l.b16 %v291
      %v1255 = vunpack.c.l.b16 %v292
      %v1256 = vunpack.c.l.b16 %v293
      %v1257 = vunpack.c.l.b16 %v294
      %v1258 = vunpack.c.l.b16 %v295
      %v1259 = vunpack.c.l.b16 %v296
      %v1260 = vunpack.c.l.b16 %v297
      %v1261 = vunpack.c.l.b16 %v298
      %v1262 = vunpack.c.l.b16 %v299
      %v1263 = vunpack.c.l.b16 %v300
      %v1264 = vpack.c.b16 %v881, %v1248
      %v1265 = vpack.c.b16 %v883, %v1249
      %v1266 = vpack.c.b16 %v885, %v1250
      %v1267 = vpack.c.b16 %v887, %v1251
      %v1268 = vpack.c.b16 %v889, %v1252
      %v1269 = vpack.c.b16 %v891, %v1253
      %v1270 = vpack.c.b16 %v893, %v1254
      %v1271 = vpack.c.b16 %v895, %v1255
      %v1272 = vpack.c.b16 %v897, %v1256
      %v1273 = vpack.c.b16 %v899, %v1257
      %v1274 = vpack.c.b16 %v901, %v1258
      %v1275 = vpack.c.b16 %v903, %v1259
      %v1276 = vpack.c.b16 %v905, %v1260
      %v1277 = vpack.c.b16 %v907, %v1261
      %v1278 = vpack.c.b16 %v909, %v1262
      %v1279 = vpack.c.b16 %v911, %v1263
      %v1280 = vrot.slane %v1264, 1
      %v1281 = vrot.slane %v992, 1
      %v1282 = vsel %vm767, %v1280, %v1281
      %v1283 = vrot.slane %v1265, 1
      %v1284 = vrot.slane %v993, 1
      %v1285 = vsel %vm767, %v1283, %v1284
      %v1286 = vrot.slane %v1266, 1
      %v1287 = vrot.slane %v994, 1
      %v1288 = vsel %vm767, %v1286, %v1287
      %v1289 = vrot.slane %v1267, 1
      %v1290 = vrot.slane %v995, 1
      %v1291 = vsel %vm767, %v1289, %v1290
      %v1292 = vrot.slane %v1268, 1
      %v1293 = vrot.slane %v996, 1
      %v1294 = vsel %vm767, %v1292, %v1293
      %v1295 = vrot.slane %v1269, 1
      %v1296 = vrot.slane %v997, 1
      %v1297 = vsel %vm767, %v1295, %v1296
      %v1298 = vrot.slane %v1270, 1
      %v1299 = vrot.slane %v998, 1
      %v1300 = vsel %vm767, %v1298, %v1299
      %v1301 = vrot.slane %v1271, 1
      %v1302 = vrot.slane %v999, 1
      %v1303 = vsel %vm767, %v1301, %v1302
      %v1304 = vrot.slane %v1272, 1
      %v1305 = vrot.slane %v1000, 1
      %v1306 = vsel %vm767, %v1304, %v1305
      %v1307 = vrot.slane %v1273, 1
      %v1308 = vrot.slane %v1001, 1
      %v1309 = vsel %vm767, %v1307, %v1308
      %v1310 = vrot.slane %v1274, 1
      %v1311 = vrot.slane %v1002, 1
      %v1312 = vsel %vm767, %v1310, %v1311
      %v1313 = vrot.slane %v1275, 1
      %v1314 = vrot.slane %v1003, 1
      %v1315 = vsel %vm767, %v1313, %v1314
      %v1316 = vrot.slane %v1276, 1
      %v1317 = vrot.slane %v1004, 1
      %v1318 = vsel %vm767, %v1316, %v1317
      %v1319 = vrot.slane %v1277, 1
      %v1320 = vrot.slane %v1005, 1
      %v1321 = vsel %vm767, %v1319, %v1320
      %v1322 = vrot.slane %v1278, 1
      %v1323 = vrot.slane %v1006, 1
      %v1324 = vsel %vm767, %v1322, %v1323
      %v1325 = vrot.slane %v1279, 1
      %v1326 = vrot.slane %v1007, 1
      %v1327 = vsel %vm767, %v1325, %v1326
      %1328 = vrot.lane.b32.xlu0 %v1282, 100
      %v1329 = vpop.permute.xlu0 %1328
      %1330 = vrot.lane.b32.xlu0 %v1285, 100
      %v1331 = vpop.permute.xlu0 %1330
      %1332 = vrot.lane.b32.xlu0 %v1288, 100
      %v1333 = vpop.permute.xlu0 %1332
      %1334 = vrot.lane.b32.xlu0 %v1291, 100
      %v1335 = vpop.permute.xlu0 %1334
      %1336 = vrot.lane.b32.xlu0 %v1294, 100
      %v1337 = vpop.permute.xlu0 %1336
      %1338 = vrot.lane.b32.xlu0 %v1297, 100
      %v1339 = vpop.permute.xlu0 %1338
      %1340 = vrot.lane.b32.xlu0 %v1300, 100
      %v1341 = vpop.permute.xlu0 %1340
      %1342 = vrot.lane.b32.xlu0 %v1303, 100
      %v1343 = vpop.permute.xlu0 %1342
      %1344 = vrot.lane.b32.xlu0 %v1306, 100
      %v1345 = vpop.permute.xlu0 %1344
      %1346 = vrot.lane.b32.xlu0 %v1309, 100
      %v1347 = vpop.permute.xlu0 %1346
      %1348 = vrot.lane.b32.xlu0 %v1312, 100
      %v1349 = vpop.permute.xlu0 %1348
      %1350 = vrot.lane.b32.xlu0 %v1315, 100
      %v1351 = vpop.permute.xlu0 %1350
      %1352 = vrot.lane.b32.xlu0 %v1318, 100
      %v1353 = vpop.permute.xlu0 %1352
      %1354 = vrot.lane.b32.xlu0 %v1321, 100
      %v1355 = vpop.permute.xlu0 %1354
      %1356 = vrot.lane.b32.xlu0 %v1324, 100
      %v1357 = vpop.permute.xlu0 %1356
      %1358 = vrot.lane.b32.xlu0 %v1327, 100
      %v1359 = vpop.permute.xlu0 %1358
      %v1392 = vunpack.c.l.b16 %v302
      %v1393 = vunpack.c.l.b16 %v303
      %v1394 = vunpack.c.l.b16 %v304
      %v1395 = vunpack.c.l.b16 %v305
      %v1396 = vunpack.c.l.b16 %v306
      %v1397 = vunpack.c.l.b16 %v307
      %v1398 = vunpack.c.l.b16 %v308
      %v1399 = vunpack.c.l.b16 %v309
      %v1400 = vunpack.c.l.b16 %v310
      %v1401 = vunpack.c.l.b16 %v311
      %v1402 = vunpack.c.l.b16 %v312
      %v1403 = vunpack.c.l.b16 %v313
      %v1404 = vunpack.c.l.b16 %v314
      %v1405 = vunpack.c.l.b16 %v315
      %v1406 = vunpack.c.l.b16 %v316
      %v1407 = vunpack.c.l.b16 %v317
      %v1408 = vunpack.c.l.b16 %v318
      %v1409 = vunpack.c.l.b16 %v319
      %v1410 = vunpack.c.l.b16 %v320
      %v1411 = vunpack.c.l.b16 %v321
      %v1412 = vunpack.c.l.b16 %v322
      %v1413 = vunpack.c.l.b16 %v323
      %v1414 = vunpack.c.l.b16 %v324
      %v1415 = vunpack.c.l.b16 %v325
      %v1416 = vunpack.c.l.b16 %v326
      %v1417 = vunpack.c.l.b16 %v327
      %v1418 = vunpack.c.l.b16 %v328
      %v1419 = vunpack.c.l.b16 %v329
      %v1420 = vunpack.c.l.b16 %v330
      %v1421 = vunpack.c.l.b16 %v331
      %v1422 = vunpack.c.l.b16 %v332
      %v1423 = vunpack.c.l.b16 %v333
      %v1424 = vpack.c.b16 %v1393, %v1392
      %v1425 = vpack.c.b16 %v1395, %v1394
      %v1426 = vpack.c.b16 %v1397, %v1396
      %v1427 = vpack.c.b16 %v1399, %v1398
      %v1428 = vpack.c.b16 %v1401, %v1400
      %v1429 = vpack.c.b16 %v1403, %v1402
      %v1430 = vpack.c.b16 %v1405, %v1404
      %v1431 = vpack.c.b16 %v1407, %v1406
      %v1432 = vpack.c.b16 %v1409, %v1408
      %v1433 = vpack.c.b16 %v1411, %v1410
      %v1434 = vpack.c.b16 %v1413, %v1412
      %v1435 = vpack.c.b16 %v1415, %v1414
      %v1436 = vpack.c.b16 %v1417, %v1416
      %v1437 = vpack.c.b16 %v1419, %v1418
      %v1438 = vpack.c.b16 %v1421, %v1420
      %v1439 = vpack.c.b16 %v1423, %v1422
      %1440 = vrot.lane.b32.xlu0 %v1424, 120
      %v1441 = vpop.permute.xlu0 %1440
      %1442 = vrot.lane.b32.xlu0 %v1425, 120
      %v1443 = vpop.permute.xlu0 %1442
      %1444 = vrot.lane.b32.xlu0 %v1426, 120
      %v1445 = vpop.permute.xlu0 %1444
      %1446 = vrot.lane.b32.xlu0 %v1427, 120
      %v1447 = vpop.permute.xlu0 %1446
      %1448 = vrot.lane.b32.xlu0 %v1428, 120
      %v1449 = vpop.permute.xlu0 %1448
      %1450 = vrot.lane.b32.xlu0 %v1429, 120
      %v1451 = vpop.permute.xlu0 %1450
      %1452 = vrot.lane.b32.xlu0 %v1430, 120
      %v1453 = vpop.permute.xlu0 %1452
      %1454 = vrot.lane.b32.xlu0 %v1431, 120
      %v1455 = vpop.permute.xlu0 %1454
      %1456 = vrot.lane.b32.xlu0 %v1432, 120
      %v1457 = vpop.permute.xlu0 %1456
      %1458 = vrot.lane.b32.xlu0 %v1433, 120
      %v1459 = vpop.permute.xlu0 %1458
      %1460 = vrot.lane.b32.xlu0 %v1434, 120
      %v1461 = vpop.permute.xlu0 %1460
      %1462 = vrot.lane.b32.xlu0 %v1435, 120
      %v1463 = vpop.permute.xlu0 %1462
      %1464 = vrot.lane.b32.xlu0 %v1436, 120
      %v1465 = vpop.permute.xlu0 %1464
      %1466 = vrot.lane.b32.xlu0 %v1437, 120
      %v1467 = vpop.permute.xlu0 %1466
      %1468 = vrot.lane.b32.xlu0 %v1438, 120
      %v1469 = vpop.permute.xlu0 %1468
      %1470 = vrot.lane.b32.xlu0 %v1439, 120
      %v1471 = vpop.permute.xlu0 %1470
      %v1488 = vunpack.c.l.b16 %v334
      %v1489 = vunpack.c.l.b16 %v335
      %v1490 = vunpack.c.l.b16 %v336
      %v1491 = vunpack.c.l.b16 %v337
      %v1492 = vunpack.c.l.b16 %v338
      %v1493 = vunpack.c.l.b16 %v339
      %v1494 = vunpack.c.l.b16 %v340
      %v1495 = vunpack.c.l.b16 %v341
      %v1496 = vunpack.c.l.b16 %v342
      %v1497 = vunpack.c.l.b16 %v343
      %v1498 = vunpack.c.l.b16 %v344
      %v1499 = vunpack.c.l.b16 %v345
      %v1500 = vunpack.c.l.b16 %v346
      %v1501 = vunpack.c.l.b16 %v347
      %v1502 = vunpack.c.l.b16 %v348
      %v1503 = vunpack.c.l.b16 %v349
      %v1504 = vpack.c.b16 %v1488, %v1488
      %v1505 = vpack.c.b16 %v1489, %v1489
      %v1506 = vpack.c.b16 %v1490, %v1490
      %v1507 = vpack.c.b16 %v1491, %v1491
      %v1508 = vpack.c.b16 %v1492, %v1492
      %v1509 = vpack.c.b16 %v1493, %v1493
      %v1510 = vpack.c.b16 %v1494, %v1494
      %v1511 = vpack.c.b16 %v1495, %v1495
      %v1512 = vpack.c.b16 %v1496, %v1496
      %v1513 = vpack.c.b16 %v1497, %v1497
      %v1514 = vpack.c.b16 %v1498, %v1498
      %v1515 = vpack.c.b16 %v1499, %v1499
      %v1516 = vpack.c.b16 %v1500, %v1500
      %v1517 = vpack.c.b16 %v1501, %v1501
      %v1518 = vpack.c.b16 %v1502, %v1502
      %v1519 = vpack.c.b16 %v1503, %v1503
      %v1521 = vshrl.u32 %v1424, 16
      %v1523 = vshll.u32 %v1424, 16
      %v1525 = vrot.slane %v1523, 1
      %v1526 = vor.u32 %v1521, %v1525
      %v1528 = vshll.u32 %v1504, 16
      %v1530 = vrot.slane %v1528, 1
      %v1531 = vsel %vm494, %v1526, %v1530
      %v1533 = vshrl.u32 %v1425, 16
      %v1535 = vshll.u32 %v1425, 16
      %v1537 = vrot.slane %v1535, 1
      %v1538 = vor.u32 %v1533, %v1537
      %v1540 = vshll.u32 %v1505, 16
      %v1542 = vrot.slane %v1540, 1
      %v1543 = vsel %vm494, %v1538, %v1542
      %v1545 = vshrl.u32 %v1426, 16
      %v1547 = vshll.u32 %v1426, 16
      %v1549 = vrot.slane %v1547, 1
      %v1550 = vor.u32 %v1545, %v1549
      %v1552 = vshll.u32 %v1506, 16
      %v1554 = vrot.slane %v1552, 1
      %v1555 = vsel %vm494, %v1550, %v1554
      %v1557 = vshrl.u32 %v1427, 16
      %v1559 = vshll.u32 %v1427, 16
      %v1561 = vrot.slane %v1559, 1
      %v1562 = vor.u32 %v1557, %v1561
      %v1564 = vshll.u32 %v1507, 16
      %v1566 = vrot.slane %v1564, 1
      %v1567 = vsel %vm494, %v1562, %v1566
      %v1569 = vshrl.u32 %v1428, 16
      %v1571 = vshll.u32 %v1428, 16
      %v1573 = vrot.slane %v1571, 1
      %v1574 = vor.u32 %v1569, %v1573
      %v1576 = vshll.u32 %v1508, 16
      %v1578 = vrot.slane %v1576, 1
      %v1579 = vsel %vm494, %v1574, %v1578
      %v1581 = vshrl.u32 %v1429, 16
      %v1583 = vshll.u32 %v1429, 16
      %v1585 = vrot.slane %v1583, 1
      %v1586 = vor.u32 %v1581, %v1585
      %v1588 = vshll.u32 %v1509, 16
      %v1590 = vrot.slane %v1588, 1
      %v1591 = vsel %vm494, %v1586, %v1590
      %v1593 = vshrl.u32 %v1430, 16
      %v1595 = vshll.u32 %v1430, 16
      %v1597 = vrot.slane %v1595, 1
      %v1598 = vor.u32 %v1593, %v1597
      %v1600 = vshll.u32 %v1510, 16
      %v1602 = vrot.slane %v1600, 1
      %v1603 = vsel %vm494, %v1598, %v1602
      %v1605 = vshrl.u32 %v1431, 16
      %v1607 = vshll.u32 %v1431, 16
      %v1609 = vrot.slane %v1607, 1
      %v1610 = vor.u32 %v1605, %v1609
      %v1612 = vshll.u32 %v1511, 16
      %v1614 = vrot.slane %v1612, 1
      %v1615 = vsel %vm494, %v1610, %v1614
      %v1617 = vshrl.u32 %v1432, 16
      %v1619 = vshll.u32 %v1432, 16
      %v1621 = vrot.slane %v1619, 1
      %v1622 = vor.u32 %v1617, %v1621
      %v1624 = vshll.u32 %v1512, 16
      %v1626 = vrot.slane %v1624, 1
      %v1627 = vsel %vm494, %v1622, %v1626
      %v1629 = vshrl.u32 %v1433, 16
      %v1631 = vshll.u32 %v1433, 16
      %v1633 = vrot.slane %v1631, 1
      %v1634 = vor.u32 %v1629, %v1633
      %v1636 = vshll.u32 %v1513, 16
      %v1638 = vrot.slane %v1636, 1
      %v1639 = vsel %vm494, %v1634, %v1638
      %v1641 = vshrl.u32 %v1434, 16
      %v1643 = vshll.u32 %v1434, 16
      %v1645 = vrot.slane %v1643, 1
      %v1646 = vor.u32 %v1641, %v1645
      %v1648 = vshll.u32 %v1514, 16
      %v1650 = vrot.slane %v1648, 1
      %v1651 = vsel %vm494, %v1646, %v1650
      %v1653 = vshrl.u32 %v1435, 16
      %v1655 = vshll.u32 %v1435, 16
      %v1657 = vrot.slane %v1655, 1
      %v1658 = vor.u32 %v1653, %v1657
      %v1660 = vshll.u32 %v1515, 16
      %v1662 = vrot.slane %v1660, 1
      %v1663 = vsel %vm494, %v1658, %v1662
      %v1665 = vshrl.u32 %v1436, 16
      %v1667 = vshll.u32 %v1436, 16
      %v1669 = vrot.slane %v1667, 1
      %v1670 = vor.u32 %v1665, %v1669
      %v1672 = vshll.u32 %v1516, 16
      %v1674 = vrot.slane %v1672, 1
      %v1675 = vsel %vm494, %v1670, %v1674
      %v1677 = vshrl.u32 %v1437, 16
      %v1679 = vshll.u32 %v1437, 16
      %v1681 = vrot.slane %v1679, 1
      %v1682 = vor.u32 %v1677, %v1681
      %v1684 = vshll.u32 %v1517, 16
      %v1686 = vrot.slane %v1684, 1
      %v1687 = vsel %vm494, %v1682, %v1686
      %v1689 = vshrl.u32 %v1438, 16
      %v1691 = vshll.u32 %v1438, 16
      %v1693 = vrot.slane %v1691, 1
      %v1694 = vor.u32 %v1689, %v1693
      %v1696 = vshll.u32 %v1518, 16
      %v1698 = vrot.slane %v1696, 1
      %v1699 = vsel %vm494, %v1694, %v1698
      %v1701 = vshrl.u32 %v1439, 16
      %v1703 = vshll.u32 %v1439, 16
      %v1705 = vrot.slane %v1703, 1
      %v1706 = vor.u32 %v1701, %v1705
      %v1708 = vshll.u32 %v1519, 16
      %v1710 = vrot.slane %v1708, 1
      %v1711 = vsel %vm494, %v1706, %v1710
      %1712 = vrot.lane.b32.xlu0 %v1531, 12
      %v1713 = vpop.permute.xlu0 %1712
      %1714 = vrot.lane.b32.xlu0 %v1543, 12
      %v1715 = vpop.permute.xlu0 %1714
      %1716 = vrot.lane.b32.xlu0 %v1555, 12
      %v1717 = vpop.permute.xlu0 %1716
      %1718 = vrot.lane.b32.xlu0 %v1567, 12
      %v1719 = vpop.permute.xlu0 %1718
      %1720 = vrot.lane.b32.xlu0 %v1579, 12
      %v1721 = vpop.permute.xlu0 %1720
      %1722 = vrot.lane.b32.xlu0 %v1591, 12
      %v1723 = vpop.permute.xlu0 %1722
      %1724 = vrot.lane.b32.xlu0 %v1603, 12
      %v1725 = vpop.permute.xlu0 %1724
      %1726 = vrot.lane.b32.xlu0 %v1615, 12
      %v1727 = vpop.permute.xlu0 %1726
      %1728 = vrot.lane.b32.xlu0 %v1627, 12
      %v1729 = vpop.permute.xlu0 %1728
      %1730 = vrot.lane.b32.xlu0 %v1639, 12
      %v1731 = vpop.permute.xlu0 %1730
      %1732 = vrot.lane.b32.xlu0 %v1651, 12
      %v1733 = vpop.permute.xlu0 %1732
      %1734 = vrot.lane.b32.xlu0 %v1663, 12
      %v1735 = vpop.permute.xlu0 %1734
      %1736 = vrot.lane.b32.xlu0 %v1675, 12
      %v1737 = vpop.permute.xlu0 %1736
      %1738 = vrot.lane.b32.xlu0 %v1687, 12
      %v1739 = vpop.permute.xlu0 %1738
      %1740 = vrot.lane.b32.xlu0 %v1699, 12
      %v1741 = vpop.permute.xlu0 %1740
      %1742 = vrot.lane.b32.xlu0 %v1711, 12
      %v1743 = vpop.permute.xlu0 %1742
      %v1760 = vunpack.c.l.b16 %v350
      %v1761 = vunpack.c.l.b16 %v351
      %v1762 = vunpack.c.l.b16 %v352
      %v1763 = vunpack.c.l.b16 %v353
      %v1764 = vunpack.c.l.b16 %v354
      %v1765 = vunpack.c.l.b16 %v355
      %v1766 = vunpack.c.l.b16 %v356
      %v1767 = vunpack.c.l.b16 %v357
      %v1768 = vunpack.c.l.b16 %v358
      %v1769 = vunpack.c.l.b16 %v359
      %v1770 = vunpack.c.l.b16 %v360
      %v1771 = vunpack.c.l.b16 %v361
      %v1772 = vunpack.c.l.b16 %v362
      %v1773 = vunpack.c.l.b16 %v363
      %v1774 = vunpack.c.l.b16 %v364
      %v1775 = vunpack.c.l.b16 %v365
      %v1776 = vpack.c.b16 %v1393, %v1760
      %v1777 = vpack.c.b16 %v1395, %v1761
      %v1778 = vpack.c.b16 %v1397, %v1762
      %v1779 = vpack.c.b16 %v1399, %v1763
      %v1780 = vpack.c.b16 %v1401, %v1764
      %v1781 = vpack.c.b16 %v1403, %v1765
      %v1782 = vpack.c.b16 %v1405, %v1766
      %v1783 = vpack.c.b16 %v1407, %v1767
      %v1784 = vpack.c.b16 %v1409, %v1768
      %v1785 = vpack.c.b16 %v1411, %v1769
      %v1786 = vpack.c.b16 %v1413, %v1770
      %v1787 = vpack.c.b16 %v1415, %v1771
      %v1788 = vpack.c.b16 %v1417, %v1772
      %v1789 = vpack.c.b16 %v1419, %v1773
      %v1790 = vpack.c.b16 %v1421, %v1774
      %v1791 = vpack.c.b16 %v1423, %v1775
      %v1792 = vrot.slane %v1776, 1
      %v1793 = vrot.slane %v1504, 1
      %v1794 = vsel %vm767, %v1792, %v1793
      %v1795 = vrot.slane %v1777, 1
      %v1796 = vrot.slane %v1505, 1
      %v1797 = vsel %vm767, %v1795, %v1796
      %v1798 = vrot.slane %v1778, 1
      %v1799 = vrot.slane %v1506, 1
      %v1800 = vsel %vm767, %v1798, %v1799
      %v1801 = vrot.slane %v1779, 1
      %v1802 = vrot.slane %v1507, 1
      %v1803 = vsel %vm767, %v1801, %v1802
      %v1804 = vrot.slane %v1780, 1
      %v1805 = vrot.slane %v1508, 1
      %v1806 = vsel %vm767, %v1804, %v1805
      %v1807 = vrot.slane %v1781, 1
      %v1808 = vrot.slane %v1509, 1
      %v1809 = vsel %vm767, %v1807, %v1808
      %v1810 = vrot.slane %v1782, 1
      %v1811 = vrot.slane %v1510, 1
      %v1812 = vsel %vm767, %v1810, %v1811
      %v1813 = vrot.slane %v1783, 1
      %v1814 = vrot.slane %v1511, 1
      %v1815 = vsel %vm767, %v1813, %v1814
      %v1816 = vrot.slane %v1784, 1
      %v1817 = vrot.slane %v1512, 1
      %v1818 = vsel %vm767, %v1816, %v1817
      %v1819 = vrot.slane %v1785, 1
      %v1820 = vrot.slane %v1513, 1
      %v1821 = vsel %vm767, %v1819, %v1820
      %v1822 = vrot.slane %v1786, 1
      %v1823 = vrot.slane %v1514, 1
      %v1824 = vsel %vm767, %v1822, %v1823
      %v1825 = vrot.slane %v1787, 1
      %v1826 = vrot.slane %v1515, 1
      %v1827 = vsel %vm767, %v1825, %v1826
      %v1828 = vrot.slane %v1788, 1
      %v1829 = vrot.slane %v1516, 1
      %v1830 = vsel %vm767, %v1828, %v1829
      %v1831 = vrot.slane %v1789, 1
      %v1832 = vrot.slane %v1517, 1
      %v1833 = vsel %vm767, %v1831, %v1832
      %v1834 = vrot.slane %v1790, 1
      %v1835 = vrot.slane %v1518, 1
      %v1836 = vsel %vm767, %v1834, %v1835
      %v1837 = vrot.slane %v1791, 1
      %v1838 = vrot.slane %v1519, 1
      %v1839 = vsel %vm767, %v1837, %v1838
      %1840 = vrot.lane.b32.xlu0 %v1794, 32
      %v1841 = vpop.permute.xlu0 %1840
      %1842 = vrot.lane.b32.xlu0 %v1797, 32
      %v1843 = vpop.permute.xlu0 %1842
      %1844 = vrot.lane.b32.xlu0 %v1800, 32
      %v1845 = vpop.permute.xlu0 %1844
      %1846 = vrot.lane.b32.xlu0 %v1803, 32
      %v1847 = vpop.permute.xlu0 %1846
      %1848 = vrot.lane.b32.xlu0 %v1806, 32
      %v1849 = vpop.permute.xlu0 %1848
      %1850 = vrot.lane.b32.xlu0 %v1809, 32
      %v1851 = vpop.permute.xlu0 %1850
      %1852 = vrot.lane.b32.xlu0 %v1812, 32
      %v1853 = vpop.permute.xlu0 %1852
      %1854 = vrot.lane.b32.xlu0 %v1815, 32
      %v1855 = vpop.permute.xlu0 %1854
      %1856 = vrot.lane.b32.xlu0 %v1818, 32
      %v1857 = vpop.permute.xlu0 %1856
      %1858 = vrot.lane.b32.xlu0 %v1821, 32
      %v1859 = vpop.permute.xlu0 %1858
      %1860 = vrot.lane.b32.xlu0 %v1824, 32
      %v1861 = vpop.permute.xlu0 %1860
      %1862 = vrot.lane.b32.xlu0 %v1827, 32
      %v1863 = vpop.permute.xlu0 %1862
      %1864 = vrot.lane.b32.xlu0 %v1830, 32
      %v1865 = vpop.permute.xlu0 %1864
      %1866 = vrot.lane.b32.xlu0 %v1833, 32
      %v1867 = vpop.permute.xlu0 %1866
      %1868 = vrot.lane.b32.xlu0 %v1836, 32
      %v1869 = vpop.permute.xlu0 %1868
      %1870 = vrot.lane.b32.xlu0 %v1839, 32
      %v1871 = vpop.permute.xlu0 %1870
      %vm1872 = vcmask 162816
      %v1874 = vsel %vm1872, %v430, %v688
      %v1876 = vsel %vm1872, %v431, %v690
      %v1878 = vsel %vm1872, %v432, %v692
      %v1880 = vsel %vm1872, %v433, %v694
      %v1882 = vsel %vm1872, %v434, %v696
      %v1884 = vsel %vm1872, %v435, %v698
      %v1886 = vsel %vm1872, %v436, %v700
      %v1888 = vsel %vm1872, %v437, %v702
      %v1890 = vsel %vm1872, %v438, %v704
      %v1892 = vsel %vm1872, %v439, %v706
      %v1894 = vsel %vm1872, %v440, %v708
      %v1896 = vsel %vm1872, %v441, %v710
      %v1898 = vsel %vm1872, %v442, %v712
      %v1900 = vsel %vm1872, %v443, %v714
      %v1902 = vsel %vm1872, %v444, %v716
      %v1904 = vsel %vm1872, %v445, %v718
      %vm1905 = vcmask 326656
      %v1907 = vsel %vm1905, %v1874, %v817
      %v1909 = vsel %vm1905, %v1876, %v819
      %v1911 = vsel %vm1905, %v1878, %v821
      %v1913 = vsel %vm1905, %v1880, %v823
      %v1915 = vsel %vm1905, %v1882, %v825
      %v1917 = vsel %vm1905, %v1884, %v827
      %v1919 = vsel %vm1905, %v1886, %v829
      %v1921 = vsel %vm1905, %v1888, %v831
      %v1923 = vsel %vm1905, %v1890, %v833
      %v1925 = vsel %vm1905, %v1892, %v835
      %v1927 = vsel %vm1905, %v1894, %v837
      %v1929 = vsel %vm1905, %v1896, %v839
      %v1931 = vsel %vm1905, %v1898, %v841
      %v1933 = vsel %vm1905, %v1900, %v843
      %v1935 = vsel %vm1905, %v1902, %v845
      %v1937 = vsel %vm1905, %v1904, %v847
      %vm1938 = vcmask 490496
      %v1940 = vsel %vm1938, %v1907, %v929
      %v1942 = vsel %vm1938, %v1909, %v931
      %v1944 = vsel %vm1938, %v1911, %v933
      %v1946 = vsel %vm1938, %v1913, %v935
      %v1948 = vsel %vm1938, %v1915, %v937
      %v1950 = vsel %vm1938, %v1917, %v939
      %v1952 = vsel %vm1938, %v1919, %v941
      %v1954 = vsel %vm1938, %v1921, %v943
      %v1956 = vsel %vm1938, %v1923, %v945
      %v1958 = vsel %vm1938, %v1925, %v947
      %v1960 = vsel %vm1938, %v1927, %v949
      %v1962 = vsel %vm1938, %v1929, %v951
      %v1964 = vsel %vm1938, %v1931, %v953
      %v1966 = vsel %vm1938, %v1933, %v955
      %v1968 = vsel %vm1938, %v1935, %v957
      %v1970 = vsel %vm1938, %v1937, %v959
      %vm1971 = vcmask 654336
      %v1973 = vsel %vm1971, %v1940, %v1201
      %v1975 = vsel %vm1971, %v1942, %v1203
      %v1977 = vsel %vm1971, %v1944, %v1205
      %v1979 = vsel %vm1971, %v1946, %v1207
      %v1981 = vsel %vm1971, %v1948, %v1209
      %v1983 = vsel %vm1971, %v1950, %v1211
      %v1985 = vsel %vm1971, %v1952, %v1213
      %v1987 = vsel %vm1971, %v1954, %v1215
      %v1989 = vsel %vm1971, %v1956, %v1217
      %v1991 = vsel %vm1971, %v1958, %v1219
      %v1993 = vsel %vm1971, %v1960, %v1221
      %v1995 = vsel %vm1971, %v1962, %v1223
      %v1997 = vsel %vm1971, %v1964, %v1225
      %v1999 = vsel %vm1971, %v1966, %v1227
      %v2001 = vsel %vm1971, %v1968, %v1229
      %v2003 = vsel %vm1971, %v1970, %v1231
      %vm2004 = vcmask 818176
      %v2006 = vsel %vm2004, %v1973, %v1329
      %v2008 = vsel %vm2004, %v1975, %v1331
      %v2010 = vsel %vm2004, %v1977, %v1333
      %v2012 = vsel %vm2004, %v1979, %v1335
      %v2014 = vsel %vm2004, %v1981, %v1337
      %v2016 = vsel %vm2004, %v1983, %v1339
      %v2018 = vsel %vm2004, %v1985, %v1341
      %v2020 = vsel %vm2004, %v1987, %v1343
      %v2022 = vsel %vm2004, %v1989, %v1345
      %v2024 = vsel %vm2004, %v1991, %v1347
      %v2026 = vsel %vm2004, %v1993, %v1349
      %v2028 = vsel %vm2004, %v1995, %v1351
      %v2030 = vsel %vm2004, %v1997, %v1353
      %v2032 = vsel %vm2004, %v1999, %v1355
      %v2034 = vsel %vm2004, %v2001, %v1357
      %v2036 = vsel %vm2004, %v2003, %v1359
      %vm2037 = vcmask 982016
      %v2039 = vsel %vm2037, %v2006, %v1441
      %v2042 = vsel %vm2037, %v2008, %v1443
      %v2045 = vsel %vm2037, %v2010, %v1445
      %v2048 = vsel %vm2037, %v2012, %v1447
      %v2051 = vsel %vm2037, %v2014, %v1449
      %v2054 = vsel %vm2037, %v2016, %v1451
      %v2057 = vsel %vm2037, %v2018, %v1453
      %v2060 = vsel %vm2037, %v2020, %v1455
      %v2063 = vsel %vm2037, %v2022, %v1457
      %v2066 = vsel %vm2037, %v2024, %v1459
      %v2069 = vsel %vm2037, %v2026, %v1461
      %v2072 = vsel %vm2037, %v2028, %v1463
      %v2075 = vsel %vm2037, %v2030, %v1465
      %v2078 = vsel %vm2037, %v2032, %v1467
      %v2081 = vsel %vm2037, %v2034, %v1469
      %v2084 = vsel %vm2037, %v2036, %v1471
      %vm2086 = vcmask 97280
      %v2088 = vsel %vm2086, %v1441, %v1713
      %v2090 = vsel %vm2086, %v1443, %v1715
      %v2092 = vsel %vm2086, %v1445, %v1717
      %v2094 = vsel %vm2086, %v1447, %v1719
      %v2096 = vsel %vm2086, %v1449, %v1721
      %v2098 = vsel %vm2086, %v1451, %v1723
      %v2100 = vsel %vm2086, %v1453, %v1725
      %v2102 = vsel %vm2086, %v1455, %v1727
      %v2104 = vsel %vm2086, %v1457, %v1729
      %v2106 = vsel %vm2086, %v1459, %v1731
      %v2108 = vsel %vm2086, %v1461, %v1733
      %v2110 = vsel %vm2086, %v1463, %v1735
      %v2112 = vsel %vm2086, %v1465, %v1737
      %v2114 = vsel %vm2086, %v1467, %v1739
      %v2116 = vsel %vm2086, %v1469, %v1741
      %v2118 = vsel %vm2086, %v1471, %v1743
      %vm2119 = vcmask 261120
      %v2121 = vsel %vm2119, %v2088, %v1841
      %v2123 = vsel %vm2119, %v2090, %v1843
      %v2125 = vsel %vm2119, %v2092, %v1845
      %v2127 = vsel %vm2119, %v2094, %v1847
      %v2129 = vsel %vm2119, %v2096, %v1849
      %v2131 = vsel %vm2119, %v2098, %v1851
      %v2133 = vsel %vm2119, %v2100, %v1853
      %v2135 = vsel %vm2119, %v2102, %v1855
      %v2137 = vsel %vm2119, %v2104, %v1857
      %v2139 = vsel %vm2119, %v2106, %v1859
      %v2141 = vsel %vm2119, %v2108, %v1861
      %v2143 = vsel %vm2119, %v2110, %v1863
      %v2145 = vsel %vm2119, %v2112, %v1865
      %v2147 = vsel %vm2119, %v2114, %v1867
      %v2149 = vsel %vm2119, %v2116, %v1869
      %v2151 = vsel %vm2119, %v2118, %v1871
      %v2152 = vld [vmem:[%s1] sm:$0xf]
      %v2153 = vld [vmem:[%s1 + $0x4] sm:$0xf]
      %v2154 = vld [vmem:[%s1 + $0x8] sm:$0xf]
      %v2155 = vld [vmem:[%s1 + $0xc] sm:$0xf]
      %v2156 = vld [vmem:[%s1 + $0x10] sm:$0xf]
      %v2157 = vld [vmem:[%s1 + $0x14] sm:$0xf]
      %v2158 = vld [vmem:[%s1 + $0x18] sm:$0xf]
      %v2159 = vld [vmem:[%s1 + $0x1c] sm:$0xf]
      %v2160 = vld [vmem:[%s1 + $0x20] sm:$0xf]
      %v2161 = vld [vmem:[%s1 + $0x24] sm:$0xf]
      %v2162 = vld [vmem:[%s1 + $0x28] sm:$0xf]
      %v2163 = vld [vmem:[%s1 + $0x2c] sm:$0xf]
      %v2164 = vld [vmem:[%s1 + $0x30] sm:$0xf]
      %v2165 = vld [vmem:[%s1 + $0x34] sm:$0xf]
      %v2166 = vld [vmem:[%s1 + $0x38] sm:$0xf]
      %v2167 = vld [vmem:[%s1 + $0x3c] sm:$0xf]
      %v2168 = vld [vmem:[%s1 + $0x40] sm:$0xf]
      %v2169 = vld [vmem:[%s1 + $0x44] sm:$0xf]
      %v2170 = vld [vmem:[%s1 + $0x48] sm:$0xf]
      %v2171 = vld [vmem:[%s1 + $0x4c] sm:$0xf]
      %v2172 = vld [vmem:[%s1 + $0x50] sm:$0xf]
      %v2173 = vld [vmem:[%s1 + $0x54] sm:$0xf]
      %v2174 = vld [vmem:[%s1 + $0x58] sm:$0x3]
      %v2198 = vunpack.c.l.b16 %v2152
      %v2199 = vunpack.c.l.b16 %v2153
      %v2200 = vunpack.c.l.b16 %v2154
      %v2201 = vunpack.c.l.b16 %v2155
      %v2202 = vunpack.c.l.b16 %v2156
      %v2203 = vunpack.c.l.b16 %v2157
      %v2204 = vunpack.c.l.b16 %v2158
      %v2205 = vunpack.c.l.b16 %v2159
      %v2206 = vunpack.c.l.b16 %v2160
      %v2207 = vunpack.c.l.b16 %v2161
      %v2208 = vunpack.c.l.b16 %v2162
      %v2209 = vunpack.c.l.b16 %v2163
      %v2210 = vunpack.c.l.b16 %v2164
      %v2211 = vunpack.c.l.b16 %v2165
      %v2212 = vunpack.c.l.b16 %v2166
      %v2213 = vunpack.c.l.b16 %v2167
      %v2214 = vunpack.c.l.b16 %v2168
      %v2215 = vunpack.c.l.b16 %v2169
      %v2216 = vunpack.c.l.b16 %v2170
      %v2217 = vunpack.c.l.b16 %v2171
      %v2218 = vunpack.c.l.b16 %v2172
      %v2219 = vunpack.c.l.b16 %v2173
      %v2220 = vunpack.c.l.b16 %v2174
      %v2221 = vpack.c.b16 %v2199, %v2198
      %v2222 = vpack.c.b16 %v2201, %v2200
      %v2223 = vpack.c.b16 %v2203, %v2202
      %v2224 = vpack.c.b16 %v2205, %v2204
      %v2225 = vpack.c.b16 %v2207, %v2206
      %v2226 = vpack.c.b16 %v2209, %v2208
      %v2227 = vpack.c.b16 %v2211, %v2210
      %v2228 = vpack.c.b16 %v2213, %v2212
      %v2229 = vpack.c.b16 %v2215, %v2214
      %v2230 = vpack.c.b16 %v2217, %v2216
      %v2231 = vpack.c.b16 %v2219, %v2218
      %v2232 = vpack.c.b16 %v2220, %v2220
      %vm2244 = vcmask 424960
      %v2245 = vsel %vm2244, %v2121, 0
      %v2247 = vsel %vm2244, %v2123, 0
      %v2249 = vsel %vm2244, %v2125, 0
      %v2251 = vsel %vm2244, %v2127, 0
      %v2253 = vsel %vm2244, %v2129, 0
      %v2255 = vsel %vm2244, %v2131, 0
      %v2257 = vsel %vm2244, %v2133, 0
      %v2259 = vsel %vm2244, %v2135, 0
      %v2261 = vsel %vm2244, %v2137, 0
      %v2263 = vsel %vm2244, %v2139, 0
      %v2265 = vsel %vm2244, %v2141, 0
      %v2267 = vsel %vm2244, %v2143, 0
      %v2269 = vsel %vm2244, %v2145, 0
      %v2271 = vsel %vm2244, %v2147, 0
      %v2273 = vsel %vm2244, %v2149, 0
      %v2275 = vsel %vm2244, %v2151, 0
      %vm2277 = vcmask 1041408
      %v2279 = vsel %vm2277, %v2232, 0
      %2281 = vmatpush.bf16.msra.mxu0 %v2228
      %2282 = vmatpush.bf16.msra.mxu0 %v2227
      %2283 = vmatpush.bf16.msra.mxu0 %v2226
      %2284 = vmatpush.bf16.msra.mxu0 %v2225
      %2285 = vmatpush.bf16.msra.mxu0 %v2224
      %2286 = vmatpush.bf16.msra.mxu0 %v2223
      %2287 = vmatpush.bf16.msra.mxu0 %v2222
      %2288 = vmatpush.bf16.msra.mxu0 %v2221
      %2289 = vmatmul.bf16.gmra.mxu0 %v2039
      %v2290 = vpop.f32.mrf.mxu0
      %v2291 = vadd.f32 0.0, %v2290
      %v2292 = vpop.f32.mrf.mxu0
      %v2293 = vadd.f32 0.0, %v2292
      %2294 = vmatmul.bf16.gmra.mxu0 %v2042
      %v2295 = vpop.f32.mrf.mxu0
      %v2296 = vadd.f32 0.0, %v2295
      %v2297 = vpop.f32.mrf.mxu0
      %v2298 = vadd.f32 0.0, %v2297
      %2299 = vmatmul.bf16.gmra.mxu0 %v2045
      %v2300 = vpop.f32.mrf.mxu0
      %v2301 = vadd.f32 0.0, %v2300
      %v2302 = vpop.f32.mrf.mxu0
      %v2303 = vadd.f32 0.0, %v2302
      %2304 = vmatmul.bf16.gmra.mxu0 %v2048
      %v2305 = vpop.f32.mrf.mxu0
      %v2306 = vadd.f32 0.0, %v2305
      %v2307 = vpop.f32.mrf.mxu0
      %v2308 = vadd.f32 0.0, %v2307
      %2309 = vmatmul.bf16.gmra.mxu0 %v2051
      %v2310 = vpop.f32.mrf.mxu0
      %v2311 = vadd.f32 0.0, %v2310
      %v2312 = vpop.f32.mrf.mxu0
      %v2313 = vadd.f32 0.0, %v2312
      %2314 = vmatmul.bf16.gmra.mxu0 %v2054
      %v2315 = vpop.f32.mrf.mxu0
      %v2316 = vadd.f32 0.0, %v2315
      %v2317 = vpop.f32.mrf.mxu0
      %v2318 = vadd.f32 0.0, %v2317
      %2319 = vmatmul.bf16.gmra.mxu0 %v2057
      %v2320 = vpop.f32.mrf.mxu0
      %v2321 = vadd.f32 0.0, %v2320
      %v2322 = vpop.f32.mrf.mxu0
      %v2323 = vadd.f32 0.0, %v2322
      %2324 = vmatmul.bf16.gmra.mxu0 %v2060
      %v2325 = vpop.f32.mrf.mxu0
      %v2326 = vadd.f32 0.0, %v2325
      %v2327 = vpop.f32.mrf.mxu0
      %v2328 = vadd.f32 0.0, %v2327
      %2329 = vmatmul.bf16.gmra.mxu0 %v2063
      %v2330 = vpop.f32.mrf.mxu0
      %v2331 = vadd.f32 0.0, %v2330
      %v2332 = vpop.f32.mrf.mxu0
      %v2333 = vadd.f32 0.0, %v2332
      %2334 = vmatmul.bf16.gmra.mxu0 %v2066
      %v2335 = vpop.f32.mrf.mxu0
      %v2336 = vadd.f32 0.0, %v2335
      %v2337 = vpop.f32.mrf.mxu0
      %v2338 = vadd.f32 0.0, %v2337
      %2339 = vmatmul.bf16.gmra.mxu0 %v2069
      %v2340 = vpop.f32.mrf.mxu0
      %v2341 = vadd.f32 0.0, %v2340
      %v2342 = vpop.f32.mrf.mxu0
      %v2343 = vadd.f32 0.0, %v2342
      %2344 = vmatmul.bf16.gmra.mxu0 %v2072
      %v2345 = vpop.f32.mrf.mxu0
      %v2346 = vadd.f32 0.0, %v2345
      %v2347 = vpop.f32.mrf.mxu0
      %v2348 = vadd.f32 0.0, %v2347
      %2349 = vmatmul.bf16.gmra.mxu0 %v2075
      %v2350 = vpop.f32.mrf.mxu0
      %v2351 = vadd.f32 0.0, %v2350
      %v2352 = vpop.f32.mrf.mxu0
      %v2353 = vadd.f32 0.0, %v2352
      %2354 = vmatmul.bf16.gmra.mxu0 %v2078
      %v2355 = vpop.f32.mrf.mxu0
      %v2356 = vadd.f32 0.0, %v2355
      %v2357 = vpop.f32.mrf.mxu0
      %v2358 = vadd.f32 0.0, %v2357
      %2359 = vmatmul.bf16.gmra.mxu0 %v2081
      %v2360 = vpop.f32.mrf.mxu0
      %v2361 = vadd.f32 0.0, %v2360
      %v2362 = vpop.f32.mrf.mxu0
      %v2363 = vadd.f32 0.0, %v2362
      %2364 = vmatmul.bf16.gmra.mxu0 %v2084
      %v2365 = vpop.f32.mrf.mxu0
      %v2366 = vadd.f32 0.0, %v2365
      %v2367 = vpop.f32.mrf.mxu0
      %v2368 = vadd.f32 0.0, %v2367
      %2369 = vdwg.mxu0
      %2370 = vmatpush.bf16.msra.mxu0 0
      %2371 = vmatpush.bf16.msra.mxu0 0
      %2372 = vmatpush.bf16.msra.mxu0 0
      %2373 = vmatpush.bf16.msra.mxu0 0
      %2374 = vmatpush.bf16.msra.mxu0 %v2279
      %2375 = vmatpush.bf16.msra.mxu0 %v2231
      %2376 = vmatpush.bf16.msra.mxu0 %v2230
      %2377 = vmatpush.bf16.msra.mxu0 %v2229
      %2378 = vmatmul.bf16.gmra.mxu0 %v2245
      %v2379 = vpop.f32.mrf.mxu0
      %v2380 = vadd.f32 %v2291, %v2379
      %v2381 = vpop.f32.mrf.mxu0
      %v2382 = vadd.f32 %v2293, %v2381
      %2383 = vmatmul.bf16.gmra.mxu0 %v2247
      %v2384 = vpop.f32.mrf.mxu0
      %v2385 = vadd.f32 %v2296, %v2384
      %v2386 = vpop.f32.mrf.mxu0
      %v2387 = vadd.f32 %v2298, %v2386
      %2388 = vmatmul.bf16.gmra.mxu0 %v2249
      %v2389 = vpop.f32.mrf.mxu0
      %v2390 = vadd.f32 %v2301, %v2389
      %v2391 = vpop.f32.mrf.mxu0
      %v2392 = vadd.f32 %v2303, %v2391
      %2393 = vmatmul.bf16.gmra.mxu0 %v2251
      %v2394 = vpop.f32.mrf.mxu0
      %v2395 = vadd.f32 %v2306, %v2394
      %v2396 = vpop.f32.mrf.mxu0
      %v2397 = vadd.f32 %v2308, %v2396
      %2398 = vmatmul.bf16.gmra.mxu0 %v2253
      %v2399 = vpop.f32.mrf.mxu0
      %v2400 = vadd.f32 %v2311, %v2399
      %v2401 = vpop.f32.mrf.mxu0
      %v2402 = vadd.f32 %v2313, %v2401
      %2403 = vmatmul.bf16.gmra.mxu0 %v2255
      %v2404 = vpop.f32.mrf.mxu0
      %v2405 = vadd.f32 %v2316, %v2404
      %v2406 = vpop.f32.mrf.mxu0
      %v2407 = vadd.f32 %v2318, %v2406
      %2408 = vmatmul.bf16.gmra.mxu0 %v2257
      %v2409 = vpop.f32.mrf.mxu0
      %v2410 = vadd.f32 %v2321, %v2409
      %v2411 = vpop.f32.mrf.mxu0
      %v2412 = vadd.f32 %v2323, %v2411
      %2413 = vmatmul.bf16.gmra.mxu0 %v2259
      %v2414 = vpop.f32.mrf.mxu0
      %v2415 = vadd.f32 %v2326, %v2414
      %v2416 = vpop.f32.mrf.mxu0
      %v2417 = vadd.f32 %v2328, %v2416
      %2418 = vmatmul.bf16.gmra.mxu0 %v2261
      %v2419 = vpop.f32.mrf.mxu0
      %v2420 = vadd.f32 %v2331, %v2419
      %v2421 = vpop.f32.mrf.mxu0
      %v2422 = vadd.f32 %v2333, %v2421
      %2423 = vmatmul.bf16.gmra.mxu0 %v2263
      %v2424 = vpop.f32.mrf.mxu0
      %v2425 = vadd.f32 %v2336, %v2424
      %v2426 = vpop.f32.mrf.mxu0
      %v2427 = vadd.f32 %v2338, %v2426
      %2428 = vmatmul.bf16.gmra.mxu0 %v2265
      %v2429 = vpop.f32.mrf.mxu0
      %v2430 = vadd.f32 %v2341, %v2429
      %v2431 = vpop.f32.mrf.mxu0
      %v2432 = vadd.f32 %v2343, %v2431
      %2433 = vmatmul.bf16.gmra.mxu0 %v2267
      %v2434 = vpop.f32.mrf.mxu0
      %v2435 = vadd.f32 %v2346, %v2434
      %v2436 = vpop.f32.mrf.mxu0
      %v2437 = vadd.f32 %v2348, %v2436
      %2438 = vmatmul.bf16.gmra.mxu0 %v2269
      %v2439 = vpop.f32.mrf.mxu0
      %v2440 = vadd.f32 %v2351, %v2439
      %v2441 = vpop.f32.mrf.mxu0
      %v2442 = vadd.f32 %v2353, %v2441
      %2443 = vmatmul.bf16.gmra.mxu0 %v2271
      %v2444 = vpop.f32.mrf.mxu0
      %v2445 = vadd.f32 %v2356, %v2444
      %v2446 = vpop.f32.mrf.mxu0
      %v2447 = vadd.f32 %v2358, %v2446
      %2448 = vmatmul.bf16.gmra.mxu0 %v2273
      %v2449 = vpop.f32.mrf.mxu0
      %v2450 = vadd.f32 %v2361, %v2449
      %v2451 = vpop.f32.mrf.mxu0
      %v2452 = vadd.f32 %v2363, %v2451
      %2453 = vmatmul.bf16.gmra.mxu0 %v2275
      %v2454 = vpop.f32.mrf.mxu0
      %v2455 = vadd.f32 %v2366, %v2454
      %v2456 = vpop.f32.mrf.mxu0
      %v2457 = vadd.f32 %v2368, %v2456
      %2458 = vdwg.mxu0
      %v2459 = vld [vmem:[%s2] sm:$0x1]
      %v2460 = vperm.slane %v2459, 0
      %v2461 = vmul.f32 %v2380, %v2460
      %v2462 = vmul.f32 %v2382, %v2460
      %v2463 = vmul.f32 %v2385, %v2460
      %v2464 = vmul.f32 %v2387, %v2460
      %v2465 = vmul.f32 %v2390, %v2460
      %v2466 = vmul.f32 %v2392, %v2460
      %v2467 = vmul.f32 %v2395, %v2460
      %v2468 = vmul.f32 %v2397, %v2460
      %v2469 = vmul.f32 %v2400, %v2460
      %v2470 = vmul.f32 %v2402, %v2460
      %v2471 = vmul.f32 %v2405, %v2460
      %v2472 = vmul.f32 %v2407, %v2460
      %v2473 = vmul.f32 %v2410, %v2460
      %v2474 = vmul.f32 %v2412, %v2460
      %v2475 = vmul.f32 %v2415, %v2460
      %v2476 = vmul.f32 %v2417, %v2460
      %v2477 = vmul.f32 %v2420, %v2460
      %v2478 = vmul.f32 %v2422, %v2460
      %v2479 = vmul.f32 %v2425, %v2460
      %v2480 = vmul.f32 %v2427, %v2460
      %v2481 = vmul.f32 %v2430, %v2460
      %v2482 = vmul.f32 %v2432, %v2460
      %v2483 = vmul.f32 %v2435, %v2460
      %v2484 = vmul.f32 %v2437, %v2460
      %v2485 = vmul.f32 %v2440, %v2460
      %v2486 = vmul.f32 %v2442, %v2460
      %v2487 = vmul.f32 %v2445, %v2460
      %v2488 = vmul.f32 %v2447, %v2460
      %v2489 = vmul.f32 %v2450, %v2460
      %v2490 = vmul.f32 %v2452, %v2460
      %v2491 = vmul.f32 %v2455, %v2460
      %v2492 = vmul.f32 %v2457, %v2460
      %v2493 = vld [vmem:[%s2 + $0x1] sm:$0x1]
      %v2494 = vperm.slane %v2493, 0
      %v2495 = vadd.f32 %v2461, %v2494
      %v2496 = vadd.f32 %v2462, %v2494
      %v2497 = vadd.f32 %v2463, %v2494
      %v2498 = vadd.f32 %v2464, %v2494
      %v2499 = vadd.f32 %v2465, %v2494
      %v2500 = vadd.f32 %v2466, %v2494
      %v2501 = vadd.f32 %v2467, %v2494
      %v2502 = vadd.f32 %v2468, %v2494
      %v2503 = vadd.f32 %v2469, %v2494
      %v2504 = vadd.f32 %v2470, %v2494
      %v2505 = vadd.f32 %v2471, %v2494
      %v2506 = vadd.f32 %v2472, %v2494
      %v2507 = vadd.f32 %v2473, %v2494
      %v2508 = vadd.f32 %v2474, %v2494
      %v2509 = vadd.f32 %v2475, %v2494
      %v2510 = vadd.f32 %v2476, %v2494
      %v2511 = vadd.f32 %v2477, %v2494
      %v2512 = vadd.f32 %v2478, %v2494
      %v2513 = vadd.f32 %v2479, %v2494
      %v2514 = vadd.f32 %v2480, %v2494
      %v2515 = vadd.f32 %v2481, %v2494
      %v2516 = vadd.f32 %v2482, %v2494
      %v2517 = vadd.f32 %v2483, %v2494
      %v2518 = vadd.f32 %v2484, %v2494
      %v2519 = vadd.f32 %v2485, %v2494
      %v2520 = vadd.f32 %v2486, %v2494
      %v2521 = vadd.f32 %v2487, %v2494
      %v2522 = vadd.f32 %v2488, %v2494
      %v2523 = vadd.f32 %v2489, %v2494
      %v2524 = vadd.f32 %v2490, %v2494
      %v2525 = vadd.f32 %v2491, %v2494
      %v2526 = vadd.f32 %v2492, %v2494
      %v2527 = vmax.f32 %v2495, 0.0
      %v2528 = vmax.f32 %v2496, 0.0
      %v2529 = vmax.f32 %v2497, 0.0
      %v2530 = vmax.f32 %v2498, 0.0
      %v2531 = vmax.f32 %v2499, 0.0
      %v2532 = vmax.f32 %v2500, 0.0
      %v2533 = vmax.f32 %v2501, 0.0
      %v2534 = vmax.f32 %v2502, 0.0
      %v2535 = vmax.f32 %v2503, 0.0
      %v2536 = vmax.f32 %v2504, 0.0
      %v2537 = vmax.f32 %v2505, 0.0
      %v2538 = vmax.f32 %v2506, 0.0
      %v2539 = vmax.f32 %v2507, 0.0
      %v2540 = vmax.f32 %v2508, 0.0
      %v2541 = vmax.f32 %v2509, 0.0
      %v2542 = vmax.f32 %v2510, 0.0
      %v2543 = vmax.f32 %v2511, 0.0
      %v2544 = vmax.f32 %v2512, 0.0
      %v2545 = vmax.f32 %v2513, 0.0
      %v2546 = vmax.f32 %v2514, 0.0
      %v2547 = vmax.f32 %v2515, 0.0
      %v2548 = vmax.f32 %v2516, 0.0
      %v2549 = vmax.f32 %v2517, 0.0
      %v2550 = vmax.f32 %v2518, 0.0
      %v2551 = vmax.f32 %v2519, 0.0
      %v2552 = vmax.f32 %v2520, 0.0
      %v2553 = vmax.f32 %v2521, 0.0
      %v2554 = vmax.f32 %v2522, 0.0
      %v2555 = vmax.f32 %v2523, 0.0
      %v2556 = vmax.f32 %v2524, 0.0
      %v2557 = vmax.f32 %v2525, 0.0
      %v2558 = vmax.f32 %v2526, 0.0
      %v2559 = vpack.c.bf16 %v2527, %v2527
      %v2560 = vpack.c.bf16 %v2528, %v2528
      %v2561 = vpack.c.bf16 %v2529, %v2529
      %v2562 = vpack.c.bf16 %v2530, %v2530
      %v2563 = vpack.c.bf16 %v2531, %v2531
      %v2564 = vpack.c.bf16 %v2532, %v2532
      %v2565 = vpack.c.bf16 %v2533, %v2533
      %v2566 = vpack.c.bf16 %v2534, %v2534
      %v2567 = vpack.c.bf16 %v2535, %v2535
      %v2568 = vpack.c.bf16 %v2536, %v2536
      %v2569 = vpack.c.bf16 %v2537, %v2537
      %v2570 = vpack.c.bf16 %v2538, %v2538
      %v2571 = vpack.c.bf16 %v2539, %v2539
      %v2572 = vpack.c.bf16 %v2540, %v2540
      %v2573 = vpack.c.bf16 %v2541, %v2541
      %v2574 = vpack.c.bf16 %v2542, %v2542
      %v2575 = vpack.c.bf16 %v2543, %v2543
      %v2576 = vpack.c.bf16 %v2544, %v2544
      %v2577 = vpack.c.bf16 %v2545, %v2545
      %v2578 = vpack.c.bf16 %v2546, %v2546
      %v2579 = vpack.c.bf16 %v2547, %v2547
      %v2580 = vpack.c.bf16 %v2548, %v2548
      %v2581 = vpack.c.bf16 %v2549, %v2549
      %v2582 = vpack.c.bf16 %v2550, %v2550
      %v2583 = vpack.c.bf16 %v2551, %v2551
      %v2584 = vpack.c.bf16 %v2552, %v2552
      %v2585 = vpack.c.bf16 %v2553, %v2553
      %v2586 = vpack.c.bf16 %v2554, %v2554
      %v2587 = vpack.c.bf16 %v2555, %v2555
      %v2588 = vpack.c.bf16 %v2556, %v2556
      %v2589 = vpack.c.bf16 %v2557, %v2557
      %v2590 = vpack.c.bf16 %v2558, %v2558
      %vm2591 = vcmask 158720
      %2592 = vst.msk [vmem:[%s170] sm:$0xf] %vm2591, %v2559
      %2593 = vst.msk [vmem:[%s170 + $0x4] sm:$0xf] %vm2591, %v2560
      %2594 = vst.msk [vmem:[%s170 + $0x8] sm:$0xf] %vm2591, %v2561
      %2595 = vst.msk [vmem:[%s170 + $0xc] sm:$0xf] %vm2591, %v2562
      %2596 = vst.msk [vmem:[%s170 + $0x10] sm:$0xf] %vm2591, %v2563
      %2597 = vst.msk [vmem:[%s170 + $0x14] sm:$0xf] %vm2591, %v2564
      %2598 = vst.msk [vmem:[%s170 + $0x18] sm:$0xf] %vm2591, %v2565
      %2599 = vst.msk [vmem:[%s170 + $0x1c] sm:$0xf] %vm2591, %v2566
      %2600 = vst.msk [vmem:[%s170 + $0x20] sm:$0xf] %vm2591, %v2567
      %2601 = vst.msk [vmem:[%s170 + $0x24] sm:$0xf] %vm2591, %v2568
      %2602 = vst.msk [vmem:[%s170 + $0x28] sm:$0xf] %vm2591, %v2569
      %2603 = vst.msk [vmem:[%s170 + $0x2c] sm:$0xf] %vm2591, %v2570
      %2604 = vst.msk [vmem:[%s170 + $0x30] sm:$0xf] %vm2591, %v2571
      %2605 = vst.msk [vmem:[%s170 + $0x34] sm:$0xf] %vm2591, %v2572
      %2606 = vst.msk [vmem:[%s170 + $0x38] sm:$0xf] %vm2591, %v2573
      %2607 = vst.msk [vmem:[%s170 + $0x3c] sm:$0xf] %vm2591, %v2574
      %2608 = vst.msk [vmem:[%s170 + $0x40] sm:$0xf] %vm2591, %v2575
      %2609 = vst.msk [vmem:[%s170 + $0x44] sm:$0xf] %vm2591, %v2576
      %2610 = vst.msk [vmem:[%s170 + $0x48] sm:$0xf] %vm2591, %v2577
      %2611 = vst.msk [vmem:[%s170 + $0x4c] sm:$0xf] %vm2591, %v2578
      %2612 = vst.msk [vmem:[%s170 + $0x50] sm:$0xf] %vm2591, %v2579
      %2613 = vst.msk [vmem:[%s170 + $0x54] sm:$0xf] %vm2591, %v2580
      %2614 = vst.msk [vmem:[%s170 + $0x58] sm:$0xf] %vm2591, %v2581
      %2615 = vst.msk [vmem:[%s170 + $0x5c] sm:$0xf] %vm2591, %v2582
      %2616 = vst.msk [vmem:[%s170 + $0x60] sm:$0xf] %vm2591, %v2583
      %2617 = vst.msk [vmem:[%s170 + $0x64] sm:$0xf] %vm2591, %v2584
      %2618 = vst.msk [vmem:[%s170 + $0x68] sm:$0xf] %vm2591, %v2585
      %2619 = vst.msk [vmem:[%s170 + $0x6c] sm:$0xf] %vm2591, %v2586
      %2620 = vst.msk [vmem:[%s170 + $0x70] sm:$0xf] %vm2591, %v2587
      %2621 = vst.msk [vmem:[%s170 + $0x74] sm:$0xf] %vm2591, %v2588
      %2622 = vst.msk [vmem:[%s170 + $0x78] sm:$0xf] %vm2591, %v2589
      %2623 = vst.msk [vmem:[%s170 + $0x7c] sm:$0xf] %vm2591, %v2590
      %p2624 = scmp.lt.s32.totalorder %s14, 1
      %s2625 = scalar_select %p2624, %s14, 1
      %s2626 = smul.addr %s2625, 32
      %s2627 = smul.addr %s2626, 4
      %s2628 = scalar_lea.vmem %s3, %s2627
      // Predicated region
      $region33: #{_lambda_.10} parent=31 // pred_check
        %p2629 = pneg %p100
      $region34: #{_lambda_.10} parent=31 // pred_check_branch
        %2631 = sbr.rel (%p2629) target = $region36
      $region35: #{_lambda_.10} parent=31 // pred_region
        _
      $region36: #{_lambda_.10} parent=31 // pred_fallthru
        _
    $region32: #{_lambda_.10} parent=5 // pred_fallthru
      _
    %p2632 = scmp.le.s32.totalorder 2, %s9
    // Predicated region
    $region37: #{_lambda_.10} parent=5 // pred_check
      %p2633 = pneg %p2632
    $region38: #{_lambda_.10} parent=5 // pred_check_branch
      %2635 = sbr.rel (%p2633) target = $region40
    $region39: #{_lambda_.10} parent=5 // pred_region
      %s2636 = ssub.s32 %s9, 2
      // Predicated region
      $region41: #{_lambda_.10} parent=39 // pred_check
        %p2637 = pneg %p106
      $region42: #{_lambda_.10} parent=39 // pred_check_branch
        %2639 = sbr.rel (%p2637) target = $region44
      $region43: #{_lambda_.10} parent=39 // pred_region
        %p2640 = scmp.lt.s32.totalorder %s15, 1
        %s2641 = scalar_select %p2640, %s15, 1
        %s2642 = smul.addr %s2641, 32
        %s2643 = smul.addr %s2642, 4
        %s2644 = scalar_lea.vmem %s3, %s2643
      $region44: #{_lambda_.10} parent=39 // pred_fallthru
        _
    $region40: #{_lambda_.10} parent=5 // pred_fallthru
      _
  $region6: #{_lambda_.10} parent=0 // loop_footer
    %s13 = sadd.s32 1, %s9
  $region7: #{_lambda_.10} parent=0 // loop_footer_branch
    %8 = sbr.rel target = $region3
  $region8: #{_lambda_.10} parent=0 // loop_exit
    _

// kernel: _lambda_.14
$region0: #{_lambda_.14}
  #allocation0 [shape = 'u32[]', space=smem, size = 0x4, offset = 0x4, fixed_abs, tag = 'smem constant byte address 0x4 - core index']
  #allocation1 [shape = 'u32[72,128]{1,0:T(1,128)}', space=vmem, size = 0x9000, scoped, tag = 'internal scratch']
  %s0 = inlined_call_operand.vmem [shape: bf16[128,24], index: 0, kind: input, shape index: {}]
  %s1 = inlined_call_operand.vmem [shape: bf16[24,96], index: 1, kind: input, shape index: {}]
  %s2 = inlined_call_operand.vmem [shape: f32[2,96], index: 2, kind: input, shape index: {}]
  %s3 = inlined_call_operand.vmem [shape: bf16[128,80], index: 3, kind: input, shape index: {}]
  %s4 = inlined_call_operand.vmem [shape: bf16[128,96], index: 4, kind: output, shape index: {}]
  %s5 = sld [smem:[#allocation0]]
  $region26: #{_lambda_.14} parent=0
    _
  %s7 = ssub.s32 1, %s5
  %s8 = scalar_select 0, %s7, %s5
  // Predicated region
  $region2: #{_lambda_.14} parent=0 // pred_check
    _
  $region3: #{_lambda_.14} parent=0 // pred_check_branch
    %10 = sbr.rel (0) target = $region5
  $region4: #{_lambda_.14} parent=0 // pred_region
    _
  $region5: #{_lambda_.14} parent=0 // pred_fallthru
    _
  // Predicated region
  $region6: #{_lambda_.14} parent=0 // pred_check
    _
  $region7: #{_lambda_.14} parent=0 // pred_check_branch
    %12 = sbr.rel (0) target = $region9
  $region8: #{_lambda_.14} parent=0 // pred_region
    _
  $region9: #{_lambda_.14} parent=0 // pred_fallthru
    _
  // Predicated region
  $region10: #{_lambda_.14} parent=0 // pred_check
    _
  $region11: #{_lambda_.14} parent=0 // pred_check_branch
    %14 = sbr.rel (0) target = $region13
  $region12: #{_lambda_.14} parent=0 // pred_region
    _
  $region13: #{_lambda_.14} parent=0 // pred_fallthru
    _
  // Predicated region
  $region14: #{_lambda_.14} parent=0 // pred_check
    _
  $region15: #{_lambda_.14} parent=0 // pred_check_branch
    %16 = sbr.rel (0) target = $region17
  $region16: #{_lambda_.14} parent=0 // pred_region
    _
  $region17: #{_lambda_.14} parent=0 // pred_fallthru
    _
  %v18 = vld [vmem:[%s0] sm:$0xf]
  %v19 = vld [vmem:[%s0 + $0x4] sm:$0xf]
  %v20 = vld [vmem:[%s0 + $0x8] sm:$0xf]
  %v21 = vld [vmem:[%s0 + $0xc] sm:$0xf]
  %v22 = vld [vmem:[%s0 + $0x10] sm:$0xf]
  %v23 = vld [vmem:[%s0 + $0x14] sm:$0xf]
  %v24 = vld [vmem:[%s0 + $0x18] sm:$0xf]
  %v25 = vld [vmem:[%s0 + $0x1c] sm:$0xf]
  %v26 = vld [vmem:[%s0 + $0x20] sm:$0xf]
  %v27 = vld [vmem:[%s0 + $0x24] sm:$0xf]
  %v28 = vld [vmem:[%s0 + $0x28] sm:$0xf]
  %v29 = vld [vmem:[%s0 + $0x2c] sm:$0xf]
  %v30 = vld [vmem:[%s0 + $0x30] sm:$0xf]
  %v31 = vld [vmem:[%s0 + $0x34] sm:$0xf]
  %v32 = vld [vmem:[%s0 + $0x38] sm:$0xf]
  %v33 = vld [vmem:[%s0 + $0x3c] sm:$0xf]
  %v34 = vld [vmem:[%s1] sm:$0xf]
  %v35 = vld [vmem:[%s1 + $0x4] sm:$0xf]
  %v36 = vld [vmem:[%s1 + $0x8] sm:$0xf]
  %v53 = vunpack.c.l.b16 %v18
  %v54 = vunpack.c.l.b16 %v19
  %v55 = vunpack.c.l.b16 %v20
  %v56 = vunpack.c.l.b16 %v21
  %v57 = vunpack.c.l.b16 %v22
  %v58 = vunpack.c.l.b16 %v23
  %v59 = vunpack.c.l.b16 %v24
  %v60 = vunpack.c.l.b16 %v25
  %v61 = vunpack.c.l.b16 %v26
  %v62 = vunpack.c.l.b16 %v27
  %v63 = vunpack.c.l.b16 %v28
  %v64 = vunpack.c.l.b16 %v29
  %v65 = vunpack.c.l.b16 %v30
  %v66 = vunpack.c.l.b16 %v31
  %v67 = vunpack.c.l.b16 %v32
  %v68 = vunpack.c.l.b16 %v33
  %v69 = vpack.c.b16 %v54, %v53
  %v70 = vpack.c.b16 %v56, %v55
  %v71 = vpack.c.b16 %v58, %v57
  %v72 = vpack.c.b16 %v60, %v59
  %v73 = vpack.c.b16 %v62, %v61
  %v74 = vpack.c.b16 %v64, %v63
  %v75 = vpack.c.b16 %v66, %v65
  %v76 = vpack.c.b16 %v68, %v67
  %v80 = vunpack.c.l.b16 %v34
  %v81 = vunpack.c.l.b16 %v35
  %v82 = vunpack.c.l.b16 %v36
  %v83 = vpack.c.b16 %v81, %v80
  %v84 = vpack.c.b16 %v82, %v82
  %vm86 = vcmask 195584
  %v88 = vsel %vm86, %v69, 0
  %v91 = vsel %vm86, %v70, 0
  %v94 = vsel %vm86, %v71, 0
  %v97 = vsel %vm86, %v72, 0
  %v100 = vsel %vm86, %v73, 0
  %v103 = vsel %vm86, %v74, 0
  %v106 = vsel %vm86, %v75, 0
  %v109 = vsel %vm86, %v76, 0
  %vm111 = vcmask 1043456
  %v113 = vsel %vm111, %v84, 0
  %115 = vmatpush.bf16.msra.mxu0 0
  %116 = vmatpush.bf16.msra.mxu0 0
  %117 = vmatpush.bf16.msra.mxu0 0
  %118 = vmatpush.bf16.msra.mxu0 0
  %119 = vmatpush.bf16.msra.mxu0 0
  %120 = vmatpush.bf16.msra.mxu0 0
  %121 = vmatpush.bf16.msra.mxu0 %v113
  %122 = vmatpush.bf16.msra.mxu0 %v83
  %123 = vmatmul.bf16.gmra.mxu0 %v88
  %v124 = vpop.f32.mrf.mxu0
  %v125 = vadd.f32 0.0, %v124
  %v126 = vpop.f32.mrf.mxu0
  %v127 = vadd.f32 0.0, %v126
  %128 = vmatmul.bf16.gmra.mxu0 %v91
  %v129 = vpop.f32.mrf.mxu0
  %v130 = vadd.f32 0.0, %v129
  %v131 = vpop.f32.mrf.mxu0
  %v132 = vadd.f32 0.0, %v131
  %133 = vmatmul.bf16.gmra.mxu0 %v94
  %v134 = vpop.f32.mrf.mxu0
  %v135 = vadd.f32 0.0, %v134
  %v136 = vpop.f32.mrf.mxu0
  %v137 = vadd.f32 0.0, %v136
  %138 = vmatmul.bf16.gmra.mxu0 %v97
  %v139 = vpop.f32.mrf.mxu0
  %v140 = vadd.f32 0.0, %v139
  %v141 = vpop.f32.mrf.mxu0
  %v142 = vadd.f32 0.0, %v141
  %143 = vmatmul.bf16.gmra.mxu0 %v100
  %v144 = vpop.f32.mrf.mxu0
  %v145 = vadd.f32 0.0, %v144
  %v146 = vpop.f32.mrf.mxu0
  %v147 = vadd.f32 0.0, %v146
  %148 = vmatmul.bf16.gmra.mxu0 %v103
  %v149 = vpop.f32.mrf.mxu0
  %v150 = vadd.f32 0.0, %v149
  %v151 = vpop.f32.mrf.mxu0
  %v152 = vadd.f32 0.0, %v151
  %153 = vmatmul.bf16.gmra.mxu0 %v106
  %v154 = vpop.f32.mrf.mxu0
  %v155 = vadd.f32 0.0, %v154
  %v156 = vpop.f32.mrf.mxu0
  %v157 = vadd.f32 0.0, %v156
  %158 = vmatmul.bf16.gmra.mxu0 %v109
  %v159 = vpop.f32.mrf.mxu0
  %v160 = vadd.f32 0.0, %v159
  %v161 = vpop.f32.mrf.mxu0
  %v162 = vadd.f32 0.0, %v161
  %163 = vdwg.mxu0
  %v164 = vld [vmem:[%s2] sm:$0x1]
  %v165 = vperm.slane %v164, 0
  %v166 = vmul.f32 %v125, %v165
  %v167 = vmul.f32 %v127, %v165
  %v168 = vmul.f32 %v130, %v165
  %v169 = vmul.f32 %v132, %v165
  %v170 = vmul.f32 %v135, %v165
  %v171 = vmul.f32 %v137, %v165
  %v172 = vmul.f32 %v140, %v165
  %v173 = vmul.f32 %v142, %v165
  %v174 = vmul.f32 %v145, %v165
  %v175 = vmul.f32 %v147, %v165
  %v176 = vmul.f32 %v150, %v165
  %v177 = vmul.f32 %v152, %v165
  %v178 = vmul.f32 %v155, %v165
  %v179 = vmul.f32 %v157, %v165
  %v180 = vmul.f32 %v160, %v165
  %v181 = vmul.f32 %v162, %v165
  %v182 = vld [vmem:[%s2 + $0x1] sm:$0x1]
  %v183 = vperm.slane %v182, 0
  %v184 = vadd.f32 %v166, %v183
  %v185 = vadd.f32 %v167, %v183
  %v186 = vadd.f32 %v168, %v183
  %v187 = vadd.f32 %v169, %v183
  %v188 = vadd.f32 %v170, %v183
  %v189 = vadd.f32 %v171, %v183
  %v190 = vadd.f32 %v172, %v183
  %v191 = vadd.f32 %v173, %v183
  %v192 = vadd.f32 %v174, %v183
  %v193 = vadd.f32 %v175, %v183
  %v194 = vadd.f32 %v176, %v183
  %v195 = vadd.f32 %v177, %v183
  %v196 = vadd.f32 %v178, %v183
  %v197 = vadd.f32 %v179, %v183
  %v198 = vadd.f32 %v180, %v183
  %v199 = vadd.f32 %v181, %v183
  %v200 = vld [vmem:[%s3] sm:$0xf]
  %v201 = vld [vmem:[%s3 + $0x4] sm:$0xf]
  %v202 = vld [vmem:[%s3 + $0x8] sm:$0xf]
  %v203 = vld [vmem:[%s3 + $0xc] sm:$0xf]
  %v204 = vld [vmem:[%s3 + $0x10] sm:$0xf]
  %v205 = vld [vmem:[%s3 + $0x14] sm:$0xf]
  %v206 = vld [vmem:[%s3 + $0x18] sm:$0xf]
  %v207 = vld [vmem:[%s3 + $0x1c] sm:$0xf]
  %v208 = vld [vmem:[%s3 + $0x20] sm:$0xf]
  %v209 = vld [vmem:[%s3 + $0x24] sm:$0xf]
  %v210 = vld [vmem:[%s3 + $0x28] sm:$0xf]
  %v211 = vld [vmem:[%s3 + $0x2c] sm:$0xf]
  %v212 = vld [vmem:[%s3 + $0x30] sm:$0xf]
  %v213 = vld [vmem:[%s3 + $0x34] sm:$0xf]
  %v214 = vld [vmem:[%s3 + $0x38] sm:$0xf]
  %v215 = vld [vmem:[%s3 + $0x3c] sm:$0xf]
  %v216 = vunpack.c.l.bf16 %v200
  %v217 = vunpack.c.l.bf16 %v201
  %v218 = vunpack.c.l.bf16 %v202
  %v219 = vunpack.c.l.bf16 %v203
  %v220 = vunpack.c.l.bf16 %v204
  %v221 = vunpack.c.l.bf16 %v205
  %v222 = vunpack.c.l.bf16 %v206
  %v223 = vunpack.c.l.bf16 %v207
  %v224 = vunpack.c.l.bf16 %v208
  %v225 = vunpack.c.l.bf16 %v209
  %v226 = vunpack.c.l.bf16 %v210
  %v227 = vunpack.c.l.bf16 %v211
  %v228 = vunpack.c.l.bf16 %v212
  %v229 = vunpack.c.l.bf16 %v213
  %v230 = vunpack.c.l.bf16 %v214
  %v231 = vunpack.c.l.bf16 %v215
  %vm232 = vcmask 654336
  %v233 = vsel %vm232, %v216, 0.0
  %v234 = vsel %vm232, %v217, 0.0
  %v235 = vsel %vm232, %v218, 0.0
  %v236 = vsel %vm232, %v219, 0.0
  %v237 = vsel %vm232, %v220, 0.0
  %v238 = vsel %vm232, %v221, 0.0
  %v239 = vsel %vm232, %v222, 0.0
  %v240 = vsel %vm232, %v223, 0.0
  %v241 = vsel %vm232, %v224, 0.0
  %v242 = vsel %vm232, %v225, 0.0
  %v243 = vsel %vm232, %v226, 0.0
  %v244 = vsel %vm232, %v227, 0.0
  %v245 = vsel %vm232, %v228, 0.0
  %v246 = vsel %vm232, %v229, 0.0
  %v247 = vsel %vm232, %v230, 0.0
  %v248 = vsel %vm232, %v231, 0.0
  %v249 = vadd.f32 %v184, %v233
  %v250 = vadd.f32 %v185, %v234
  %v251 = vadd.f32 %v186, %v235
  %v252 = vadd.f32 %v187, %v236
  %v253 = vadd.f32 %v188, %v237
  %v254 = vadd.f32 %v189, %v238
  %v255 = vadd.f32 %v190, %v239
  %v256 = vadd.f32 %v191, %v240
  %v257 = vadd.f32 %v192, %v241
  %v258 = vadd.f32 %v193, %v242
  %v259 = vadd.f32 %v194, %v243
  %v260 = vadd.f32 %v195, %v244
  %v261 = vadd.f32 %v196, %v245
  %v262 = vadd.f32 %v197, %v246
  %v263 = vadd.f32 %v198, %v247
  %v264 = vadd.f32 %v199, %v248
  %v265 = vpack.c.bf16 %v249, %v249
  %v266 = vpack.c.bf16 %v250, %v250
  %v267 = vpack.c.bf16 %v251, %v251
  %v268 = vpack.c.bf16 %v252, %v252
  %v269 = vpack.c.bf16 %v253, %v253
  %v270 = vpack.c.bf16 %v254, %v254
  %v271 = vpack.c.bf16 %v255, %v255
  %v272 = vpack.c.bf16 %v256, %v256
  %v273 = vpack.c.bf16 %v257, %v257
  %v274 = vpack.c.bf16 %v258, %v258
  %v275 = vpack.c.bf16 %v259, %v259
  %v276 = vpack.c.bf16 %v260, %v260
  %v277 = vpack.c.bf16 %v261, %v261
  %v278 = vpack.c.bf16 %v262, %v262
  %v279 = vpack.c.bf16 %v263, %v263
  %v280 = vpack.c.bf16 %v264, %v264
  %vm281 = vcmask 781312
  %282 = vst.msk [vmem:[%s4] sm:$0xf] %vm281, %v265
  %283 = vst.msk [vmem:[%s4 + $0x4] sm:$0xf] %vm281, %v266
  %284 = vst.msk [vmem:[%s4 + $0x8] sm:$0xf] %vm281, %v267
  %285 = vst.msk [vmem:[%s4 + $0xc] sm:$0xf] %vm281, %v268
  %286 = vst.msk [vmem:[%s4 + $0x10] sm:$0xf] %vm281, %v269
  %287 = vst.msk [vmem:[%s4 + $0x14] sm:$0xf] %vm281, %v270
  %288 = vst.msk [vmem:[%s4 + $0x18] sm:$0xf] %vm281, %v271
  %289 = vst.msk [vmem:[%s4 + $0x1c] sm:$0xf] %vm281, %v272
  %290 = vst.msk [vmem:[%s4 + $0x20] sm:$0xf] %vm281, %v273
  %291 = vst.msk [vmem:[%s4 + $0x24] sm:$0xf] %vm281, %v274
  %292 = vst.msk [vmem:[%s4 + $0x28] sm:$0xf] %vm281, %v275
  %293 = vst.msk [vmem:[%s4 + $0x2c] sm:$0xf] %vm281, %v276
  %294 = vst.msk [vmem:[%s4 + $0x30] sm:$0xf] %vm281, %v277
  %295 = vst.msk [vmem:[%s4 + $0x34] sm:$0xf] %vm281, %v278
  %296 = vst.msk [vmem:[%s4 + $0x38] sm:$0xf] %vm281, %v279
  %297 = vst.msk [vmem:[%s4 + $0x3c] sm:$0xf] %vm281, %v280
  // Predicated region
  $region18: #{_lambda_.14} parent=0 // pred_check
    _
  $region19: #{_lambda_.14} parent=0 // pred_check_branch
    %299 = sbr.rel (0) target = $region21
  $region20: #{_lambda_.14} parent=0 // pred_region
    _
  $region21: #{_lambda_.14} parent=0 // pred_fallthru
    _
  // Predicated region
  $region22: #{_lambda_.14} parent=0 // pred_check
    _
  $region23: #{_lambda_.14} parent=0 // pred_check_branch
    %301 = sbr.rel (0) target = $region25
  $region24: #{_lambda_.14} parent=0 // pred_region
    _
  $region25: #{_lambda_.14} parent=0 // pred_fallthru
    _

// kernel: _lambda_.15
$region0: #{_lambda_.15}
  #allocation0 [shape = 'u32[]', space=smem, size = 0x4, offset = 0x4, fixed_abs, tag = 'smem constant byte address 0x4 - core index']
  #allocation1 [shape = 'u32[72,128]{1,0:T(1,128)}', space=vmem, size = 0x9000, scoped, tag = 'internal scratch']
  %s0 = inlined_call_operand.vmem [shape: bf16[2,64,96], index: 0, kind: input, shape index: {}]
  %s1 = inlined_call_operand.vmem [shape: f32[2,96], index: 1, kind: input, shape index: {}]
  %s2 = inlined_call_operand.vmem [shape: bf16[96,10], index: 2, kind: input, shape index: {}]
  %s3 = inlined_call_operand.vmem [shape: f32[1,10], index: 3, kind: input, shape index: {}]
  %s4 = inlined_call_operand.hbm [shape: f32[2,10], index: 4, kind: output, shape index: {}]
  %s5 = sld [smem:[#allocation0]]
  $region26: #{_lambda_.15} parent=0
    _
  %s7 = ssub.s32 1, %s5
  %s8 = scalar_select 0, %s7, %s5
  $region1: #{_lambda_.15} parent=0
    #allocation2 [shape = 'u8[1024]{0}', space=vmem, size = 0x400, scoped, tag = 'output window, operand 0, single buffered']
    #allocation3 [shape = 's32[1]{0}', space=sflag, size = 0x4, scoped, tag = 'scoped memory for _lambda_.15']
    %9 = vsyncpa [#allocation3], 0
    // Predicated region
    $region2: #{_lambda_.15} parent=1 // pred_check
      _
    $region3: #{_lambda_.15} parent=1 // pred_check_branch
      %11 = sbr.rel (0) target = $region5
    $region4: #{_lambda_.15} parent=1 // pred_region
      _
    $region5: #{_lambda_.15} parent=1 // pred_fallthru
      _
    // Predicated region
    $region6: #{_lambda_.15} parent=1 // pred_check
      _
    $region7: #{_lambda_.15} parent=1 // pred_check_branch
      %13 = sbr.rel (0) target = $region9
    $region8: #{_lambda_.15} parent=1 // pred_region
      _
    $region9: #{_lambda_.15} parent=1 // pred_fallthru
      _
    // Predicated region
    $region10: #{_lambda_.15} parent=1 // pred_check
      _
    $region11: #{_lambda_.15} parent=1 // pred_check_branch
      %15 = sbr.rel (0) target = $region13
    $region12: #{_lambda_.15} parent=1 // pred_region
      _
    $region13: #{_lambda_.15} parent=1 // pred_fallthru
      _
    // Predicated region
    $region14: #{_lambda_.15} parent=1 // pred_check
      _
    $region15: #{_lambda_.15} parent=1 // pred_check_branch
      %17 = sbr.rel (0) target = $region17
    $region16: #{_lambda_.15} parent=1 // pred_region
      _
    $region17: #{_lambda_.15} parent=1 // pred_fallthru
      _
    %v19 = vld [vmem:[%s0] sm:$0xf]
    %v20 = vld [vmem:[%s0 + $0x4] sm:$0xf]
    %v21 = vld [vmem:[%s0 + $0x8] sm:$0xf]
    %v22 = vld [vmem:[%s0 + $0xc] sm:$0xf]
    %v23 = vld [vmem:[%s0 + $0x10] sm:$0xf]
    %v24 = vld [vmem:[%s0 + $0x14] sm:$0xf]
    %v25 = vld [vmem:[%s0 + $0x18] sm:$0xf]
    %v26 = vld [vmem:[%s0 + $0x1c] sm:$0xf]
    %v27 = vld [vmem:[%s0 + $0x20] sm:$0xf]
    %v28 = vld [vmem:[%s0 + $0x24] sm:$0xf]
    %v29 = vld [vmem:[%s0 + $0x28] sm:$0xf]
    %v30 = vld [vmem:[%s0 + $0x2c] sm:$0xf]
    %v31 = vld [vmem:[%s0 + $0x30] sm:$0xf]
    %v32 = vld [vmem:[%s0 + $0x34] sm:$0xf]
    %v33 = vld [vmem:[%s0 + $0x38] sm:$0xf]
    %v34 = vld [vmem:[%s0 + $0x3c] sm:$0xf]
    %v35 = vunpack.c.l.bf16 %v19
    %v36 = vunpack.c.l.bf16 %v20
    %v37 = vunpack.c.l.bf16 %v21
    %v38 = vunpack.c.l.bf16 %v22
    %v39 = vunpack.c.l.bf16 %v23
    %v40 = vunpack.c.l.bf16 %v24
    %v41 = vunpack.c.l.bf16 %v25
    %v42 = vunpack.c.l.bf16 %v26
    %v43 = vunpack.c.l.bf16 %v27
    %v44 = vunpack.c.l.bf16 %v28
    %v45 = vunpack.c.l.bf16 %v29
    %v46 = vunpack.c.l.bf16 %v30
    %v47 = vunpack.c.l.bf16 %v31
    %v48 = vunpack.c.l.bf16 %v32
    %v49 = vunpack.c.l.bf16 %v33
    %v50 = vunpack.c.l.bf16 %v34
    %v51 = vld [vmem:[%s1] sm:$0x1]
    %v52 = vperm.slane %v51, 0
    %v53 = vmul.f32 %v35, %v52
    %v54 = vmul.f32 %v36, %v52
    %v55 = vmul.f32 %v37, %v52
    %v56 = vmul.f32 %v38, %v52
    %v57 = vmul.f32 %v39, %v52
    %v58 = vmul.f32 %v40, %v52
    %v59 = vmul.f32 %v41, %v52
    %v60 = vmul.f32 %v42, %v52
    %v61 = vmul.f32 %v43, %v52
    %v62 = vmul.f32 %v44, %v52
    %v63 = vmul.f32 %v45, %v52
    %v64 = vmul.f32 %v46, %v52
    %v65 = vmul.f32 %v47, %v52
    %v66 = vmul.f32 %v48, %v52
    %v67 = vmul.f32 %v49, %v52
    %v68 = vmul.f32 %v50, %v52
    %v69 = vld [vmem:[%s1 + $0x1] sm:$0x1]
    %v70 = vperm.slane %v69, 0
    %v71 = vadd.f32 %v53, %v70
    %v72 = vadd.f32 %v54, %v70
    %v73 = vadd.f32 %v55, %v70
    %v74 = vadd.f32 %v56, %v70
    %v75 = vadd.f32 %v57, %v70
    %v76 = vadd.f32 %v58, %v70
    %v77 = vadd.f32 %v59, %v70
    %v78 = vadd.f32 %v60, %v70
    %v79 = vadd.f32 %v61, %v70
    %v80 = vadd.f32 %v62, %v70
    %v81 = vadd.f32 %v63, %v70
    %v82 = vadd.f32 %v64, %v70
    %v83 = vadd.f32 %v65, %v70
    %v84 = vadd.f32 %v66, %v70
    %v85 = vadd.f32 %v67, %v70
    %v86 = vadd.f32 %v68, %v70
    %v87 = vmax.f32 %v71, 0.0
    %v88 = vmax.f32 %v72, 0.0
    %v89 = vmax.f32 %v73, 0.0
    %v90 = vmax.f32 %v74, 0.0
    %v91 = vmax.f32 %v75, 0.0
    %v92 = vmax.f32 %v76, 0.0
    %v93 = vmax.f32 %v77, 0.0
    %v94 = vmax.f32 %v78, 0.0
    %v95 = vmax.f32 %v79, 0.0
    %v96 = vmax.f32 %v80, 0.0
    %v97 = vmax.f32 %v81, 0.0
    %v98 = vmax.f32 %v82, 0.0
    %v99 = vmax.f32 %v83, 0.0
    %v100 = vmax.f32 %v84, 0.0
    %v101 = vmax.f32 %v85, 0.0
    %v102 = vmax.f32 %v86, 0.0
    %vm103 = vcmask 785408
    %v104 = vsel %vm103, %v87, 0.0
    %v105 = vsel %vm103, %v88, 0.0
    %v106 = vadd.f32 %v104, %v105
    %v107 = vsel %vm103, %v89, 0.0
    %v108 = vadd.f32 %v106, %v107
    %v109 = vsel %vm103, %v90, 0.0
    %v110 = vadd.f32 %v108, %v109
    %v111 = vsel %vm103, %v91, 0.0
    %v112 = vadd.f32 %v110, %v111
    %v113 = vsel %vm103, %v92, 0.0
    %v114 = vadd.f32 %v112, %v113
    %v115 = vsel %vm103, %v93, 0.0
    %v116 = vadd.f32 %v114, %v115
    %v117 = vsel %vm103, %v94, 0.0
    %v118 = vadd.f32 %v116, %v117
    %v119 = vrot.slane %v118, 4
    %v120 = vadd.f32 %v118, %v119
    %v121 = vrot.slane %v120, 2
    %v122 = vadd.f32 %v120, %v121
    %v123 = vrot.slane %v122, 1
    %v124 = vadd.f32 %v122, %v123
    %v125 = vsel %vm103, %v95, 0.0
    %v126 = vsel %vm103, %v96, 0.0
    %v127 = vadd.f32 %v125, %v126
    %v128 = vsel %vm103, %v97, 0.0
    %v129 = vadd.f32 %v127, %v128
    %v130 = vsel %vm103, %v98, 0.0
    %v131 = vadd.f32 %v129, %v130
    %v132 = vsel %vm103, %v99, 0.0
    %v133 = vadd.f32 %v131, %v132
    %v134 = vsel %vm103, %v100, 0.0
    %v135 = vadd.f32 %v133, %v134
    %v136 = vsel %vm103, %v101, 0.0
    %v137 = vadd.f32 %v135, %v136
    %v138 = vsel %vm103, %v102, 0.0
    %v139 = vadd.f32 %v137, %v138
    %v140 = vrot.slane %v139, 4
    %v141 = vadd.f32 %v139, %v140
    %v142 = vrot.slane %v141, 2
    %v143 = vadd.f32 %v141, %v142
    %v144 = vrot.slane %v143, 1
    %v145 = vadd.f32 %v143, %v144
    %v146 = vrcp.pop 64.0
    %v147 = vmul.f32 64.0, %v146
    %v148 = vsub.f32 1.0, %v147
    %v149 = vmul.f32 %v146, %v148
    %v150 = vadd.f32 %v146, %v149
    %vm151 = vweird.f32 %v146
    %v152 = vsel %vm151, %v146, %v150
    %v153 = vmul.f32 %v124, %v152
    %v154 = vmul.f32 %v145, %v152
    %v155 = vpack.c.bf16 %v153, %v153
    %v156 = vpack.c.bf16 %v154, %v154
    %v157 = vld [vmem:[%s2] sm:$0xf]
    %v158 = vld [vmem:[%s2 + $0x4] sm:$0xf]
    %v159 = vld [vmem:[%s2 + $0x8] sm:$0xf]
    %v160 = vld [vmem:[%s2 + $0xc] sm:$0xf]
    %v161 = vld [vmem:[%s2 + $0x10] sm:$0xf]
    %v162 = vld [vmem:[%s2 + $0x14] sm:$0xf]
    %v163 = vld [vmem:[%s2 + $0x18] sm:$0xf]
    %v164 = vld [vmem:[%s2 + $0x1c] sm:$0xf]
    %v165 = vld [vmem:[%s2 + $0x20] sm:$0xf]
    %v166 = vld [vmem:[%s2 + $0x24] sm:$0xf]
    %v167 = vld [vmem:[%s2 + $0x28] sm:$0xf]
    %v168 = vld [vmem:[%s2 + $0x2c] sm:$0xf]
    %v169 = vld [vmem:[%s3] sm:$0x1]
    %v171 = vperm.slane %v169, 0
    %v175 = vunpack.c.l.b16 %v155
    %v176 = vunpack.c.l.b16 %v156
    %vm177 = vcmask 1041409
    %v178 = vsel %vm177, %v176, %v175
    %v179 = vpack.c.b16 %v178, %v178
    %v192 = vunpack.c.l.b16 %v157
    %v193 = vunpack.c.l.b16 %v158
    %v194 = vunpack.c.l.b16 %v159
    %v195 = vunpack.c.l.b16 %v160
    %v196 = vunpack.c.l.b16 %v161
    %v197 = vunpack.c.l.b16 %v162
    %v198 = vunpack.c.l.b16 %v163
    %v199 = vunpack.c.l.b16 %v164
    %v200 = vunpack.c.l.b16 %v165
    %v201 = vunpack.c.l.b16 %v166
    %v202 = vunpack.c.l.b16 %v167
    %v203 = vunpack.c.l.b16 %v168
    %v204 = vpack.c.b16 %v193, %v192
    %v205 = vpack.c.b16 %v195, %v194
    %v206 = vpack.c.b16 %v197, %v196
    %v207 = vpack.c.b16 %v199, %v198
    %v208 = vpack.c.b16 %v201, %v200
    %v209 = vpack.c.b16 %v203, %v202
    %v217 = vsel %vm103, %v179, 0
    %219 = vmatpush.bf16.msra.mxu0 0
    %220 = vmatpush.bf16.msra.mxu0 0
    %221 = vmatpush.bf16.msra.mxu0 %v209
    %222 = vmatpush.bf16.msra.mxu0 %v208
    %223 = vmatpush.bf16.msra.mxu0 %v207
    %224 = vmatpush.bf16.msra.mxu0 %v206
    %225 = vmatpush.bf16.msra.mxu0 %v205
    %226 = vmatpush.bf16.msra.mxu0 %v204
    %227 = vmatmul.bf16.gmra.mxu0 %v217
    %v228 = vpop.f32.mrf.mxu0
    %v229 = vadd.f32 %v171, %v228
    %v230 = vpop.f32.mrf.mxu0
    %231 = vdwg.mxu0
    %vm232 = vcmask 74752
    %233 = vst.msk [vmem:[#allocation2] sm:$0x3] %vm232, %v229
    // Predicated region
    $region18: #{_lambda_.15} parent=1 // pred_check
      _
    $region19: #{_lambda_.15} parent=1 // pred_check_branch
      %235 = sbr.rel (0) target = $region21
    $region20: #{_lambda_.15} parent=1 // pred_region
      %237 = vsyncadd [#allocation3], 0
      %s239 = sshll.u32 [#allocation2], 4
      %s240 = int_to_ptr.vmem [resolvable:$true] %s239
      %s241 = sshll.u32 %s4, 4
      %s242 = int_to_ptr.hbm [resolvable:$true] %s241
      %244 = dma.vmem_to_hbm [thread:$0]  %s240, 32, %s242, [#allocation3]
    $region21: #{_lambda_.15} parent=1 // pred_fallthru
      _
    // Predicated region
    $region22: #{_lambda_.15} parent=1 // pred_check
      _
    $region23: #{_lambda_.15} parent=1 // pred_check_branch
      %246 = sbr.rel (0) target = $region25
    $region24: #{_lambda_.15} parent=1 // pred_region
      %248 = dma.done [#allocation3], 32
    $region25: #{_lambda_.15} parent=1 // pred_fallthru
      _
    %249 = vsyncpa [#allocation3], 1

// kernel: _lambda_.13
$region0: #{_lambda_.13}
  #allocation0 [shape = 'u32[]', space=smem, size = 0x4, offset = 0x4, fixed_abs, tag = 'smem constant byte address 0x4 - core index']
  #allocation1 [shape = 'u32[72,128]{1,0:T(1,128)}', space=vmem, size = 0x9000, scoped, tag = 'internal scratch']
  %s0 = inlined_call_operand.vmem [shape: bf16[2,18,9,48], index: 0, kind: input, shape index: {}]
  %s1 = inlined_call_operand.vmem [shape: bf16[216,24], index: 1, kind: input, shape index: {}]
  %s2 = inlined_call_operand.vmem [shape: f32[2,24], index: 2, kind: input, shape index: {}]
  %s3 = inlined_call_operand.vmem [shape: bf16[2,8,8,24], index: 3, kind: output, shape index: {}]
  %s4 = sld [smem:[#allocation0]]
  $region45: #{_lambda_.13} parent=0
    _
  %s6 = ssub.s32 1, %s4
  %s7 = scalar_select 0, %s6, %s4
  loop: start=0, step=1, limit=4
  $region2: #{_lambda_.13} parent=0 // loop_pre_header
    _
  $region3: #{_lambda_.13} parent=0 // loop_header
    %s9 = sphi 0, %s13
    %p10 = scmp.ge.s32.totalorder %s9, 4
    %s19 = sphi 0, %s21
    %s22 = sphi 0, %s19
    %s23 = sphi 0, %s22
    %s39 = sphi 0, %s23
    %s43 = sphi 0, %s43
    %s45 = sphi 0, %s43
    %s46 = sphi 0, %s45
    %s60 = sphi 0, %s46
    %s64 = sphi 0, %s64
    %s66 = sphi 0, %s64
    %s67 = sphi 0, %s66
    %s81 = sphi 0, %s67
    %s87 = sphi 0, %s89
    %s90 = sphi 0, %s87
    %s91 = sphi 0, %s90
    %s107 = sphi 0, %s91
  $region4: #{_lambda_.13} parent=0 // loop_header_branch
    %12 = sbr.rel (%p10) target = $region8
  $region5: #{_lambda_.13} parent=0 // loop_body
    %s14 = ssub.s32 %s9, 1
    %s15 = ssub.s32 %s9, 2
    %s16 = sadd.s32 %s9, 1
    %s17 = ssub.s32 %s9, %s16
    %p18 = scmp.eq.s32.totalorder %s17, 0
    %s20 = sadd.s32 %s19, 1
    %s21 = scalar_select %p18, %s19, %s20
    %p24 = pneg %p18
    %p25 = scmp.eq.s32.totalorder %s9, 1
    %p26 = por %p24, %p25
    %p27 = scmp.ne.s32.totalorder %s19, %s22
    %p28 = scmp.eq.s32.totalorder %s9, 0
    %p29 = por %p27, %p28
    %p30 = scmp.ne.s32.totalorder %s19, %s22
    %p31 = scmp.eq.s32.totalorder %s14, 1
    %p32 = por %p30, %p31
    %p33 = scmp.ne.s32.totalorder %s22, %s23
    %p34 = scmp.eq.s32.totalorder %s14, 0
    %p35 = por %p33, %p34
    %p36 = scmp.ne.s32.totalorder %s22, %s23
    %p37 = scmp.eq.s32.totalorder %s15, 1
    %p38 = por %p36, %p37
    %p40 = scmp.ne.s32.totalorder %s23, %s39
    %p41 = scmp.eq.s32.totalorder %s15, 0
    %p42 = por %p40, %p41
    %s44 = sadd.s32 %s43, 1
    %p47 = scmp.eq.s32.totalorder %s9, 1
    %p48 = scmp.ne.s32.totalorder %s43, %s45
    %p49 = scmp.eq.s32.totalorder %s9, 0
    %p50 = por %p48, %p49
    %p51 = scmp.ne.s32.totalorder %s43, %s45
    %p52 = scmp.eq.s32.totalorder %s14, 1
    %p53 = por %p51, %p52
    %p54 = scmp.ne.s32.totalorder %s45, %s46
    %p55 = scmp.eq.s32.totalorder %s14, 0
    %p56 = por %p54, %p55
    %p57 = scmp.ne.s32.totalorder %s45, %s46
    %p58 = scmp.eq.s32.totalorder %s15, 1
    %p59 = por %p57, %p58
    %p61 = scmp.ne.s32.totalorder %s46, %s60
    %p62 = scmp.eq.s32.totalorder %s15, 0
    %p63 = por %p61, %p62
    %s65 = sadd.s32 %s64, 1
    %p68 = scmp.eq.s32.totalorder %s9, 1
    %p69 = scmp.ne.s32.totalorder %s64, %s66
    %p70 = scmp.eq.s32.totalorder %s9, 0
    %p71 = por %p69, %p70
    %p72 = scmp.ne.s32.totalorder %s64, %s66
    %p73 = scmp.eq.s32.totalorder %s14, 1
    %p74 = por %p72, %p73
    %p75 = scmp.ne.s32.totalorder %s66, %s67
    %p76 = scmp.eq.s32.totalorder %s14, 0
    %p77 = por %p75, %p76
    %p78 = scmp.ne.s32.totalorder %s66, %s67
    %p79 = scmp.eq.s32.totalorder %s15, 1
    %p80 = por %p78, %p79
    %p82 = scmp.ne.s32.totalorder %s67, %s81
    %p83 = scmp.eq.s32.totalorder %s15, 0
    %p84 = por %p82, %p83
    %s85 = ssub.s32 %s9, %s16
    %p86 = scmp.eq.s32.totalorder %s85, 0
    %s88 = sadd.s32 %s87, 1
    %s89 = scalar_select %p86, %s87, %s88
    %p92 = pneg %p86
    %p93 = scmp.eq.s32.totalorder %s9, 1
    %p94 = por %p92, %p93
    %p95 = scmp.ne.s32.totalorder %s87, %s90
    %p96 = scmp.eq.s32.totalorder %s9, 0
    %p97 = por %p95, %p96
    %p98 = scmp.ne.s32.totalorder %s87, %s90
    %p99 = scmp.eq.s32.totalorder %s14, 1
    %p100 = por %p98, %p99
    %p101 = scmp.ne.s32.totalorder %s90, %s91
    %p102 = scmp.eq.s32.totalorder %s14, 0
    %p103 = por %p101, %p102
    %p104 = scmp.ne.s32.totalorder %s90, %s91
    %p105 = scmp.eq.s32.totalorder %s15, 1
    %p106 = por %p104, %p105
    %p108 = scmp.ne.s32.totalorder %s91, %s107
    %p109 = scmp.eq.s32.totalorder %s15, 0
    %p110 = por %p108, %p109
    %p111 = scmp.le.s32.totalorder 1, %s9
    %p112 = scmp.lt.s32.totalorder %s9, 3
    %p113 = pnand %p111, %p112
    %p114 = pneg %p113
    // Predicated region
    $region9: #{_lambda_.13} parent=5 // pred_check
      _
    $region10: #{_lambda_.13} parent=5 // pred_check_branch
      %116 = sbr.rel (%p113) target = $region12
    $region11: #{_lambda_.13} parent=5 // pred_region
      %s117 = ssub.s32 %s9, 1
      // Predicated region
      $region13: #{_lambda_.13} parent=11 // pred_check
        %p118 = pneg %p56
      $region14: #{_lambda_.13} parent=11 // pred_check_branch
        %120 = sbr.rel (%p118) target = $region16
      $region15: #{_lambda_.13} parent=11 // pred_region
        _
      $region16: #{_lambda_.13} parent=11 // pred_fallthru
        _
      // Predicated region
      $region17: #{_lambda_.13} parent=11 // pred_check
        %p121 = pneg %p77
      $region18: #{_lambda_.13} parent=11 // pred_check_branch
        %123 = sbr.rel (%p121) target = $region20
      $region19: #{_lambda_.13} parent=11 // pred_region
        _
      $region20: #{_lambda_.13} parent=11 // pred_fallthru
        _
    $region12: #{_lambda_.13} parent=5 // pred_fallthru
      _
    %p124 = scmp.lt.s32.totalorder %s9, 2
    // Predicated region
    $region21: #{_lambda_.13} parent=5 // pred_check
      %p125 = pneg %p124
    $region22: #{_lambda_.13} parent=5 // pred_check_branch
      %127 = sbr.rel (%p125) target = $region24
    $region23: #{_lambda_.13} parent=5 // pred_region
      // Predicated region
      $region25: #{_lambda_.13} parent=23 // pred_check
        %p128 = pneg %p29
      $region26: #{_lambda_.13} parent=23 // pred_check_branch
        %130 = sbr.rel (%p128) target = $region28
      $region27: #{_lambda_.13} parent=23 // pred_region
        %p131 = scmp.lt.s32.totalorder %s9, 1
        %s132 = scalar_select %p131, %s9, 1
        %s133 = smul.addr %s132, 36
        %s134 = smul.addr %s133, 4
        %s135 = scalar_lea.vmem %s0, %s134
      $region28: #{_lambda_.13} parent=23 // pred_fallthru
        _
    $region24: #{_lambda_.13} parent=5 // pred_fallthru
      _
    %p136 = scmp.le.s32.totalorder 1, %s9
    %p137 = scmp.lt.s32.totalorder %s9, 3
    %p138 = pnand %p136, %p137
    %p139 = pneg %p138
    // Predicated region
    $region29: #{_lambda_.13} parent=5 // pred_check
      _
    $region30: #{_lambda_.13} parent=5 // pred_check_branch
      %141 = sbr.rel (%p138) target = $region32
    $region31: #{_lambda_.13} parent=5 // pred_region
      %s142 = ssub.s32 %s9, 1
      %p143 = scmp.lt.s32.totalorder %s14, 1
      %s144 = scalar_select %p143, %s14, 1
      %s145 = smul.addr %s144, 36
      %s146 = smul.addr %s145, 4
      %s147 = scalar_lea.vmem %s0, %s146
      %p148 = pneg %p35
      %p149 = pneg %p32
      %p150 = pneg %p56
      %p151 = pneg %p53
      %p152 = pneg %p77
      %p153 = pneg %p74
      %p154 = pneg %p103
      %p155 = pneg %p100
      %p156 = scmp.lt.s32.totalorder %s14, 1
      %s157 = scalar_select %p156, %s14, 1
      %s158 = smul.addr %s157, 8
      %s159 = smul.addr %s158, 4
      %s160 = scalar_lea.vmem %s3, %s159
      %p161 = scmp.lt.s32.totalorder %s14, 1
      %s162 = scalar_select %p161, %s14, 1
      %s163 = smul.addr %s162, 36
      %s164 = smul.addr %s163, 4
      %s165 = scalar_lea.vmem %s0, %s164
      %p166 = scmp.lt.s32.totalorder %s14, 1
      %s167 = scalar_select %p166, %s14, 1
      %s168 = smul.addr %s167, 8
      %s169 = smul.addr %s168, 4
      %s170 = scalar_lea.vmem %s3, %s169
      %v172 = vld [vmem:[%s165] sm:$0xf]
      %v173 = vld [vmem:[%s165 + $0x4] sm:$0x1]
      %v174 = vld [vmem:[%s165 + $0x8] sm:$0xf]
      %v175 = vld [vmem:[%s165 + $0xc] sm:$0x1]
      %v176 = vld [vmem:[%s165 + $0x10] sm:$0xf]
      %v177 = vld [vmem:[%s165 + $0x14] sm:$0x1]
      %v178 = vld [vmem:[%s165 + $0x18] sm:$0xf]
      %v179 = vld [vmem:[%s165 + $0x1c] sm:$0x1]
      %v180 = vld [vmem:[%s165 + $0x20] sm:$0xf]
      %v181 = vld [vmem:[%s165 + $0x24] sm:$0x1]
      %v182 = vld [vmem:[%s165 + $0x28] sm:$0xf]
      %v183 = vld [vmem:[%s165 + $0x2c] sm:$0x1]
      %v184 = vld [vmem:[%s165 + $0x30] sm:$0xf]
      %v185 = vld [vmem:[%s165 + $0x34] sm:$0x1]
      %v186 = vld [vmem:[%s165 + $0x38] sm:$0xf]
      %v187 = vld [vmem:[%s165 + $0x3c] sm:$0x1]
      %v188 = vld [vmem:[%s165 + $0x40] sm:$0xf]
      %v189 = vld [vmem:[%s165 + $0x44] sm:$0x1]
      %v190 = vld [vmem:[%s165 + $0x48] sm:$0xf]
      %v191 = vld [vmem:[%s165 + $0x4c] sm:$0x1]
      %v192 = vld [vmem:[%s165 + $0x50] sm:$0xf]
      %v193 = vld [vmem:[%s165 + $0x54] sm:$0x1]
      %v194 = vld [vmem:[%s165 + $0x58] sm:$0xf]
      %v195 = vld [vmem:[%s165 + $0x5c] sm:$0x1]
      %v196 = vld [vmem:[%s165 + $0x60] sm:$0xf]
      %v197 = vld [vmem:[%s165 + $0x64] sm:$0x1]
      %v198 = vld [vmem:[%s165 + $0x68] sm:$0xf]
      %v199 = vld [vmem:[%s165 + $0x6c] sm:$0x1]
      %v200 = vld [vmem:[%s165 + $0x70] sm:$0xf]
      %v201 = vld [vmem:[%s165 + $0x74] sm:$0x1]
      %v202 = vld [vmem:[%s165 + $0x78] sm:$0xf]
      %v203 = vld [vmem:[%s165 + $0x7c] sm:$0x1]
      %v204 = vld [vmem:[%s165 + $0x80] sm:$0xf]
      %v205 = vld [vmem:[%s165 + $0x84] sm:$0x1]
      %v222 = vunpack.c.l.b16 %v172
      %v223 = vunpack.c.l.b16 %v173
      %v224 = vunpack.c.l.b16 %v176
      %v225 = vunpack.c.l.b16 %v177
      %v226 = vunpack.c.l.b16 %v180
      %v227 = vunpack.c.l.b16 %v181
      %v228 = vunpack.c.l.b16 %v184
      %v229 = vunpack.c.l.b16 %v185
      %v230 = vunpack.c.l.b16 %v188
      %v231 = vunpack.c.l.b16 %v189
      %v232 = vunpack.c.l.b16 %v192
      %v233 = vunpack.c.l.b16 %v193
      %v234 = vunpack.c.l.b16 %v196
      %v235 = vunpack.c.l.b16 %v197
      %v236 = vunpack.c.l.b16 %v200
      %v237 = vunpack.c.l.b16 %v201
      %v238 = vpack.c.b16 %v223, %v222
      %v239 = vpack.c.b16 %v225, %v224
      %v240 = vpack.c.b16 %v227, %v226
      %v241 = vpack.c.b16 %v229, %v228
      %v242 = vpack.c.b16 %v231, %v230
      %v243 = vpack.c.b16 %v233, %v232
      %v244 = vpack.c.b16 %v235, %v234
      %v245 = vpack.c.b16 %v237, %v236
      %v247 = vshrl.u32 %v238, 16
      %v249 = vshll.u32 %v238, 16
      %v251 = vrot.slane %v249, 1
      %v252 = vor.u32 %v247, %v251
      %v254 = vshrl.u32 %v239, 16
      %v256 = vshll.u32 %v239, 16
      %v258 = vrot.slane %v256, 1
      %v259 = vor.u32 %v254, %v258
      %v261 = vshrl.u32 %v240, 16
      %v263 = vshll.u32 %v240, 16
      %v265 = vrot.slane %v263, 1
      %v266 = vor.u32 %v261, %v265
      %v268 = vshrl.u32 %v241, 16
      %v270 = vshll.u32 %v241, 16
      %v272 = vrot.slane %v270, 1
      %v273 = vor.u32 %v268, %v272
      %v275 = vshrl.u32 %v242, 16
      %v277 = vshll.u32 %v242, 16
      %v279 = vrot.slane %v277, 1
      %v280 = vor.u32 %v275, %v279
      %v282 = vshrl.u32 %v243, 16
      %v284 = vshll.u32 %v243, 16
      %v286 = vrot.slane %v284, 1
      %v287 = vor.u32 %v282, %v286
      %v289 = vshrl.u32 %v244, 16
      %v291 = vshll.u32 %v244, 16
      %v293 = vrot.slane %v291, 1
      %v294 = vor.u32 %v289, %v293
      %v296 = vshrl.u32 %v245, 16
      %v298 = vshll.u32 %v245, 16
      %v300 = vrot.slane %v298, 1
      %v301 = vor.u32 %v296, %v300
      %302 = vrot.lane.b32.xlu0 %v252, 48
      %v303 = vpop.permute.xlu0 %302
      %304 = vrot.lane.b32.xlu0 %v259, 48
      %v305 = vpop.permute.xlu0 %304
      %306 = vrot.lane.b32.xlu0 %v266, 48
      %v307 = vpop.permute.xlu0 %306
      %308 = vrot.lane.b32.xlu0 %v273, 48
      %v309 = vpop.permute.xlu0 %308
      %310 = vrot.lane.b32.xlu0 %v280, 48
      %v311 = vpop.permute.xlu0 %310
      %312 = vrot.lane.b32.xlu0 %v287, 48
      %v313 = vpop.permute.xlu0 %312
      %314 = vrot.lane.b32.xlu0 %v294, 48
      %v315 = vpop.permute.xlu0 %314
      %316 = vrot.lane.b32.xlu0 %v301, 48
      %v317 = vpop.permute.xlu0 %316
      %v326 = vunpack.c.l.b16 %v174
      %v327 = vunpack.c.l.b16 %v178
      %v328 = vunpack.c.l.b16 %v182
      %v329 = vunpack.c.l.b16 %v186
      %v330 = vunpack.c.l.b16 %v190
      %v331 = vunpack.c.l.b16 %v194
      %v332 = vunpack.c.l.b16 %v198
      %v333 = vunpack.c.l.b16 %v202
      %v334 = vpack.c.b16 %v326, %v326
      %v335 = vpack.c.b16 %v327, %v327
      %v336 = vpack.c.b16 %v328, %v328
      %v337 = vpack.c.b16 %v329, %v329
      %v338 = vpack.c.b16 %v330, %v330
      %v339 = vpack.c.b16 %v331, %v331
      %v340 = vpack.c.b16 %v332, %v332
      %v341 = vpack.c.b16 %v333, %v333
      %342 = vrot.lane.b32.xlu0 %v334, 72
      %v343 = vpop.permute.xlu0 %342
      %344 = vrot.lane.b32.xlu0 %v335, 72
      %v345 = vpop.permute.xlu0 %344
      %346 = vrot.lane.b32.xlu0 %v336, 72
      %v347 = vpop.permute.xlu0 %346
      %348 = vrot.lane.b32.xlu0 %v337, 72
      %v349 = vpop.permute.xlu0 %348
      %350 = vrot.lane.b32.xlu0 %v338, 72
      %v351 = vpop.permute.xlu0 %350
      %352 = vrot.lane.b32.xlu0 %v339, 72
      %v353 = vpop.permute.xlu0 %352
      %354 = vrot.lane.b32.xlu0 %v340, 72
      %v355 = vpop.permute.xlu0 %354
      %356 = vrot.lane.b32.xlu0 %v341, 72
      %v357 = vpop.permute.xlu0 %356
      %v366 = vunpack.c.l.b16 %v175
      %v367 = vunpack.c.l.b16 %v179
      %v368 = vunpack.c.l.b16 %v183
      %v369 = vunpack.c.l.b16 %v187
      %v370 = vunpack.c.l.b16 %v191
      %v371 = vunpack.c.l.b16 %v195
      %v372 = vunpack.c.l.b16 %v199
      %v373 = vunpack.c.l.b16 %v203
      %v374 = vpack.c.b16 %v366, %v326
      %v375 = vpack.c.b16 %v367, %v327
      %v376 = vpack.c.b16 %v368, %v328
      %v377 = vpack.c.b16 %v369, %v329
      %v378 = vpack.c.b16 %v370, %v330
      %v379 = vpack.c.b16 %v371, %v331
      %v380 = vpack.c.b16 %v372, %v332
      %v381 = vpack.c.b16 %v373, %v333
      %v383 = vshrl.u32 %v374, 16
      %v385 = vshll.u32 %v374, 16
      %v387 = vrot.slane %v385, 1
      %v388 = vor.u32 %v383, %v387
      %v390 = vshrl.u32 %v375, 16
      %v392 = vshll.u32 %v375, 16
      %v394 = vrot.slane %v392, 1
      %v395 = vor.u32 %v390, %v394
      %v397 = vshrl.u32 %v376, 16
      %v399 = vshll.u32 %v376, 16
      %v401 = vrot.slane %v399, 1
      %v402 = vor.u32 %v397, %v401
      %v404 = vshrl.u32 %v377, 16
      %v406 = vshll.u32 %v377, 16
      %v408 = vrot.slane %v406, 1
      %v409 = vor.u32 %v404, %v408
      %v411 = vshrl.u32 %v378, 16
      %v413 = vshll.u32 %v378, 16
      %v415 = vrot.slane %v413, 1
      %v416 = vor.u32 %v411, %v415
      %v418 = vshrl.u32 %v379, 16
      %v420 = vshll.u32 %v379, 16
      %v422 = vrot.slane %v420, 1
      %v423 = vor.u32 %v418, %v422
      %v425 = vshrl.u32 %v380, 16
      %v427 = vshll.u32 %v380, 16
      %v429 = vrot.slane %v427, 1
      %v430 = vor.u32 %v425, %v429
      %v432 = vshrl.u32 %v381, 16
      %v434 = vshll.u32 %v381, 16
      %v436 = vrot.slane %v434, 1
      %v437 = vor.u32 %v432, %v436
      %438 = vrot.lane.b32.xlu0 %v388, 120
      %v439 = vpop.permute.xlu0 %438
      %440 = vrot.lane.b32.xlu0 %v395, 120
      %v441 = vpop.permute.xlu0 %440
      %442 = vrot.lane.b32.xlu0 %v402, 120
      %v443 = vpop.permute.xlu0 %442
      %444 = vrot.lane.b32.xlu0 %v409, 120
      %v445 = vpop.permute.xlu0 %444
      %446 = vrot.lane.b32.xlu0 %v416, 120
      %v447 = vpop.permute.xlu0 %446
      %448 = vrot.lane.b32.xlu0 %v423, 120
      %v449 = vpop.permute.xlu0 %448
      %450 = vrot.lane.b32.xlu0 %v430, 120
      %v451 = vpop.permute.xlu0 %450
      %452 = vrot.lane.b32.xlu0 %v437, 120
      %v453 = vpop.permute.xlu0 %452
      %v455 = vunpack.c.l.b16 %v204
      %v456 = vpack.c.b16 %v224, %v224
      %v457 = vpack.c.b16 %v226, %v226
      %v458 = vpack.c.b16 %v228, %v228
      %v459 = vpack.c.b16 %v230, %v230
      %v460 = vpack.c.b16 %v232, %v232
      %v461 = vpack.c.b16 %v234, %v234
      %v462 = vpack.c.b16 %v236, %v236
      %v463 = vpack.c.b16 %v455, %v455
      %464 = vrot.lane.b32.xlu0 %v456, 16
      %v465 = vpop.permute.xlu0 %464
      %466 = vrot.lane.b32.xlu0 %v457, 16
      %v467 = vpop.permute.xlu0 %466
      %468 = vrot.lane.b32.xlu0 %v458, 16
      %v469 = vpop.permute.xlu0 %468
      %470 = vrot.lane.b32.xlu0 %v459, 16
      %v471 = vpop.permute.xlu0 %470
      %472 = vrot.lane.b32.xlu0 %v460, 16
      %v473 = vpop.permute.xlu0 %472
      %474 = vrot.lane.b32.xlu0 %v461, 16
      %v475 = vpop.permute.xlu0 %474
      %476 = vrot.lane.b32.xlu0 %v462, 16
      %v477 = vpop.permute.xlu0 %476
      %478 = vrot.lane.b32.xlu0 %v463, 16
      %v479 = vpop.permute.xlu0 %478
      %v481 = vunpack.c.l.b16 %v205
      %v482 = vpack.c.b16 %v481, %v455
      %v484 = vshrl.u32 %v482, 16
      %v486 = vshll.u32 %v482, 16
      %v488 = vrot.slane %v486, 1
      %v489 = vor.u32 %v484, %v488
      %490 = vrot.lane.b32.xlu0 %v259, 64
      %v491 = vpop.permute.xlu0 %490
      %492 = vrot.lane.b32.xlu0 %v266, 64
      %v493 = vpop.permute.xlu0 %492
      %494 = vrot.lane.b32.xlu0 %v273, 64
      %v495 = vpop.permute.xlu0 %494
      %496 = vrot.lane.b32.xlu0 %v280, 64
      %v497 = vpop.permute.xlu0 %496
      %498 = vrot.lane.b32.xlu0 %v287, 64
      %v499 = vpop.permute.xlu0 %498
      %500 = vrot.lane.b32.xlu0 %v294, 64
      %v501 = vpop.permute.xlu0 %500
      %502 = vrot.lane.b32.xlu0 %v301, 64
      %v503 = vpop.permute.xlu0 %502
      %504 = vrot.lane.b32.xlu0 %v489, 64
      %v505 = vpop.permute.xlu0 %504
      %vm514 = vcmask 392192
      %v516 = vsel %vm514, %v172, %v303
      %v518 = vsel %vm514, %v176, %v305
      %v520 = vsel %vm514, %v180, %v307
      %v522 = vsel %vm514, %v184, %v309
      %v524 = vsel %vm514, %v188, %v311
      %v526 = vsel %vm514, %v192, %v313
      %v528 = vsel %vm514, %v196, %v315
      %v530 = vsel %vm514, %v200, %v317
      %vm531 = vcmask 588800
      %v533 = vsel %vm531, %v516, %v343
      %v535 = vsel %vm531, %v518, %v345
      %v537 = vsel %vm531, %v520, %v347
      %v539 = vsel %vm531, %v522, %v349
      %v541 = vsel %vm531, %v524, %v351
      %v543 = vsel %vm531, %v526, %v353
      %v545 = vsel %vm531, %v528, %v355
      %v547 = vsel %vm531, %v530, %v357
      %vm548 = vcmask 785408
      %v549 = vsel %vm548, %v533, %v343
      %v550 = vsel %vm548, %v535, %v345
      %v551 = vsel %vm548, %v537, %v347
      %v552 = vsel %vm548, %v539, %v349
      %v553 = vsel %vm548, %v541, %v351
      %v554 = vsel %vm548, %v543, %v353
      %v555 = vsel %vm548, %v545, %v355
      %v556 = vsel %vm548, %v547, %v357
      %vm557 = vcmask 982016
      %v559 = vsel %vm557, %v549, %v439
      %v561 = vsel %vm557, %v550, %v441
      %v563 = vsel %vm557, %v551, %v443
      %v565 = vsel %vm557, %v552, %v445
      %v567 = vsel %vm557, %v553, %v447
      %v569 = vsel %vm557, %v554, %v449
      %v571 = vsel %vm557, %v555, %v451
      %v573 = vsel %vm557, %v556, %v453
      %vm574 = vcmask 130048
      %v576 = vsel %vm574, %v439, %v465
      %v578 = vsel %vm574, %v441, %v467
      %v580 = vsel %vm574, %v443, %v469
      %v582 = vsel %vm574, %v445, %v471
      %v584 = vsel %vm574, %v447, %v473
      %v586 = vsel %vm574, %v449, %v475
      %v588 = vsel %vm574, %v451, %v477
      %v590 = vsel %vm574, %v453, %v479
      %vm591 = vcmask 326656
      %v592 = vsel %vm591, %v576, %v465
      %v593 = vsel %vm591, %v578, %v467
      %v594 = vsel %vm591, %v580, %v469
      %v595 = vsel %vm591, %v582, %v471
      %v596 = vsel %vm591, %v584, %v473
      %v597 = vsel %vm591, %v586, %v475
      %v598 = vsel %vm591, %v588, %v477
      %v599 = vsel %vm591, %v590, %v479
      %vm600 = vcmask 523264
      %v602 = vsel %vm600, %v592, %v491
      %v604 = vsel %vm600, %v593, %v493
      %v606 = vsel %vm600, %v594, %v495
      %v608 = vsel %vm600, %v595, %v497
      %v610 = vsel %vm600, %v596, %v499
      %v612 = vsel %vm600, %v597, %v501
      %v614 = vsel %vm600, %v598, %v503
      %v616 = vsel %vm600, %v599, %v505
      %v633 = vunpack.c.l.b16 %v559
      %v634 = vunpack.c.l.b16 %v602
      %v635 = vunpack.c.l.b16 %v561
      %v636 = vunpack.c.l.b16 %v604
      %v637 = vunpack.c.l.b16 %v563
      %v638 = vunpack.c.l.b16 %v606
      %v639 = vunpack.c.l.b16 %v565
      %v640 = vunpack.c.l.b16 %v608
      %v641 = vunpack.c.l.b16 %v567
      %v642 = vunpack.c.l.b16 %v610
      %v643 = vunpack.c.l.b16 %v569
      %v644 = vunpack.c.l.b16 %v612
      %v645 = vunpack.c.l.b16 %v571
      %v646 = vunpack.c.l.b16 %v614
      %v647 = vunpack.c.l.b16 %v573
      %v648 = vunpack.c.l.b16 %v616
      %v649 = vld [vmem:[%s1] sm:$0xf]
      %v650 = vld [vmem:[%s1 + $0x4] sm:$0xf]
      %v651 = vld [vmem:[%s1 + $0x8] sm:$0xf]
      %v652 = vld [vmem:[%s1 + $0xc] sm:$0xf]
      %v653 = vld [vmem:[%s1 + $0x10] sm:$0xf]
      %v654 = vld [vmem:[%s1 + $0x14] sm:$0xf]
      %v655 = vld [vmem:[%s1 + $0x18] sm:$0xf]
      %v656 = vld [vmem:[%s1 + $0x1c] sm:$0xf]
      %v657 = vld [vmem:[%s1 + $0x20] sm:$0xf]
      %v658 = vld [vmem:[%s1 + $0x24] sm:$0xf]
      %v659 = vld [vmem:[%s1 + $0x28] sm:$0xf]
      %v660 = vld [vmem:[%s1 + $0x2c] sm:$0xf]
      %v661 = vld [vmem:[%s1 + $0x30] sm:$0xf]
      %v662 = vld [vmem:[%s1 + $0x34] sm:$0xf]
      %v663 = vld [vmem:[%s1 + $0x38] sm:$0xf]
      %v664 = vld [vmem:[%s1 + $0x3c] sm:$0xf]
      %v665 = vld [vmem:[%s1 + $0x40] sm:$0xf]
      %v666 = vld [vmem:[%s1 + $0x44] sm:$0xf]
      %v667 = vld [vmem:[%s1 + $0x48] sm:$0xf]
      %v668 = vld [vmem:[%s1 + $0x4c] sm:$0xf]
      %v669 = vld [vmem:[%s1 + $0x50] sm:$0xf]
      %v670 = vld [vmem:[%s1 + $0x54] sm:$0xf]
      %v671 = vld [vmem:[%s1 + $0x58] sm:$0xf]
      %v672 = vld [vmem:[%s1 + $0x5c] sm:$0xf]
      %v673 = vld [vmem:[%s1 + $0x60] sm:$0xf]
      %v674 = vld [vmem:[%s1 + $0x64] sm:$0xf]
      %v675 = vld [vmem:[%s1 + $0x68] sm:$0xf]
      %v676 = vpack.c.b16 %v635, %v633
      %v677 = vpack.c.b16 %v636, %v634
      %v678 = vpack.c.b16 %v639, %v637
      %v679 = vpack.c.b16 %v640, %v638
      %v680 = vpack.c.b16 %v643, %v641
      %v681 = vpack.c.b16 %v644, %v642
      %v682 = vpack.c.b16 %v647, %v645
      %v683 = vpack.c.b16 %v648, %v646
      %v715 = vunpack.c.l.b16 %v649
      %v716 = vunpack.c.l.b16 %v650
      %v717 = vunpack.c.l.b16 %v651
      %v718 = vunpack.c.l.b16 %v652
      %v719 = vunpack.c.l.b16 %v653
      %v720 = vunpack.c.l.b16 %v654
      %v721 = vunpack.c.l.b16 %v655
      %v722 = vunpack.c.l.b16 %v656
      %v723 = vunpack.c.l.b16 %v657
      %v724 = vunpack.c.l.b16 %v658
      %v725 = vunpack.c.l.b16 %v659
      %v726 = vunpack.c.l.b16 %v660
      %v727 = vunpack.c.l.b16 %v661
      %v728 = vunpack.c.l.b16 %v662
      %v729 = vunpack.c.l.b16 %v663
      %v730 = vunpack.c.l.b16 %v664
      %v731 = vunpack.c.l.b16 %v665
      %v732 = vunpack.c.l.b16 %v666
      %v733 = vunpack.c.l.b16 %v667
      %v734 = vunpack.c.l.b16 %v668
      %v735 = vunpack.c.l.b16 %v669
      %v736 = vunpack.c.l.b16 %v670
      %v737 = vunpack.c.l.b16 %v671
      %v738 = vunpack.c.l.b16 %v672
      %v739 = vunpack.c.l.b16 %v673
      %v740 = vunpack.c.l.b16 %v674
      %v741 = vunpack.c.l.b16 %v675
      %v742 = vpack.c.b16 %v716, %v715
      %v743 = vpack.c.b16 %v718, %v717
      %v744 = vpack.c.b16 %v720, %v719
      %v745 = vpack.c.b16 %v722, %v721
      %v746 = vpack.c.b16 %v724, %v723
      %v747 = vpack.c.b16 %v726, %v725
      %v748 = vpack.c.b16 %v728, %v727
      %v749 = vpack.c.b16 %v730, %v729
      %v750 = vpack.c.b16 %v732, %v731
      %v751 = vpack.c.b16 %v734, %v733
      %v752 = vpack.c.b16 %v736, %v735
      %v753 = vpack.c.b16 %v738, %v737
      %v754 = vpack.c.b16 %v740, %v739
      %v755 = vpack.c.b16 %v741, %v741
      %vm769 = vcmask 719872
      %v771 = vsel %vm769, %v677, 0
      %v774 = vsel %vm769, %v679, 0
      %v777 = vsel %vm769, %v681, 0
      %v780 = vsel %vm769, %v683, 0
      %vm782 = vcmask 1043456
      %v784 = vsel %vm782, %v755, 0
      %786 = vmatpush.bf16.msra.mxu0 %v749
      %787 = vmatpush.bf16.msra.mxu0 %v748
      %788 = vmatpush.bf16.msra.mxu0 %v747
      %789 = vmatpush.bf16.msra.mxu0 %v746
      %790 = vmatpush.bf16.msra.mxu0 %v745
      %791 = vmatpush.bf16.msra.mxu0 %v744
      %792 = vmatpush.bf16.msra.mxu0 %v743
      %793 = vmatpush.bf16.msra.mxu0 %v742
      %794 = vmatmul.bf16.gmra.mxu0 %v676
      %v795 = vpop.f32.mrf.mxu0
      %v796 = vadd.f32 0.0, %v795
      %v797 = vpop.f32.mrf.mxu0
      %v798 = vadd.f32 0.0, %v797
      %799 = vmatmul.bf16.gmra.mxu0 %v678
      %v800 = vpop.f32.mrf.mxu0
      %v801 = vadd.f32 0.0, %v800
      %v802 = vpop.f32.mrf.mxu0
      %v803 = vadd.f32 0.0, %v802
      %804 = vmatmul.bf16.gmra.mxu0 %v680
      %v805 = vpop.f32.mrf.mxu0
      %v806 = vadd.f32 0.0, %v805
      %v807 = vpop.f32.mrf.mxu0
      %v808 = vadd.f32 0.0, %v807
      %809 = vmatmul.bf16.gmra.mxu0 %v682
      %v810 = vpop.f32.mrf.mxu0
      %v811 = vadd.f32 0.0, %v810
      %v812 = vpop.f32.mrf.mxu0
      %v813 = vadd.f32 0.0, %v812
      %814 = vdwg.mxu0
      %815 = vmatpush.bf16.msra.mxu0 0
      %816 = vmatpush.bf16.msra.mxu0 0
      %817 = vmatpush.bf16.msra.mxu0 %v784
      %818 = vmatpush.bf16.msra.mxu0 %v754
      %819 = vmatpush.bf16.msra.mxu0 %v753
      %820 = vmatpush.bf16.msra.mxu0 %v752
      %821 = vmatpush.bf16.msra.mxu0 %v751
      %822 = vmatpush.bf16.msra.mxu0 %v750
      %823 = vmatmul.bf16.gmra.mxu0 %v771
      %v824 = vpop.f32.mrf.mxu0
      %v825 = vadd.f32 %v796, %v824
      %v826 = vpop.f32.mrf.mxu0
      %v827 = vadd.f32 %v798, %v826
      %828 = vmatmul.bf16.gmra.mxu0 %v774
      %v829 = vpop.f32.mrf.mxu0
      %v830 = vadd.f32 %v801, %v829
      %v831 = vpop.f32.mrf.mxu0
      %v832 = vadd.f32 %v803, %v831
      %833 = vmatmul.bf16.gmra.mxu0 %v777
      %v834 = vpop.f32.mrf.mxu0
      %v835 = vadd.f32 %v806, %v834
      %v836 = vpop.f32.mrf.mxu0
      %v837 = vadd.f32 %v808, %v836
      %838 = vmatmul.bf16.gmra.mxu0 %v780
      %v839 = vpop.f32.mrf.mxu0
      %v840 = vadd.f32 %v811, %v839
      %v841 = vpop.f32.mrf.mxu0
      %v842 = vadd.f32 %v813, %v841
      %843 = vdwg.mxu0
      %v844 = vld [vmem:[%s2] sm:$0x1]
      %v845 = vperm.slane %v844, 0
      %v846 = vmul.f32 %v825, %v845
      %v847 = vmul.f32 %v827, %v845
      %v848 = vmul.f32 %v830, %v845
      %v849 = vmul.f32 %v832, %v845
      %v850 = vmul.f32 %v835, %v845
      %v851 = vmul.f32 %v837, %v845
      %v852 = vmul.f32 %v840, %v845
      %v853 = vmul.f32 %v842, %v845
      %v854 = vld [vmem:[%s2 + $0x1] sm:$0x1]
      %v855 = vperm.slane %v854, 0
      %v856 = vadd.f32 %v846, %v855
      %v857 = vadd.f32 %v847, %v855
      %v858 = vadd.f32 %v848, %v855
      %v859 = vadd.f32 %v849, %v855
      %v860 = vadd.f32 %v850, %v855
      %v861 = vadd.f32 %v851, %v855
      %v862 = vadd.f32 %v852, %v855
      %v863 = vadd.f32 %v853, %v855
      %v864 = vmax.f32 %v856, 0.0
      %v865 = vmax.f32 %v857, 0.0
      %v866 = vmax.f32 %v858, 0.0
      %v867 = vmax.f32 %v859, 0.0
      %v868 = vmax.f32 %v860, 0.0
      %v869 = vmax.f32 %v861, 0.0
      %v870 = vmax.f32 %v862, 0.0
      %v871 = vmax.f32 %v863, 0.0
      %v872 = vpack.c.bf16 %v864, %v864
      %v873 = vpack.c.bf16 %v865, %v865
      %v874 = vpack.c.bf16 %v866, %v866
      %v875 = vpack.c.bf16 %v867, %v867
      %v876 = vpack.c.bf16 %v868, %v868
      %v877 = vpack.c.bf16 %v869, %v869
      %v878 = vpack.c.bf16 %v870, %v870
      %v879 = vpack.c.bf16 %v871, %v871
      %vm880 = vcmask 191488
      %881 = vst.msk [vmem:[%s170] sm:$0xf] %vm880, %v872
      %882 = vst.msk [vmem:[%s170 + $0x4] sm:$0xf] %vm880, %v873
      %883 = vst.msk [vmem:[%s170 + $0x8] sm:$0xf] %vm880, %v874
      %884 = vst.msk [vmem:[%s170 + $0xc] sm:$0xf] %vm880, %v875
      %885 = vst.msk [vmem:[%s170 + $0x10] sm:$0xf] %vm880, %v876
      %886 = vst.msk [vmem:[%s170 + $0x14] sm:$0xf] %vm880, %v877
      %887 = vst.msk [vmem:[%s170 + $0x18] sm:$0xf] %vm880, %v878
      %888 = vst.msk [vmem:[%s170 + $0x1c] sm:$0xf] %vm880, %v879
      %p889 = scmp.lt.s32.totalorder %s14, 1
      %s890 = scalar_select %p889, %s14, 1
      %s891 = smul.addr %s890, 8
      %s892 = smul.addr %s891, 4
      %s893 = scalar_lea.vmem %s3, %s892
      // Predicated region
      $region33: #{_lambda_.13} parent=31 // pred_check
        %p894 = pneg %p100
      $region34: #{_lambda_.13} parent=31 // pred_check_branch
        %896 = sbr.rel (%p894) target = $region36
      $region35: #{_lambda_.13} parent=31 // pred_region
        _
      $region36: #{_lambda_.13} parent=31 // pred_fallthru
        _
    $region32: #{_lambda_.13} parent=5 // pred_fallthru
      _
    %p897 = scmp.le.s32.totalorder 2, %s9
    // Predicated region
    $region37: #{_lambda_.13} parent=5 // pred_check
      %p898 = pneg %p897
    $region38: #{_lambda_.13} parent=5 // pred_check_branch
      %900 = sbr.rel (%p898) target = $region40
    $region39: #{_lambda_.13} parent=5 // pred_region
      %s901 = ssub.s32 %s9, 2
      // Predicated region
      $region41: #{_lambda_.13} parent=39 // pred_check
        %p902 = pneg %p106
      $region42: #{_lambda_.13} parent=39 // pred_check_branch
        %904 = sbr.rel (%p902) target = $region44
      $region43: #{_lambda_.13} parent=39 // pred_region
        %p905 = scmp.lt.s32.totalorder %s15, 1
        %s906 = scalar_select %p905, %s15, 1
        %s907 = smul.addr %s906, 8
        %s908 = smul.addr %s907, 4
        %s909 = scalar_lea.vmem %s3, %s908
      $region44: #{_lambda_.13} parent=39 // pred_fallthru
        _
    $region40: #{_lambda_.13} parent=5 // pred_fallthru
      _
  $region6: #{_lambda_.13} parent=0 // loop_footer
    %s13 = sadd.s32 1, %s9
  $region7: #{_lambda_.13} parent=0 // loop_footer_branch
    %8 = sbr.rel target = $region3
  $region8: #{_lambda_.13} parent=0 // loop_exit
    _

</llo_original>
